<compile_context>
chip_gen: v7x
topology: tpu7x:2x2x1
jax: 0.10.0
libtpu: 0.0.40
codegen_flags: <defaults>
</compile_context>

<pallas_src>
import math
import jax
import jax.numpy as jnp
from jax.experimental import pallas as pl
from jax.experimental.pallas import tpu as pltpu

D_MODEL = 512
D_HIDDEN = 2048
HIDDEN_CHUNK = 512          # hidden-dim chunk width inside the kernel body


def _round_up(a, b):
    return (a + b - 1) // b * b


def _cdiv(a, b):
    return -(-a // b)


# ---------------------------------------------------------------------------
# Kernel body: one [tm, 512] row tile of x against resident bf16 weights.
# ---------------------------------------------------------------------------
def _ffn_kernel(x_ref, w1_ref, b1_ref, w2_ref, b2_ref, o_ref):
    x_bf = x_ref[...]                                   # bf16, lane-dense [tm, 512]
    tm = x_ref.shape[0]
    acc = jnp.zeros((tm, D_MODEL), jnp.float32)
    # Chunk the hidden dim: mm1 chunk -> bias+ReLU (f32, VPU) -> bf16 -> mm2 partial.
    for c in range(D_HIDDEN // HIDDEN_CHUNK):
        lo = c * HIDDEN_CHUNK
        h = jnp.dot(x_bf, w1_ref[:, pl.ds(lo, HIDDEN_CHUNK)],
                    preferred_element_type=jnp.float32)
        h = jnp.maximum(h + b1_ref[:, pl.ds(lo, HIDDEN_CHUNK)], 0.0)
        acc = acc + jnp.dot(h.astype(jnp.bfloat16),
                            w2_ref[pl.ds(lo, HIDDEN_CHUNK), :],
                            preferred_element_type=jnp.float32)
    o_ref[...] = (acc + b2_ref[...]).astype(o_ref.dtype)


# ---------------------------------------------------------------------------
# Tiling / VMEM heuristics
# ---------------------------------------------------------------------------
def _vmem_capacity_bytes():
    try:
        info = pltpu.get_tpu_info()
        cap = int(getattr(info, "vmem_capacity_bytes"))
        if cap > 0:
            return cap
    except Exception:
        pass
    return 64 << 20          # conservative fallback: v7x per-TC VMEM


def _vmem_footprint(tm, out_itemsize=4):
    """Worst-case steady-state VMEM bytes for a row tile of tm."""
    weights = 2 * (2 * D_MODEL * D_HIDDEN * 2)   # W1+W2 bf16, allow 2x (DB fallback)
    biases = (D_HIDDEN + D_MODEL) * 4 * 2
    x_tiles = 2 * tm * D_MODEL * 2               # bf16 x tile, double-buffered
    o_tiles = 2 * tm * D_MODEL * out_itemsize    # out tile, double-buffered
    h_tmp = tm * HIDDEN_CHUNK * (4 + 2)          # f32 chunk + bf16 copy
    acc = tm * D_MODEL * 4
    return weights + biases + x_tiles + o_tiles + h_tmp + acc + (4 << 20)


def _choose_tm(M, vmem_cap, out_itemsize=4):
    m128 = _round_up(max(M, 1), 128)
    budget = int(0.70 * vmem_cap)
    # Largest 128-aligned tile (<=1024) whose footprint fits the budget.
    tm_cap = 128
    for cand in (1024, 768, 512, 384, 256, 128):
        if _vmem_footprint(cand, out_itemsize) <= budget:
            tm_cap = cand
            break
    if m128 <= 128:
        return 128                                   # tiny M: single step is fine
    nblk = m128 // 128
    cap_blk = tm_cap // 128
    steps = max(2, _cdiv(nblk, cap_blk))
    if steps % 2:
        steps += 1                                   # even steps -> balanced v7x 2-TC
    while True:
        tm_blk = _cdiv(nblk, steps)
        grid = _cdiv(nblk, tm_blk)
        if grid % 2 == 0 or grid == 1 or steps > nblk:
            break
        steps += 2
    return tm_blk * 128


def _resident_spec(shape):
    """Block whose index_map is constant across the grid: single-buffer it."""
    try:
        return pl.BlockSpec(shape, lambda i: (0, 0), pipeline_mode=pl.Buffered(1))
    except TypeError:  # older jax without pipeline_mode on BlockSpec
        return pl.BlockSpec(shape, lambda i: (0, 0))


# ---------------------------------------------------------------------------
# Wrapper
# ---------------------------------------------------------------------------
def feed_forward(x, w1, b1, w2, b2, *, tm=None, out_dtype=None):
    """x: (M, 512); w1: (512, 2048); b1: (2048,); w2: (2048, 512); b2: (512,)."""
    M, D = x.shape
    assert D == D_MODEL
    out_dtype = jnp.dtype(out_dtype if out_dtype is not None else x.dtype)
    out_itemsize = out_dtype.itemsize

    vmem_cap = _vmem_capacity_bytes()
    if tm is None:
        tm = _choose_tm(M, vmem_cap, out_itemsize)
    assert tm % 8 == 0, "row tile must be sublane-aligned (multiple of 8)"

    m_pad = _round_up(M, tm)

    # Stream activations in bf16: halves the only steady-state per-step DMA.
    x_bf = x.astype(jnp.bfloat16)
    x_p = x_bf if m_pad == M else jnp.pad(x_bf, ((0, m_pad - M), (0, 0)))

    # bf16 weights for the MXU; biases stay f32 for the epilogue.
    w1_bf = w1.astype(jnp.bfloat16)
    w2_bf = w2.astype(jnp.bfloat16)
    b1_2d = b1.reshape(1, D_HIDDEN).astype(jnp.float32)
    b2_2d = b2.reshape(1, D_MODEL).astype(jnp.float32)

    grid = (m_pad // tm,)

    vmem_limit_bytes = min(int(0.75 * vmem_cap),
                           _vmem_footprint(tm, out_itemsize) + (16 << 20))

    cost = pl.CostEstimate(
        flops=4 * m_pad * D_MODEL * D_HIDDEN,              # two matmuls, 2*M*K*N each
        transcendentals=0,
        bytes_accessed=(2 * D_MODEL * D_HIDDEN) * 2        # bf16 weights read once
                       + (D_HIDDEN + D_MODEL) * 4          # biases
                       + m_pad * D_MODEL * 2               # x streamed in bf16
                       + m_pad * D_MODEL * out_itemsize,   # out written
    )

    out = pl.pallas_call(
        _ffn_kernel,
        out_shape=jax.ShapeDtypeStruct((m_pad, D_MODEL), out_dtype),
        grid_spec=pltpu.PrefetchScalarGridSpec(
            num_scalar_prefetch=0,
            grid=grid,
            in_specs=[
                pl.BlockSpec((tm, D_MODEL), lambda i: (i, 0)),  # x tile (streamed, bf16)
                _resident_spec((D_MODEL, D_HIDDEN)),            # W1 (resident, bf16)
                _resident_spec((1, D_HIDDEN)),                  # b1 (f32)
                _resident_spec((D_HIDDEN, D_MODEL)),            # W2 (resident, bf16)
                _resident_spec((1, D_MODEL)),                   # b2 (f32)
            ],
            out_specs=pl.BlockSpec((tm, D_MODEL), lambda i: (i, 0)),
        ),
        compiler_params=pltpu.CompilerParams(
            dimension_semantics=("parallel",),
            vmem_limit_bytes=vmem_limit_bytes,
        ),
        cost_estimate=cost,
    )(x_p, w1_bf, b1_2d, w2_bf, b2_2d)

    return out[:M] if m_pad != M else out


# ---------------------------------------------------------------------------
# Deterministic PyTorch-equivalent initializers (for the demo)
# ---------------------------------------------------------------------------
def _xavier_uniform(key, shape):
    # shape = (out_features, in_features) to match PyTorch nn.Linear.weight.
    fan_out, fan_in = shape
    bound = math.sqrt(6.0 / (fan_in + fan_out))
    return jax.random.uniform(key, shape, jnp.float32, -bound, bound)


def _linear_bias(key, fan_in, out_features):
    # PyTorch nn.Linear default bias init: U(-1/sqrt(fan_in), 1/sqrt(fan_in))
    bound = 1.0 / math.sqrt(fan_in)
    return jax.random.uniform(key, (out_features,), jnp.float32, -bound, bound)


if __name__ == "__main__":
    key = jax.random.PRNGKey(0)
    k_x, k_w1, k_b1, k_w2, k_b2 = jax.random.split(key, 5)

    batch, seq = 2, 8  # small shapes; feature dims fixed by the module (512 / 2048)
    x = jax.random.normal(k_x, (batch, seq, D_MODEL), jnp.float32)

    # Parameters (deterministic, PyTorch-equivalent inits)
    w1_torch = _xavier_uniform(k_w1, (D_HIDDEN, D_MODEL))   # linear1.weight (2048, 512)
    b1 = _linear_bias(k_b1, D_MODEL, D_HIDDEN)               # linear1.bias  (2048,)
    w2_torch = _xavier_uniform(k_w2, (D_MODEL, D_HIDDEN))   # linear2.weight (512, 2048)
    b2 = _linear_bias(k_b2, D_HIDDEN, D_MODEL)               # linear2.bias  (512,)

    # Pre-transpose for the x @ W layout used by the kernel.
    w1 = w1_torch.T  # (512, 2048)
    w2 = w2_torch.T  # (2048, 512)

    # Flatten leading dims (PyTorch Linear acts on the last dim).
    x2d = x.reshape(-1, D_MODEL)

    out2d = feed_forward(x2d, w1, b1, w2, b2)
    out = out2d.reshape(batch, seq, D_MODEL)
    jax.block_until_ready(out)
    assert out.shape == (batch, seq, D_MODEL)
    assert out.dtype == x.dtype

    # Reference matching the kernel's numerics (bf16 MXU operands, f32 accumulate).
    x_bf = x2d.astype(jnp.bfloat16)
    w1_bf = w1.astype(jnp.bfloat16)
    w2_bf = w2.astype(jnp.bfloat16)
    h_ref = jnp.maximum(
        jnp.dot(x_bf, w1_bf, preferred_element_type=jnp.float32) + b1, 0.0)
    ref2d = jnp.dot(h_ref.astype(jnp.bfloat16), w2_bf,
                    preferred_element_type=jnp.float32) + b2
    assert jnp.allclose(out2d, ref2d, atol=2e-3, rtol=2e-3), "mismatch vs bf16 reference"

    # Loose sanity check against the full-f32 reference (bf16 operand rounding only).
    # TODO(synk): if full f32 matmul accuracy is required, switch to a 3-pass
    # bf16-split matmul; bf16 operands are intentional here for MXU throughput.
    ref_f32 = jnp.maximum(x2d @ w1 + b1, 0.0) @ w2 + b2
    assert jnp.allclose(out2d, ref_f32, atol=5e-2, rtol=5e-2), "mismatch vs f32 reference"

    print("KERNEL_OK")
</pallas_src>

<mosaic_0001>
module attributes {stable_mosaic.version = 11 : i64} {
  func.func @_ffn_kernel(%arg0: i32, %arg1: memref<128x512xbf16, #tpu.memory_space<vmem>>, %arg2: memref<512x2048xbf16, #tpu.memory_space<vmem>>, %arg3: memref<1x2048xf32, #tpu.memory_space<vmem>>, %arg4: memref<2048x512xbf16, #tpu.memory_space<vmem>>, %arg5: memref<1x512xf32, #tpu.memory_space<vmem>>, %arg6: memref<128x512xf32, #tpu.memory_space<vmem>>) attributes {dimension_semantics = [#tpu.dimension_semantics<parallel>], iteration_bounds = array<i64: 1>, scalar_prefetch = 0 : i64, scratch_operands = 0 : i64, tpu.core_type = #tpu.core_type<tc>, window_params = [{transform_indices = @transform_0, window_bounds = array<i64: 128, 512>}, {pipeline_mode = #tpu.pipeline_mode<synchronous>, transform_indices = @transform_1, window_bounds = array<i64: 512, 2048>}, {pipeline_mode = #tpu.pipeline_mode<synchronous>, transform_indices = @transform_2, window_bounds = array<i64: 1, 2048>}, {pipeline_mode = #tpu.pipeline_mode<synchronous>, transform_indices = @transform_3, window_bounds = array<i64: 2048, 512>}, {pipeline_mode = #tpu.pipeline_mode<synchronous>, transform_indices = @transform_4, window_bounds = array<i64: 1, 512>}, {transform_indices = @transform_5, window_bounds = array<i64: 128, 512>}]} {
    %c0 = arith.constant 0 : index
    %c0_0 = arith.constant 0 : index
    %0 = vector.load %arg1[%c0, %c0_0] : memref<128x512xbf16, #tpu.memory_space<vmem>>, vector<128x512xbf16>
    %cst = arith.constant 0.000000e+00 : f32
    %1 = vector.broadcast %cst : f32 to vector<128x512xf32>
    %c0_1 = arith.constant 0 : index
    %c0_2 = arith.constant 0 : index
    %2 = vector.load %arg2[%c0_1, %c0_2] : memref<512x2048xbf16, #tpu.memory_space<vmem>>, vector<512x512xbf16>
    %cst_3 = arith.constant dense<0.000000e+00> : vector<128x512xf32>
    %3 = tpu.matmul %0, %2, %cst_3 {dimension_numbers = #tpu.dot_dimension_numbers<[1], [0], [0], [1], [0, 0, 1, 1], [], []>} : vector<128x512xbf16>, vector<512x512xbf16>, vector<128x512xf32> -> vector<128x512xf32>
    %c0_4 = arith.constant 0 : index
    %c0_5 = arith.constant 0 : index
    %4 = vector.load %arg3[%c0_4, %c0_5] : memref<1x2048xf32, #tpu.memory_space<vmem>>, vector<1x512xf32>
    %5 = vector.broadcast %4 : vector<1x512xf32> to vector<128x512xf32>
    %6 = arith.addf %3, %5 : vector<128x512xf32>
    %cst_6 = arith.constant 0.000000e+00 : f32
    %7 = vector.broadcast %cst_6 : f32 to vector<128x512xf32>
    %8 = arith.maximumf %6, %7 : vector<128x512xf32>
    %9 = arith.truncf %8 : vector<128x512xf32> to vector<128x512xbf16>
    %c0_7 = arith.constant 0 : index
    %c0_8 = arith.constant 0 : index
    %10 = vector.load %arg4[%c0_7, %c0_8] : memref<2048x512xbf16, #tpu.memory_space<vmem>>, vector<512x512xbf16>
    %cst_9 = arith.constant dense<0.000000e+00> : vector<128x512xf32>
    %11 = tpu.matmul %9, %10, %cst_9 {dimension_numbers = #tpu.dot_dimension_numbers<[1], [0], [0], [1], [0, 0, 1, 1], [], []>} : vector<128x512xbf16>, vector<512x512xbf16>, vector<128x512xf32> -> vector<128x512xf32>
    %12 = arith.addf %1, %11 : vector<128x512xf32>
    %c0_10 = arith.constant 0 : index
    %c512 = arith.constant 512 : index
    %13 = vector.load %arg2[%c0_10, %c512] : memref<512x2048xbf16, #tpu.memory_space<vmem>>, vector<512x512xbf16>
    %cst_11 = arith.constant dense<0.000000e+00> : vector<128x512xf32>
    %14 = tpu.matmul %0, %13, %cst_11 {dimension_numbers = #tpu.dot_dimension_numbers<[1], [0], [0], [1], [0, 0, 1, 1], [], []>} : vector<128x512xbf16>, vector<512x512xbf16>, vector<128x512xf32> -> vector<128x512xf32>
    %c0_12 = arith.constant 0 : index
    %c512_13 = arith.constant 512 : index
    %15 = vector.load %arg3[%c0_12, %c512_13] : memref<1x2048xf32, #tpu.memory_space<vmem>>, vector<1x512xf32>
    %16 = vector.broadcast %15 : vector<1x512xf32> to vector<128x512xf32>
    %17 = arith.addf %14, %16 : vector<128x512xf32>
    %cst_14 = arith.constant 0.000000e+00 : f32
    %18 = vector.broadcast %cst_14 : f32 to vector<128x512xf32>
    %19 = arith.maximumf %17, %18 : vector<128x512xf32>
    %20 = arith.truncf %19 : vector<128x512xf32> to vector<128x512xbf16>
    %c512_15 = arith.constant 512 : index
    %c0_16 = arith.constant 0 : index
    %21 = vector.load %arg4[%c512_15, %c0_16] : memref<2048x512xbf16, #tpu.memory_space<vmem>>, vector<512x512xbf16>
    %cst_17 = arith.constant dense<0.000000e+00> : vector<128x512xf32>
    %22 = tpu.matmul %20, %21, %cst_17 {dimension_numbers = #tpu.dot_dimension_numbers<[1], [0], [0], [1], [0, 0, 1, 1], [], []>} : vector<128x512xbf16>, vector<512x512xbf16>, vector<128x512xf32> -> vector<128x512xf32>
    %23 = arith.addf %12, %22 : vector<128x512xf32>
    %c0_18 = arith.constant 0 : index
    %c1024 = arith.constant 1024 : index
    %24 = vector.load %arg2[%c0_18, %c1024] : memref<512x2048xbf16, #tpu.memory_space<vmem>>, vector<512x512xbf16>
    %cst_19 = arith.constant dense<0.000000e+00> : vector<128x512xf32>
    %25 = tpu.matmul %0, %24, %cst_19 {dimension_numbers = #tpu.dot_dimension_numbers<[1], [0], [0], [1], [0, 0, 1, 1], [], []>} : vector<128x512xbf16>, vector<512x512xbf16>, vector<128x512xf32> -> vector<128x512xf32>
    %c0_20 = arith.constant 0 : index
    %c1024_21 = arith.constant 1024 : index
    %26 = vector.load %arg3[%c0_20, %c1024_21] : memref<1x2048xf32, #tpu.memory_space<vmem>>, vector<1x512xf32>
    %27 = vector.broadcast %26 : vector<1x512xf32> to vector<128x512xf32>
    %28 = arith.addf %25, %27 : vector<128x512xf32>
    %cst_22 = arith.constant 0.000000e+00 : f32
    %29 = vector.broadcast %cst_22 : f32 to vector<128x512xf32>
    %30 = arith.maximumf %28, %29 : vector<128x512xf32>
    %31 = arith.truncf %30 : vector<128x512xf32> to vector<128x512xbf16>
    %c1024_23 = arith.constant 1024 : index
    %c0_24 = arith.constant 0 : index
    %32 = vector.load %arg4[%c1024_23, %c0_24] : memref<2048x512xbf16, #tpu.memory_space<vmem>>, vector<512x512xbf16>
    %cst_25 = arith.constant dense<0.000000e+00> : vector<128x512xf32>
    %33 = tpu.matmul %31, %32, %cst_25 {dimension_numbers = #tpu.dot_dimension_numbers<[1], [0], [0], [1], [0, 0, 1, 1], [], []>} : vector<128x512xbf16>, vector<512x512xbf16>, vector<128x512xf32> -> vector<128x512xf32>
    %34 = arith.addf %23, %33 : vector<128x512xf32>
    %c0_26 = arith.constant 0 : index
    %c1536 = arith.constant 1536 : index
    %35 = vector.load %arg2[%c0_26, %c1536] : memref<512x2048xbf16, #tpu.memory_space<vmem>>, vector<512x512xbf16>
    %cst_27 = arith.constant dense<0.000000e+00> : vector<128x512xf32>
    %36 = tpu.matmul %0, %35, %cst_27 {dimension_numbers = #tpu.dot_dimension_numbers<[1], [0], [0], [1], [0, 0, 1, 1], [], []>} : vector<128x512xbf16>, vector<512x512xbf16>, vector<128x512xf32> -> vector<128x512xf32>
    %c0_28 = arith.constant 0 : index
    %c1536_29 = arith.constant 1536 : index
    %37 = vector.load %arg3[%c0_28, %c1536_29] : memref<1x2048xf32, #tpu.memory_space<vmem>>, vector<1x512xf32>
    %38 = vector.broadcast %37 : vector<1x512xf32> to vector<128x512xf32>
    %39 = arith.addf %36, %38 : vector<128x512xf32>
    %cst_30 = arith.constant 0.000000e+00 : f32
    %40 = vector.broadcast %cst_30 : f32 to vector<128x512xf32>
    %41 = arith.maximumf %39, %40 : vector<128x512xf32>
    %42 = arith.truncf %41 : vector<128x512xf32> to vector<128x512xbf16>
    %c1536_31 = arith.constant 1536 : index
    %c0_32 = arith.constant 0 : index
    %43 = vector.load %arg4[%c1536_31, %c0_32] : memref<2048x512xbf16, #tpu.memory_space<vmem>>, vector<512x512xbf16>
    %cst_33 = arith.constant dense<0.000000e+00> : vector<128x512xf32>
    %44 = tpu.matmul %42, %43, %cst_33 {dimension_numbers = #tpu.dot_dimension_numbers<[1], [0], [0], [1], [0, 0, 1, 1], [], []>} : vector<128x512xbf16>, vector<512x512xbf16>, vector<128x512xf32> -> vector<128x512xf32>
    %45 = arith.addf %34, %44 : vector<128x512xf32>
    %c0_34 = arith.constant 0 : index
    %c0_35 = arith.constant 0 : index
    %46 = vector.load %arg5[%c0_34, %c0_35] : memref<1x512xf32, #tpu.memory_space<vmem>>, vector<1x512xf32>
    %47 = vector.broadcast %46 : vector<1x512xf32> to vector<128x512xf32>
    %48 = arith.addf %45, %47 : vector<128x512xf32>
    %c0_36 = arith.constant 0 : index
    %c0_37 = arith.constant 0 : index
    %49 = vector.load %arg6[%c0_36, %c0_37] : memref<128x512xf32, #tpu.memory_space<vmem>>, vector<128x512xf32>
    tpu.vector_store %arg6[%c0_36, %c0_37], %48 {strides = array<i32>} : memref<128x512xf32, #tpu.memory_space<vmem>>, vector<128x512xf32>,
    return
  }
  func.func @transform_0(%arg0: i32) -> (i32, i32) {
    %c0_i32 = arith.constant 0 : i32
    %c0_i32_0 = arith.constant 0 : i32
    return %arg0, %c0_i32 : i32, i32
  }
  func.func @transform_1(%arg0: i32) -> (i32, i32) {
    %c0_i32 = arith.constant 0 : i32
    %c0_i32_0 = arith.constant 0 : i32
    %c0_i32_1 = arith.constant 0 : i32
    return %c0_i32, %c0_i32_0 : i32, i32
  }
  func.func @transform_2(%arg0: i32) -> (i32, i32) {
    %c0_i32 = arith.constant 0 : i32
    %c0_i32_0 = arith.constant 0 : i32
    %c0_i32_1 = arith.constant 0 : i32
    return %c0_i32, %c0_i32_0 : i32, i32
  }
  func.func @transform_3(%arg0: i32) -> (i32, i32) {
    %c0_i32 = arith.constant 0 : i32
    %c0_i32_0 = arith.constant 0 : i32
    %c0_i32_1 = arith.constant 0 : i32
    return %c0_i32, %c0_i32_0 : i32, i32
  }
  func.func @transform_4(%arg0: i32) -> (i32, i32) {
    %c0_i32 = arith.constant 0 : i32
    %c0_i32_0 = arith.constant 0 : i32
    %c0_i32_1 = arith.constant 0 : i32
    return %c0_i32, %c0_i32_0 : i32, i32
  }
  func.func @transform_5(%arg0: i32) -> (i32, i32) {
    %c0_i32 = arith.constant 0 : i32
    %c0_i32_0 = arith.constant 0 : i32
    return %arg0, %c0_i32 : i32, i32
  }
}

</mosaic_0001>

<llo_original>
// kernel: tpu_custom_call.1
$region0: #{tpu_custom_call.1}
  #allocation0 [shape = 'u32[]', space=smem, size = 0x4, offset = 0x4, fixed_abs, tag = 'smem constant byte address 0x4 - core index']
  #allocation1 [shape = 'u32[144,128]{1,0:T(1,128)}', space=vmem, size = 0x12000, scoped, tag = 'internal scratch']
  %s0 = inlined_call_operand.hbm [shape: bf16[128,512], index: 0, kind: input, shape index: {}]
  %s1 = inlined_call_operand.hbm [shape: bf16[512,2048], index: 1, kind: input, shape index: {}]
  %s2 = inlined_call_operand.hbm [shape: f32[1,2048], index: 2, kind: input, shape index: {}]
  %s3 = inlined_call_operand.hbm [shape: bf16[2048,512], index: 3, kind: input, shape index: {}]
  %s4 = inlined_call_operand.hbm [shape: f32[1,512], index: 4, kind: input, shape index: {}]
  %s5 = inlined_call_operand.hbm [shape: f32[128,512], index: 5, kind: output, shape index: {}]
  %s6 = sld [smem:[#allocation0]]
  $region50: #{tpu_custom_call.1} parent=0
    _
  %s8 = ssub.s32 1, %s6
  %s9 = scalar_select 0, %s8, %s6
  $region1: #{tpu_custom_call.1} parent=0
    #allocation2 [shape = 'u8[131072]{0}', space=vmem, size = 0x20000, scoped, tag = 'input window, operand 0, single buffered']
    #allocation3 [shape = 's32[1]{0}', space=sflag, size = 0x4, scoped, tag = 'scoped memory for tpu_custom_call.1']
    #allocation4 [shape = 's32[1]{0}', space=sflag, size = 0x4, scoped, tag = 'scoped memory for tpu_custom_call.1']
    #allocation5 [shape = 'u8[2097152]{0}', space=vmem, size = 0x200000, scoped, tag = 'input window, operand 1, single buffered']
    #allocation6 [shape = 's32[1]{0}', space=sflag, size = 0x4, scoped, tag = 'scoped memory for tpu_custom_call.1']
    #allocation7 [shape = 'u8[8192]{0}', space=vmem, size = 0x2000, scoped, tag = 'input window, operand 2, single buffered']
    #allocation8 [shape = 'u8[2097152]{0}', space=vmem, size = 0x200000, scoped, tag = 'input window, operand 3, single buffered']
    #allocation9 [shape = 's32[1]{0}', space=sflag, size = 0x4, scoped, tag = 'scoped memory for tpu_custom_call.1']
    #allocation10 [shape = 'u8[2048]{0}', space=vmem, size = 0x800, scoped, tag = 'input window, operand 4, single buffered']
    #allocation11 [shape = 'u8[262144]{0}', space=vmem, size = 0x40000, scoped, tag = 'output window, operand 0, single buffered']
    %10 = vsyncpa [#allocation3], 0
    %11 = vsyncpa [#allocation6], 0
    %12 = vsyncpa [#allocation9], 0
    %13 = vsyncpa [#allocation4], 0
    // Predicated region
    $region2: #{tpu_custom_call.1} parent=1 // pred_check
      _
    $region3: #{tpu_custom_call.1} parent=1 // pred_check_branch
      %15 = sbr.rel (0) target = $region5
    $region4: #{tpu_custom_call.1} parent=1 // pred_region
      %s17 = ssub.s32 4096, 4096
      %18 = vsyncadd [#allocation3], %s17
      %s19 = sshll.u32 [#allocation2], 4
      %s20 = int_to_ptr.vmem [resolvable:$true] %s19
      %25 = dma.hbm_to_vmem [thread:$0]  %s0, 4096, %s20, [#allocation3], 256, 256, 16
    $region5: #{tpu_custom_call.1} parent=1 // pred_fallthru
      _
    // Predicated region
    $region6: #{tpu_custom_call.1} parent=1 // pred_check
      _
    $region7: #{tpu_custom_call.1} parent=1 // pred_check_branch
      %27 = sbr.rel (0) target = $region9
    $region8: #{tpu_custom_call.1} parent=1 // pred_region
      %s29 = ssub.s32 65536, 65536
      %30 = vsyncadd [#allocation6], %s29
      %s31 = sshll.u32 [#allocation5], 4
      %s32 = int_to_ptr.vmem [resolvable:$true] %s31
      %37 = dma.hbm_to_vmem [thread:$0]  %s1, 65536, %s32, [#allocation6], 1024, 1024, 64
    $region9: #{tpu_custom_call.1} parent=1 // pred_fallthru
      _
    // Predicated region
    $region10: #{tpu_custom_call.1} parent=1 // pred_check
      _
    $region11: #{tpu_custom_call.1} parent=1 // pred_check_branch
      %39 = sbr.rel (0) target = $region13
    $region12: #{tpu_custom_call.1} parent=1 // pred_region
      %s41 = ssub.s32 256, 256
      %42 = vsyncadd [#allocation6], %s41
      %s44 = sshll.u32 [#allocation7], 4
      %s45 = int_to_ptr.vmem [resolvable:$true] %s44
      %47 = dma.hbm_to_vmem [thread:$0]  %s2, 256, %s45, [#allocation6]
    $region13: #{tpu_custom_call.1} parent=1 // pred_fallthru
      _
    // Predicated region
    $region14: #{tpu_custom_call.1} parent=1 // pred_check
      _
    $region15: #{tpu_custom_call.1} parent=1 // pred_check_branch
      %49 = sbr.rel (0) target = $region17
    $region16: #{tpu_custom_call.1} parent=1 // pred_region
      %s51 = ssub.s32 65536, 65536
      %52 = vsyncadd [#allocation9], %s51
      %s53 = sshll.u32 [#allocation8], 4
      %s54 = int_to_ptr.vmem [resolvable:$true] %s53
      %59 = dma.hbm_to_vmem [thread:$0]  %s3, 65536, %s54, [#allocation9], 256, 256, 16
    $region17: #{tpu_custom_call.1} parent=1 // pred_fallthru
      _
    // Predicated region
    $region18: #{tpu_custom_call.1} parent=1 // pred_check
      _
    $region19: #{tpu_custom_call.1} parent=1 // pred_check_branch
      %61 = sbr.rel (0) target = $region21
    $region20: #{tpu_custom_call.1} parent=1 // pred_region
      %s63 = ssub.s32 64, 64
      %64 = vsyncadd [#allocation9], %s63
      %s66 = sshll.u32 [#allocation10], 4
      %s67 = int_to_ptr.vmem [resolvable:$true] %s66
      %69 = dma.hbm_to_vmem [thread:$0]  %s4, 64, %s67, [#allocation9]
    $region21: #{tpu_custom_call.1} parent=1 // pred_fallthru
      _
    // Predicated region
    $region22: #{tpu_custom_call.1} parent=1 // pred_check
      _
    $region23: #{tpu_custom_call.1} parent=1 // pred_check_branch
      %71 = sbr.rel (0) target = $region25
    $region24: #{tpu_custom_call.1} parent=1 // pred_region
      %72 = dma.done [#allocation3], 4096
    $region25: #{tpu_custom_call.1} parent=1 // pred_fallthru
      _
    // Predicated region
    $region26: #{tpu_custom_call.1} parent=1 // pred_check
      _
    $region27: #{tpu_custom_call.1} parent=1 // pred_check_branch
      %74 = sbr.rel (0) target = $region29
    $region28: #{tpu_custom_call.1} parent=1 // pred_region
      %75 = dma.done [#allocation6], 65536
    $region29: #{tpu_custom_call.1} parent=1 // pred_fallthru
      _
    // Predicated region
    $region30: #{tpu_custom_call.1} parent=1 // pred_check
      _
    $region31: #{tpu_custom_call.1} parent=1 // pred_check_branch
      %77 = sbr.rel (0) target = $region33
    $region32: #{tpu_custom_call.1} parent=1 // pred_region
      %78 = dma.done [#allocation6], 256
    $region33: #{tpu_custom_call.1} parent=1 // pred_fallthru
      _
    // Predicated region
    $region34: #{tpu_custom_call.1} parent=1 // pred_check
      _
    $region35: #{tpu_custom_call.1} parent=1 // pred_check_branch
      %80 = sbr.rel (0) target = $region37
    $region36: #{tpu_custom_call.1} parent=1 // pred_region
      %81 = dma.done [#allocation9], 65536
    $region37: #{tpu_custom_call.1} parent=1 // pred_fallthru
      _
    // Predicated region
    $region38: #{tpu_custom_call.1} parent=1 // pred_check
      _
    $region39: #{tpu_custom_call.1} parent=1 // pred_check_branch
      %83 = sbr.rel (0) target = $region41
    $region40: #{tpu_custom_call.1} parent=1 // pred_region
      %84 = dma.done [#allocation9], 64
    $region41: #{tpu_custom_call.1} parent=1 // pred_fallthru
      _
    %v85 = vld [vmem:[#allocation2] sm:$0xff]
    %v86 = vld [vmem:[#allocation2 + $0x8] sm:$0xff]
    %v87 = vld [vmem:[#allocation2 + $0x10] sm:$0xff]
    %v88 = vld [vmem:[#allocation2 + $0x18] sm:$0xff]
    %v89 = vld [vmem:[#allocation2 + $0x20] sm:$0xff]
    %v90 = vld [vmem:[#allocation2 + $0x28] sm:$0xff]
    %v91 = vld [vmem:[#allocation2 + $0x30] sm:$0xff]
    %v92 = vld [vmem:[#allocation2 + $0x38] sm:$0xff]
    %v93 = vld [vmem:[#allocation2 + $0x40] sm:$0xff]
    %v94 = vld [vmem:[#allocation2 + $0x48] sm:$0xff]
    %v95 = vld [vmem:[#allocation2 + $0x50] sm:$0xff]
    %v96 = vld [vmem:[#allocation2 + $0x58] sm:$0xff]
    %v97 = vld [vmem:[#allocation2 + $0x60] sm:$0xff]
    %v98 = vld [vmem:[#allocation2 + $0x68] sm:$0xff]
    %v99 = vld [vmem:[#allocation2 + $0x70] sm:$0xff]
    %v100 = vld [vmem:[#allocation2 + $0x78] sm:$0xff]
    %v101 = vld [vmem:[#allocation2 + $0x80] sm:$0xff]
    %v102 = vld [vmem:[#allocation2 + $0x88] sm:$0xff]
    %v103 = vld [vmem:[#allocation2 + $0x90] sm:$0xff]
    %v104 = vld [vmem:[#allocation2 + $0x98] sm:$0xff]
    %v105 = vld [vmem:[#allocation2 + $0xa0] sm:$0xff]
    %v106 = vld [vmem:[#allocation2 + $0xa8] sm:$0xff]
    %v107 = vld [vmem:[#allocation2 + $0xb0] sm:$0xff]
    %v108 = vld [vmem:[#allocation2 + $0xb8] sm:$0xff]
    %v109 = vld [vmem:[#allocation2 + $0xc0] sm:$0xff]
    %v110 = vld [vmem:[#allocation2 + $0xc8] sm:$0xff]
    %v111 = vld [vmem:[#allocation2 + $0xd0] sm:$0xff]
    %v112 = vld [vmem:[#allocation2 + $0xd8] sm:$0xff]
    %v113 = vld [vmem:[#allocation2 + $0xe0] sm:$0xff]
    %v114 = vld [vmem:[#allocation2 + $0xe8] sm:$0xff]
    %v115 = vld [vmem:[#allocation2 + $0xf0] sm:$0xff]
    %v116 = vld [vmem:[#allocation2 + $0xf8] sm:$0xff]
    %v117 = vld [vmem:[#allocation5] sm:$0xff]
    %v118 = vld [vmem:[#allocation5 + $0x8] sm:$0xff]
    %v119 = vld [vmem:[#allocation5 + $0x40] sm:$0xff]
    %v120 = vld [vmem:[#allocation5 + $0x48] sm:$0xff]
    %v121 = vld [vmem:[#allocation5 + $0x80] sm:$0xff]
    %v122 = vld [vmem:[#allocation5 + $0x88] sm:$0xff]
    %v123 = vld [vmem:[#allocation5 + $0xc0] sm:$0xff]
    %v124 = vld [vmem:[#allocation5 + $0xc8] sm:$0xff]
    %v125 = vld [vmem:[#allocation5 + $0x100] sm:$0xff]
    %v126 = vld [vmem:[#allocation5 + $0x108] sm:$0xff]
    %v127 = vld [vmem:[#allocation5 + $0x140] sm:$0xff]
    %v128 = vld [vmem:[#allocation5 + $0x148] sm:$0xff]
    %v129 = vld [vmem:[#allocation5 + $0x180] sm:$0xff]
    %v130 = vld [vmem:[#allocation5 + $0x188] sm:$0xff]
    %v131 = vld [vmem:[#allocation5 + $0x1c0] sm:$0xff]
    %v132 = vld [vmem:[#allocation5 + $0x1c8] sm:$0xff]
    %v133 = vld [vmem:[#allocation5 + $0x200] sm:$0xff]
    %v134 = vld [vmem:[#allocation5 + $0x208] sm:$0xff]
    %v135 = vld [vmem:[#allocation5 + $0x240] sm:$0xff]
    %v136 = vld [vmem:[#allocation5 + $0x248] sm:$0xff]
    %v137 = vld [vmem:[#allocation5 + $0x280] sm:$0xff]
    %v138 = vld [vmem:[#allocation5 + $0x288] sm:$0xff]
    %v139 = vld [vmem:[#allocation5 + $0x2c0] sm:$0xff]
    %v140 = vld [vmem:[#allocation5 + $0x2c8] sm:$0xff]
    %v141 = vld [vmem:[#allocation5 + $0x300] sm:$0xff]
    %v142 = vld [vmem:[#allocation5 + $0x308] sm:$0xff]
    %v143 = vld [vmem:[#allocation5 + $0x340] sm:$0xff]
    %v144 = vld [vmem:[#allocation5 + $0x348] sm:$0xff]
    %v145 = vld [vmem:[#allocation5 + $0x380] sm:$0xff]
    %v146 = vld [vmem:[#allocation5 + $0x388] sm:$0xff]
    %v147 = vld [vmem:[#allocation5 + $0x3c0] sm:$0xff]
    %v148 = vld [vmem:[#allocation5 + $0x3c8] sm:$0xff]
    %v149 = vld [vmem:[#allocation5 + $0x400] sm:$0xff]
    %v150 = vld [vmem:[#allocation5 + $0x408] sm:$0xff]
    %v151 = vld [vmem:[#allocation5 + $0x440] sm:$0xff]
    %v152 = vld [vmem:[#allocation5 + $0x448] sm:$0xff]
    %v153 = vld [vmem:[#allocation5 + $0x480] sm:$0xff]
    %v154 = vld [vmem:[#allocation5 + $0x488] sm:$0xff]
    %v155 = vld [vmem:[#allocation5 + $0x4c0] sm:$0xff]
    %v156 = vld [vmem:[#allocation5 + $0x4c8] sm:$0xff]
    %v157 = vld [vmem:[#allocation5 + $0x500] sm:$0xff]
    %v158 = vld [vmem:[#allocation5 + $0x508] sm:$0xff]
    %v159 = vld [vmem:[#allocation5 + $0x540] sm:$0xff]
    %v160 = vld [vmem:[#allocation5 + $0x548] sm:$0xff]
    %v161 = vld [vmem:[#allocation5 + $0x580] sm:$0xff]
    %v162 = vld [vmem:[#allocation5 + $0x588] sm:$0xff]
    %v163 = vld [vmem:[#allocation5 + $0x5c0] sm:$0xff]
    %v164 = vld [vmem:[#allocation5 + $0x5c8] sm:$0xff]
    %v165 = vld [vmem:[#allocation5 + $0x600] sm:$0xff]
    %v166 = vld [vmem:[#allocation5 + $0x608] sm:$0xff]
    %v167 = vld [vmem:[#allocation5 + $0x640] sm:$0xff]
    %v168 = vld [vmem:[#allocation5 + $0x648] sm:$0xff]
    %v169 = vld [vmem:[#allocation5 + $0x680] sm:$0xff]
    %v170 = vld [vmem:[#allocation5 + $0x688] sm:$0xff]
    %v171 = vld [vmem:[#allocation5 + $0x6c0] sm:$0xff]
    %v172 = vld [vmem:[#allocation5 + $0x6c8] sm:$0xff]
    %v173 = vld [vmem:[#allocation5 + $0x700] sm:$0xff]
    %v174 = vld [vmem:[#allocation5 + $0x708] sm:$0xff]
    %v175 = vld [vmem:[#allocation5 + $0x740] sm:$0xff]
    %v176 = vld [vmem:[#allocation5 + $0x748] sm:$0xff]
    %v177 = vld [vmem:[#allocation5 + $0x780] sm:$0xff]
    %v178 = vld [vmem:[#allocation5 + $0x788] sm:$0xff]
    %v179 = vld [vmem:[#allocation5 + $0x7c0] sm:$0xff]
    %v180 = vld [vmem:[#allocation5 + $0x7c8] sm:$0xff]
    %v181 = vld [vmem:[#allocation5 + $0x800] sm:$0xff]
    %v182 = vld [vmem:[#allocation5 + $0x808] sm:$0xff]
    %v183 = vld [vmem:[#allocation5 + $0x840] sm:$0xff]
    %v184 = vld [vmem:[#allocation5 + $0x848] sm:$0xff]
    %v185 = vld [vmem:[#allocation5 + $0x880] sm:$0xff]
    %v186 = vld [vmem:[#allocation5 + $0x888] sm:$0xff]
    %v187 = vld [vmem:[#allocation5 + $0x8c0] sm:$0xff]
    %v188 = vld [vmem:[#allocation5 + $0x8c8] sm:$0xff]
    %v189 = vld [vmem:[#allocation5 + $0x900] sm:$0xff]
    %v190 = vld [vmem:[#allocation5 + $0x908] sm:$0xff]
    %v191 = vld [vmem:[#allocation5 + $0x940] sm:$0xff]
    %v192 = vld [vmem:[#allocation5 + $0x948] sm:$0xff]
    %v193 = vld [vmem:[#allocation5 + $0x980] sm:$0xff]
    %v194 = vld [vmem:[#allocation5 + $0x988] sm:$0xff]
    %v195 = vld [vmem:[#allocation5 + $0x9c0] sm:$0xff]
    %v196 = vld [vmem:[#allocation5 + $0x9c8] sm:$0xff]
    %v197 = vld [vmem:[#allocation5 + $0xa00] sm:$0xff]
    %v198 = vld [vmem:[#allocation5 + $0xa08] sm:$0xff]
    %v199 = vld [vmem:[#allocation5 + $0xa40] sm:$0xff]
    %v200 = vld [vmem:[#allocation5 + $0xa48] sm:$0xff]
    %v201 = vld [vmem:[#allocation5 + $0xa80] sm:$0xff]
    %v202 = vld [vmem:[#allocation5 + $0xa88] sm:$0xff]
    %v203 = vld [vmem:[#allocation5 + $0xac0] sm:$0xff]
    %v204 = vld [vmem:[#allocation5 + $0xac8] sm:$0xff]
    %v205 = vld [vmem:[#allocation5 + $0xb00] sm:$0xff]
    %v206 = vld [vmem:[#allocation5 + $0xb08] sm:$0xff]
    %v207 = vld [vmem:[#allocation5 + $0xb40] sm:$0xff]
    %v208 = vld [vmem:[#allocation5 + $0xb48] sm:$0xff]
    %v209 = vld [vmem:[#allocation5 + $0xb80] sm:$0xff]
    %v210 = vld [vmem:[#allocation5 + $0xb88] sm:$0xff]
    %v211 = vld [vmem:[#allocation5 + $0xbc0] sm:$0xff]
    %v212 = vld [vmem:[#allocation5 + $0xbc8] sm:$0xff]
    %v213 = vld [vmem:[#allocation5 + $0xc00] sm:$0xff]
    %v214 = vld [vmem:[#allocation5 + $0xc08] sm:$0xff]
    %v215 = vld [vmem:[#allocation5 + $0xc40] sm:$0xff]
    %v216 = vld [vmem:[#allocation5 + $0xc48] sm:$0xff]
    %v217 = vld [vmem:[#allocation5 + $0xc80] sm:$0xff]
    %v218 = vld [vmem:[#allocation5 + $0xc88] sm:$0xff]
    %v219 = vld [vmem:[#allocation5 + $0xcc0] sm:$0xff]
    %v220 = vld [vmem:[#allocation5 + $0xcc8] sm:$0xff]
    %v221 = vld [vmem:[#allocation5 + $0xd00] sm:$0xff]
    %v222 = vld [vmem:[#allocation5 + $0xd08] sm:$0xff]
    %v223 = vld [vmem:[#allocation5 + $0xd40] sm:$0xff]
    %v224 = vld [vmem:[#allocation5 + $0xd48] sm:$0xff]
    %v225 = vld [vmem:[#allocation5 + $0xd80] sm:$0xff]
    %v226 = vld [vmem:[#allocation5 + $0xd88] sm:$0xff]
    %v227 = vld [vmem:[#allocation5 + $0xdc0] sm:$0xff]
    %v228 = vld [vmem:[#allocation5 + $0xdc8] sm:$0xff]
    %v229 = vld [vmem:[#allocation5 + $0xe00] sm:$0xff]
    %v230 = vld [vmem:[#allocation5 + $0xe08] sm:$0xff]
    %v231 = vld [vmem:[#allocation5 + $0xe40] sm:$0xff]
    %v232 = vld [vmem:[#allocation5 + $0xe48] sm:$0xff]
    %v233 = vld [vmem:[#allocation5 + $0xe80] sm:$0xff]
    %v234 = vld [vmem:[#allocation5 + $0xe88] sm:$0xff]
    %v235 = vld [vmem:[#allocation5 + $0xec0] sm:$0xff]
    %v236 = vld [vmem:[#allocation5 + $0xec8] sm:$0xff]
    %v237 = vld [vmem:[#allocation5 + $0xf00] sm:$0xff]
    %v238 = vld [vmem:[#allocation5 + $0xf08] sm:$0xff]
    %v239 = vld [vmem:[#allocation5 + $0xf40] sm:$0xff]
    %v240 = vld [vmem:[#allocation5 + $0xf48] sm:$0xff]
    %v241 = vld [vmem:[#allocation5 + $0xf80] sm:$0xff]
    %v242 = vld [vmem:[#allocation5 + $0xf88] sm:$0xff]
    %v243 = vld [vmem:[#allocation5 + $0xfc0] sm:$0xff]
    %v244 = vld [vmem:[#allocation5 + $0xfc8] sm:$0xff]
    %v245 = vld [vmem:[#allocation7] sm:$0xf]
    %v247 = vlaneseq
    %v248 = vshrl.u32 %v247, 7
    %v249 = vsub.s32 0, %v248
    %v250 = vrot.slane %v245, %v249
    %v251 = vlaneseq
    %v252 = vshrl.u32 %v251, 7
    %v253 = vsub.s32 1, %v252
    %v254 = vrot.slane %v245, %v253
    %v255 = vlaneseq
    %v256 = vshrl.u32 %v255, 7
    %v257 = vsub.s32 2, %v256
    %v258 = vrot.slane %v245, %v257
    %v259 = vlaneseq
    %v260 = vshrl.u32 %v259, 7
    %v261 = vsub.s32 3, %v260
    %v262 = vrot.slane %v245, %v261
    %v299 = vunpack.c.l.b16 %v85
    %v300 = vunpack.c.h.b16 %v85
    %v301 = vunpack.c.l.b16 %v86
    %v302 = vunpack.c.h.b16 %v86
    %v303 = vunpack.c.l.b16 %v87
    %v304 = vunpack.c.h.b16 %v87
    %v305 = vunpack.c.l.b16 %v88
    %v306 = vunpack.c.h.b16 %v88
    %v307 = vunpack.c.l.b16 %v89
    %v308 = vunpack.c.h.b16 %v89
    %v309 = vunpack.c.l.b16 %v90
    %v310 = vunpack.c.h.b16 %v90
    %v311 = vunpack.c.l.b16 %v91
    %v312 = vunpack.c.h.b16 %v91
    %v313 = vunpack.c.l.b16 %v92
    %v314 = vunpack.c.h.b16 %v92
    %v315 = vunpack.c.l.b16 %v93
    %v316 = vunpack.c.h.b16 %v93
    %v317 = vunpack.c.l.b16 %v94
    %v318 = vunpack.c.h.b16 %v94
    %v319 = vunpack.c.l.b16 %v95
    %v320 = vunpack.c.h.b16 %v95
    %v321 = vunpack.c.l.b16 %v96
    %v322 = vunpack.c.h.b16 %v96
    %v323 = vunpack.c.l.b16 %v97
    %v324 = vunpack.c.h.b16 %v97
    %v325 = vunpack.c.l.b16 %v98
    %v326 = vunpack.c.h.b16 %v98
    %v327 = vunpack.c.l.b16 %v99
    %v328 = vunpack.c.h.b16 %v99
    %v329 = vunpack.c.l.b16 %v100
    %v330 = vunpack.c.h.b16 %v100
    %v331 = vunpack.c.l.b16 %v101
    %v332 = vunpack.c.h.b16 %v101
    %v333 = vunpack.c.l.b16 %v102
    %v334 = vunpack.c.h.b16 %v102
    %v335 = vunpack.c.l.b16 %v103
    %v336 = vunpack.c.h.b16 %v103
    %v337 = vunpack.c.l.b16 %v104
    %v338 = vunpack.c.h.b16 %v104
    %v339 = vunpack.c.l.b16 %v105
    %v340 = vunpack.c.h.b16 %v105
    %v341 = vunpack.c.l.b16 %v106
    %v342 = vunpack.c.h.b16 %v106
    %v343 = vunpack.c.l.b16 %v107
    %v344 = vunpack.c.h.b16 %v107
    %v345 = vunpack.c.l.b16 %v108
    %v346 = vunpack.c.h.b16 %v108
    %v347 = vunpack.c.l.b16 %v109
    %v348 = vunpack.c.h.b16 %v109
    %v349 = vunpack.c.l.b16 %v110
    %v350 = vunpack.c.h.b16 %v110
    %v351 = vunpack.c.l.b16 %v111
    %v352 = vunpack.c.h.b16 %v111
    %v353 = vunpack.c.l.b16 %v112
    %v354 = vunpack.c.h.b16 %v112
    %v355 = vunpack.c.l.b16 %v113
    %v356 = vunpack.c.h.b16 %v113
    %v357 = vunpack.c.l.b16 %v114
    %v358 = vunpack.c.h.b16 %v114
    %v359 = vunpack.c.l.b16 %v115
    %v360 = vunpack.c.h.b16 %v115
    %v361 = vunpack.c.l.b16 %v116
    %v362 = vunpack.c.h.b16 %v116
    %v363 = vpack.c.b16 %v303, %v299
    %v364 = vpack.c.b16 %v304, %v300
    %v365 = vpack.c.b16 %v305, %v301
    %v366 = vpack.c.b16 %v306, %v302
    %v367 = vpack.c.b16 %v311, %v307
    %v368 = vpack.c.b16 %v312, %v308
    %v369 = vpack.c.b16 %v313, %v309
    %v370 = vpack.c.b16 %v314, %v310
    %v371 = vpack.c.b16 %v319, %v315
    %v372 = vpack.c.b16 %v320, %v316
    %v373 = vpack.c.b16 %v321, %v317
    %v374 = vpack.c.b16 %v322, %v318
    %v375 = vpack.c.b16 %v327, %v323
    %v376 = vpack.c.b16 %v328, %v324
    %v377 = vpack.c.b16 %v329, %v325
    %v378 = vpack.c.b16 %v330, %v326
    %v379 = vpack.c.b16 %v335, %v331
    %v380 = vpack.c.b16 %v336, %v332
    %v381 = vpack.c.b16 %v337, %v333
    %v382 = vpack.c.b16 %v338, %v334
    %v383 = vpack.c.b16 %v343, %v339
    %v384 = vpack.c.b16 %v344, %v340
    %v385 = vpack.c.b16 %v345, %v341
    %v386 = vpack.c.b16 %v346, %v342
    %v387 = vpack.c.b16 %v351, %v347
    %v388 = vpack.c.b16 %v352, %v348
    %v389 = vpack.c.b16 %v353, %v349
    %v390 = vpack.c.b16 %v354, %v350
    %v391 = vpack.c.b16 %v359, %v355
    %v392 = vpack.c.b16 %v360, %v356
    %v393 = vpack.c.b16 %v361, %v357
    %v394 = vpack.c.b16 %v362, %v358
    %v555 = vunpack.c.l.b16 %v117
    %v556 = vunpack.c.h.b16 %v117
    %v557 = vunpack.c.l.b16 %v118
    %v558 = vunpack.c.h.b16 %v118
    %v559 = vunpack.c.l.b16 %v119
    %v560 = vunpack.c.h.b16 %v119
    %v561 = vunpack.c.l.b16 %v120
    %v562 = vunpack.c.h.b16 %v120
    %v563 = vunpack.c.l.b16 %v121
    %v564 = vunpack.c.h.b16 %v121
    %v565 = vunpack.c.l.b16 %v122
    %v566 = vunpack.c.h.b16 %v122
    %v567 = vunpack.c.l.b16 %v123
    %v568 = vunpack.c.h.b16 %v123
    %v569 = vunpack.c.l.b16 %v124
    %v570 = vunpack.c.h.b16 %v124
    %v571 = vunpack.c.l.b16 %v125
    %v572 = vunpack.c.h.b16 %v125
    %v573 = vunpack.c.l.b16 %v126
    %v574 = vunpack.c.h.b16 %v126
    %v575 = vunpack.c.l.b16 %v127
    %v576 = vunpack.c.h.b16 %v127
    %v577 = vunpack.c.l.b16 %v128
    %v578 = vunpack.c.h.b16 %v128
    %v579 = vunpack.c.l.b16 %v129
    %v580 = vunpack.c.h.b16 %v129
    %v581 = vunpack.c.l.b16 %v130
    %v582 = vunpack.c.h.b16 %v130
    %v583 = vunpack.c.l.b16 %v131
    %v584 = vunpack.c.h.b16 %v131
    %v585 = vunpack.c.l.b16 %v132
    %v586 = vunpack.c.h.b16 %v132
    %v587 = vunpack.c.l.b16 %v133
    %v588 = vunpack.c.h.b16 %v133
    %v589 = vunpack.c.l.b16 %v134
    %v590 = vunpack.c.h.b16 %v134
    %v591 = vunpack.c.l.b16 %v135
    %v592 = vunpack.c.h.b16 %v135
    %v593 = vunpack.c.l.b16 %v136
    %v594 = vunpack.c.h.b16 %v136
    %v595 = vunpack.c.l.b16 %v137
    %v596 = vunpack.c.h.b16 %v137
    %v597 = vunpack.c.l.b16 %v138
    %v598 = vunpack.c.h.b16 %v138
    %v599 = vunpack.c.l.b16 %v139
    %v600 = vunpack.c.h.b16 %v139
    %v601 = vunpack.c.l.b16 %v140
    %v602 = vunpack.c.h.b16 %v140
    %v603 = vunpack.c.l.b16 %v141
    %v604 = vunpack.c.h.b16 %v141
    %v605 = vunpack.c.l.b16 %v142
    %v606 = vunpack.c.h.b16 %v142
    %v607 = vunpack.c.l.b16 %v143
    %v608 = vunpack.c.h.b16 %v143
    %v609 = vunpack.c.l.b16 %v144
    %v610 = vunpack.c.h.b16 %v144
    %v611 = vunpack.c.l.b16 %v145
    %v612 = vunpack.c.h.b16 %v145
    %v613 = vunpack.c.l.b16 %v146
    %v614 = vunpack.c.h.b16 %v146
    %v615 = vunpack.c.l.b16 %v147
    %v616 = vunpack.c.h.b16 %v147
    %v617 = vunpack.c.l.b16 %v148
    %v618 = vunpack.c.h.b16 %v148
    %v619 = vunpack.c.l.b16 %v149
    %v620 = vunpack.c.h.b16 %v149
    %v621 = vunpack.c.l.b16 %v150
    %v622 = vunpack.c.h.b16 %v150
    %v623 = vunpack.c.l.b16 %v151
    %v624 = vunpack.c.h.b16 %v151
    %v625 = vunpack.c.l.b16 %v152
    %v626 = vunpack.c.h.b16 %v152
    %v627 = vunpack.c.l.b16 %v153
    %v628 = vunpack.c.h.b16 %v153
    %v629 = vunpack.c.l.b16 %v154
    %v630 = vunpack.c.h.b16 %v154
    %v631 = vunpack.c.l.b16 %v155
    %v632 = vunpack.c.h.b16 %v155
    %v633 = vunpack.c.l.b16 %v156
    %v634 = vunpack.c.h.b16 %v156
    %v635 = vunpack.c.l.b16 %v157
    %v636 = vunpack.c.h.b16 %v157
    %v637 = vunpack.c.l.b16 %v158
    %v638 = vunpack.c.h.b16 %v158
    %v639 = vunpack.c.l.b16 %v159
    %v640 = vunpack.c.h.b16 %v159
    %v641 = vunpack.c.l.b16 %v160
    %v642 = vunpack.c.h.b16 %v160
    %v643 = vunpack.c.l.b16 %v161
    %v644 = vunpack.c.h.b16 %v161
    %v645 = vunpack.c.l.b16 %v162
    %v646 = vunpack.c.h.b16 %v162
    %v647 = vunpack.c.l.b16 %v163
    %v648 = vunpack.c.h.b16 %v163
    %v649 = vunpack.c.l.b16 %v164
    %v650 = vunpack.c.h.b16 %v164
    %v651 = vunpack.c.l.b16 %v165
    %v652 = vunpack.c.h.b16 %v165
    %v653 = vunpack.c.l.b16 %v166
    %v654 = vunpack.c.h.b16 %v166
    %v655 = vunpack.c.l.b16 %v167
    %v656 = vunpack.c.h.b16 %v167
    %v657 = vunpack.c.l.b16 %v168
    %v658 = vunpack.c.h.b16 %v168
    %v659 = vunpack.c.l.b16 %v169
    %v660 = vunpack.c.h.b16 %v169
    %v661 = vunpack.c.l.b16 %v170
    %v662 = vunpack.c.h.b16 %v170
    %v663 = vunpack.c.l.b16 %v171
    %v664 = vunpack.c.h.b16 %v171
    %v665 = vunpack.c.l.b16 %v172
    %v666 = vunpack.c.h.b16 %v172
    %v667 = vunpack.c.l.b16 %v173
    %v668 = vunpack.c.h.b16 %v173
    %v669 = vunpack.c.l.b16 %v174
    %v670 = vunpack.c.h.b16 %v174
    %v671 = vunpack.c.l.b16 %v175
    %v672 = vunpack.c.h.b16 %v175
    %v673 = vunpack.c.l.b16 %v176
    %v674 = vunpack.c.h.b16 %v176
    %v675 = vunpack.c.l.b16 %v177
    %v676 = vunpack.c.h.b16 %v177
    %v677 = vunpack.c.l.b16 %v178
    %v678 = vunpack.c.h.b16 %v178
    %v679 = vunpack.c.l.b16 %v179
    %v680 = vunpack.c.h.b16 %v179
    %v681 = vunpack.c.l.b16 %v180
    %v682 = vunpack.c.h.b16 %v180
    %v683 = vunpack.c.l.b16 %v181
    %v684 = vunpack.c.h.b16 %v181
    %v685 = vunpack.c.l.b16 %v182
    %v686 = vunpack.c.h.b16 %v182
    %v687 = vunpack.c.l.b16 %v183
    %v688 = vunpack.c.h.b16 %v183
    %v689 = vunpack.c.l.b16 %v184
    %v690 = vunpack.c.h.b16 %v184
    %v691 = vunpack.c.l.b16 %v185
    %v692 = vunpack.c.h.b16 %v185
    %v693 = vunpack.c.l.b16 %v186
    %v694 = vunpack.c.h.b16 %v186
    %v695 = vunpack.c.l.b16 %v187
    %v696 = vunpack.c.h.b16 %v187
    %v697 = vunpack.c.l.b16 %v188
    %v698 = vunpack.c.h.b16 %v188
    %v699 = vunpack.c.l.b16 %v189
    %v700 = vunpack.c.h.b16 %v189
    %v701 = vunpack.c.l.b16 %v190
    %v702 = vunpack.c.h.b16 %v190
    %v703 = vunpack.c.l.b16 %v191
    %v704 = vunpack.c.h.b16 %v191
    %v705 = vunpack.c.l.b16 %v192
    %v706 = vunpack.c.h.b16 %v192
    %v707 = vunpack.c.l.b16 %v193
    %v708 = vunpack.c.h.b16 %v193
    %v709 = vunpack.c.l.b16 %v194
    %v710 = vunpack.c.h.b16 %v194
    %v711 = vunpack.c.l.b16 %v195
    %v712 = vunpack.c.h.b16 %v195
    %v713 = vunpack.c.l.b16 %v196
    %v714 = vunpack.c.h.b16 %v196
    %v715 = vunpack.c.l.b16 %v197
    %v716 = vunpack.c.h.b16 %v197
    %v717 = vunpack.c.l.b16 %v198
    %v718 = vunpack.c.h.b16 %v198
    %v719 = vunpack.c.l.b16 %v199
    %v720 = vunpack.c.h.b16 %v199
    %v721 = vunpack.c.l.b16 %v200
    %v722 = vunpack.c.h.b16 %v200
    %v723 = vunpack.c.l.b16 %v201
    %v724 = vunpack.c.h.b16 %v201
    %v725 = vunpack.c.l.b16 %v202
    %v726 = vunpack.c.h.b16 %v202
    %v727 = vunpack.c.l.b16 %v203
    %v728 = vunpack.c.h.b16 %v203
    %v729 = vunpack.c.l.b16 %v204
    %v730 = vunpack.c.h.b16 %v204
    %v731 = vunpack.c.l.b16 %v205
    %v732 = vunpack.c.h.b16 %v205
    %v733 = vunpack.c.l.b16 %v206
    %v734 = vunpack.c.h.b16 %v206
    %v735 = vunpack.c.l.b16 %v207
    %v736 = vunpack.c.h.b16 %v207
    %v737 = vunpack.c.l.b16 %v208
    %v738 = vunpack.c.h.b16 %v208
    %v739 = vunpack.c.l.b16 %v209
    %v740 = vunpack.c.h.b16 %v209
    %v741 = vunpack.c.l.b16 %v210
    %v742 = vunpack.c.h.b16 %v210
    %v743 = vunpack.c.l.b16 %v211
    %v744 = vunpack.c.h.b16 %v211
    %v745 = vunpack.c.l.b16 %v212
    %v746 = vunpack.c.h.b16 %v212
    %v747 = vunpack.c.l.b16 %v213
    %v748 = vunpack.c.h.b16 %v213
    %v749 = vunpack.c.l.b16 %v214
    %v750 = vunpack.c.h.b16 %v214
    %v751 = vunpack.c.l.b16 %v215
    %v752 = vunpack.c.h.b16 %v215
    %v753 = vunpack.c.l.b16 %v216
    %v754 = vunpack.c.h.b16 %v216
    %v755 = vunpack.c.l.b16 %v217
    %v756 = vunpack.c.h.b16 %v217
    %v757 = vunpack.c.l.b16 %v218
    %v758 = vunpack.c.h.b16 %v218
    %v759 = vunpack.c.l.b16 %v219
    %v760 = vunpack.c.h.b16 %v219
    %v761 = vunpack.c.l.b16 %v220
    %v762 = vunpack.c.h.b16 %v220
    %v763 = vunpack.c.l.b16 %v221
    %v764 = vunpack.c.h.b16 %v221
    %v765 = vunpack.c.l.b16 %v222
    %v766 = vunpack.c.h.b16 %v222
    %v767 = vunpack.c.l.b16 %v223
    %v768 = vunpack.c.h.b16 %v223
    %v769 = vunpack.c.l.b16 %v224
    %v770 = vunpack.c.h.b16 %v224
    %v771 = vunpack.c.l.b16 %v225
    %v772 = vunpack.c.h.b16 %v225
    %v773 = vunpack.c.l.b16 %v226
    %v774 = vunpack.c.h.b16 %v226
    %v775 = vunpack.c.l.b16 %v227
    %v776 = vunpack.c.h.b16 %v227
    %v777 = vunpack.c.l.b16 %v228
    %v778 = vunpack.c.h.b16 %v228
    %v779 = vunpack.c.l.b16 %v229
    %v780 = vunpack.c.h.b16 %v229
    %v781 = vunpack.c.l.b16 %v230
    %v782 = vunpack.c.h.b16 %v230
    %v783 = vunpack.c.l.b16 %v231
    %v784 = vunpack.c.h.b16 %v231
    %v785 = vunpack.c.l.b16 %v232
    %v786 = vunpack.c.h.b16 %v232
    %v787 = vunpack.c.l.b16 %v233
    %v788 = vunpack.c.h.b16 %v233
    %v789 = vunpack.c.l.b16 %v234
    %v790 = vunpack.c.h.b16 %v234
    %v791 = vunpack.c.l.b16 %v235
    %v792 = vunpack.c.h.b16 %v235
    %v793 = vunpack.c.l.b16 %v236
    %v794 = vunpack.c.h.b16 %v236
    %v795 = vunpack.c.l.b16 %v237
    %v796 = vunpack.c.h.b16 %v237
    %v797 = vunpack.c.l.b16 %v238
    %v798 = vunpack.c.h.b16 %v238
    %v799 = vunpack.c.l.b16 %v239
    %v800 = vunpack.c.h.b16 %v239
    %v801 = vunpack.c.l.b16 %v240
    %v802 = vunpack.c.h.b16 %v240
    %v803 = vunpack.c.l.b16 %v241
    %v804 = vunpack.c.h.b16 %v241
    %v805 = vunpack.c.l.b16 %v242
    %v806 = vunpack.c.h.b16 %v242
    %v807 = vunpack.c.l.b16 %v243
    %v808 = vunpack.c.h.b16 %v243
    %v809 = vunpack.c.l.b16 %v244
    %v810 = vunpack.c.h.b16 %v244
    %v811 = vpack.c.b16 %v559, %v555
    %v812 = vpack.c.b16 %v560, %v556
    %v813 = vpack.c.b16 %v561, %v557
    %v814 = vpack.c.b16 %v562, %v558
    %v815 = vpack.c.b16 %v567, %v563
    %v816 = vpack.c.b16 %v568, %v564
    %v817 = vpack.c.b16 %v569, %v565
    %v818 = vpack.c.b16 %v570, %v566
    %v819 = vpack.c.b16 %v575, %v571
    %v820 = vpack.c.b16 %v576, %v572
    %v821 = vpack.c.b16 %v577, %v573
    %v822 = vpack.c.b16 %v578, %v574
    %v823 = vpack.c.b16 %v583, %v579
    %v824 = vpack.c.b16 %v584, %v580
    %v825 = vpack.c.b16 %v585, %v581
    %v826 = vpack.c.b16 %v586, %v582
    %v827 = vpack.c.b16 %v591, %v587
    %v828 = vpack.c.b16 %v592, %v588
    %v829 = vpack.c.b16 %v593, %v589
    %v830 = vpack.c.b16 %v594, %v590
    %v831 = vpack.c.b16 %v599, %v595
    %v832 = vpack.c.b16 %v600, %v596
    %v833 = vpack.c.b16 %v601, %v597
    %v834 = vpack.c.b16 %v602, %v598
    %v835 = vpack.c.b16 %v607, %v603
    %v836 = vpack.c.b16 %v608, %v604
    %v837 = vpack.c.b16 %v609, %v605
    %v838 = vpack.c.b16 %v610, %v606
    %v839 = vpack.c.b16 %v615, %v611
    %v840 = vpack.c.b16 %v616, %v612
    %v841 = vpack.c.b16 %v617, %v613
    %v842 = vpack.c.b16 %v618, %v614
    %v843 = vpack.c.b16 %v623, %v619
    %v844 = vpack.c.b16 %v624, %v620
    %v845 = vpack.c.b16 %v625, %v621
    %v846 = vpack.c.b16 %v626, %v622
    %v847 = vpack.c.b16 %v631, %v627
    %v848 = vpack.c.b16 %v632, %v628
    %v849 = vpack.c.b16 %v633, %v629
    %v850 = vpack.c.b16 %v634, %v630
    %v851 = vpack.c.b16 %v639, %v635
    %v852 = vpack.c.b16 %v640, %v636
    %v853 = vpack.c.b16 %v641, %v637
    %v854 = vpack.c.b16 %v642, %v638
    %v855 = vpack.c.b16 %v647, %v643
    %v856 = vpack.c.b16 %v648, %v644
    %v857 = vpack.c.b16 %v649, %v645
    %v858 = vpack.c.b16 %v650, %v646
    %v859 = vpack.c.b16 %v655, %v651
    %v860 = vpack.c.b16 %v656, %v652
    %v861 = vpack.c.b16 %v657, %v653
    %v862 = vpack.c.b16 %v658, %v654
    %v863 = vpack.c.b16 %v663, %v659
    %v864 = vpack.c.b16 %v664, %v660
    %v865 = vpack.c.b16 %v665, %v661
    %v866 = vpack.c.b16 %v666, %v662
    %v867 = vpack.c.b16 %v671, %v667
    %v868 = vpack.c.b16 %v672, %v668
    %v869 = vpack.c.b16 %v673, %v669
    %v870 = vpack.c.b16 %v674, %v670
    %v871 = vpack.c.b16 %v679, %v675
    %v872 = vpack.c.b16 %v680, %v676
    %v873 = vpack.c.b16 %v681, %v677
    %v874 = vpack.c.b16 %v682, %v678
    %v875 = vpack.c.b16 %v687, %v683
    %v876 = vpack.c.b16 %v688, %v684
    %v877 = vpack.c.b16 %v689, %v685
    %v878 = vpack.c.b16 %v690, %v686
    %v879 = vpack.c.b16 %v695, %v691
    %v880 = vpack.c.b16 %v696, %v692
    %v881 = vpack.c.b16 %v697, %v693
    %v882 = vpack.c.b16 %v698, %v694
    %v883 = vpack.c.b16 %v703, %v699
    %v884 = vpack.c.b16 %v704, %v700
    %v885 = vpack.c.b16 %v705, %v701
    %v886 = vpack.c.b16 %v706, %v702
    %v887 = vpack.c.b16 %v711, %v707
    %v888 = vpack.c.b16 %v712, %v708
    %v889 = vpack.c.b16 %v713, %v709
    %v890 = vpack.c.b16 %v714, %v710
    %v891 = vpack.c.b16 %v719, %v715
    %v892 = vpack.c.b16 %v720, %v716
    %v893 = vpack.c.b16 %v721, %v717
    %v894 = vpack.c.b16 %v722, %v718
    %v895 = vpack.c.b16 %v727, %v723
    %v896 = vpack.c.b16 %v728, %v724
    %v897 = vpack.c.b16 %v729, %v725
    %v898 = vpack.c.b16 %v730, %v726
    %v899 = vpack.c.b16 %v735, %v731
    %v900 = vpack.c.b16 %v736, %v732
    %v901 = vpack.c.b16 %v737, %v733
    %v902 = vpack.c.b16 %v738, %v734
    %v903 = vpack.c.b16 %v743, %v739
    %v904 = vpack.c.b16 %v744, %v740
    %v905 = vpack.c.b16 %v745, %v741
    %v906 = vpack.c.b16 %v746, %v742
    %v907 = vpack.c.b16 %v751, %v747
    %v908 = vpack.c.b16 %v752, %v748
    %v909 = vpack.c.b16 %v753, %v749
    %v910 = vpack.c.b16 %v754, %v750
    %v911 = vpack.c.b16 %v759, %v755
    %v912 = vpack.c.b16 %v760, %v756
    %v913 = vpack.c.b16 %v761, %v757
    %v914 = vpack.c.b16 %v762, %v758
    %v915 = vpack.c.b16 %v767, %v763
    %v916 = vpack.c.b16 %v768, %v764
    %v917 = vpack.c.b16 %v769, %v765
    %v918 = vpack.c.b16 %v770, %v766
    %v919 = vpack.c.b16 %v775, %v771
    %v920 = vpack.c.b16 %v776, %v772
    %v921 = vpack.c.b16 %v777, %v773
    %v922 = vpack.c.b16 %v778, %v774
    %v923 = vpack.c.b16 %v783, %v779
    %v924 = vpack.c.b16 %v784, %v780
    %v925 = vpack.c.b16 %v785, %v781
    %v926 = vpack.c.b16 %v786, %v782
    %v927 = vpack.c.b16 %v791, %v787
    %v928 = vpack.c.b16 %v792, %v788
    %v929 = vpack.c.b16 %v793, %v789
    %v930 = vpack.c.b16 %v794, %v790
    %v931 = vpack.c.b16 %v799, %v795
    %v932 = vpack.c.b16 %v800, %v796
    %v933 = vpack.c.b16 %v801, %v797
    %v934 = vpack.c.b16 %v802, %v798
    %v935 = vpack.c.b16 %v807, %v803
    %v936 = vpack.c.b16 %v808, %v804
    %v937 = vpack.c.b16 %v809, %v805
    %v938 = vpack.c.b16 %v810, %v806
    %1067 = vmatprep.subr.bf16.mxu0 %v812
    %1068 = vmatpush1.bf16.msra.mxu0 %v811
    %1069 = vmatprep.subr.bf16.mxu0 %v816
    %1070 = vmatpush1.bf16.msra.mxu0 %v815
    %1071 = vmatprep.subr.bf16.mxu0 %v820
    %1072 = vmatpush1.bf16.msra.mxu0 %v819
    %1073 = vmatprep.subr.bf16.mxu0 %v824
    %1074 = vmatpush1.bf16.msra.mxu0 %v823
    %1075 = vmatprep.subr.bf16.mxu0 %v828
    %1076 = vmatpush1.bf16.msra.mxu0 %v827
    %1077 = vmatprep.subr.bf16.mxu0 %v832
    %1078 = vmatpush1.bf16.msra.mxu0 %v831
    %1079 = vmatprep.subr.bf16.mxu0 %v836
    %1080 = vmatpush1.bf16.msra.mxu0 %v835
    %1081 = vmatprep.subr.bf16.mxu0 %v840
    %1082 = vmatpush1.bf16.msra.mxu0 %v839
    %1083 = vmatprep.subr.bf16.mxu0 %v844
    %1084 = vmatpush1.bf16.msra.mxu0 %v843
    %1085 = vmatprep.subr.bf16.mxu0 %v848
    %1086 = vmatpush1.bf16.msra.mxu0 %v847
    %1087 = vmatprep.subr.bf16.mxu0 %v852
    %1088 = vmatpush1.bf16.msra.mxu0 %v851
    %1089 = vmatprep.subr.bf16.mxu0 %v856
    %1090 = vmatpush1.bf16.msra.mxu0 %v855
    %1091 = vmatprep.subr.bf16.mxu0 %v860
    %1092 = vmatpush1.bf16.msra.mxu0 %v859
    %1093 = vmatprep.subr.bf16.mxu0 %v864
    %1094 = vmatpush1.bf16.msra.mxu0 %v863
    %1095 = vmatprep.subr.bf16.mxu0 %v868
    %1096 = vmatpush1.bf16.msra.mxu0 %v867
    %1097 = vmatprep.subr.bf16.mxu0 %v872
    %1098 = vmatpush1.bf16.msra.mxu0 %v871
    %1099 = vmatprep.mubr.bf16.mxu0 %v364
    %1100 = vmatmul.mubr.bf16.gmra.mrb[0].mxu0 %v363
    %v1101 = vpop.f32.mrb[0].mxu0
    %v1102 = vadd.f32 %v250, %v1101
    %v1103 = vpop.f32.mrb[0].mxu0
    %v1104 = vadd.f32 %v254, %v1103
    %v1105 = vpop.f32.mrb[0].mxu0
    %v1106 = vadd.f32 %v250, %v1105
    %v1107 = vpop.f32.mrb[0].mxu0
    %v1108 = vadd.f32 %v254, %v1107
    %1109 = vmatprep.mubr.bf16.mxu0 %v368
    %1110 = vmatmul.mubr.bf16.gmra.mrb[0].mxu0 %v367
    %v1111 = vpop.f32.mrb[0].mxu0
    %v1112 = vadd.f32 %v250, %v1111
    %v1113 = vpop.f32.mrb[0].mxu0
    %v1114 = vadd.f32 %v254, %v1113
    %v1115 = vpop.f32.mrb[0].mxu0
    %v1116 = vadd.f32 %v250, %v1115
    %v1117 = vpop.f32.mrb[0].mxu0
    %v1118 = vadd.f32 %v254, %v1117
    %1119 = vmatprep.mubr.bf16.mxu0 %v372
    %1120 = vmatmul.mubr.bf16.gmra.mrb[0].mxu0 %v371
    %v1121 = vpop.f32.mrb[0].mxu0
    %v1122 = vadd.f32 %v250, %v1121
    %v1123 = vpop.f32.mrb[0].mxu0
    %v1124 = vadd.f32 %v254, %v1123
    %v1125 = vpop.f32.mrb[0].mxu0
    %v1126 = vadd.f32 %v250, %v1125
    %v1127 = vpop.f32.mrb[0].mxu0
    %v1128 = vadd.f32 %v254, %v1127
    %1129 = vmatprep.mubr.bf16.mxu0 %v376
    %1130 = vmatmul.mubr.bf16.gmra.mrb[0].mxu0 %v375
    %v1131 = vpop.f32.mrb[0].mxu0
    %v1132 = vadd.f32 %v250, %v1131
    %v1133 = vpop.f32.mrb[0].mxu0
    %v1134 = vadd.f32 %v254, %v1133
    %v1135 = vpop.f32.mrb[0].mxu0
    %v1136 = vadd.f32 %v250, %v1135
    %v1137 = vpop.f32.mrb[0].mxu0
    %v1138 = vadd.f32 %v254, %v1137
    %1139 = vmatprep.mubr.bf16.mxu0 %v380
    %1140 = vmatmul.mubr.bf16.gmra.mrb[0].mxu0 %v379
    %v1141 = vpop.f32.mrb[0].mxu0
    %v1142 = vadd.f32 %v250, %v1141
    %v1143 = vpop.f32.mrb[0].mxu0
    %v1144 = vadd.f32 %v254, %v1143
    %v1145 = vpop.f32.mrb[0].mxu0
    %v1146 = vadd.f32 %v250, %v1145
    %v1147 = vpop.f32.mrb[0].mxu0
    %v1148 = vadd.f32 %v254, %v1147
    %1149 = vmatprep.mubr.bf16.mxu0 %v384
    %1150 = vmatmul.mubr.bf16.gmra.mrb[0].mxu0 %v383
    %v1151 = vpop.f32.mrb[0].mxu0
    %v1152 = vadd.f32 %v250, %v1151
    %v1153 = vpop.f32.mrb[0].mxu0
    %v1154 = vadd.f32 %v254, %v1153
    %v1155 = vpop.f32.mrb[0].mxu0
    %v1156 = vadd.f32 %v250, %v1155
    %v1157 = vpop.f32.mrb[0].mxu0
    %v1158 = vadd.f32 %v254, %v1157
    %1159 = vmatprep.mubr.bf16.mxu0 %v388
    %1160 = vmatmul.mubr.bf16.gmra.mrb[0].mxu0 %v387
    %v1161 = vpop.f32.mrb[0].mxu0
    %v1162 = vadd.f32 %v250, %v1161
    %v1163 = vpop.f32.mrb[0].mxu0
    %v1164 = vadd.f32 %v254, %v1163
    %v1165 = vpop.f32.mrb[0].mxu0
    %v1166 = vadd.f32 %v250, %v1165
    %v1167 = vpop.f32.mrb[0].mxu0
    %v1168 = vadd.f32 %v254, %v1167
    %1169 = vmatprep.mubr.bf16.mxu0 %v392
    %1170 = vmatmul.mubr.bf16.gmra.mrb[0].mxu0 %v391
    %v1171 = vpop.f32.mrb[0].mxu0
    %v1172 = vadd.f32 %v250, %v1171
    %v1173 = vpop.f32.mrb[0].mxu0
    %v1174 = vadd.f32 %v254, %v1173
    %v1175 = vpop.f32.mrb[0].mxu0
    %v1176 = vadd.f32 %v250, %v1175
    %v1177 = vpop.f32.mrb[0].mxu0
    %v1178 = vadd.f32 %v254, %v1177
    %1179 = vdwg.mxu0
    %1180 = vmatprep.subr.bf16.mxu0 %v876
    %1181 = vmatpush1.bf16.msra.mxu0 %v875
    %1182 = vmatprep.subr.bf16.mxu0 %v880
    %1183 = vmatpush1.bf16.msra.mxu0 %v879
    %1184 = vmatprep.subr.bf16.mxu0 %v884
    %1185 = vmatpush1.bf16.msra.mxu0 %v883
    %1186 = vmatprep.subr.bf16.mxu0 %v888
    %1187 = vmatpush1.bf16.msra.mxu0 %v887
    %1188 = vmatprep.subr.bf16.mxu0 %v892
    %1189 = vmatpush1.bf16.msra.mxu0 %v891
    %1190 = vmatprep.subr.bf16.mxu0 %v896
    %1191 = vmatpush1.bf16.msra.mxu0 %v895
    %1192 = vmatprep.subr.bf16.mxu0 %v900
    %1193 = vmatpush1.bf16.msra.mxu0 %v899
    %1194 = vmatprep.subr.bf16.mxu0 %v904
    %1195 = vmatpush1.bf16.msra.mxu0 %v903
    %1196 = vmatprep.subr.bf16.mxu0 %v908
    %1197 = vmatpush1.bf16.msra.mxu0 %v907
    %1198 = vmatprep.subr.bf16.mxu0 %v912
    %1199 = vmatpush1.bf16.msra.mxu0 %v911
    %1200 = vmatprep.subr.bf16.mxu0 %v916
    %1201 = vmatpush1.bf16.msra.mxu0 %v915
    %1202 = vmatprep.subr.bf16.mxu0 %v920
    %1203 = vmatpush1.bf16.msra.mxu0 %v919
    %1204 = vmatprep.subr.bf16.mxu0 %v924
    %1205 = vmatpush1.bf16.msra.mxu0 %v923
    %1206 = vmatprep.subr.bf16.mxu0 %v928
    %1207 = vmatpush1.bf16.msra.mxu0 %v927
    %1208 = vmatprep.subr.bf16.mxu0 %v932
    %1209 = vmatpush1.bf16.msra.mxu0 %v931
    %1210 = vmatprep.subr.bf16.mxu0 %v936
    %1211 = vmatpush1.bf16.msra.mxu0 %v935
    %1212 = vmatprep.mubr.bf16.mxu0 %v366
    %1213 = vmatmul.mubr.bf16.gmra.mrb[0].mxu0 %v365
    %v1214 = vpop.f32.mrb[0].mxu0
    %v1215 = vadd.f32 %v1102, %v1214
    %v1216 = vpop.f32.mrb[0].mxu0
    %v1217 = vadd.f32 %v1104, %v1216
    %v1218 = vpop.f32.mrb[0].mxu0
    %v1219 = vadd.f32 %v1106, %v1218
    %v1220 = vpop.f32.mrb[0].mxu0
    %v1221 = vadd.f32 %v1108, %v1220
    %1222 = vmatprep.mubr.bf16.mxu0 %v370
    %1223 = vmatmul.mubr.bf16.gmra.mrb[0].mxu0 %v369
    %v1224 = vpop.f32.mrb[0].mxu0
    %v1225 = vadd.f32 %v1112, %v1224
    %v1226 = vpop.f32.mrb[0].mxu0
    %v1227 = vadd.f32 %v1114, %v1226
    %v1228 = vpop.f32.mrb[0].mxu0
    %v1229 = vadd.f32 %v1116, %v1228
    %v1230 = vpop.f32.mrb[0].mxu0
    %v1231 = vadd.f32 %v1118, %v1230
    %1232 = vmatprep.mubr.bf16.mxu0 %v374
    %1233 = vmatmul.mubr.bf16.gmra.mrb[0].mxu0 %v373
    %v1234 = vpop.f32.mrb[0].mxu0
    %v1235 = vadd.f32 %v1122, %v1234
    %v1236 = vpop.f32.mrb[0].mxu0
    %v1237 = vadd.f32 %v1124, %v1236
    %v1238 = vpop.f32.mrb[0].mxu0
    %v1239 = vadd.f32 %v1126, %v1238
    %v1240 = vpop.f32.mrb[0].mxu0
    %v1241 = vadd.f32 %v1128, %v1240
    %1242 = vmatprep.mubr.bf16.mxu0 %v378
    %1243 = vmatmul.mubr.bf16.gmra.mrb[0].mxu0 %v377
    %v1244 = vpop.f32.mrb[0].mxu0
    %v1245 = vadd.f32 %v1132, %v1244
    %v1246 = vpop.f32.mrb[0].mxu0
    %v1247 = vadd.f32 %v1134, %v1246
    %v1248 = vpop.f32.mrb[0].mxu0
    %v1249 = vadd.f32 %v1136, %v1248
    %v1250 = vpop.f32.mrb[0].mxu0
    %v1251 = vadd.f32 %v1138, %v1250
    %1252 = vmatprep.mubr.bf16.mxu0 %v382
    %1253 = vmatmul.mubr.bf16.gmra.mrb[0].mxu0 %v381
    %v1254 = vpop.f32.mrb[0].mxu0
    %v1255 = vadd.f32 %v1142, %v1254
    %v1256 = vpop.f32.mrb[0].mxu0
    %v1257 = vadd.f32 %v1144, %v1256
    %v1258 = vpop.f32.mrb[0].mxu0
    %v1259 = vadd.f32 %v1146, %v1258
    %v1260 = vpop.f32.mrb[0].mxu0
    %v1261 = vadd.f32 %v1148, %v1260
    %1262 = vmatprep.mubr.bf16.mxu0 %v386
    %1263 = vmatmul.mubr.bf16.gmra.mrb[0].mxu0 %v385
    %v1264 = vpop.f32.mrb[0].mxu0
    %v1265 = vadd.f32 %v1152, %v1264
    %v1266 = vpop.f32.mrb[0].mxu0
    %v1267 = vadd.f32 %v1154, %v1266
    %v1268 = vpop.f32.mrb[0].mxu0
    %v1269 = vadd.f32 %v1156, %v1268
    %v1270 = vpop.f32.mrb[0].mxu0
    %v1271 = vadd.f32 %v1158, %v1270
    %1272 = vmatprep.mubr.bf16.mxu0 %v390
    %1273 = vmatmul.mubr.bf16.gmra.mrb[0].mxu0 %v389
    %v1274 = vpop.f32.mrb[0].mxu0
    %v1275 = vadd.f32 %v1162, %v1274
    %v1276 = vpop.f32.mrb[0].mxu0
    %v1277 = vadd.f32 %v1164, %v1276
    %v1278 = vpop.f32.mrb[0].mxu0
    %v1279 = vadd.f32 %v1166, %v1278
    %v1280 = vpop.f32.mrb[0].mxu0
    %v1281 = vadd.f32 %v1168, %v1280
    %1282 = vmatprep.mubr.bf16.mxu0 %v394
    %1283 = vmatmul.mubr.bf16.gmra.mrb[0].mxu0 %v393
    %v1284 = vpop.f32.mrb[0].mxu0
    %v1285 = vadd.f32 %v1172, %v1284
    %v1286 = vpop.f32.mrb[0].mxu0
    %v1287 = vadd.f32 %v1174, %v1286
    %v1288 = vpop.f32.mrb[0].mxu0
    %v1289 = vadd.f32 %v1176, %v1288
    %v1290 = vpop.f32.mrb[0].mxu0
    %v1291 = vadd.f32 %v1178, %v1290
    %1292 = vdwg.mxu0
    %1293 = vmatprep.subr.bf16.mxu0 %v814
    %1294 = vmatpush1.bf16.msra.mxu0 %v813
    %1295 = vmatprep.subr.bf16.mxu0 %v818
    %1296 = vmatpush1.bf16.msra.mxu0 %v817
    %1297 = vmatprep.subr.bf16.mxu0 %v822
    %1298 = vmatpush1.bf16.msra.mxu0 %v821
    %1299 = vmatprep.subr.bf16.mxu0 %v826
    %1300 = vmatpush1.bf16.msra.mxu0 %v825
    %1301 = vmatprep.subr.bf16.mxu0 %v830
    %1302 = vmatpush1.bf16.msra.mxu0 %v829
    %1303 = vmatprep.subr.bf16.mxu0 %v834
    %1304 = vmatpush1.bf16.msra.mxu0 %v833
    %1305 = vmatprep.subr.bf16.mxu0 %v838
    %1306 = vmatpush1.bf16.msra.mxu0 %v837
    %1307 = vmatprep.subr.bf16.mxu0 %v842
    %1308 = vmatpush1.bf16.msra.mxu0 %v841
    %1309 = vmatprep.subr.bf16.mxu0 %v846
    %1310 = vmatpush1.bf16.msra.mxu0 %v845
    %1311 = vmatprep.subr.bf16.mxu0 %v850
    %1312 = vmatpush1.bf16.msra.mxu0 %v849
    %1313 = vmatprep.subr.bf16.mxu0 %v854
    %1314 = vmatpush1.bf16.msra.mxu0 %v853
    %1315 = vmatprep.subr.bf16.mxu0 %v858
    %1316 = vmatpush1.bf16.msra.mxu0 %v857
    %1317 = vmatprep.subr.bf16.mxu0 %v862
    %1318 = vmatpush1.bf16.msra.mxu0 %v861
    %1319 = vmatprep.subr.bf16.mxu0 %v866
    %1320 = vmatpush1.bf16.msra.mxu0 %v865
    %1321 = vmatprep.subr.bf16.mxu0 %v870
    %1322 = vmatpush1.bf16.msra.mxu0 %v869
    %1323 = vmatprep.subr.bf16.mxu0 %v874
    %1324 = vmatpush1.bf16.msra.mxu0 %v873
    %1325 = vmatprep.mubr.bf16.mxu0 %v364
    %1326 = vmatmul.mubr.bf16.gmra.mrb[0].mxu0 %v363
    %v1327 = vpop.f32.mrb[0].mxu0
    %v1328 = vadd.f32 %v258, %v1327
    %v1329 = vpop.f32.mrb[0].mxu0
    %v1330 = vadd.f32 %v262, %v1329
    %v1331 = vpop.f32.mrb[0].mxu0
    %v1332 = vadd.f32 %v258, %v1331
    %v1333 = vpop.f32.mrb[0].mxu0
    %v1334 = vadd.f32 %v262, %v1333
    %1335 = vmatprep.mubr.bf16.mxu0 %v368
    %1336 = vmatmul.mubr.bf16.gmra.mrb[0].mxu0 %v367
    %v1337 = vpop.f32.mrb[0].mxu0
    %v1338 = vadd.f32 %v258, %v1337
    %v1339 = vpop.f32.mrb[0].mxu0
    %v1340 = vadd.f32 %v262, %v1339
    %v1341 = vpop.f32.mrb[0].mxu0
    %v1342 = vadd.f32 %v258, %v1341
    %v1343 = vpop.f32.mrb[0].mxu0
    %v1344 = vadd.f32 %v262, %v1343
    %1345 = vmatprep.mubr.bf16.mxu0 %v372
    %1346 = vmatmul.mubr.bf16.gmra.mrb[0].mxu0 %v371
    %v1347 = vpop.f32.mrb[0].mxu0
    %v1348 = vadd.f32 %v258, %v1347
    %v1349 = vpop.f32.mrb[0].mxu0
    %v1350 = vadd.f32 %v262, %v1349
    %v1351 = vpop.f32.mrb[0].mxu0
    %v1352 = vadd.f32 %v258, %v1351
    %v1353 = vpop.f32.mrb[0].mxu0
    %v1354 = vadd.f32 %v262, %v1353
    %1355 = vmatprep.mubr.bf16.mxu0 %v376
    %1356 = vmatmul.mubr.bf16.gmra.mrb[0].mxu0 %v375
    %v1357 = vpop.f32.mrb[0].mxu0
    %v1358 = vadd.f32 %v258, %v1357
    %v1359 = vpop.f32.mrb[0].mxu0
    %v1360 = vadd.f32 %v262, %v1359
    %v1361 = vpop.f32.mrb[0].mxu0
    %v1362 = vadd.f32 %v258, %v1361
    %v1363 = vpop.f32.mrb[0].mxu0
    %v1364 = vadd.f32 %v262, %v1363
    %1365 = vmatprep.mubr.bf16.mxu0 %v380
    %1366 = vmatmul.mubr.bf16.gmra.mrb[0].mxu0 %v379
    %v1367 = vpop.f32.mrb[0].mxu0
    %v1368 = vadd.f32 %v258, %v1367
    %v1369 = vpop.f32.mrb[0].mxu0
    %v1370 = vadd.f32 %v262, %v1369
    %v1371 = vpop.f32.mrb[0].mxu0
    %v1372 = vadd.f32 %v258, %v1371
    %v1373 = vpop.f32.mrb[0].mxu0
    %v1374 = vadd.f32 %v262, %v1373
    %1375 = vmatprep.mubr.bf16.mxu0 %v384
    %1376 = vmatmul.mubr.bf16.gmra.mrb[0].mxu0 %v383
    %v1377 = vpop.f32.mrb[0].mxu0
    %v1378 = vadd.f32 %v258, %v1377
    %v1379 = vpop.f32.mrb[0].mxu0
    %v1380 = vadd.f32 %v262, %v1379
    %v1381 = vpop.f32.mrb[0].mxu0
    %v1382 = vadd.f32 %v258, %v1381
    %v1383 = vpop.f32.mrb[0].mxu0
    %v1384 = vadd.f32 %v262, %v1383
    %1385 = vmatprep.mubr.bf16.mxu0 %v388
    %1386 = vmatmul.mubr.bf16.gmra.mrb[0].mxu0 %v387
    %v1387 = vpop.f32.mrb[0].mxu0
    %v1388 = vadd.f32 %v258, %v1387
    %v1389 = vpop.f32.mrb[0].mxu0
    %v1390 = vadd.f32 %v262, %v1389
    %v1391 = vpop.f32.mrb[0].mxu0
    %v1392 = vadd.f32 %v258, %v1391
    %v1393 = vpop.f32.mrb[0].mxu0
    %v1394 = vadd.f32 %v262, %v1393
    %1395 = vmatprep.mubr.bf16.mxu0 %v392
    %1396 = vmatmul.mubr.bf16.gmra.mrb[0].mxu0 %v391
    %v1397 = vpop.f32.mrb[0].mxu0
    %v1398 = vadd.f32 %v258, %v1397
    %v1399 = vpop.f32.mrb[0].mxu0
    %v1400 = vadd.f32 %v262, %v1399
    %v1401 = vpop.f32.mrb[0].mxu0
    %v1402 = vadd.f32 %v258, %v1401
    %v1403 = vpop.f32.mrb[0].mxu0
    %v1404 = vadd.f32 %v262, %v1403
    %1405 = vdwg.mxu0
    %1406 = vmatprep.subr.bf16.mxu0 %v878
    %1407 = vmatpush1.bf16.msra.mxu0 %v877
    %1408 = vmatprep.subr.bf16.mxu0 %v882
    %1409 = vmatpush1.bf16.msra.mxu0 %v881
    %1410 = vmatprep.subr.bf16.mxu0 %v886
    %1411 = vmatpush1.bf16.msra.mxu0 %v885
    %1412 = vmatprep.subr.bf16.mxu0 %v890
    %1413 = vmatpush1.bf16.msra.mxu0 %v889
    %1414 = vmatprep.subr.bf16.mxu0 %v894
    %1415 = vmatpush1.bf16.msra.mxu0 %v893
    %1416 = vmatprep.subr.bf16.mxu0 %v898
    %1417 = vmatpush1.bf16.msra.mxu0 %v897
    %1418 = vmatprep.subr.bf16.mxu0 %v902
    %1419 = vmatpush1.bf16.msra.mxu0 %v901
    %1420 = vmatprep.subr.bf16.mxu0 %v906
    %1421 = vmatpush1.bf16.msra.mxu0 %v905
    %1422 = vmatprep.subr.bf16.mxu0 %v910
    %1423 = vmatpush1.bf16.msra.mxu0 %v909
    %1424 = vmatprep.subr.bf16.mxu0 %v914
    %1425 = vmatpush1.bf16.msra.mxu0 %v913
    %1426 = vmatprep.subr.bf16.mxu0 %v918
    %1427 = vmatpush1.bf16.msra.mxu0 %v917
    %1428 = vmatprep.subr.bf16.mxu0 %v922
    %1429 = vmatpush1.bf16.msra.mxu0 %v921
    %1430 = vmatprep.subr.bf16.mxu0 %v926
    %1431 = vmatpush1.bf16.msra.mxu0 %v925
    %1432 = vmatprep.subr.bf16.mxu0 %v930
    %1433 = vmatpush1.bf16.msra.mxu0 %v929
    %1434 = vmatprep.subr.bf16.mxu0 %v934
    %1435 = vmatpush1.bf16.msra.mxu0 %v933
    %1436 = vmatprep.subr.bf16.mxu0 %v938
    %1437 = vmatpush1.bf16.msra.mxu0 %v937
    %1438 = vmatprep.mubr.bf16.mxu0 %v366
    %1439 = vmatmul.mubr.bf16.gmra.mrb[0].mxu0 %v365
    %v1440 = vpop.f32.mrb[0].mxu0
    %v1441 = vadd.f32 %v1328, %v1440
    %v1442 = vpop.f32.mrb[0].mxu0
    %v1443 = vadd.f32 %v1330, %v1442
    %v1444 = vpop.f32.mrb[0].mxu0
    %v1445 = vadd.f32 %v1332, %v1444
    %v1446 = vpop.f32.mrb[0].mxu0
    %v1447 = vadd.f32 %v1334, %v1446
    %1448 = vmatprep.mubr.bf16.mxu0 %v370
    %1449 = vmatmul.mubr.bf16.gmra.mrb[0].mxu0 %v369
    %v1450 = vpop.f32.mrb[0].mxu0
    %v1451 = vadd.f32 %v1338, %v1450
    %v1452 = vpop.f32.mrb[0].mxu0
    %v1453 = vadd.f32 %v1340, %v1452
    %v1454 = vpop.f32.mrb[0].mxu0
    %v1455 = vadd.f32 %v1342, %v1454
    %v1456 = vpop.f32.mrb[0].mxu0
    %v1457 = vadd.f32 %v1344, %v1456
    %1458 = vmatprep.mubr.bf16.mxu0 %v374
    %1459 = vmatmul.mubr.bf16.gmra.mrb[0].mxu0 %v373
    %v1460 = vpop.f32.mrb[0].mxu0
    %v1461 = vadd.f32 %v1348, %v1460
    %v1462 = vpop.f32.mrb[0].mxu0
    %v1463 = vadd.f32 %v1350, %v1462
    %v1464 = vpop.f32.mrb[0].mxu0
    %v1465 = vadd.f32 %v1352, %v1464
    %v1466 = vpop.f32.mrb[0].mxu0
    %v1467 = vadd.f32 %v1354, %v1466
    %1468 = vmatprep.mubr.bf16.mxu0 %v378
    %1469 = vmatmul.mubr.bf16.gmra.mrb[0].mxu0 %v377
    %v1470 = vpop.f32.mrb[0].mxu0
    %v1471 = vadd.f32 %v1358, %v1470
    %v1472 = vpop.f32.mrb[0].mxu0
    %v1473 = vadd.f32 %v1360, %v1472
    %v1474 = vpop.f32.mrb[0].mxu0
    %v1475 = vadd.f32 %v1362, %v1474
    %v1476 = vpop.f32.mrb[0].mxu0
    %v1477 = vadd.f32 %v1364, %v1476
    %1478 = vmatprep.mubr.bf16.mxu0 %v382
    %1479 = vmatmul.mubr.bf16.gmra.mrb[0].mxu0 %v381
    %v1480 = vpop.f32.mrb[0].mxu0
    %v1481 = vadd.f32 %v1368, %v1480
    %v1482 = vpop.f32.mrb[0].mxu0
    %v1483 = vadd.f32 %v1370, %v1482
    %v1484 = vpop.f32.mrb[0].mxu0
    %v1485 = vadd.f32 %v1372, %v1484
    %v1486 = vpop.f32.mrb[0].mxu0
    %v1487 = vadd.f32 %v1374, %v1486
    %1488 = vmatprep.mubr.bf16.mxu0 %v386
    %1489 = vmatmul.mubr.bf16.gmra.mrb[0].mxu0 %v385
    %v1490 = vpop.f32.mrb[0].mxu0
    %v1491 = vadd.f32 %v1378, %v1490
    %v1492 = vpop.f32.mrb[0].mxu0
    %v1493 = vadd.f32 %v1380, %v1492
    %v1494 = vpop.f32.mrb[0].mxu0
    %v1495 = vadd.f32 %v1382, %v1494
    %v1496 = vpop.f32.mrb[0].mxu0
    %v1497 = vadd.f32 %v1384, %v1496
    %1498 = vmatprep.mubr.bf16.mxu0 %v390
    %1499 = vmatmul.mubr.bf16.gmra.mrb[0].mxu0 %v389
    %v1500 = vpop.f32.mrb[0].mxu0
    %v1501 = vadd.f32 %v1388, %v1500
    %v1502 = vpop.f32.mrb[0].mxu0
    %v1503 = vadd.f32 %v1390, %v1502
    %v1504 = vpop.f32.mrb[0].mxu0
    %v1505 = vadd.f32 %v1392, %v1504
    %v1506 = vpop.f32.mrb[0].mxu0
    %v1507 = vadd.f32 %v1394, %v1506
    %1508 = vmatprep.mubr.bf16.mxu0 %v394
    %1509 = vmatmul.mubr.bf16.gmra.mrb[0].mxu0 %v393
    %v1510 = vpop.f32.mrb[0].mxu0
    %v1511 = vadd.f32 %v1398, %v1510
    %v1512 = vpop.f32.mrb[0].mxu0
    %v1513 = vadd.f32 %v1400, %v1512
    %v1514 = vpop.f32.mrb[0].mxu0
    %v1515 = vadd.f32 %v1402, %v1514
    %v1516 = vpop.f32.mrb[0].mxu0
    %v1517 = vadd.f32 %v1404, %v1516
    %1518 = vdwg.mxu0
    %v1519 = vmax.f32 %v1215, 0.0
    %v1520 = vmax.f32 %v1217, 0.0
    %v1521 = vmax.f32 %v1441, 0.0
    %v1522 = vmax.f32 %v1443, 0.0
    %v1523 = vmax.f32 %v1219, 0.0
    %v1524 = vmax.f32 %v1221, 0.0
    %v1525 = vmax.f32 %v1445, 0.0
    %v1526 = vmax.f32 %v1447, 0.0
    %v1527 = vmax.f32 %v1225, 0.0
    %v1528 = vmax.f32 %v1227, 0.0
    %v1529 = vmax.f32 %v1451, 0.0
    %v1530 = vmax.f32 %v1453, 0.0
    %v1531 = vmax.f32 %v1229, 0.0
    %v1532 = vmax.f32 %v1231, 0.0
    %v1533 = vmax.f32 %v1455, 0.0
    %v1534 = vmax.f32 %v1457, 0.0
    %v1535 = vmax.f32 %v1235, 0.0
    %v1536 = vmax.f32 %v1237, 0.0
    %v1537 = vmax.f32 %v1461, 0.0
    %v1538 = vmax.f32 %v1463, 0.0
    %v1539 = vmax.f32 %v1239, 0.0
    %v1540 = vmax.f32 %v1241, 0.0
    %v1541 = vmax.f32 %v1465, 0.0
    %v1542 = vmax.f32 %v1467, 0.0
    %v1543 = vmax.f32 %v1245, 0.0
    %v1544 = vmax.f32 %v1247, 0.0
    %v1545 = vmax.f32 %v1471, 0.0
    %v1546 = vmax.f32 %v1473, 0.0
    %v1547 = vmax.f32 %v1249, 0.0
    %v1548 = vmax.f32 %v1251, 0.0
    %v1549 = vmax.f32 %v1475, 0.0
    %v1550 = vmax.f32 %v1477, 0.0
    %v1551 = vmax.f32 %v1255, 0.0
    %v1552 = vmax.f32 %v1257, 0.0
    %v1553 = vmax.f32 %v1481, 0.0
    %v1554 = vmax.f32 %v1483, 0.0
    %v1555 = vmax.f32 %v1259, 0.0
    %v1556 = vmax.f32 %v1261, 0.0
    %v1557 = vmax.f32 %v1485, 0.0
    %v1558 = vmax.f32 %v1487, 0.0
    %v1559 = vmax.f32 %v1265, 0.0
    %v1560 = vmax.f32 %v1267, 0.0
    %v1561 = vmax.f32 %v1491, 0.0
    %v1562 = vmax.f32 %v1493, 0.0
    %v1563 = vmax.f32 %v1269, 0.0
    %v1564 = vmax.f32 %v1271, 0.0
    %v1565 = vmax.f32 %v1495, 0.0
    %v1566 = vmax.f32 %v1497, 0.0
    %v1567 = vmax.f32 %v1275, 0.0
    %v1568 = vmax.f32 %v1277, 0.0
    %v1569 = vmax.f32 %v1501, 0.0
    %v1570 = vmax.f32 %v1503, 0.0
    %v1571 = vmax.f32 %v1279, 0.0
    %v1572 = vmax.f32 %v1281, 0.0
    %v1573 = vmax.f32 %v1505, 0.0
    %v1574 = vmax.f32 %v1507, 0.0
    %v1575 = vmax.f32 %v1285, 0.0
    %v1576 = vmax.f32 %v1287, 0.0
    %v1577 = vmax.f32 %v1511, 0.0
    %v1578 = vmax.f32 %v1513, 0.0
    %v1579 = vmax.f32 %v1289, 0.0
    %v1580 = vmax.f32 %v1291, 0.0
    %v1581 = vmax.f32 %v1515, 0.0
    %v1582 = vmax.f32 %v1517, 0.0
    %v1583 = vpack.c.bf16 %v1523, %v1519
    %v1584 = vpack.c.bf16 %v1524, %v1520
    %v1585 = vpack.c.bf16 %v1525, %v1521
    %v1586 = vpack.c.bf16 %v1526, %v1522
    %v1587 = vpack.c.bf16 %v1531, %v1527
    %v1588 = vpack.c.bf16 %v1532, %v1528
    %v1589 = vpack.c.bf16 %v1533, %v1529
    %v1590 = vpack.c.bf16 %v1534, %v1530
    %v1591 = vpack.c.bf16 %v1539, %v1535
    %v1592 = vpack.c.bf16 %v1540, %v1536
    %v1593 = vpack.c.bf16 %v1541, %v1537
    %v1594 = vpack.c.bf16 %v1542, %v1538
    %v1595 = vpack.c.bf16 %v1547, %v1543
    %v1596 = vpack.c.bf16 %v1548, %v1544
    %v1597 = vpack.c.bf16 %v1549, %v1545
    %v1598 = vpack.c.bf16 %v1550, %v1546
    %v1599 = vpack.c.bf16 %v1555, %v1551
    %v1600 = vpack.c.bf16 %v1556, %v1552
    %v1601 = vpack.c.bf16 %v1557, %v1553
    %v1602 = vpack.c.bf16 %v1558, %v1554
    %v1603 = vpack.c.bf16 %v1563, %v1559
    %v1604 = vpack.c.bf16 %v1564, %v1560
    %v1605 = vpack.c.bf16 %v1565, %v1561
    %v1606 = vpack.c.bf16 %v1566, %v1562
    %v1607 = vpack.c.bf16 %v1571, %v1567
    %v1608 = vpack.c.bf16 %v1572, %v1568
    %v1609 = vpack.c.bf16 %v1573, %v1569
    %v1610 = vpack.c.bf16 %v1574, %v1570
    %v1611 = vpack.c.bf16 %v1579, %v1575
    %v1612 = vpack.c.bf16 %v1580, %v1576
    %v1613 = vpack.c.bf16 %v1581, %v1577
    %v1614 = vpack.c.bf16 %v1582, %v1578
    %v1615 = vld [vmem:[#allocation8] sm:$0xff]
    %v1616 = vld [vmem:[#allocation8 + $0x8] sm:$0xff]
    %v1617 = vld [vmem:[#allocation8 + $0x10] sm:$0xff]
    %v1618 = vld [vmem:[#allocation8 + $0x18] sm:$0xff]
    %v1619 = vld [vmem:[#allocation8 + $0x20] sm:$0xff]
    %v1620 = vld [vmem:[#allocation8 + $0x28] sm:$0xff]
    %v1621 = vld [vmem:[#allocation8 + $0x30] sm:$0xff]
    %v1622 = vld [vmem:[#allocation8 + $0x38] sm:$0xff]
    %v1623 = vld [vmem:[#allocation8 + $0x40] sm:$0xff]
    %v1624 = vld [vmem:[#allocation8 + $0x48] sm:$0xff]
    %v1625 = vld [vmem:[#allocation8 + $0x50] sm:$0xff]
    %v1626 = vld [vmem:[#allocation8 + $0x58] sm:$0xff]
    %v1627 = vld [vmem:[#allocation8 + $0x60] sm:$0xff]
    %v1628 = vld [vmem:[#allocation8 + $0x68] sm:$0xff]
    %v1629 = vld [vmem:[#allocation8 + $0x70] sm:$0xff]
    %v1630 = vld [vmem:[#allocation8 + $0x78] sm:$0xff]
    %v1631 = vld [vmem:[#allocation8 + $0x80] sm:$0xff]
    %v1632 = vld [vmem:[#allocation8 + $0x88] sm:$0xff]
    %v1633 = vld [vmem:[#allocation8 + $0x90] sm:$0xff]
    %v1634 = vld [vmem:[#allocation8 + $0x98] sm:$0xff]
    %v1635 = vld [vmem:[#allocation8 + $0xa0] sm:$0xff]
    %v1636 = vld [vmem:[#allocation8 + $0xa8] sm:$0xff]
    %v1637 = vld [vmem:[#allocation8 + $0xb0] sm:$0xff]
    %v1638 = vld [vmem:[#allocation8 + $0xb8] sm:$0xff]
    %v1639 = vld [vmem:[#allocation8 + $0xc0] sm:$0xff]
    %v1640 = vld [vmem:[#allocation8 + $0xc8] sm:$0xff]
    %v1641 = vld [vmem:[#allocation8 + $0xd0] sm:$0xff]
    %v1642 = vld [vmem:[#allocation8 + $0xd8] sm:$0xff]
    %v1643 = vld [vmem:[#allocation8 + $0xe0] sm:$0xff]
    %v1644 = vld [vmem:[#allocation8 + $0xe8] sm:$0xff]
    %v1645 = vld [vmem:[#allocation8 + $0xf0] sm:$0xff]
    %v1646 = vld [vmem:[#allocation8 + $0xf8] sm:$0xff]
    %v1647 = vld [vmem:[#allocation8 + $0x100] sm:$0xff]
    %v1648 = vld [vmem:[#allocation8 + $0x108] sm:$0xff]
    %v1649 = vld [vmem:[#allocation8 + $0x110] sm:$0xff]
    %v1650 = vld [vmem:[#allocation8 + $0x118] sm:$0xff]
    %v1651 = vld [vmem:[#allocation8 + $0x120] sm:$0xff]
    %v1652 = vld [vmem:[#allocation8 + $0x128] sm:$0xff]
    %v1653 = vld [vmem:[#allocation8 + $0x130] sm:$0xff]
    %v1654 = vld [vmem:[#allocation8 + $0x138] sm:$0xff]
    %v1655 = vld [vmem:[#allocation8 + $0x140] sm:$0xff]
    %v1656 = vld [vmem:[#allocation8 + $0x148] sm:$0xff]
    %v1657 = vld [vmem:[#allocation8 + $0x150] sm:$0xff]
    %v1658 = vld [vmem:[#allocation8 + $0x158] sm:$0xff]
    %v1659 = vld [vmem:[#allocation8 + $0x160] sm:$0xff]
    %v1660 = vld [vmem:[#allocation8 + $0x168] sm:$0xff]
    %v1661 = vld [vmem:[#allocation8 + $0x170] sm:$0xff]
    %v1662 = vld [vmem:[#allocation8 + $0x178] sm:$0xff]
    %v1663 = vld [vmem:[#allocation8 + $0x180] sm:$0xff]
    %v1664 = vld [vmem:[#allocation8 + $0x188] sm:$0xff]
    %v1665 = vld [vmem:[#allocation8 + $0x190] sm:$0xff]
    %v1666 = vld [vmem:[#allocation8 + $0x198] sm:$0xff]
    %v1667 = vld [vmem:[#allocation8 + $0x1a0] sm:$0xff]
    %v1668 = vld [vmem:[#allocation8 + $0x1a8] sm:$0xff]
    %v1669 = vld [vmem:[#allocation8 + $0x1b0] sm:$0xff]
    %v1670 = vld [vmem:[#allocation8 + $0x1b8] sm:$0xff]
    %v1671 = vld [vmem:[#allocation8 + $0x1c0] sm:$0xff]
    %v1672 = vld [vmem:[#allocation8 + $0x1c8] sm:$0xff]
    %v1673 = vld [vmem:[#allocation8 + $0x1d0] sm:$0xff]
    %v1674 = vld [vmem:[#allocation8 + $0x1d8] sm:$0xff]
    %v1675 = vld [vmem:[#allocation8 + $0x1e0] sm:$0xff]
    %v1676 = vld [vmem:[#allocation8 + $0x1e8] sm:$0xff]
    %v1677 = vld [vmem:[#allocation8 + $0x1f0] sm:$0xff]
    %v1678 = vld [vmem:[#allocation8 + $0x1f8] sm:$0xff]
    %v1679 = vld [vmem:[#allocation8 + $0x200] sm:$0xff]
    %v1680 = vld [vmem:[#allocation8 + $0x208] sm:$0xff]
    %v1681 = vld [vmem:[#allocation8 + $0x210] sm:$0xff]
    %v1682 = vld [vmem:[#allocation8 + $0x218] sm:$0xff]
    %v1683 = vld [vmem:[#allocation8 + $0x220] sm:$0xff]
    %v1684 = vld [vmem:[#allocation8 + $0x228] sm:$0xff]
    %v1685 = vld [vmem:[#allocation8 + $0x230] sm:$0xff]
    %v1686 = vld [vmem:[#allocation8 + $0x238] sm:$0xff]
    %v1687 = vld [vmem:[#allocation8 + $0x240] sm:$0xff]
    %v1688 = vld [vmem:[#allocation8 + $0x248] sm:$0xff]
    %v1689 = vld [vmem:[#allocation8 + $0x250] sm:$0xff]
    %v1690 = vld [vmem:[#allocation8 + $0x258] sm:$0xff]
    %v1691 = vld [vmem:[#allocation8 + $0x260] sm:$0xff]
    %v1692 = vld [vmem:[#allocation8 + $0x268] sm:$0xff]
    %v1693 = vld [vmem:[#allocation8 + $0x270] sm:$0xff]
    %v1694 = vld [vmem:[#allocation8 + $0x278] sm:$0xff]
    %v1695 = vld [vmem:[#allocation8 + $0x280] sm:$0xff]
    %v1696 = vld [vmem:[#allocation8 + $0x288] sm:$0xff]
    %v1697 = vld [vmem:[#allocation8 + $0x290] sm:$0xff]
    %v1698 = vld [vmem:[#allocation8 + $0x298] sm:$0xff]
    %v1699 = vld [vmem:[#allocation8 + $0x2a0] sm:$0xff]
    %v1700 = vld [vmem:[#allocation8 + $0x2a8] sm:$0xff]
    %v1701 = vld [vmem:[#allocation8 + $0x2b0] sm:$0xff]
    %v1702 = vld [vmem:[#allocation8 + $0x2b8] sm:$0xff]
    %v1703 = vld [vmem:[#allocation8 + $0x2c0] sm:$0xff]
    %v1704 = vld [vmem:[#allocation8 + $0x2c8] sm:$0xff]
    %v1705 = vld [vmem:[#allocation8 + $0x2d0] sm:$0xff]
    %v1706 = vld [vmem:[#allocation8 + $0x2d8] sm:$0xff]
    %v1707 = vld [vmem:[#allocation8 + $0x2e0] sm:$0xff]
    %v1708 = vld [vmem:[#allocation8 + $0x2e8] sm:$0xff]
    %v1709 = vld [vmem:[#allocation8 + $0x2f0] sm:$0xff]
    %v1710 = vld [vmem:[#allocation8 + $0x2f8] sm:$0xff]
    %v1711 = vld [vmem:[#allocation8 + $0x300] sm:$0xff]
    %v1712 = vld [vmem:[#allocation8 + $0x308] sm:$0xff]
    %v1713 = vld [vmem:[#allocation8 + $0x310] sm:$0xff]
    %v1714 = vld [vmem:[#allocation8 + $0x318] sm:$0xff]
    %v1715 = vld [vmem:[#allocation8 + $0x320] sm:$0xff]
    %v1716 = vld [vmem:[#allocation8 + $0x328] sm:$0xff]
    %v1717 = vld [vmem:[#allocation8 + $0x330] sm:$0xff]
    %v1718 = vld [vmem:[#allocation8 + $0x338] sm:$0xff]
    %v1719 = vld [vmem:[#allocation8 + $0x340] sm:$0xff]
    %v1720 = vld [vmem:[#allocation8 + $0x348] sm:$0xff]
    %v1721 = vld [vmem:[#allocation8 + $0x350] sm:$0xff]
    %v1722 = vld [vmem:[#allocation8 + $0x358] sm:$0xff]
    %v1723 = vld [vmem:[#allocation8 + $0x360] sm:$0xff]
    %v1724 = vld [vmem:[#allocation8 + $0x368] sm:$0xff]
    %v1725 = vld [vmem:[#allocation8 + $0x370] sm:$0xff]
    %v1726 = vld [vmem:[#allocation8 + $0x378] sm:$0xff]
    %v1727 = vld [vmem:[#allocation8 + $0x380] sm:$0xff]
    %v1728 = vld [vmem:[#allocation8 + $0x388] sm:$0xff]
    %v1729 = vld [vmem:[#allocation8 + $0x390] sm:$0xff]
    %v1730 = vld [vmem:[#allocation8 + $0x398] sm:$0xff]
    %v1731 = vld [vmem:[#allocation8 + $0x3a0] sm:$0xff]
    %v1732 = vld [vmem:[#allocation8 + $0x3a8] sm:$0xff]
    %v1733 = vld [vmem:[#allocation8 + $0x3b0] sm:$0xff]
    %v1734 = vld [vmem:[#allocation8 + $0x3b8] sm:$0xff]
    %v1735 = vld [vmem:[#allocation8 + $0x3c0] sm:$0xff]
    %v1736 = vld [vmem:[#allocation8 + $0x3c8] sm:$0xff]
    %v1737 = vld [vmem:[#allocation8 + $0x3d0] sm:$0xff]
    %v1738 = vld [vmem:[#allocation8 + $0x3d8] sm:$0xff]
    %v1739 = vld [vmem:[#allocation8 + $0x3e0] sm:$0xff]
    %v1740 = vld [vmem:[#allocation8 + $0x3e8] sm:$0xff]
    %v1741 = vld [vmem:[#allocation8 + $0x3f0] sm:$0xff]
    %v1742 = vld [vmem:[#allocation8 + $0x3f8] sm:$0xff]
    %v1743 = vld [vmem:[#allocation5 + $0x10] sm:$0xff]
    %v1744 = vld [vmem:[#allocation5 + $0x18] sm:$0xff]
    %v1745 = vld [vmem:[#allocation5 + $0x50] sm:$0xff]
    %v1746 = vld [vmem:[#allocation5 + $0x58] sm:$0xff]
    %v1747 = vld [vmem:[#allocation5 + $0x90] sm:$0xff]
    %v1748 = vld [vmem:[#allocation5 + $0x98] sm:$0xff]
    %v1749 = vld [vmem:[#allocation5 + $0xd0] sm:$0xff]
    %v1750 = vld [vmem:[#allocation5 + $0xd8] sm:$0xff]
    %v1751 = vld [vmem:[#allocation5 + $0x110] sm:$0xff]
    %v1752 = vld [vmem:[#allocation5 + $0x118] sm:$0xff]
    %v1753 = vld [vmem:[#allocation5 + $0x150] sm:$0xff]
    %v1754 = vld [vmem:[#allocation5 + $0x158] sm:$0xff]
    %v1755 = vld [vmem:[#allocation5 + $0x190] sm:$0xff]
    %v1756 = vld [vmem:[#allocation5 + $0x198] sm:$0xff]
    %v1757 = vld [vmem:[#allocation5 + $0x1d0] sm:$0xff]
    %v1758 = vld [vmem:[#allocation5 + $0x1d8] sm:$0xff]
    %v1759 = vld [vmem:[#allocation5 + $0x210] sm:$0xff]
    %v1760 = vld [vmem:[#allocation5 + $0x218] sm:$0xff]
    %v1761 = vld [vmem:[#allocation5 + $0x250] sm:$0xff]
    %v1762 = vld [vmem:[#allocation5 + $0x258] sm:$0xff]
    %v1763 = vld [vmem:[#allocation5 + $0x290] sm:$0xff]
    %v1764 = vld [vmem:[#allocation5 + $0x298] sm:$0xff]
    %v1765 = vld [vmem:[#allocation5 + $0x2d0] sm:$0xff]
    %v1766 = vld [vmem:[#allocation5 + $0x2d8] sm:$0xff]
    %v1767 = vld [vmem:[#allocation5 + $0x310] sm:$0xff]
    %v1768 = vld [vmem:[#allocation5 + $0x318] sm:$0xff]
    %v1769 = vld [vmem:[#allocation5 + $0x350] sm:$0xff]
    %v1770 = vld [vmem:[#allocation5 + $0x358] sm:$0xff]
    %v1771 = vld [vmem:[#allocation5 + $0x390] sm:$0xff]
    %v1772 = vld [vmem:[#allocation5 + $0x398] sm:$0xff]
    %v1773 = vld [vmem:[#allocation5 + $0x3d0] sm:$0xff]
    %v1774 = vld [vmem:[#allocation5 + $0x3d8] sm:$0xff]
    %v1775 = vld [vmem:[#allocation5 + $0x410] sm:$0xff]
    %v1776 = vld [vmem:[#allocation5 + $0x418] sm:$0xff]
    %v1777 = vld [vmem:[#allocation5 + $0x450] sm:$0xff]
    %v1778 = vld [vmem:[#allocation5 + $0x458] sm:$0xff]
    %v1779 = vld [vmem:[#allocation5 + $0x490] sm:$0xff]
    %v1780 = vld [vmem:[#allocation5 + $0x498] sm:$0xff]
    %v1781 = vld [vmem:[#allocation5 + $0x4d0] sm:$0xff]
    %v1782 = vld [vmem:[#allocation5 + $0x4d8] sm:$0xff]
    %v1783 = vld [vmem:[#allocation5 + $0x510] sm:$0xff]
    %v1784 = vld [vmem:[#allocation5 + $0x518] sm:$0xff]
    %v1785 = vld [vmem:[#allocation5 + $0x550] sm:$0xff]
    %v1786 = vld [vmem:[#allocation5 + $0x558] sm:$0xff]
    %v1787 = vld [vmem:[#allocation5 + $0x590] sm:$0xff]
    %v1788 = vld [vmem:[#allocation5 + $0x598] sm:$0xff]
    %v1789 = vld [vmem:[#allocation5 + $0x5d0] sm:$0xff]
    %v1790 = vld [vmem:[#allocation5 + $0x5d8] sm:$0xff]
    %v1791 = vld [vmem:[#allocation5 + $0x610] sm:$0xff]
    %v1792 = vld [vmem:[#allocation5 + $0x618] sm:$0xff]
    %v1793 = vld [vmem:[#allocation5 + $0x650] sm:$0xff]
    %v1794 = vld [vmem:[#allocation5 + $0x658] sm:$0xff]
    %v1795 = vld [vmem:[#allocation5 + $0x690] sm:$0xff]
    %v1796 = vld [vmem:[#allocation5 + $0x698] sm:$0xff]
    %v1797 = vld [vmem:[#allocation5 + $0x6d0] sm:$0xff]
    %v1798 = vld [vmem:[#allocation5 + $0x6d8] sm:$0xff]
    %v1799 = vld [vmem:[#allocation5 + $0x710] sm:$0xff]
    %v1800 = vld [vmem:[#allocation5 + $0x718] sm:$0xff]
    %v1801 = vld [vmem:[#allocation5 + $0x750] sm:$0xff]
    %v1802 = vld [vmem:[#allocation5 + $0x758] sm:$0xff]
    %v1803 = vld [vmem:[#allocation5 + $0x790] sm:$0xff]
    %v1804 = vld [vmem:[#allocation5 + $0x798] sm:$0xff]
    %v1805 = vld [vmem:[#allocation5 + $0x7d0] sm:$0xff]
    %v1806 = vld [vmem:[#allocation5 + $0x7d8] sm:$0xff]
    %v1807 = vld [vmem:[#allocation5 + $0x810] sm:$0xff]
    %v1808 = vld [vmem:[#allocation5 + $0x818] sm:$0xff]
    %v1809 = vld [vmem:[#allocation5 + $0x850] sm:$0xff]
    %v1810 = vld [vmem:[#allocation5 + $0x858] sm:$0xff]
    %v1811 = vld [vmem:[#allocation5 + $0x890] sm:$0xff]
    %v1812 = vld [vmem:[#allocation5 + $0x898] sm:$0xff]
    %v1813 = vld [vmem:[#allocation5 + $0x8d0] sm:$0xff]
    %v1814 = vld [vmem:[#allocation5 + $0x8d8] sm:$0xff]
    %v1815 = vld [vmem:[#allocation5 + $0x910] sm:$0xff]
    %v1816 = vld [vmem:[#allocation5 + $0x918] sm:$0xff]
    %v1817 = vld [vmem:[#allocation5 + $0x950] sm:$0xff]
    %v1818 = vld [vmem:[#allocation5 + $0x958] sm:$0xff]
    %v1819 = vld [vmem:[#allocation5 + $0x990] sm:$0xff]
    %v1820 = vld [vmem:[#allocation5 + $0x998] sm:$0xff]
    %v1821 = vld [vmem:[#allocation5 + $0x9d0] sm:$0xff]
    %v1822 = vld [vmem:[#allocation5 + $0x9d8] sm:$0xff]
    %v1823 = vld [vmem:[#allocation5 + $0xa10] sm:$0xff]
    %v1824 = vld [vmem:[#allocation5 + $0xa18] sm:$0xff]
    %v1825 = vld [vmem:[#allocation5 + $0xa50] sm:$0xff]
    %v1826 = vld [vmem:[#allocation5 + $0xa58] sm:$0xff]
    %v1827 = vld [vmem:[#allocation5 + $0xa90] sm:$0xff]
    %v1828 = vld [vmem:[#allocation5 + $0xa98] sm:$0xff]
    %v1829 = vld [vmem:[#allocation5 + $0xad0] sm:$0xff]
    %v1830 = vld [vmem:[#allocation5 + $0xad8] sm:$0xff]
    %v1831 = vld [vmem:[#allocation5 + $0xb10] sm:$0xff]
    %v1832 = vld [vmem:[#allocation5 + $0xb18] sm:$0xff]
    %v1833 = vld [vmem:[#allocation5 + $0xb50] sm:$0xff]
    %v1834 = vld [vmem:[#allocation5 + $0xb58] sm:$0xff]
    %v1835 = vld [vmem:[#allocation5 + $0xb90] sm:$0xff]
    %v1836 = vld [vmem:[#allocation5 + $0xb98] sm:$0xff]
    %v1837 = vld [vmem:[#allocation5 + $0xbd0] sm:$0xff]
    %v1838 = vld [vmem:[#allocation5 + $0xbd8] sm:$0xff]
    %v1839 = vld [vmem:[#allocation5 + $0xc10] sm:$0xff]
    %v1840 = vld [vmem:[#allocation5 + $0xc18] sm:$0xff]
    %v1841 = vld [vmem:[#allocation5 + $0xc50] sm:$0xff]
    %v1842 = vld [vmem:[#allocation5 + $0xc58] sm:$0xff]
    %v1843 = vld [vmem:[#allocation5 + $0xc90] sm:$0xff]
    %v1844 = vld [vmem:[#allocation5 + $0xc98] sm:$0xff]
    %v1845 = vld [vmem:[#allocation5 + $0xcd0] sm:$0xff]
    %v1846 = vld [vmem:[#allocation5 + $0xcd8] sm:$0xff]
    %v1847 = vld [vmem:[#allocation5 + $0xd10] sm:$0xff]
    %v1848 = vld [vmem:[#allocation5 + $0xd18] sm:$0xff]
    %v1849 = vld [vmem:[#allocation5 + $0xd50] sm:$0xff]
    %v1850 = vld [vmem:[#allocation5 + $0xd58] sm:$0xff]
    %v1851 = vld [vmem:[#allocation5 + $0xd90] sm:$0xff]
    %v1852 = vld [vmem:[#allocation5 + $0xd98] sm:$0xff]
    %v1853 = vld [vmem:[#allocation5 + $0xdd0] sm:$0xff]
    %v1854 = vld [vmem:[#allocation5 + $0xdd8] sm:$0xff]
    %v1855 = vld [vmem:[#allocation5 + $0xe10] sm:$0xff]
    %v1856 = vld [vmem:[#allocation5 + $0xe18] sm:$0xff]
    %v1857 = vld [vmem:[#allocation5 + $0xe50] sm:$0xff]
    %v1858 = vld [vmem:[#allocation5 + $0xe58] sm:$0xff]
    %v1859 = vld [vmem:[#allocation5 + $0xe90] sm:$0xff]
    %v1860 = vld [vmem:[#allocation5 + $0xe98] sm:$0xff]
    %v1861 = vld [vmem:[#allocation5 + $0xed0] sm:$0xff]
    %v1862 = vld [vmem:[#allocation5 + $0xed8] sm:$0xff]
    %v1863 = vld [vmem:[#allocation5 + $0xf10] sm:$0xff]
    %v1864 = vld [vmem:[#allocation5 + $0xf18] sm:$0xff]
    %v1865 = vld [vmem:[#allocation5 + $0xf50] sm:$0xff]
    %v1866 = vld [vmem:[#allocation5 + $0xf58] sm:$0xff]
    %v1867 = vld [vmem:[#allocation5 + $0xf90] sm:$0xff]
    %v1868 = vld [vmem:[#allocation5 + $0xf98] sm:$0xff]
    %v1869 = vld [vmem:[#allocation5 + $0xfd0] sm:$0xff]
    %v1870 = vld [vmem:[#allocation5 + $0xfd8] sm:$0xff]
    %v1871 = vld [vmem:[#allocation7 + $0x4] sm:$0xf]
    %v1873 = vlaneseq
    %v1874 = vshrl.u32 %v1873, 7
    %v1875 = vsub.s32 0, %v1874
    %v1876 = vrot.slane %v1871, %v1875
    %v1877 = vlaneseq
    %v1878 = vshrl.u32 %v1877, 7
    %v1879 = vsub.s32 1, %v1878
    %v1880 = vrot.slane %v1871, %v1879
    %v1881 = vlaneseq
    %v1882 = vshrl.u32 %v1881, 7
    %v1883 = vsub.s32 2, %v1882
    %v1884 = vrot.slane %v1871, %v1883
    %v1885 = vlaneseq
    %v1886 = vshrl.u32 %v1885, 7
    %v1887 = vsub.s32 3, %v1886
    %v1888 = vrot.slane %v1871, %v1887
    %v2021 = vunpack.c.l.b16 %v1743
    %v2022 = vunpack.c.h.b16 %v1743
    %v2023 = vunpack.c.l.b16 %v1744
    %v2024 = vunpack.c.h.b16 %v1744
    %v2025 = vunpack.c.l.b16 %v1745
    %v2026 = vunpack.c.h.b16 %v1745
    %v2027 = vunpack.c.l.b16 %v1746
    %v2028 = vunpack.c.h.b16 %v1746
    %v2029 = vunpack.c.l.b16 %v1747
    %v2030 = vunpack.c.h.b16 %v1747
    %v2031 = vunpack.c.l.b16 %v1748
    %v2032 = vunpack.c.h.b16 %v1748
    %v2033 = vunpack.c.l.b16 %v1749
    %v2034 = vunpack.c.h.b16 %v1749
    %v2035 = vunpack.c.l.b16 %v1750
    %v2036 = vunpack.c.h.b16 %v1750
    %v2037 = vunpack.c.l.b16 %v1751
    %v2038 = vunpack.c.h.b16 %v1751
    %v2039 = vunpack.c.l.b16 %v1752
    %v2040 = vunpack.c.h.b16 %v1752
    %v2041 = vunpack.c.l.b16 %v1753
    %v2042 = vunpack.c.h.b16 %v1753
    %v2043 = vunpack.c.l.b16 %v1754
    %v2044 = vunpack.c.h.b16 %v1754
    %v2045 = vunpack.c.l.b16 %v1755
    %v2046 = vunpack.c.h.b16 %v1755
    %v2047 = vunpack.c.l.b16 %v1756
    %v2048 = vunpack.c.h.b16 %v1756
    %v2049 = vunpack.c.l.b16 %v1757
    %v2050 = vunpack.c.h.b16 %v1757
    %v2051 = vunpack.c.l.b16 %v1758
    %v2052 = vunpack.c.h.b16 %v1758
    %v2053 = vunpack.c.l.b16 %v1759
    %v2054 = vunpack.c.h.b16 %v1759
    %v2055 = vunpack.c.l.b16 %v1760
    %v2056 = vunpack.c.h.b16 %v1760
    %v2057 = vunpack.c.l.b16 %v1761
    %v2058 = vunpack.c.h.b16 %v1761
    %v2059 = vunpack.c.l.b16 %v1762
    %v2060 = vunpack.c.h.b16 %v1762
    %v2061 = vunpack.c.l.b16 %v1763
    %v2062 = vunpack.c.h.b16 %v1763
    %v2063 = vunpack.c.l.b16 %v1764
    %v2064 = vunpack.c.h.b16 %v1764
    %v2065 = vunpack.c.l.b16 %v1765
    %v2066 = vunpack.c.h.b16 %v1765
    %v2067 = vunpack.c.l.b16 %v1766
    %v2068 = vunpack.c.h.b16 %v1766
    %v2069 = vunpack.c.l.b16 %v1767
    %v2070 = vunpack.c.h.b16 %v1767
    %v2071 = vunpack.c.l.b16 %v1768
    %v2072 = vunpack.c.h.b16 %v1768
    %v2073 = vunpack.c.l.b16 %v1769
    %v2074 = vunpack.c.h.b16 %v1769
    %v2075 = vunpack.c.l.b16 %v1770
    %v2076 = vunpack.c.h.b16 %v1770
    %v2077 = vunpack.c.l.b16 %v1771
    %v2078 = vunpack.c.h.b16 %v1771
    %v2079 = vunpack.c.l.b16 %v1772
    %v2080 = vunpack.c.h.b16 %v1772
    %v2081 = vunpack.c.l.b16 %v1773
    %v2082 = vunpack.c.h.b16 %v1773
    %v2083 = vunpack.c.l.b16 %v1774
    %v2084 = vunpack.c.h.b16 %v1774
    %v2085 = vunpack.c.l.b16 %v1775
    %v2086 = vunpack.c.h.b16 %v1775
    %v2087 = vunpack.c.l.b16 %v1776
    %v2088 = vunpack.c.h.b16 %v1776
    %v2089 = vunpack.c.l.b16 %v1777
    %v2090 = vunpack.c.h.b16 %v1777
    %v2091 = vunpack.c.l.b16 %v1778
    %v2092 = vunpack.c.h.b16 %v1778
    %v2093 = vunpack.c.l.b16 %v1779
    %v2094 = vunpack.c.h.b16 %v1779
    %v2095 = vunpack.c.l.b16 %v1780
    %v2096 = vunpack.c.h.b16 %v1780
    %v2097 = vunpack.c.l.b16 %v1781
    %v2098 = vunpack.c.h.b16 %v1781
    %v2099 = vunpack.c.l.b16 %v1782
    %v2100 = vunpack.c.h.b16 %v1782
    %v2101 = vunpack.c.l.b16 %v1783
    %v2102 = vunpack.c.h.b16 %v1783
    %v2103 = vunpack.c.l.b16 %v1784
    %v2104 = vunpack.c.h.b16 %v1784
    %v2105 = vunpack.c.l.b16 %v1785
    %v2106 = vunpack.c.h.b16 %v1785
    %v2107 = vunpack.c.l.b16 %v1786
    %v2108 = vunpack.c.h.b16 %v1786
    %v2109 = vunpack.c.l.b16 %v1787
    %v2110 = vunpack.c.h.b16 %v1787
    %v2111 = vunpack.c.l.b16 %v1788
    %v2112 = vunpack.c.h.b16 %v1788
    %v2113 = vunpack.c.l.b16 %v1789
    %v2114 = vunpack.c.h.b16 %v1789
    %v2115 = vunpack.c.l.b16 %v1790
    %v2116 = vunpack.c.h.b16 %v1790
    %v2117 = vunpack.c.l.b16 %v1791
    %v2118 = vunpack.c.h.b16 %v1791
    %v2119 = vunpack.c.l.b16 %v1792
    %v2120 = vunpack.c.h.b16 %v1792
    %v2121 = vunpack.c.l.b16 %v1793
    %v2122 = vunpack.c.h.b16 %v1793
    %v2123 = vunpack.c.l.b16 %v1794
    %v2124 = vunpack.c.h.b16 %v1794
    %v2125 = vunpack.c.l.b16 %v1795
    %v2126 = vunpack.c.h.b16 %v1795
    %v2127 = vunpack.c.l.b16 %v1796
    %v2128 = vunpack.c.h.b16 %v1796
    %v2129 = vunpack.c.l.b16 %v1797
    %v2130 = vunpack.c.h.b16 %v1797
    %v2131 = vunpack.c.l.b16 %v1798
    %v2132 = vunpack.c.h.b16 %v1798
    %v2133 = vunpack.c.l.b16 %v1799
    %v2134 = vunpack.c.h.b16 %v1799
    %v2135 = vunpack.c.l.b16 %v1800
    %v2136 = vunpack.c.h.b16 %v1800
    %v2137 = vunpack.c.l.b16 %v1801
    %v2138 = vunpack.c.h.b16 %v1801
    %v2139 = vunpack.c.l.b16 %v1802
    %v2140 = vunpack.c.h.b16 %v1802
    %v2141 = vunpack.c.l.b16 %v1803
    %v2142 = vunpack.c.h.b16 %v1803
    %v2143 = vunpack.c.l.b16 %v1804
    %v2144 = vunpack.c.h.b16 %v1804
    %v2145 = vunpack.c.l.b16 %v1805
    %v2146 = vunpack.c.h.b16 %v1805
    %v2147 = vunpack.c.l.b16 %v1806
    %v2148 = vunpack.c.h.b16 %v1806
    %v2149 = vunpack.c.l.b16 %v1807
    %v2150 = vunpack.c.h.b16 %v1807
    %v2151 = vunpack.c.l.b16 %v1808
    %v2152 = vunpack.c.h.b16 %v1808
    %v2153 = vunpack.c.l.b16 %v1809
    %v2154 = vunpack.c.h.b16 %v1809
    %v2155 = vunpack.c.l.b16 %v1810
    %v2156 = vunpack.c.h.b16 %v1810
    %v2157 = vunpack.c.l.b16 %v1811
    %v2158 = vunpack.c.h.b16 %v1811
    %v2159 = vunpack.c.l.b16 %v1812
    %v2160 = vunpack.c.h.b16 %v1812
    %v2161 = vunpack.c.l.b16 %v1813
    %v2162 = vunpack.c.h.b16 %v1813
    %v2163 = vunpack.c.l.b16 %v1814
    %v2164 = vunpack.c.h.b16 %v1814
    %v2165 = vunpack.c.l.b16 %v1815
    %v2166 = vunpack.c.h.b16 %v1815
    %v2167 = vunpack.c.l.b16 %v1816
    %v2168 = vunpack.c.h.b16 %v1816
    %v2169 = vunpack.c.l.b16 %v1817
    %v2170 = vunpack.c.h.b16 %v1817
    %v2171 = vunpack.c.l.b16 %v1818
    %v2172 = vunpack.c.h.b16 %v1818
    %v2173 = vunpack.c.l.b16 %v1819
    %v2174 = vunpack.c.h.b16 %v1819
    %v2175 = vunpack.c.l.b16 %v1820
    %v2176 = vunpack.c.h.b16 %v1820
    %v2177 = vunpack.c.l.b16 %v1821
    %v2178 = vunpack.c.h.b16 %v1821
    %v2179 = vunpack.c.l.b16 %v1822
    %v2180 = vunpack.c.h.b16 %v1822
    %v2181 = vunpack.c.l.b16 %v1823
    %v2182 = vunpack.c.h.b16 %v1823
    %v2183 = vunpack.c.l.b16 %v1824
    %v2184 = vunpack.c.h.b16 %v1824
    %v2185 = vunpack.c.l.b16 %v1825
    %v2186 = vunpack.c.h.b16 %v1825
    %v2187 = vunpack.c.l.b16 %v1826
    %v2188 = vunpack.c.h.b16 %v1826
    %v2189 = vunpack.c.l.b16 %v1827
    %v2190 = vunpack.c.h.b16 %v1827
    %v2191 = vunpack.c.l.b16 %v1828
    %v2192 = vunpack.c.h.b16 %v1828
    %v2193 = vunpack.c.l.b16 %v1829
    %v2194 = vunpack.c.h.b16 %v1829
    %v2195 = vunpack.c.l.b16 %v1830
    %v2196 = vunpack.c.h.b16 %v1830
    %v2197 = vunpack.c.l.b16 %v1831
    %v2198 = vunpack.c.h.b16 %v1831
    %v2199 = vunpack.c.l.b16 %v1832
    %v2200 = vunpack.c.h.b16 %v1832
    %v2201 = vunpack.c.l.b16 %v1833
    %v2202 = vunpack.c.h.b16 %v1833
    %v2203 = vunpack.c.l.b16 %v1834
    %v2204 = vunpack.c.h.b16 %v1834
    %v2205 = vunpack.c.l.b16 %v1835
    %v2206 = vunpack.c.h.b16 %v1835
    %v2207 = vunpack.c.l.b16 %v1836
    %v2208 = vunpack.c.h.b16 %v1836
    %v2209 = vunpack.c.l.b16 %v1837
    %v2210 = vunpack.c.h.b16 %v1837
    %v2211 = vunpack.c.l.b16 %v1838
    %v2212 = vunpack.c.h.b16 %v1838
    %v2213 = vunpack.c.l.b16 %v1839
    %v2214 = vunpack.c.h.b16 %v1839
    %v2215 = vunpack.c.l.b16 %v1840
    %v2216 = vunpack.c.h.b16 %v1840
    %v2217 = vunpack.c.l.b16 %v1841
    %v2218 = vunpack.c.h.b16 %v1841
    %v2219 = vunpack.c.l.b16 %v1842
    %v2220 = vunpack.c.h.b16 %v1842
    %v2221 = vunpack.c.l.b16 %v1843
    %v2222 = vunpack.c.h.b16 %v1843
    %v2223 = vunpack.c.l.b16 %v1844
    %v2224 = vunpack.c.h.b16 %v1844
    %v2225 = vunpack.c.l.b16 %v1845
    %v2226 = vunpack.c.h.b16 %v1845
    %v2227 = vunpack.c.l.b16 %v1846
    %v2228 = vunpack.c.h.b16 %v1846
    %v2229 = vunpack.c.l.b16 %v1847
    %v2230 = vunpack.c.h.b16 %v1847
    %v2231 = vunpack.c.l.b16 %v1848
    %v2232 = vunpack.c.h.b16 %v1848
    %v2233 = vunpack.c.l.b16 %v1849
    %v2234 = vunpack.c.h.b16 %v1849
    %v2235 = vunpack.c.l.b16 %v1850
    %v2236 = vunpack.c.h.b16 %v1850
    %v2237 = vunpack.c.l.b16 %v1851
    %v2238 = vunpack.c.h.b16 %v1851
    %v2239 = vunpack.c.l.b16 %v1852
    %v2240 = vunpack.c.h.b16 %v1852
    %v2241 = vunpack.c.l.b16 %v1853
    %v2242 = vunpack.c.h.b16 %v1853
    %v2243 = vunpack.c.l.b16 %v1854
    %v2244 = vunpack.c.h.b16 %v1854
    %v2245 = vunpack.c.l.b16 %v1855
    %v2246 = vunpack.c.h.b16 %v1855
    %v2247 = vunpack.c.l.b16 %v1856
    %v2248 = vunpack.c.h.b16 %v1856
    %v2249 = vunpack.c.l.b16 %v1857
    %v2250 = vunpack.c.h.b16 %v1857
    %v2251 = vunpack.c.l.b16 %v1858
    %v2252 = vunpack.c.h.b16 %v1858
    %v2253 = vunpack.c.l.b16 %v1859
    %v2254 = vunpack.c.h.b16 %v1859
    %v2255 = vunpack.c.l.b16 %v1860
    %v2256 = vunpack.c.h.b16 %v1860
    %v2257 = vunpack.c.l.b16 %v1861
    %v2258 = vunpack.c.h.b16 %v1861
    %v2259 = vunpack.c.l.b16 %v1862
    %v2260 = vunpack.c.h.b16 %v1862
    %v2261 = vunpack.c.l.b16 %v1863
    %v2262 = vunpack.c.h.b16 %v1863
    %v2263 = vunpack.c.l.b16 %v1864
    %v2264 = vunpack.c.h.b16 %v1864
    %v2265 = vunpack.c.l.b16 %v1865
    %v2266 = vunpack.c.h.b16 %v1865
    %v2267 = vunpack.c.l.b16 %v1866
    %v2268 = vunpack.c.h.b16 %v1866
    %v2269 = vunpack.c.l.b16 %v1867
    %v2270 = vunpack.c.h.b16 %v1867
    %v2271 = vunpack.c.l.b16 %v1868
    %v2272 = vunpack.c.h.b16 %v1868
    %v2273 = vunpack.c.l.b16 %v1869
    %v2274 = vunpack.c.h.b16 %v1869
    %v2275 = vunpack.c.l.b16 %v1870
    %v2276 = vunpack.c.h.b16 %v1870
    %v2277 = vpack.c.b16 %v2025, %v2021
    %v2278 = vpack.c.b16 %v2026, %v2022
    %v2279 = vpack.c.b16 %v2027, %v2023
    %v2280 = vpack.c.b16 %v2028, %v2024
    %v2281 = vpack.c.b16 %v2033, %v2029
    %v2282 = vpack.c.b16 %v2034, %v2030
    %v2283 = vpack.c.b16 %v2035, %v2031
    %v2284 = vpack.c.b16 %v2036, %v2032
    %v2285 = vpack.c.b16 %v2041, %v2037
    %v2286 = vpack.c.b16 %v2042, %v2038
    %v2287 = vpack.c.b16 %v2043, %v2039
    %v2288 = vpack.c.b16 %v2044, %v2040
    %v2289 = vpack.c.b16 %v2049, %v2045
    %v2290 = vpack.c.b16 %v2050, %v2046
    %v2291 = vpack.c.b16 %v2051, %v2047
    %v2292 = vpack.c.b16 %v2052, %v2048
    %v2293 = vpack.c.b16 %v2057, %v2053
    %v2294 = vpack.c.b16 %v2058, %v2054
    %v2295 = vpack.c.b16 %v2059, %v2055
    %v2296 = vpack.c.b16 %v2060, %v2056
    %v2297 = vpack.c.b16 %v2065, %v2061
    %v2298 = vpack.c.b16 %v2066, %v2062
    %v2299 = vpack.c.b16 %v2067, %v2063
    %v2300 = vpack.c.b16 %v2068, %v2064
    %v2301 = vpack.c.b16 %v2073, %v2069
    %v2302 = vpack.c.b16 %v2074, %v2070
    %v2303 = vpack.c.b16 %v2075, %v2071
    %v2304 = vpack.c.b16 %v2076, %v2072
    %v2305 = vpack.c.b16 %v2081, %v2077
    %v2306 = vpack.c.b16 %v2082, %v2078
    %v2307 = vpack.c.b16 %v2083, %v2079
    %v2308 = vpack.c.b16 %v2084, %v2080
    %v2309 = vpack.c.b16 %v2089, %v2085
    %v2310 = vpack.c.b16 %v2090, %v2086
    %v2311 = vpack.c.b16 %v2091, %v2087
    %v2312 = vpack.c.b16 %v2092, %v2088
    %v2313 = vpack.c.b16 %v2097, %v2093
    %v2314 = vpack.c.b16 %v2098, %v2094
    %v2315 = vpack.c.b16 %v2099, %v2095
    %v2316 = vpack.c.b16 %v2100, %v2096
    %v2317 = vpack.c.b16 %v2105, %v2101
    %v2318 = vpack.c.b16 %v2106, %v2102
    %v2319 = vpack.c.b16 %v2107, %v2103
    %v2320 = vpack.c.b16 %v2108, %v2104
    %v2321 = vpack.c.b16 %v2113, %v2109
    %v2322 = vpack.c.b16 %v2114, %v2110
    %v2323 = vpack.c.b16 %v2115, %v2111
    %v2324 = vpack.c.b16 %v2116, %v2112
    %v2325 = vpack.c.b16 %v2121, %v2117
    %v2326 = vpack.c.b16 %v2122, %v2118
    %v2327 = vpack.c.b16 %v2123, %v2119
    %v2328 = vpack.c.b16 %v2124, %v2120
    %v2329 = vpack.c.b16 %v2129, %v2125
    %v2330 = vpack.c.b16 %v2130, %v2126
    %v2331 = vpack.c.b16 %v2131, %v2127
    %v2332 = vpack.c.b16 %v2132, %v2128
    %v2333 = vpack.c.b16 %v2137, %v2133
    %v2334 = vpack.c.b16 %v2138, %v2134
    %v2335 = vpack.c.b16 %v2139, %v2135
    %v2336 = vpack.c.b16 %v2140, %v2136
    %v2337 = vpack.c.b16 %v2145, %v2141
    %v2338 = vpack.c.b16 %v2146, %v2142
    %v2339 = vpack.c.b16 %v2147, %v2143
    %v2340 = vpack.c.b16 %v2148, %v2144
    %v2341 = vpack.c.b16 %v2153, %v2149
    %v2342 = vpack.c.b16 %v2154, %v2150
    %v2343 = vpack.c.b16 %v2155, %v2151
    %v2344 = vpack.c.b16 %v2156, %v2152
    %v2345 = vpack.c.b16 %v2161, %v2157
    %v2346 = vpack.c.b16 %v2162, %v2158
    %v2347 = vpack.c.b16 %v2163, %v2159
    %v2348 = vpack.c.b16 %v2164, %v2160
    %v2349 = vpack.c.b16 %v2169, %v2165
    %v2350 = vpack.c.b16 %v2170, %v2166
    %v2351 = vpack.c.b16 %v2171, %v2167
    %v2352 = vpack.c.b16 %v2172, %v2168
    %v2353 = vpack.c.b16 %v2177, %v2173
    %v2354 = vpack.c.b16 %v2178, %v2174
    %v2355 = vpack.c.b16 %v2179, %v2175
    %v2356 = vpack.c.b16 %v2180, %v2176
    %v2357 = vpack.c.b16 %v2185, %v2181
    %v2358 = vpack.c.b16 %v2186, %v2182
    %v2359 = vpack.c.b16 %v2187, %v2183
    %v2360 = vpack.c.b16 %v2188, %v2184
    %v2361 = vpack.c.b16 %v2193, %v2189
    %v2362 = vpack.c.b16 %v2194, %v2190
    %v2363 = vpack.c.b16 %v2195, %v2191
    %v2364 = vpack.c.b16 %v2196, %v2192
    %v2365 = vpack.c.b16 %v2201, %v2197
    %v2366 = vpack.c.b16 %v2202, %v2198
    %v2367 = vpack.c.b16 %v2203, %v2199
    %v2368 = vpack.c.b16 %v2204, %v2200
    %v2369 = vpack.c.b16 %v2209, %v2205
    %v2370 = vpack.c.b16 %v2210, %v2206
    %v2371 = vpack.c.b16 %v2211, %v2207
    %v2372 = vpack.c.b16 %v2212, %v2208
    %v2373 = vpack.c.b16 %v2217, %v2213
    %v2374 = vpack.c.b16 %v2218, %v2214
    %v2375 = vpack.c.b16 %v2219, %v2215
    %v2376 = vpack.c.b16 %v2220, %v2216
    %v2377 = vpack.c.b16 %v2225, %v2221
    %v2378 = vpack.c.b16 %v2226, %v2222
    %v2379 = vpack.c.b16 %v2227, %v2223
    %v2380 = vpack.c.b16 %v2228, %v2224
    %v2381 = vpack.c.b16 %v2233, %v2229
    %v2382 = vpack.c.b16 %v2234, %v2230
    %v2383 = vpack.c.b16 %v2235, %v2231
    %v2384 = vpack.c.b16 %v2236, %v2232
    %v2385 = vpack.c.b16 %v2241, %v2237
    %v2386 = vpack.c.b16 %v2242, %v2238
    %v2387 = vpack.c.b16 %v2243, %v2239
    %v2388 = vpack.c.b16 %v2244, %v2240
    %v2389 = vpack.c.b16 %v2249, %v2245
    %v2390 = vpack.c.b16 %v2250, %v2246
    %v2391 = vpack.c.b16 %v2251, %v2247
    %v2392 = vpack.c.b16 %v2252, %v2248
    %v2393 = vpack.c.b16 %v2257, %v2253
    %v2394 = vpack.c.b16 %v2258, %v2254
    %v2395 = vpack.c.b16 %v2259, %v2255
    %v2396 = vpack.c.b16 %v2260, %v2256
    %v2397 = vpack.c.b16 %v2265, %v2261
    %v2398 = vpack.c.b16 %v2266, %v2262
    %v2399 = vpack.c.b16 %v2267, %v2263
    %v2400 = vpack.c.b16 %v2268, %v2264
    %v2401 = vpack.c.b16 %v2273, %v2269
    %v2402 = vpack.c.b16 %v2274, %v2270
    %v2403 = vpack.c.b16 %v2275, %v2271
    %v2404 = vpack.c.b16 %v2276, %v2272
    %2533 = vmatprep.subr.bf16.mxu0 %v2278
    %2534 = vmatpush1.bf16.msra.mxu0 %v2277
    %2535 = vmatprep.subr.bf16.mxu0 %v2282
    %2536 = vmatpush1.bf16.msra.mxu0 %v2281
    %2537 = vmatprep.subr.bf16.mxu0 %v2286
    %2538 = vmatpush1.bf16.msra.mxu0 %v2285
    %2539 = vmatprep.subr.bf16.mxu0 %v2290
    %2540 = vmatpush1.bf16.msra.mxu0 %v2289
    %2541 = vmatprep.subr.bf16.mxu0 %v2294
    %2542 = vmatpush1.bf16.msra.mxu0 %v2293
    %2543 = vmatprep.subr.bf16.mxu0 %v2298
    %2544 = vmatpush1.bf16.msra.mxu0 %v2297
    %2545 = vmatprep.subr.bf16.mxu0 %v2302
    %2546 = vmatpush1.bf16.msra.mxu0 %v2301
    %2547 = vmatprep.subr.bf16.mxu0 %v2306
    %2548 = vmatpush1.bf16.msra.mxu0 %v2305
    %2549 = vmatprep.subr.bf16.mxu0 %v2310
    %2550 = vmatpush1.bf16.msra.mxu0 %v2309
    %2551 = vmatprep.subr.bf16.mxu0 %v2314
    %2552 = vmatpush1.bf16.msra.mxu0 %v2313
    %2553 = vmatprep.subr.bf16.mxu0 %v2318
    %2554 = vmatpush1.bf16.msra.mxu0 %v2317
    %2555 = vmatprep.subr.bf16.mxu0 %v2322
    %2556 = vmatpush1.bf16.msra.mxu0 %v2321
    %2557 = vmatprep.subr.bf16.mxu0 %v2326
    %2558 = vmatpush1.bf16.msra.mxu0 %v2325
    %2559 = vmatprep.subr.bf16.mxu0 %v2330
    %2560 = vmatpush1.bf16.msra.mxu0 %v2329
    %2561 = vmatprep.subr.bf16.mxu0 %v2334
    %2562 = vmatpush1.bf16.msra.mxu0 %v2333
    %2563 = vmatprep.subr.bf16.mxu0 %v2338
    %2564 = vmatpush1.bf16.msra.mxu0 %v2337
    %2565 = vmatprep.mubr.bf16.mxu0 %v364
    %2566 = vmatmul.mubr.bf16.gmra.mrb[0].mxu0 %v363
    %v2567 = vpop.f32.mrb[0].mxu0
    %v2568 = vadd.f32 %v1876, %v2567
    %v2569 = vpop.f32.mrb[0].mxu0
    %v2570 = vadd.f32 %v1880, %v2569
    %v2571 = vpop.f32.mrb[0].mxu0
    %v2572 = vadd.f32 %v1876, %v2571
    %v2573 = vpop.f32.mrb[0].mxu0
    %v2574 = vadd.f32 %v1880, %v2573
    %2575 = vmatprep.mubr.bf16.mxu0 %v368
    %2576 = vmatmul.mubr.bf16.gmra.mrb[0].mxu0 %v367
    %v2577 = vpop.f32.mrb[0].mxu0
    %v2578 = vadd.f32 %v1876, %v2577
    %v2579 = vpop.f32.mrb[0].mxu0
    %v2580 = vadd.f32 %v1880, %v2579
    %v2581 = vpop.f32.mrb[0].mxu0
    %v2582 = vadd.f32 %v1876, %v2581
    %v2583 = vpop.f32.mrb[0].mxu0
    %v2584 = vadd.f32 %v1880, %v2583
    %2585 = vmatprep.mubr.bf16.mxu0 %v372
    %2586 = vmatmul.mubr.bf16.gmra.mrb[0].mxu0 %v371
    %v2587 = vpop.f32.mrb[0].mxu0
    %v2588 = vadd.f32 %v1876, %v2587
    %v2589 = vpop.f32.mrb[0].mxu0
    %v2590 = vadd.f32 %v1880, %v2589
    %v2591 = vpop.f32.mrb[0].mxu0
    %v2592 = vadd.f32 %v1876, %v2591
    %v2593 = vpop.f32.mrb[0].mxu0
    %v2594 = vadd.f32 %v1880, %v2593
    %2595 = vmatprep.mubr.bf16.mxu0 %v376
    %2596 = vmatmul.mubr.bf16.gmra.mrb[0].mxu0 %v375
    %v2597 = vpop.f32.mrb[0].mxu0
    %v2598 = vadd.f32 %v1876, %v2597
    %v2599 = vpop.f32.mrb[0].mxu0
    %v2600 = vadd.f32 %v1880, %v2599
    %v2601 = vpop.f32.mrb[0].mxu0
    %v2602 = vadd.f32 %v1876, %v2601
    %v2603 = vpop.f32.mrb[0].mxu0
    %v2604 = vadd.f32 %v1880, %v2603
    %2605 = vmatprep.mubr.bf16.mxu0 %v380
    %2606 = vmatmul.mubr.bf16.gmra.mrb[0].mxu0 %v379
    %v2607 = vpop.f32.mrb[0].mxu0
    %v2608 = vadd.f32 %v1876, %v2607
    %v2609 = vpop.f32.mrb[0].mxu0
    %v2610 = vadd.f32 %v1880, %v2609
    %v2611 = vpop.f32.mrb[0].mxu0
    %v2612 = vadd.f32 %v1876, %v2611
    %v2613 = vpop.f32.mrb[0].mxu0
    %v2614 = vadd.f32 %v1880, %v2613
    %2615 = vmatprep.mubr.bf16.mxu0 %v384
    %2616 = vmatmul.mubr.bf16.gmra.mrb[0].mxu0 %v383
    %v2617 = vpop.f32.mrb[0].mxu0
    %v2618 = vadd.f32 %v1876, %v2617
    %v2619 = vpop.f32.mrb[0].mxu0
    %v2620 = vadd.f32 %v1880, %v2619
    %v2621 = vpop.f32.mrb[0].mxu0
    %v2622 = vadd.f32 %v1876, %v2621
    %v2623 = vpop.f32.mrb[0].mxu0
    %v2624 = vadd.f32 %v1880, %v2623
    %2625 = vmatprep.mubr.bf16.mxu0 %v388
    %2626 = vmatmul.mubr.bf16.gmra.mrb[0].mxu0 %v387
    %v2627 = vpop.f32.mrb[0].mxu0
    %v2628 = vadd.f32 %v1876, %v2627
    %v2629 = vpop.f32.mrb[0].mxu0
    %v2630 = vadd.f32 %v1880, %v2629
    %v2631 = vpop.f32.mrb[0].mxu0
    %v2632 = vadd.f32 %v1876, %v2631
    %v2633 = vpop.f32.mrb[0].mxu0
    %v2634 = vadd.f32 %v1880, %v2633
    %2635 = vmatprep.mubr.bf16.mxu0 %v392
    %2636 = vmatmul.mubr.bf16.gmra.mrb[0].mxu0 %v391
    %v2637 = vpop.f32.mrb[0].mxu0
    %v2638 = vadd.f32 %v1876, %v2637
    %v2639 = vpop.f32.mrb[0].mxu0
    %v2640 = vadd.f32 %v1880, %v2639
    %v2641 = vpop.f32.mrb[0].mxu0
    %v2642 = vadd.f32 %v1876, %v2641
    %v2643 = vpop.f32.mrb[0].mxu0
    %v2644 = vadd.f32 %v1880, %v2643
    %2645 = vdwg.mxu0
    %2646 = vmatprep.subr.bf16.mxu0 %v2342
    %2647 = vmatpush1.bf16.msra.mxu0 %v2341
    %2648 = vmatprep.subr.bf16.mxu0 %v2346
    %2649 = vmatpush1.bf16.msra.mxu0 %v2345
    %2650 = vmatprep.subr.bf16.mxu0 %v2350
    %2651 = vmatpush1.bf16.msra.mxu0 %v2349
    %2652 = vmatprep.subr.bf16.mxu0 %v2354
    %2653 = vmatpush1.bf16.msra.mxu0 %v2353
    %2654 = vmatprep.subr.bf16.mxu0 %v2358
    %2655 = vmatpush1.bf16.msra.mxu0 %v2357
    %2656 = vmatprep.subr.bf16.mxu0 %v2362
    %2657 = vmatpush1.bf16.msra.mxu0 %v2361
    %2658 = vmatprep.subr.bf16.mxu0 %v2366
    %2659 = vmatpush1.bf16.msra.mxu0 %v2365
    %2660 = vmatprep.subr.bf16.mxu0 %v2370
    %2661 = vmatpush1.bf16.msra.mxu0 %v2369
    %2662 = vmatprep.subr.bf16.mxu0 %v2374
    %2663 = vmatpush1.bf16.msra.mxu0 %v2373
    %2664 = vmatprep.subr.bf16.mxu0 %v2378
    %2665 = vmatpush1.bf16.msra.mxu0 %v2377
    %2666 = vmatprep.subr.bf16.mxu0 %v2382
    %2667 = vmatpush1.bf16.msra.mxu0 %v2381
    %2668 = vmatprep.subr.bf16.mxu0 %v2386
    %2669 = vmatpush1.bf16.msra.mxu0 %v2385
    %2670 = vmatprep.subr.bf16.mxu0 %v2390
    %2671 = vmatpush1.bf16.msra.mxu0 %v2389
    %2672 = vmatprep.subr.bf16.mxu0 %v2394
    %2673 = vmatpush1.bf16.msra.mxu0 %v2393
    %2674 = vmatprep.subr.bf16.mxu0 %v2398
    %2675 = vmatpush1.bf16.msra.mxu0 %v2397
    %2676 = vmatprep.subr.bf16.mxu0 %v2402
    %2677 = vmatpush1.bf16.msra.mxu0 %v2401
    %2678 = vmatprep.mubr.bf16.mxu0 %v366
    %2679 = vmatmul.mubr.bf16.gmra.mrb[0].mxu0 %v365
    %v2680 = vpop.f32.mrb[0].mxu0
    %v2681 = vadd.f32 %v2568, %v2680
    %v2682 = vpop.f32.mrb[0].mxu0
    %v2683 = vadd.f32 %v2570, %v2682
    %v2684 = vpop.f32.mrb[0].mxu0
    %v2685 = vadd.f32 %v2572, %v2684
    %v2686 = vpop.f32.mrb[0].mxu0
    %v2687 = vadd.f32 %v2574, %v2686
    %2688 = vmatprep.mubr.bf16.mxu0 %v370
    %2689 = vmatmul.mubr.bf16.gmra.mrb[0].mxu0 %v369
    %v2690 = vpop.f32.mrb[0].mxu0
    %v2691 = vadd.f32 %v2578, %v2690
    %v2692 = vpop.f32.mrb[0].mxu0
    %v2693 = vadd.f32 %v2580, %v2692
    %v2694 = vpop.f32.mrb[0].mxu0
    %v2695 = vadd.f32 %v2582, %v2694
    %v2696 = vpop.f32.mrb[0].mxu0
    %v2697 = vadd.f32 %v2584, %v2696
    %2698 = vmatprep.mubr.bf16.mxu0 %v374
    %2699 = vmatmul.mubr.bf16.gmra.mrb[0].mxu0 %v373
    %v2700 = vpop.f32.mrb[0].mxu0
    %v2701 = vadd.f32 %v2588, %v2700
    %v2702 = vpop.f32.mrb[0].mxu0
    %v2703 = vadd.f32 %v2590, %v2702
    %v2704 = vpop.f32.mrb[0].mxu0
    %v2705 = vadd.f32 %v2592, %v2704
    %v2706 = vpop.f32.mrb[0].mxu0
    %v2707 = vadd.f32 %v2594, %v2706
    %2708 = vmatprep.mubr.bf16.mxu0 %v378
    %2709 = vmatmul.mubr.bf16.gmra.mrb[0].mxu0 %v377
    %v2710 = vpop.f32.mrb[0].mxu0
    %v2711 = vadd.f32 %v2598, %v2710
    %v2712 = vpop.f32.mrb[0].mxu0
    %v2713 = vadd.f32 %v2600, %v2712
    %v2714 = vpop.f32.mrb[0].mxu0
    %v2715 = vadd.f32 %v2602, %v2714
    %v2716 = vpop.f32.mrb[0].mxu0
    %v2717 = vadd.f32 %v2604, %v2716
    %2718 = vmatprep.mubr.bf16.mxu0 %v382
    %2719 = vmatmul.mubr.bf16.gmra.mrb[0].mxu0 %v381
    %v2720 = vpop.f32.mrb[0].mxu0
    %v2721 = vadd.f32 %v2608, %v2720
    %v2722 = vpop.f32.mrb[0].mxu0
    %v2723 = vadd.f32 %v2610, %v2722
    %v2724 = vpop.f32.mrb[0].mxu0
    %v2725 = vadd.f32 %v2612, %v2724
    %v2726 = vpop.f32.mrb[0].mxu0
    %v2727 = vadd.f32 %v2614, %v2726
    %2728 = vmatprep.mubr.bf16.mxu0 %v386
    %2729 = vmatmul.mubr.bf16.gmra.mrb[0].mxu0 %v385
    %v2730 = vpop.f32.mrb[0].mxu0
    %v2731 = vadd.f32 %v2618, %v2730
    %v2732 = vpop.f32.mrb[0].mxu0
    %v2733 = vadd.f32 %v2620, %v2732
    %v2734 = vpop.f32.mrb[0].mxu0
    %v2735 = vadd.f32 %v2622, %v2734
    %v2736 = vpop.f32.mrb[0].mxu0
    %v2737 = vadd.f32 %v2624, %v2736
    %2738 = vmatprep.mubr.bf16.mxu0 %v390
    %2739 = vmatmul.mubr.bf16.gmra.mrb[0].mxu0 %v389
    %v2740 = vpop.f32.mrb[0].mxu0
    %v2741 = vadd.f32 %v2628, %v2740
    %v2742 = vpop.f32.mrb[0].mxu0
    %v2743 = vadd.f32 %v2630, %v2742
    %v2744 = vpop.f32.mrb[0].mxu0
    %v2745 = vadd.f32 %v2632, %v2744
    %v2746 = vpop.f32.mrb[0].mxu0
    %v2747 = vadd.f32 %v2634, %v2746
    %2748 = vmatprep.mubr.bf16.mxu0 %v394
    %2749 = vmatmul.mubr.bf16.gmra.mrb[0].mxu0 %v393
    %v2750 = vpop.f32.mrb[0].mxu0
    %v2751 = vadd.f32 %v2638, %v2750
    %v2752 = vpop.f32.mrb[0].mxu0
    %v2753 = vadd.f32 %v2640, %v2752
    %v2754 = vpop.f32.mrb[0].mxu0
    %v2755 = vadd.f32 %v2642, %v2754
    %v2756 = vpop.f32.mrb[0].mxu0
    %v2757 = vadd.f32 %v2644, %v2756
    %2758 = vdwg.mxu0
    %2759 = vmatprep.subr.bf16.mxu0 %v2280
    %2760 = vmatpush1.bf16.msra.mxu0 %v2279
    %2761 = vmatprep.subr.bf16.mxu0 %v2284
    %2762 = vmatpush1.bf16.msra.mxu0 %v2283
    %2763 = vmatprep.subr.bf16.mxu0 %v2288
    %2764 = vmatpush1.bf16.msra.mxu0 %v2287
    %2765 = vmatprep.subr.bf16.mxu0 %v2292
    %2766 = vmatpush1.bf16.msra.mxu0 %v2291
    %2767 = vmatprep.subr.bf16.mxu0 %v2296
    %2768 = vmatpush1.bf16.msra.mxu0 %v2295
    %2769 = vmatprep.subr.bf16.mxu0 %v2300
    %2770 = vmatpush1.bf16.msra.mxu0 %v2299
    %2771 = vmatprep.subr.bf16.mxu0 %v2304
    %2772 = vmatpush1.bf16.msra.mxu0 %v2303
    %2773 = vmatprep.subr.bf16.mxu0 %v2308
    %2774 = vmatpush1.bf16.msra.mxu0 %v2307
    %2775 = vmatprep.subr.bf16.mxu0 %v2312
    %2776 = vmatpush1.bf16.msra.mxu0 %v2311
    %2777 = vmatprep.subr.bf16.mxu0 %v2316
    %2778 = vmatpush1.bf16.msra.mxu0 %v2315
    %2779 = vmatprep.subr.bf16.mxu0 %v2320
    %2780 = vmatpush1.bf16.msra.mxu0 %v2319
    %2781 = vmatprep.subr.bf16.mxu0 %v2324
    %2782 = vmatpush1.bf16.msra.mxu0 %v2323
    %2783 = vmatprep.subr.bf16.mxu0 %v2328
    %2784 = vmatpush1.bf16.msra.mxu0 %v2327
    %2785 = vmatprep.subr.bf16.mxu0 %v2332
    %2786 = vmatpush1.bf16.msra.mxu0 %v2331
    %2787 = vmatprep.subr.bf16.mxu0 %v2336
    %2788 = vmatpush1.bf16.msra.mxu0 %v2335
    %2789 = vmatprep.subr.bf16.mxu0 %v2340
    %2790 = vmatpush1.bf16.msra.mxu0 %v2339
    %2791 = vmatprep.mubr.bf16.mxu0 %v364
    %2792 = vmatmul.mubr.bf16.gmra.mrb[0].mxu0 %v363
    %v2793 = vpop.f32.mrb[0].mxu0
    %v2794 = vadd.f32 %v1884, %v2793
    %v2795 = vpop.f32.mrb[0].mxu0
    %v2796 = vadd.f32 %v1888, %v2795
    %v2797 = vpop.f32.mrb[0].mxu0
    %v2798 = vadd.f32 %v1884, %v2797
    %v2799 = vpop.f32.mrb[0].mxu0
    %v2800 = vadd.f32 %v1888, %v2799
    %2801 = vmatprep.mubr.bf16.mxu0 %v368
    %2802 = vmatmul.mubr.bf16.gmra.mrb[0].mxu0 %v367
    %v2803 = vpop.f32.mrb[0].mxu0
    %v2804 = vadd.f32 %v1884, %v2803
    %v2805 = vpop.f32.mrb[0].mxu0
    %v2806 = vadd.f32 %v1888, %v2805
    %v2807 = vpop.f32.mrb[0].mxu0
    %v2808 = vadd.f32 %v1884, %v2807
    %v2809 = vpop.f32.mrb[0].mxu0
    %v2810 = vadd.f32 %v1888, %v2809
    %2811 = vmatprep.mubr.bf16.mxu0 %v372
    %2812 = vmatmul.mubr.bf16.gmra.mrb[0].mxu0 %v371
    %v2813 = vpop.f32.mrb[0].mxu0
    %v2814 = vadd.f32 %v1884, %v2813
    %v2815 = vpop.f32.mrb[0].mxu0
    %v2816 = vadd.f32 %v1888, %v2815
    %v2817 = vpop.f32.mrb[0].mxu0
    %v2818 = vadd.f32 %v1884, %v2817
    %v2819 = vpop.f32.mrb[0].mxu0
    %v2820 = vadd.f32 %v1888, %v2819
    %2821 = vmatprep.mubr.bf16.mxu0 %v376
    %2822 = vmatmul.mubr.bf16.gmra.mrb[0].mxu0 %v375
    %v2823 = vpop.f32.mrb[0].mxu0
    %v2824 = vadd.f32 %v1884, %v2823
    %v2825 = vpop.f32.mrb[0].mxu0
    %v2826 = vadd.f32 %v1888, %v2825
    %v2827 = vpop.f32.mrb[0].mxu0
    %v2828 = vadd.f32 %v1884, %v2827
    %v2829 = vpop.f32.mrb[0].mxu0
    %v2830 = vadd.f32 %v1888, %v2829
    %2831 = vmatprep.mubr.bf16.mxu0 %v380
    %2832 = vmatmul.mubr.bf16.gmra.mrb[0].mxu0 %v379
    %v2833 = vpop.f32.mrb[0].mxu0
    %v2834 = vadd.f32 %v1884, %v2833
    %v2835 = vpop.f32.mrb[0].mxu0
    %v2836 = vadd.f32 %v1888, %v2835
    %v2837 = vpop.f32.mrb[0].mxu0
    %v2838 = vadd.f32 %v1884, %v2837
    %v2839 = vpop.f32.mrb[0].mxu0
    %v2840 = vadd.f32 %v1888, %v2839
    %2841 = vmatprep.mubr.bf16.mxu0 %v384
    %2842 = vmatmul.mubr.bf16.gmra.mrb[0].mxu0 %v383
    %v2843 = vpop.f32.mrb[0].mxu0
    %v2844 = vadd.f32 %v1884, %v2843
    %v2845 = vpop.f32.mrb[0].mxu0
    %v2846 = vadd.f32 %v1888, %v2845
    %v2847 = vpop.f32.mrb[0].mxu0
    %v2848 = vadd.f32 %v1884, %v2847
    %v2849 = vpop.f32.mrb[0].mxu0
    %v2850 = vadd.f32 %v1888, %v2849
    %2851 = vmatprep.mubr.bf16.mxu0 %v388
    %2852 = vmatmul.mubr.bf16.gmra.mrb[0].mxu0 %v387
    %v2853 = vpop.f32.mrb[0].mxu0
    %v2854 = vadd.f32 %v1884, %v2853
    %v2855 = vpop.f32.mrb[0].mxu0
    %v2856 = vadd.f32 %v1888, %v2855
    %v2857 = vpop.f32.mrb[0].mxu0
    %v2858 = vadd.f32 %v1884, %v2857
    %v2859 = vpop.f32.mrb[0].mxu0
    %v2860 = vadd.f32 %v1888, %v2859
    %2861 = vmatprep.mubr.bf16.mxu0 %v392
    %2862 = vmatmul.mubr.bf16.gmra.mrb[0].mxu0 %v391
    %v2863 = vpop.f32.mrb[0].mxu0
    %v2864 = vadd.f32 %v1884, %v2863
    %v2865 = vpop.f32.mrb[0].mxu0
    %v2866 = vadd.f32 %v1888, %v2865
    %v2867 = vpop.f32.mrb[0].mxu0
    %v2868 = vadd.f32 %v1884, %v2867
    %v2869 = vpop.f32.mrb[0].mxu0
    %v2870 = vadd.f32 %v1888, %v2869
    %2871 = vdwg.mxu0
    %2872 = vmatprep.subr.bf16.mxu0 %v2344
    %2873 = vmatpush1.bf16.msra.mxu0 %v2343
    %2874 = vmatprep.subr.bf16.mxu0 %v2348
    %2875 = vmatpush1.bf16.msra.mxu0 %v2347
    %2876 = vmatprep.subr.bf16.mxu0 %v2352
    %2877 = vmatpush1.bf16.msra.mxu0 %v2351
    %2878 = vmatprep.subr.bf16.mxu0 %v2356
    %2879 = vmatpush1.bf16.msra.mxu0 %v2355
    %2880 = vmatprep.subr.bf16.mxu0 %v2360
    %2881 = vmatpush1.bf16.msra.mxu0 %v2359
    %2882 = vmatprep.subr.bf16.mxu0 %v2364
    %2883 = vmatpush1.bf16.msra.mxu0 %v2363
    %2884 = vmatprep.subr.bf16.mxu0 %v2368
    %2885 = vmatpush1.bf16.msra.mxu0 %v2367
    %2886 = vmatprep.subr.bf16.mxu0 %v2372
    %2887 = vmatpush1.bf16.msra.mxu0 %v2371
    %2888 = vmatprep.subr.bf16.mxu0 %v2376
    %2889 = vmatpush1.bf16.msra.mxu0 %v2375
    %2890 = vmatprep.subr.bf16.mxu0 %v2380
    %2891 = vmatpush1.bf16.msra.mxu0 %v2379
    %2892 = vmatprep.subr.bf16.mxu0 %v2384
    %2893 = vmatpush1.bf16.msra.mxu0 %v2383
    %2894 = vmatprep.subr.bf16.mxu0 %v2388
    %2895 = vmatpush1.bf16.msra.mxu0 %v2387
    %2896 = vmatprep.subr.bf16.mxu0 %v2392
    %2897 = vmatpush1.bf16.msra.mxu0 %v2391
    %2898 = vmatprep.subr.bf16.mxu0 %v2396
    %2899 = vmatpush1.bf16.msra.mxu0 %v2395
    %2900 = vmatprep.subr.bf16.mxu0 %v2400
    %2901 = vmatpush1.bf16.msra.mxu0 %v2399
    %2902 = vmatprep.subr.bf16.mxu0 %v2404
    %2903 = vmatpush1.bf16.msra.mxu0 %v2403
    %2904 = vmatprep.mubr.bf16.mxu0 %v366
    %2905 = vmatmul.mubr.bf16.gmra.mrb[0].mxu0 %v365
    %v2906 = vpop.f32.mrb[0].mxu0
    %v2907 = vadd.f32 %v2794, %v2906
    %v2908 = vpop.f32.mrb[0].mxu0
    %v2909 = vadd.f32 %v2796, %v2908
    %v2910 = vpop.f32.mrb[0].mxu0
    %v2911 = vadd.f32 %v2798, %v2910
    %v2912 = vpop.f32.mrb[0].mxu0
    %v2913 = vadd.f32 %v2800, %v2912
    %2914 = vmatprep.mubr.bf16.mxu0 %v370
    %2915 = vmatmul.mubr.bf16.gmra.mrb[0].mxu0 %v369
    %v2916 = vpop.f32.mrb[0].mxu0
    %v2917 = vadd.f32 %v2804, %v2916
    %v2918 = vpop.f32.mrb[0].mxu0
    %v2919 = vadd.f32 %v2806, %v2918
    %v2920 = vpop.f32.mrb[0].mxu0
    %v2921 = vadd.f32 %v2808, %v2920
    %v2922 = vpop.f32.mrb[0].mxu0
    %v2923 = vadd.f32 %v2810, %v2922
    %2924 = vmatprep.mubr.bf16.mxu0 %v374
    %2925 = vmatmul.mubr.bf16.gmra.mrb[0].mxu0 %v373
    %v2926 = vpop.f32.mrb[0].mxu0
    %v2927 = vadd.f32 %v2814, %v2926
    %v2928 = vpop.f32.mrb[0].mxu0
    %v2929 = vadd.f32 %v2816, %v2928
    %v2930 = vpop.f32.mrb[0].mxu0
    %v2931 = vadd.f32 %v2818, %v2930
    %v2932 = vpop.f32.mrb[0].mxu0
    %v2933 = vadd.f32 %v2820, %v2932
    %2934 = vmatprep.mubr.bf16.mxu0 %v378
    %2935 = vmatmul.mubr.bf16.gmra.mrb[0].mxu0 %v377
    %v2936 = vpop.f32.mrb[0].mxu0
    %v2937 = vadd.f32 %v2824, %v2936
    %v2938 = vpop.f32.mrb[0].mxu0
    %v2939 = vadd.f32 %v2826, %v2938
    %v2940 = vpop.f32.mrb[0].mxu0
    %v2941 = vadd.f32 %v2828, %v2940
    %v2942 = vpop.f32.mrb[0].mxu0
    %v2943 = vadd.f32 %v2830, %v2942
    %2944 = vmatprep.mubr.bf16.mxu0 %v382
    %2945 = vmatmul.mubr.bf16.gmra.mrb[0].mxu0 %v381
    %v2946 = vpop.f32.mrb[0].mxu0
    %v2947 = vadd.f32 %v2834, %v2946
    %v2948 = vpop.f32.mrb[0].mxu0
    %v2949 = vadd.f32 %v2836, %v2948
    %v2950 = vpop.f32.mrb[0].mxu0
    %v2951 = vadd.f32 %v2838, %v2950
    %v2952 = vpop.f32.mrb[0].mxu0
    %v2953 = vadd.f32 %v2840, %v2952
    %2954 = vmatprep.mubr.bf16.mxu0 %v386
    %2955 = vmatmul.mubr.bf16.gmra.mrb[0].mxu0 %v385
    %v2956 = vpop.f32.mrb[0].mxu0
    %v2957 = vadd.f32 %v2844, %v2956
    %v2958 = vpop.f32.mrb[0].mxu0
    %v2959 = vadd.f32 %v2846, %v2958
    %v2960 = vpop.f32.mrb[0].mxu0
    %v2961 = vadd.f32 %v2848, %v2960
    %v2962 = vpop.f32.mrb[0].mxu0
    %v2963 = vadd.f32 %v2850, %v2962
    %2964 = vmatprep.mubr.bf16.mxu0 %v390
    %2965 = vmatmul.mubr.bf16.gmra.mrb[0].mxu0 %v389
    %v2966 = vpop.f32.mrb[0].mxu0
    %v2967 = vadd.f32 %v2854, %v2966
    %v2968 = vpop.f32.mrb[0].mxu0
    %v2969 = vadd.f32 %v2856, %v2968
    %v2970 = vpop.f32.mrb[0].mxu0
    %v2971 = vadd.f32 %v2858, %v2970
    %v2972 = vpop.f32.mrb[0].mxu0
    %v2973 = vadd.f32 %v2860, %v2972
    %2974 = vmatprep.mubr.bf16.mxu0 %v394
    %2975 = vmatmul.mubr.bf16.gmra.mrb[0].mxu0 %v393
    %v2976 = vpop.f32.mrb[0].mxu0
    %v2977 = vadd.f32 %v2864, %v2976
    %v2978 = vpop.f32.mrb[0].mxu0
    %v2979 = vadd.f32 %v2866, %v2978
    %v2980 = vpop.f32.mrb[0].mxu0
    %v2981 = vadd.f32 %v2868, %v2980
    %v2982 = vpop.f32.mrb[0].mxu0
    %v2983 = vadd.f32 %v2870, %v2982
    %2984 = vdwg.mxu0
    %v2985 = vmax.f32 %v2681, 0.0
    %v2986 = vmax.f32 %v2683, 0.0
    %v2987 = vmax.f32 %v2907, 0.0
    %v2988 = vmax.f32 %v2909, 0.0
    %v2989 = vmax.f32 %v2685, 0.0
    %v2990 = vmax.f32 %v2687, 0.0
    %v2991 = vmax.f32 %v2911, 0.0
    %v2992 = vmax.f32 %v2913, 0.0
    %v2993 = vmax.f32 %v2691, 0.0
    %v2994 = vmax.f32 %v2693, 0.0
    %v2995 = vmax.f32 %v2917, 0.0
    %v2996 = vmax.f32 %v2919, 0.0
    %v2997 = vmax.f32 %v2695, 0.0
    %v2998 = vmax.f32 %v2697, 0.0
    %v2999 = vmax.f32 %v2921, 0.0
    %v3000 = vmax.f32 %v2923, 0.0
    %v3001 = vmax.f32 %v2701, 0.0
    %v3002 = vmax.f32 %v2703, 0.0
    %v3003 = vmax.f32 %v2927, 0.0
    %v3004 = vmax.f32 %v2929, 0.0
    %v3005 = vmax.f32 %v2705, 0.0
    %v3006 = vmax.f32 %v2707, 0.0
    %v3007 = vmax.f32 %v2931, 0.0
    %v3008 = vmax.f32 %v2933, 0.0
    %v3009 = vmax.f32 %v2711, 0.0
    %v3010 = vmax.f32 %v2713, 0.0
    %v3011 = vmax.f32 %v2937, 0.0
    %v3012 = vmax.f32 %v2939, 0.0
    %v3013 = vmax.f32 %v2715, 0.0
    %v3014 = vmax.f32 %v2717, 0.0
    %v3015 = vmax.f32 %v2941, 0.0
    %v3016 = vmax.f32 %v2943, 0.0
    %v3017 = vmax.f32 %v2721, 0.0
    %v3018 = vmax.f32 %v2723, 0.0
    %v3019 = vmax.f32 %v2947, 0.0
    %v3020 = vmax.f32 %v2949, 0.0
    %v3021 = vmax.f32 %v2725, 0.0
    %v3022 = vmax.f32 %v2727, 0.0
    %v3023 = vmax.f32 %v2951, 0.0
    %v3024 = vmax.f32 %v2953, 0.0
    %v3025 = vmax.f32 %v2731, 0.0
    %v3026 = vmax.f32 %v2733, 0.0
    %v3027 = vmax.f32 %v2957, 0.0
    %v3028 = vmax.f32 %v2959, 0.0
    %v3029 = vmax.f32 %v2735, 0.0
    %v3030 = vmax.f32 %v2737, 0.0
    %v3031 = vmax.f32 %v2961, 0.0
    %v3032 = vmax.f32 %v2963, 0.0
    %v3033 = vmax.f32 %v2741, 0.0
    %v3034 = vmax.f32 %v2743, 0.0
    %v3035 = vmax.f32 %v2967, 0.0
    %v3036 = vmax.f32 %v2969, 0.0
    %v3037 = vmax.f32 %v2745, 0.0
    %v3038 = vmax.f32 %v2747, 0.0
    %v3039 = vmax.f32 %v2971, 0.0
    %v3040 = vmax.f32 %v2973, 0.0
    %v3041 = vmax.f32 %v2751, 0.0
    %v3042 = vmax.f32 %v2753, 0.0
    %v3043 = vmax.f32 %v2977, 0.0
    %v3044 = vmax.f32 %v2979, 0.0
    %v3045 = vmax.f32 %v2755, 0.0
    %v3046 = vmax.f32 %v2757, 0.0
    %v3047 = vmax.f32 %v2981, 0.0
    %v3048 = vmax.f32 %v2983, 0.0
    %v3049 = vpack.c.bf16 %v2989, %v2985
    %v3050 = vpack.c.bf16 %v2990, %v2986
    %v3051 = vpack.c.bf16 %v2991, %v2987
    %v3052 = vpack.c.bf16 %v2992, %v2988
    %v3053 = vpack.c.bf16 %v2997, %v2993
    %v3054 = vpack.c.bf16 %v2998, %v2994
    %v3055 = vpack.c.bf16 %v2999, %v2995
    %v3056 = vpack.c.bf16 %v3000, %v2996
    %v3057 = vpack.c.bf16 %v3005, %v3001
    %v3058 = vpack.c.bf16 %v3006, %v3002
    %v3059 = vpack.c.bf16 %v3007, %v3003
    %v3060 = vpack.c.bf16 %v3008, %v3004
    %v3061 = vpack.c.bf16 %v3013, %v3009
    %v3062 = vpack.c.bf16 %v3014, %v3010
    %v3063 = vpack.c.bf16 %v3015, %v3011
    %v3064 = vpack.c.bf16 %v3016, %v3012
    %v3065 = vpack.c.bf16 %v3021, %v3017
    %v3066 = vpack.c.bf16 %v3022, %v3018
    %v3067 = vpack.c.bf16 %v3023, %v3019
    %v3068 = vpack.c.bf16 %v3024, %v3020
    %v3069 = vpack.c.bf16 %v3029, %v3025
    %v3070 = vpack.c.bf16 %v3030, %v3026
    %v3071 = vpack.c.bf16 %v3031, %v3027
    %v3072 = vpack.c.bf16 %v3032, %v3028
    %v3073 = vpack.c.bf16 %v3037, %v3033
    %v3074 = vpack.c.bf16 %v3038, %v3034
    %v3075 = vpack.c.bf16 %v3039, %v3035
    %v3076 = vpack.c.bf16 %v3040, %v3036
    %v3077 = vpack.c.bf16 %v3045, %v3041
    %v3078 = vpack.c.bf16 %v3046, %v3042
    %v3079 = vpack.c.bf16 %v3047, %v3043
    %v3080 = vpack.c.bf16 %v3048, %v3044
    %v3081 = vld [vmem:[#allocation8 + $0x400] sm:$0xff]
    %v3082 = vld [vmem:[#allocation8 + $0x408] sm:$0xff]
    %v3083 = vld [vmem:[#allocation8 + $0x410] sm:$0xff]
    %v3084 = vld [vmem:[#allocation8 + $0x418] sm:$0xff]
    %v3085 = vld [vmem:[#allocation8 + $0x420] sm:$0xff]
    %v3086 = vld [vmem:[#allocation8 + $0x428] sm:$0xff]
    %v3087 = vld [vmem:[#allocation8 + $0x430] sm:$0xff]
    %v3088 = vld [vmem:[#allocation8 + $0x438] sm:$0xff]
    %v3089 = vld [vmem:[#allocation8 + $0x440] sm:$0xff]
    %v3090 = vld [vmem:[#allocation8 + $0x448] sm:$0xff]
    %v3091 = vld [vmem:[#allocation8 + $0x450] sm:$0xff]
    %v3092 = vld [vmem:[#allocation8 + $0x458] sm:$0xff]
    %v3093 = vld [vmem:[#allocation8 + $0x460] sm:$0xff]
    %v3094 = vld [vmem:[#allocation8 + $0x468] sm:$0xff]
    %v3095 = vld [vmem:[#allocation8 + $0x470] sm:$0xff]
    %v3096 = vld [vmem:[#allocation8 + $0x478] sm:$0xff]
    %v3097 = vld [vmem:[#allocation8 + $0x480] sm:$0xff]
    %v3098 = vld [vmem:[#allocation8 + $0x488] sm:$0xff]
    %v3099 = vld [vmem:[#allocation8 + $0x490] sm:$0xff]
    %v3100 = vld [vmem:[#allocation8 + $0x498] sm:$0xff]
    %v3101 = vld [vmem:[#allocation8 + $0x4a0] sm:$0xff]
    %v3102 = vld [vmem:[#allocation8 + $0x4a8] sm:$0xff]
    %v3103 = vld [vmem:[#allocation8 + $0x4b0] sm:$0xff]
    %v3104 = vld [vmem:[#allocation8 + $0x4b8] sm:$0xff]
    %v3105 = vld [vmem:[#allocation8 + $0x4c0] sm:$0xff]
    %v3106 = vld [vmem:[#allocation8 + $0x4c8] sm:$0xff]
    %v3107 = vld [vmem:[#allocation8 + $0x4d0] sm:$0xff]
    %v3108 = vld [vmem:[#allocation8 + $0x4d8] sm:$0xff]
    %v3109 = vld [vmem:[#allocation8 + $0x4e0] sm:$0xff]
    %v3110 = vld [vmem:[#allocation8 + $0x4e8] sm:$0xff]
    %v3111 = vld [vmem:[#allocation8 + $0x4f0] sm:$0xff]
    %v3112 = vld [vmem:[#allocation8 + $0x4f8] sm:$0xff]
    %v3113 = vld [vmem:[#allocation8 + $0x500] sm:$0xff]
    %v3114 = vld [vmem:[#allocation8 + $0x508] sm:$0xff]
    %v3115 = vld [vmem:[#allocation8 + $0x510] sm:$0xff]
    %v3116 = vld [vmem:[#allocation8 + $0x518] sm:$0xff]
    %v3117 = vld [vmem:[#allocation8 + $0x520] sm:$0xff]
    %v3118 = vld [vmem:[#allocation8 + $0x528] sm:$0xff]
    %v3119 = vld [vmem:[#allocation8 + $0x530] sm:$0xff]
    %v3120 = vld [vmem:[#allocation8 + $0x538] sm:$0xff]
    %v3121 = vld [vmem:[#allocation8 + $0x540] sm:$0xff]
    %v3122 = vld [vmem:[#allocation8 + $0x548] sm:$0xff]
    %v3123 = vld [vmem:[#allocation8 + $0x550] sm:$0xff]
    %v3124 = vld [vmem:[#allocation8 + $0x558] sm:$0xff]
    %v3125 = vld [vmem:[#allocation8 + $0x560] sm:$0xff]
    %v3126 = vld [vmem:[#allocation8 + $0x568] sm:$0xff]
    %v3127 = vld [vmem:[#allocation8 + $0x570] sm:$0xff]
    %v3128 = vld [vmem:[#allocation8 + $0x578] sm:$0xff]
    %v3129 = vld [vmem:[#allocation8 + $0x580] sm:$0xff]
    %v3130 = vld [vmem:[#allocation8 + $0x588] sm:$0xff]
    %v3131 = vld [vmem:[#allocation8 + $0x590] sm:$0xff]
    %v3132 = vld [vmem:[#allocation8 + $0x598] sm:$0xff]
    %v3133 = vld [vmem:[#allocation8 + $0x5a0] sm:$0xff]
    %v3134 = vld [vmem:[#allocation8 + $0x5a8] sm:$0xff]
    %v3135 = vld [vmem:[#allocation8 + $0x5b0] sm:$0xff]
    %v3136 = vld [vmem:[#allocation8 + $0x5b8] sm:$0xff]
    %v3137 = vld [vmem:[#allocation8 + $0x5c0] sm:$0xff]
    %v3138 = vld [vmem:[#allocation8 + $0x5c8] sm:$0xff]
    %v3139 = vld [vmem:[#allocation8 + $0x5d0] sm:$0xff]
    %v3140 = vld [vmem:[#allocation8 + $0x5d8] sm:$0xff]
    %v3141 = vld [vmem:[#allocation8 + $0x5e0] sm:$0xff]
    %v3142 = vld [vmem:[#allocation8 + $0x5e8] sm:$0xff]
    %v3143 = vld [vmem:[#allocation8 + $0x5f0] sm:$0xff]
    %v3144 = vld [vmem:[#allocation8 + $0x5f8] sm:$0xff]
    %v3145 = vld [vmem:[#allocation8 + $0x600] sm:$0xff]
    %v3146 = vld [vmem:[#allocation8 + $0x608] sm:$0xff]
    %v3147 = vld [vmem:[#allocation8 + $0x610] sm:$0xff]
    %v3148 = vld [vmem:[#allocation8 + $0x618] sm:$0xff]
    %v3149 = vld [vmem:[#allocation8 + $0x620] sm:$0xff]
    %v3150 = vld [vmem:[#allocation8 + $0x628] sm:$0xff]
    %v3151 = vld [vmem:[#allocation8 + $0x630] sm:$0xff]
    %v3152 = vld [vmem:[#allocation8 + $0x638] sm:$0xff]
    %v3153 = vld [vmem:[#allocation8 + $0x640] sm:$0xff]
    %v3154 = vld [vmem:[#allocation8 + $0x648] sm:$0xff]
    %v3155 = vld [vmem:[#allocation8 + $0x650] sm:$0xff]
    %v3156 = vld [vmem:[#allocation8 + $0x658] sm:$0xff]
    %v3157 = vld [vmem:[#allocation8 + $0x660] sm:$0xff]
    %v3158 = vld [vmem:[#allocation8 + $0x668] sm:$0xff]
    %v3159 = vld [vmem:[#allocation8 + $0x670] sm:$0xff]
    %v3160 = vld [vmem:[#allocation8 + $0x678] sm:$0xff]
    %v3161 = vld [vmem:[#allocation8 + $0x680] sm:$0xff]
    %v3162 = vld [vmem:[#allocation8 + $0x688] sm:$0xff]
    %v3163 = vld [vmem:[#allocation8 + $0x690] sm:$0xff]
    %v3164 = vld [vmem:[#allocation8 + $0x698] sm:$0xff]
    %v3165 = vld [vmem:[#allocation8 + $0x6a0] sm:$0xff]
    %v3166 = vld [vmem:[#allocation8 + $0x6a8] sm:$0xff]
    %v3167 = vld [vmem:[#allocation8 + $0x6b0] sm:$0xff]
    %v3168 = vld [vmem:[#allocation8 + $0x6b8] sm:$0xff]
    %v3169 = vld [vmem:[#allocation8 + $0x6c0] sm:$0xff]
    %v3170 = vld [vmem:[#allocation8 + $0x6c8] sm:$0xff]
    %v3171 = vld [vmem:[#allocation8 + $0x6d0] sm:$0xff]
    %v3172 = vld [vmem:[#allocation8 + $0x6d8] sm:$0xff]
    %v3173 = vld [vmem:[#allocation8 + $0x6e0] sm:$0xff]
    %v3174 = vld [vmem:[#allocation8 + $0x6e8] sm:$0xff]
    %v3175 = vld [vmem:[#allocation8 + $0x6f0] sm:$0xff]
    %v3176 = vld [vmem:[#allocation8 + $0x6f8] sm:$0xff]
    %v3177 = vld [vmem:[#allocation8 + $0x700] sm:$0xff]
    %v3178 = vld [vmem:[#allocation8 + $0x708] sm:$0xff]
    %v3179 = vld [vmem:[#allocation8 + $0x710] sm:$0xff]
    %v3180 = vld [vmem:[#allocation8 + $0x718] sm:$0xff]
    %v3181 = vld [vmem:[#allocation8 + $0x720] sm:$0xff]
    %v3182 = vld [vmem:[#allocation8 + $0x728] sm:$0xff]
    %v3183 = vld [vmem:[#allocation8 + $0x730] sm:$0xff]
    %v3184 = vld [vmem:[#allocation8 + $0x738] sm:$0xff]
    %v3185 = vld [vmem:[#allocation8 + $0x740] sm:$0xff]
    %v3186 = vld [vmem:[#allocation8 + $0x748] sm:$0xff]
    %v3187 = vld [vmem:[#allocation8 + $0x750] sm:$0xff]
    %v3188 = vld [vmem:[#allocation8 + $0x758] sm:$0xff]
    %v3189 = vld [vmem:[#allocation8 + $0x760] sm:$0xff]
    %v3190 = vld [vmem:[#allocation8 + $0x768] sm:$0xff]
    %v3191 = vld [vmem:[#allocation8 + $0x770] sm:$0xff]
    %v3192 = vld [vmem:[#allocation8 + $0x778] sm:$0xff]
    %v3193 = vld [vmem:[#allocation8 + $0x780] sm:$0xff]
    %v3194 = vld [vmem:[#allocation8 + $0x788] sm:$0xff]
    %v3195 = vld [vmem:[#allocation8 + $0x790] sm:$0xff]
    %v3196 = vld [vmem:[#allocation8 + $0x798] sm:$0xff]
    %v3197 = vld [vmem:[#allocation8 + $0x7a0] sm:$0xff]
    %v3198 = vld [vmem:[#allocation8 + $0x7a8] sm:$0xff]
    %v3199 = vld [vmem:[#allocation8 + $0x7b0] sm:$0xff]
    %v3200 = vld [vmem:[#allocation8 + $0x7b8] sm:$0xff]
    %v3201 = vld [vmem:[#allocation8 + $0x7c0] sm:$0xff]
    %v3202 = vld [vmem:[#allocation8 + $0x7c8] sm:$0xff]
    %v3203 = vld [vmem:[#allocation8 + $0x7d0] sm:$0xff]
    %v3204 = vld [vmem:[#allocation8 + $0x7d8] sm:$0xff]
    %v3205 = vld [vmem:[#allocation8 + $0x7e0] sm:$0xff]
    %v3206 = vld [vmem:[#allocation8 + $0x7e8] sm:$0xff]
    %v3207 = vld [vmem:[#allocation8 + $0x7f0] sm:$0xff]
    %v3208 = vld [vmem:[#allocation8 + $0x7f8] sm:$0xff]
    %v3337 = vunpack.c.l.b16 %v3081
    %v3338 = vunpack.c.h.b16 %v3081
    %v3339 = vunpack.c.l.b16 %v3082
    %v3340 = vunpack.c.h.b16 %v3082
    %v3341 = vunpack.c.l.b16 %v3083
    %v3342 = vunpack.c.h.b16 %v3083
    %v3343 = vunpack.c.l.b16 %v3084
    %v3344 = vunpack.c.h.b16 %v3084
    %v3345 = vunpack.c.l.b16 %v3085
    %v3346 = vunpack.c.h.b16 %v3085
    %v3347 = vunpack.c.l.b16 %v3086
    %v3348 = vunpack.c.h.b16 %v3086
    %v3349 = vunpack.c.l.b16 %v3087
    %v3350 = vunpack.c.h.b16 %v3087
    %v3351 = vunpack.c.l.b16 %v3088
    %v3352 = vunpack.c.h.b16 %v3088
    %v3353 = vunpack.c.l.b16 %v3089
    %v3354 = vunpack.c.h.b16 %v3089
    %v3355 = vunpack.c.l.b16 %v3090
    %v3356 = vunpack.c.h.b16 %v3090
    %v3357 = vunpack.c.l.b16 %v3091
    %v3358 = vunpack.c.h.b16 %v3091
    %v3359 = vunpack.c.l.b16 %v3092
    %v3360 = vunpack.c.h.b16 %v3092
    %v3361 = vunpack.c.l.b16 %v3093
    %v3362 = vunpack.c.h.b16 %v3093
    %v3363 = vunpack.c.l.b16 %v3094
    %v3364 = vunpack.c.h.b16 %v3094
    %v3365 = vunpack.c.l.b16 %v3095
    %v3366 = vunpack.c.h.b16 %v3095
    %v3367 = vunpack.c.l.b16 %v3096
    %v3368 = vunpack.c.h.b16 %v3096
    %v3369 = vunpack.c.l.b16 %v3097
    %v3370 = vunpack.c.h.b16 %v3097
    %v3371 = vunpack.c.l.b16 %v3098
    %v3372 = vunpack.c.h.b16 %v3098
    %v3373 = vunpack.c.l.b16 %v3099
    %v3374 = vunpack.c.h.b16 %v3099
    %v3375 = vunpack.c.l.b16 %v3100
    %v3376 = vunpack.c.h.b16 %v3100
    %v3377 = vunpack.c.l.b16 %v3101
    %v3378 = vunpack.c.h.b16 %v3101
    %v3379 = vunpack.c.l.b16 %v3102
    %v3380 = vunpack.c.h.b16 %v3102
    %v3381 = vunpack.c.l.b16 %v3103
    %v3382 = vunpack.c.h.b16 %v3103
    %v3383 = vunpack.c.l.b16 %v3104
    %v3384 = vunpack.c.h.b16 %v3104
    %v3385 = vunpack.c.l.b16 %v3105
    %v3386 = vunpack.c.h.b16 %v3105
    %v3387 = vunpack.c.l.b16 %v3106
    %v3388 = vunpack.c.h.b16 %v3106
    %v3389 = vunpack.c.l.b16 %v3107
    %v3390 = vunpack.c.h.b16 %v3107
    %v3391 = vunpack.c.l.b16 %v3108
    %v3392 = vunpack.c.h.b16 %v3108
    %v3393 = vunpack.c.l.b16 %v3109
    %v3394 = vunpack.c.h.b16 %v3109
    %v3395 = vunpack.c.l.b16 %v3110
    %v3396 = vunpack.c.h.b16 %v3110
    %v3397 = vunpack.c.l.b16 %v3111
    %v3398 = vunpack.c.h.b16 %v3111
    %v3399 = vunpack.c.l.b16 %v3112
    %v3400 = vunpack.c.h.b16 %v3112
    %v3401 = vunpack.c.l.b16 %v3113
    %v3402 = vunpack.c.h.b16 %v3113
    %v3403 = vunpack.c.l.b16 %v3114
    %v3404 = vunpack.c.h.b16 %v3114
    %v3405 = vunpack.c.l.b16 %v3115
    %v3406 = vunpack.c.h.b16 %v3115
    %v3407 = vunpack.c.l.b16 %v3116
    %v3408 = vunpack.c.h.b16 %v3116
    %v3409 = vunpack.c.l.b16 %v3117
    %v3410 = vunpack.c.h.b16 %v3117
    %v3411 = vunpack.c.l.b16 %v3118
    %v3412 = vunpack.c.h.b16 %v3118
    %v3413 = vunpack.c.l.b16 %v3119
    %v3414 = vunpack.c.h.b16 %v3119
    %v3415 = vunpack.c.l.b16 %v3120
    %v3416 = vunpack.c.h.b16 %v3120
    %v3417 = vunpack.c.l.b16 %v3121
    %v3418 = vunpack.c.h.b16 %v3121
    %v3419 = vunpack.c.l.b16 %v3122
    %v3420 = vunpack.c.h.b16 %v3122
    %v3421 = vunpack.c.l.b16 %v3123
    %v3422 = vunpack.c.h.b16 %v3123
    %v3423 = vunpack.c.l.b16 %v3124
    %v3424 = vunpack.c.h.b16 %v3124
    %v3425 = vunpack.c.l.b16 %v3125
    %v3426 = vunpack.c.h.b16 %v3125
    %v3427 = vunpack.c.l.b16 %v3126
    %v3428 = vunpack.c.h.b16 %v3126
    %v3429 = vunpack.c.l.b16 %v3127
    %v3430 = vunpack.c.h.b16 %v3127
    %v3431 = vunpack.c.l.b16 %v3128
    %v3432 = vunpack.c.h.b16 %v3128
    %v3433 = vunpack.c.l.b16 %v3129
    %v3434 = vunpack.c.h.b16 %v3129
    %v3435 = vunpack.c.l.b16 %v3130
    %v3436 = vunpack.c.h.b16 %v3130
    %v3437 = vunpack.c.l.b16 %v3131
    %v3438 = vunpack.c.h.b16 %v3131
    %v3439 = vunpack.c.l.b16 %v3132
    %v3440 = vunpack.c.h.b16 %v3132
    %v3441 = vunpack.c.l.b16 %v3133
    %v3442 = vunpack.c.h.b16 %v3133
    %v3443 = vunpack.c.l.b16 %v3134
    %v3444 = vunpack.c.h.b16 %v3134
    %v3445 = vunpack.c.l.b16 %v3135
    %v3446 = vunpack.c.h.b16 %v3135
    %v3447 = vunpack.c.l.b16 %v3136
    %v3448 = vunpack.c.h.b16 %v3136
    %v3449 = vunpack.c.l.b16 %v3137
    %v3450 = vunpack.c.h.b16 %v3137
    %v3451 = vunpack.c.l.b16 %v3138
    %v3452 = vunpack.c.h.b16 %v3138
    %v3453 = vunpack.c.l.b16 %v3139
    %v3454 = vunpack.c.h.b16 %v3139
    %v3455 = vunpack.c.l.b16 %v3140
    %v3456 = vunpack.c.h.b16 %v3140
    %v3457 = vunpack.c.l.b16 %v3141
    %v3458 = vunpack.c.h.b16 %v3141
    %v3459 = vunpack.c.l.b16 %v3142
    %v3460 = vunpack.c.h.b16 %v3142
    %v3461 = vunpack.c.l.b16 %v3143
    %v3462 = vunpack.c.h.b16 %v3143
    %v3463 = vunpack.c.l.b16 %v3144
    %v3464 = vunpack.c.h.b16 %v3144
    %v3465 = vunpack.c.l.b16 %v3145
    %v3466 = vunpack.c.h.b16 %v3145
    %v3467 = vunpack.c.l.b16 %v3146
    %v3468 = vunpack.c.h.b16 %v3146
    %v3469 = vunpack.c.l.b16 %v3147
    %v3470 = vunpack.c.h.b16 %v3147
    %v3471 = vunpack.c.l.b16 %v3148
    %v3472 = vunpack.c.h.b16 %v3148
    %v3473 = vunpack.c.l.b16 %v3149
    %v3474 = vunpack.c.h.b16 %v3149
    %v3475 = vunpack.c.l.b16 %v3150
    %v3476 = vunpack.c.h.b16 %v3150
    %v3477 = vunpack.c.l.b16 %v3151
    %v3478 = vunpack.c.h.b16 %v3151
    %v3479 = vunpack.c.l.b16 %v3152
    %v3480 = vunpack.c.h.b16 %v3152
    %v3481 = vunpack.c.l.b16 %v3153
    %v3482 = vunpack.c.h.b16 %v3153
    %v3483 = vunpack.c.l.b16 %v3154
    %v3484 = vunpack.c.h.b16 %v3154
    %v3485 = vunpack.c.l.b16 %v3155
    %v3486 = vunpack.c.h.b16 %v3155
    %v3487 = vunpack.c.l.b16 %v3156
    %v3488 = vunpack.c.h.b16 %v3156
    %v3489 = vunpack.c.l.b16 %v3157
    %v3490 = vunpack.c.h.b16 %v3157
    %v3491 = vunpack.c.l.b16 %v3158
    %v3492 = vunpack.c.h.b16 %v3158
    %v3493 = vunpack.c.l.b16 %v3159
    %v3494 = vunpack.c.h.b16 %v3159
    %v3495 = vunpack.c.l.b16 %v3160
    %v3496 = vunpack.c.h.b16 %v3160
    %v3497 = vunpack.c.l.b16 %v3161
    %v3498 = vunpack.c.h.b16 %v3161
    %v3499 = vunpack.c.l.b16 %v3162
    %v3500 = vunpack.c.h.b16 %v3162
    %v3501 = vunpack.c.l.b16 %v3163
    %v3502 = vunpack.c.h.b16 %v3163
    %v3503 = vunpack.c.l.b16 %v3164
    %v3504 = vunpack.c.h.b16 %v3164
    %v3505 = vunpack.c.l.b16 %v3165
    %v3506 = vunpack.c.h.b16 %v3165
    %v3507 = vunpack.c.l.b16 %v3166
    %v3508 = vunpack.c.h.b16 %v3166
    %v3509 = vunpack.c.l.b16 %v3167
    %v3510 = vunpack.c.h.b16 %v3167
    %v3511 = vunpack.c.l.b16 %v3168
    %v3512 = vunpack.c.h.b16 %v3168
    %v3513 = vunpack.c.l.b16 %v3169
    %v3514 = vunpack.c.h.b16 %v3169
    %v3515 = vunpack.c.l.b16 %v3170
    %v3516 = vunpack.c.h.b16 %v3170
    %v3517 = vunpack.c.l.b16 %v3171
    %v3518 = vunpack.c.h.b16 %v3171
    %v3519 = vunpack.c.l.b16 %v3172
    %v3520 = vunpack.c.h.b16 %v3172
    %v3521 = vunpack.c.l.b16 %v3173
    %v3522 = vunpack.c.h.b16 %v3173
    %v3523 = vunpack.c.l.b16 %v3174
    %v3524 = vunpack.c.h.b16 %v3174
    %v3525 = vunpack.c.l.b16 %v3175
    %v3526 = vunpack.c.h.b16 %v3175
    %v3527 = vunpack.c.l.b16 %v3176
    %v3528 = vunpack.c.h.b16 %v3176
    %v3529 = vunpack.c.l.b16 %v3177
    %v3530 = vunpack.c.h.b16 %v3177
    %v3531 = vunpack.c.l.b16 %v3178
    %v3532 = vunpack.c.h.b16 %v3178
    %v3533 = vunpack.c.l.b16 %v3179
    %v3534 = vunpack.c.h.b16 %v3179
    %v3535 = vunpack.c.l.b16 %v3180
    %v3536 = vunpack.c.h.b16 %v3180
    %v3537 = vunpack.c.l.b16 %v3181
    %v3538 = vunpack.c.h.b16 %v3181
    %v3539 = vunpack.c.l.b16 %v3182
    %v3540 = vunpack.c.h.b16 %v3182
    %v3541 = vunpack.c.l.b16 %v3183
    %v3542 = vunpack.c.h.b16 %v3183
    %v3543 = vunpack.c.l.b16 %v3184
    %v3544 = vunpack.c.h.b16 %v3184
    %v3545 = vunpack.c.l.b16 %v3185
    %v3546 = vunpack.c.h.b16 %v3185
    %v3547 = vunpack.c.l.b16 %v3186
    %v3548 = vunpack.c.h.b16 %v3186
    %v3549 = vunpack.c.l.b16 %v3187
    %v3550 = vunpack.c.h.b16 %v3187
    %v3551 = vunpack.c.l.b16 %v3188
    %v3552 = vunpack.c.h.b16 %v3188
    %v3553 = vunpack.c.l.b16 %v3189
    %v3554 = vunpack.c.h.b16 %v3189
    %v3555 = vunpack.c.l.b16 %v3190
    %v3556 = vunpack.c.h.b16 %v3190
    %v3557 = vunpack.c.l.b16 %v3191
    %v3558 = vunpack.c.h.b16 %v3191
    %v3559 = vunpack.c.l.b16 %v3192
    %v3560 = vunpack.c.h.b16 %v3192
    %v3561 = vunpack.c.l.b16 %v3193
    %v3562 = vunpack.c.h.b16 %v3193
    %v3563 = vunpack.c.l.b16 %v3194
    %v3564 = vunpack.c.h.b16 %v3194
    %v3565 = vunpack.c.l.b16 %v3195
    %v3566 = vunpack.c.h.b16 %v3195
    %v3567 = vunpack.c.l.b16 %v3196
    %v3568 = vunpack.c.h.b16 %v3196
    %v3569 = vunpack.c.l.b16 %v3197
    %v3570 = vunpack.c.h.b16 %v3197
    %v3571 = vunpack.c.l.b16 %v3198
    %v3572 = vunpack.c.h.b16 %v3198
    %v3573 = vunpack.c.l.b16 %v3199
    %v3574 = vunpack.c.h.b16 %v3199
    %v3575 = vunpack.c.l.b16 %v3200
    %v3576 = vunpack.c.h.b16 %v3200
    %v3577 = vunpack.c.l.b16 %v3201
    %v3578 = vunpack.c.h.b16 %v3201
    %v3579 = vunpack.c.l.b16 %v3202
    %v3580 = vunpack.c.h.b16 %v3202
    %v3581 = vunpack.c.l.b16 %v3203
    %v3582 = vunpack.c.h.b16 %v3203
    %v3583 = vunpack.c.l.b16 %v3204
    %v3584 = vunpack.c.h.b16 %v3204
    %v3585 = vunpack.c.l.b16 %v3205
    %v3586 = vunpack.c.h.b16 %v3205
    %v3587 = vunpack.c.l.b16 %v3206
    %v3588 = vunpack.c.h.b16 %v3206
    %v3589 = vunpack.c.l.b16 %v3207
    %v3590 = vunpack.c.h.b16 %v3207
    %v3591 = vunpack.c.l.b16 %v3208
    %v3592 = vunpack.c.h.b16 %v3208
    %v3593 = vpack.c.b16 %v3341, %v3337
    %v3594 = vpack.c.b16 %v3342, %v3338
    %v3595 = vpack.c.b16 %v3343, %v3339
    %v3596 = vpack.c.b16 %v3344, %v3340
    %v3597 = vpack.c.b16 %v3349, %v3345
    %v3598 = vpack.c.b16 %v3350, %v3346
    %v3599 = vpack.c.b16 %v3351, %v3347
    %v3600 = vpack.c.b16 %v3352, %v3348
    %v3601 = vpack.c.b16 %v3357, %v3353
    %v3602 = vpack.c.b16 %v3358, %v3354
    %v3603 = vpack.c.b16 %v3359, %v3355
    %v3604 = vpack.c.b16 %v3360, %v3356
    %v3605 = vpack.c.b16 %v3365, %v3361
    %v3606 = vpack.c.b16 %v3366, %v3362
    %v3607 = vpack.c.b16 %v3367, %v3363
    %v3608 = vpack.c.b16 %v3368, %v3364
    %v3609 = vpack.c.b16 %v3373, %v3369
    %v3610 = vpack.c.b16 %v3374, %v3370
    %v3611 = vpack.c.b16 %v3375, %v3371
    %v3612 = vpack.c.b16 %v3376, %v3372
    %v3613 = vpack.c.b16 %v3381, %v3377
    %v3614 = vpack.c.b16 %v3382, %v3378
    %v3615 = vpack.c.b16 %v3383, %v3379
    %v3616 = vpack.c.b16 %v3384, %v3380
    %v3617 = vpack.c.b16 %v3389, %v3385
    %v3618 = vpack.c.b16 %v3390, %v3386
    %v3619 = vpack.c.b16 %v3391, %v3387
    %v3620 = vpack.c.b16 %v3392, %v3388
    %v3621 = vpack.c.b16 %v3397, %v3393
    %v3622 = vpack.c.b16 %v3398, %v3394
    %v3623 = vpack.c.b16 %v3399, %v3395
    %v3624 = vpack.c.b16 %v3400, %v3396
    %v3625 = vpack.c.b16 %v3405, %v3401
    %v3626 = vpack.c.b16 %v3406, %v3402
    %v3627 = vpack.c.b16 %v3407, %v3403
    %v3628 = vpack.c.b16 %v3408, %v3404
    %v3629 = vpack.c.b16 %v3413, %v3409
    %v3630 = vpack.c.b16 %v3414, %v3410
    %v3631 = vpack.c.b16 %v3415, %v3411
    %v3632 = vpack.c.b16 %v3416, %v3412
    %v3633 = vpack.c.b16 %v3421, %v3417
    %v3634 = vpack.c.b16 %v3422, %v3418
    %v3635 = vpack.c.b16 %v3423, %v3419
    %v3636 = vpack.c.b16 %v3424, %v3420
    %v3637 = vpack.c.b16 %v3429, %v3425
    %v3638 = vpack.c.b16 %v3430, %v3426
    %v3639 = vpack.c.b16 %v3431, %v3427
    %v3640 = vpack.c.b16 %v3432, %v3428
    %v3641 = vpack.c.b16 %v3437, %v3433
    %v3642 = vpack.c.b16 %v3438, %v3434
    %v3643 = vpack.c.b16 %v3439, %v3435
    %v3644 = vpack.c.b16 %v3440, %v3436
    %v3645 = vpack.c.b16 %v3445, %v3441
    %v3646 = vpack.c.b16 %v3446, %v3442
    %v3647 = vpack.c.b16 %v3447, %v3443
    %v3648 = vpack.c.b16 %v3448, %v3444
    %v3649 = vpack.c.b16 %v3453, %v3449
    %v3650 = vpack.c.b16 %v3454, %v3450
    %v3651 = vpack.c.b16 %v3455, %v3451
    %v3652 = vpack.c.b16 %v3456, %v3452
    %v3653 = vpack.c.b16 %v3461, %v3457
    %v3654 = vpack.c.b16 %v3462, %v3458
    %v3655 = vpack.c.b16 %v3463, %v3459
    %v3656 = vpack.c.b16 %v3464, %v3460
    %v3657 = vpack.c.b16 %v3469, %v3465
    %v3658 = vpack.c.b16 %v3470, %v3466
    %v3659 = vpack.c.b16 %v3471, %v3467
    %v3660 = vpack.c.b16 %v3472, %v3468
    %v3661 = vpack.c.b16 %v3477, %v3473
    %v3662 = vpack.c.b16 %v3478, %v3474
    %v3663 = vpack.c.b16 %v3479, %v3475
    %v3664 = vpack.c.b16 %v3480, %v3476
    %v3665 = vpack.c.b16 %v3485, %v3481
    %v3666 = vpack.c.b16 %v3486, %v3482
    %v3667 = vpack.c.b16 %v3487, %v3483
    %v3668 = vpack.c.b16 %v3488, %v3484
    %v3669 = vpack.c.b16 %v3493, %v3489
    %v3670 = vpack.c.b16 %v3494, %v3490
    %v3671 = vpack.c.b16 %v3495, %v3491
    %v3672 = vpack.c.b16 %v3496, %v3492
    %v3673 = vpack.c.b16 %v3501, %v3497
    %v3674 = vpack.c.b16 %v3502, %v3498
    %v3675 = vpack.c.b16 %v3503, %v3499
    %v3676 = vpack.c.b16 %v3504, %v3500
    %v3677 = vpack.c.b16 %v3509, %v3505
    %v3678 = vpack.c.b16 %v3510, %v3506
    %v3679 = vpack.c.b16 %v3511, %v3507
    %v3680 = vpack.c.b16 %v3512, %v3508
    %v3681 = vpack.c.b16 %v3517, %v3513
    %v3682 = vpack.c.b16 %v3518, %v3514
    %v3683 = vpack.c.b16 %v3519, %v3515
    %v3684 = vpack.c.b16 %v3520, %v3516
    %v3685 = vpack.c.b16 %v3525, %v3521
    %v3686 = vpack.c.b16 %v3526, %v3522
    %v3687 = vpack.c.b16 %v3527, %v3523
    %v3688 = vpack.c.b16 %v3528, %v3524
    %v3689 = vpack.c.b16 %v3533, %v3529
    %v3690 = vpack.c.b16 %v3534, %v3530
    %v3691 = vpack.c.b16 %v3535, %v3531
    %v3692 = vpack.c.b16 %v3536, %v3532
    %v3693 = vpack.c.b16 %v3541, %v3537
    %v3694 = vpack.c.b16 %v3542, %v3538
    %v3695 = vpack.c.b16 %v3543, %v3539
    %v3696 = vpack.c.b16 %v3544, %v3540
    %v3697 = vpack.c.b16 %v3549, %v3545
    %v3698 = vpack.c.b16 %v3550, %v3546
    %v3699 = vpack.c.b16 %v3551, %v3547
    %v3700 = vpack.c.b16 %v3552, %v3548
    %v3701 = vpack.c.b16 %v3557, %v3553
    %v3702 = vpack.c.b16 %v3558, %v3554
    %v3703 = vpack.c.b16 %v3559, %v3555
    %v3704 = vpack.c.b16 %v3560, %v3556
    %v3705 = vpack.c.b16 %v3565, %v3561
    %v3706 = vpack.c.b16 %v3566, %v3562
    %v3707 = vpack.c.b16 %v3567, %v3563
    %v3708 = vpack.c.b16 %v3568, %v3564
    %v3709 = vpack.c.b16 %v3573, %v3569
    %v3710 = vpack.c.b16 %v3574, %v3570
    %v3711 = vpack.c.b16 %v3575, %v3571
    %v3712 = vpack.c.b16 %v3576, %v3572
    %v3713 = vpack.c.b16 %v3581, %v3577
    %v3714 = vpack.c.b16 %v3582, %v3578
    %v3715 = vpack.c.b16 %v3583, %v3579
    %v3716 = vpack.c.b16 %v3584, %v3580
    %v3717 = vpack.c.b16 %v3589, %v3585
    %v3718 = vpack.c.b16 %v3590, %v3586
    %v3719 = vpack.c.b16 %v3591, %v3587
    %v3720 = vpack.c.b16 %v3592, %v3588
    %3849 = vmatprep.subr.bf16.mxu0 %v3594
    %3850 = vmatpush1.bf16.msra.mxu0 %v3593
    %3851 = vmatprep.subr.bf16.mxu0 %v3598
    %3852 = vmatpush1.bf16.msra.mxu0 %v3597
    %3853 = vmatprep.subr.bf16.mxu0 %v3602
    %3854 = vmatpush1.bf16.msra.mxu0 %v3601
    %3855 = vmatprep.subr.bf16.mxu0 %v3606
    %3856 = vmatpush1.bf16.msra.mxu0 %v3605
    %3857 = vmatprep.subr.bf16.mxu0 %v3610
    %3858 = vmatpush1.bf16.msra.mxu0 %v3609
    %3859 = vmatprep.subr.bf16.mxu0 %v3614
    %3860 = vmatpush1.bf16.msra.mxu0 %v3613
    %3861 = vmatprep.subr.bf16.mxu0 %v3618
    %3862 = vmatpush1.bf16.msra.mxu0 %v3617
    %3863 = vmatprep.subr.bf16.mxu0 %v3622
    %3864 = vmatpush1.bf16.msra.mxu0 %v3621
    %3865 = vmatprep.subr.bf16.mxu0 %v3626
    %3866 = vmatpush1.bf16.msra.mxu0 %v3625
    %3867 = vmatprep.subr.bf16.mxu0 %v3630
    %3868 = vmatpush1.bf16.msra.mxu0 %v3629
    %3869 = vmatprep.subr.bf16.mxu0 %v3634
    %3870 = vmatpush1.bf16.msra.mxu0 %v3633
    %3871 = vmatprep.subr.bf16.mxu0 %v3638
    %3872 = vmatpush1.bf16.msra.mxu0 %v3637
    %3873 = vmatprep.subr.bf16.mxu0 %v3642
    %3874 = vmatpush1.bf16.msra.mxu0 %v3641
    %3875 = vmatprep.subr.bf16.mxu0 %v3646
    %3876 = vmatpush1.bf16.msra.mxu0 %v3645
    %3877 = vmatprep.subr.bf16.mxu0 %v3650
    %3878 = vmatpush1.bf16.msra.mxu0 %v3649
    %3879 = vmatprep.subr.bf16.mxu0 %v3654
    %3880 = vmatpush1.bf16.msra.mxu0 %v3653
    %3881 = vmatprep.mubr.bf16.mxu0 %v3050
    %3882 = vmatmul.mubr.bf16.gmra.mrb[0].mxu0 %v3049
    %v3883 = vpop.f32.mrb[0].mxu0
    %v3884 = vadd.f32 0.0, %v3883
    %v3885 = vpop.f32.mrb[0].mxu0
    %v3886 = vadd.f32 0.0, %v3885
    %v3887 = vpop.f32.mrb[0].mxu0
    %v3888 = vadd.f32 0.0, %v3887
    %v3889 = vpop.f32.mrb[0].mxu0
    %v3890 = vadd.f32 0.0, %v3889
    %3891 = vmatprep.mubr.bf16.mxu0 %v3054
    %3892 = vmatmul.mubr.bf16.gmra.mrb[0].mxu0 %v3053
    %v3893 = vpop.f32.mrb[0].mxu0
    %v3894 = vadd.f32 0.0, %v3893
    %v3895 = vpop.f32.mrb[0].mxu0
    %v3896 = vadd.f32 0.0, %v3895
    %v3897 = vpop.f32.mrb[0].mxu0
    %v3898 = vadd.f32 0.0, %v3897
    %v3899 = vpop.f32.mrb[0].mxu0
    %v3900 = vadd.f32 0.0, %v3899
    %3901 = vmatprep.mubr.bf16.mxu0 %v3058
    %3902 = vmatmul.mubr.bf16.gmra.mrb[0].mxu0 %v3057
    %v3903 = vpop.f32.mrb[0].mxu0
    %v3904 = vadd.f32 0.0, %v3903
    %v3905 = vpop.f32.mrb[0].mxu0
    %v3906 = vadd.f32 0.0, %v3905
    %v3907 = vpop.f32.mrb[0].mxu0
    %v3908 = vadd.f32 0.0, %v3907
    %v3909 = vpop.f32.mrb[0].mxu0
    %v3910 = vadd.f32 0.0, %v3909
    %3911 = vmatprep.mubr.bf16.mxu0 %v3062
    %3912 = vmatmul.mubr.bf16.gmra.mrb[0].mxu0 %v3061
    %v3913 = vpop.f32.mrb[0].mxu0
    %v3914 = vadd.f32 0.0, %v3913
    %v3915 = vpop.f32.mrb[0].mxu0
    %v3916 = vadd.f32 0.0, %v3915
    %v3917 = vpop.f32.mrb[0].mxu0
    %v3918 = vadd.f32 0.0, %v3917
    %v3919 = vpop.f32.mrb[0].mxu0
    %v3920 = vadd.f32 0.0, %v3919
    %3921 = vmatprep.mubr.bf16.mxu0 %v3066
    %3922 = vmatmul.mubr.bf16.gmra.mrb[0].mxu0 %v3065
    %v3923 = vpop.f32.mrb[0].mxu0
    %v3924 = vadd.f32 0.0, %v3923
    %v3925 = vpop.f32.mrb[0].mxu0
    %v3926 = vadd.f32 0.0, %v3925
    %v3927 = vpop.f32.mrb[0].mxu0
    %v3928 = vadd.f32 0.0, %v3927
    %v3929 = vpop.f32.mrb[0].mxu0
    %v3930 = vadd.f32 0.0, %v3929
    %3931 = vmatprep.mubr.bf16.mxu0 %v3070
    %3932 = vmatmul.mubr.bf16.gmra.mrb[0].mxu0 %v3069
    %v3933 = vpop.f32.mrb[0].mxu0
    %v3934 = vadd.f32 0.0, %v3933
    %v3935 = vpop.f32.mrb[0].mxu0
    %v3936 = vadd.f32 0.0, %v3935
    %v3937 = vpop.f32.mrb[0].mxu0
    %v3938 = vadd.f32 0.0, %v3937
    %v3939 = vpop.f32.mrb[0].mxu0
    %v3940 = vadd.f32 0.0, %v3939
    %3941 = vmatprep.mubr.bf16.mxu0 %v3074
    %3942 = vmatmul.mubr.bf16.gmra.mrb[0].mxu0 %v3073
    %v3943 = vpop.f32.mrb[0].mxu0
    %v3944 = vadd.f32 0.0, %v3943
    %v3945 = vpop.f32.mrb[0].mxu0
    %v3946 = vadd.f32 0.0, %v3945
    %v3947 = vpop.f32.mrb[0].mxu0
    %v3948 = vadd.f32 0.0, %v3947
    %v3949 = vpop.f32.mrb[0].mxu0
    %v3950 = vadd.f32 0.0, %v3949
    %3951 = vmatprep.mubr.bf16.mxu0 %v3078
    %3952 = vmatmul.mubr.bf16.gmra.mrb[0].mxu0 %v3077
    %v3953 = vpop.f32.mrb[0].mxu0
    %v3954 = vadd.f32 0.0, %v3953
    %v3955 = vpop.f32.mrb[0].mxu0
    %v3956 = vadd.f32 0.0, %v3955
    %v3957 = vpop.f32.mrb[0].mxu0
    %v3958 = vadd.f32 0.0, %v3957
    %v3959 = vpop.f32.mrb[0].mxu0
    %v3960 = vadd.f32 0.0, %v3959
    %3961 = vdwg.mxu0
    %3962 = vmatprep.subr.bf16.mxu0 %v3658
    %3963 = vmatpush1.bf16.msra.mxu0 %v3657
    %3964 = vmatprep.subr.bf16.mxu0 %v3662
    %3965 = vmatpush1.bf16.msra.mxu0 %v3661
    %3966 = vmatprep.subr.bf16.mxu0 %v3666
    %3967 = vmatpush1.bf16.msra.mxu0 %v3665
    %3968 = vmatprep.subr.bf16.mxu0 %v3670
    %3969 = vmatpush1.bf16.msra.mxu0 %v3669
    %3970 = vmatprep.subr.bf16.mxu0 %v3674
    %3971 = vmatpush1.bf16.msra.mxu0 %v3673
    %3972 = vmatprep.subr.bf16.mxu0 %v3678
    %3973 = vmatpush1.bf16.msra.mxu0 %v3677
    %3974 = vmatprep.subr.bf16.mxu0 %v3682
    %3975 = vmatpush1.bf16.msra.mxu0 %v3681
    %3976 = vmatprep.subr.bf16.mxu0 %v3686
    %3977 = vmatpush1.bf16.msra.mxu0 %v3685
    %3978 = vmatprep.subr.bf16.mxu0 %v3690
    %3979 = vmatpush1.bf16.msra.mxu0 %v3689
    %3980 = vmatprep.subr.bf16.mxu0 %v3694
    %3981 = vmatpush1.bf16.msra.mxu0 %v3693
    %3982 = vmatprep.subr.bf16.mxu0 %v3698
    %3983 = vmatpush1.bf16.msra.mxu0 %v3697
    %3984 = vmatprep.subr.bf16.mxu0 %v3702
    %3985 = vmatpush1.bf16.msra.mxu0 %v3701
    %3986 = vmatprep.subr.bf16.mxu0 %v3706
    %3987 = vmatpush1.bf16.msra.mxu0 %v3705
    %3988 = vmatprep.subr.bf16.mxu0 %v3710
    %3989 = vmatpush1.bf16.msra.mxu0 %v3709
    %3990 = vmatprep.subr.bf16.mxu0 %v3714
    %3991 = vmatpush1.bf16.msra.mxu0 %v3713
    %3992 = vmatprep.subr.bf16.mxu0 %v3718
    %3993 = vmatpush1.bf16.msra.mxu0 %v3717
    %3994 = vmatprep.mubr.bf16.mxu0 %v3052
    %3995 = vmatmul.mubr.bf16.gmra.mrb[0].mxu0 %v3051
    %v3996 = vpop.f32.mrb[0].mxu0
    %v3997 = vadd.f32 %v3884, %v3996
    %v3998 = vpop.f32.mrb[0].mxu0
    %v3999 = vadd.f32 %v3886, %v3998
    %v4000 = vpop.f32.mrb[0].mxu0
    %v4001 = vadd.f32 %v3888, %v4000
    %v4002 = vpop.f32.mrb[0].mxu0
    %v4003 = vadd.f32 %v3890, %v4002
    %4004 = vmatprep.mubr.bf16.mxu0 %v3056
    %4005 = vmatmul.mubr.bf16.gmra.mrb[0].mxu0 %v3055
    %v4006 = vpop.f32.mrb[0].mxu0
    %v4007 = vadd.f32 %v3894, %v4006
    %v4008 = vpop.f32.mrb[0].mxu0
    %v4009 = vadd.f32 %v3896, %v4008
    %v4010 = vpop.f32.mrb[0].mxu0
    %v4011 = vadd.f32 %v3898, %v4010
    %v4012 = vpop.f32.mrb[0].mxu0
    %v4013 = vadd.f32 %v3900, %v4012
    %4014 = vmatprep.mubr.bf16.mxu0 %v3060
    %4015 = vmatmul.mubr.bf16.gmra.mrb[0].mxu0 %v3059
    %v4016 = vpop.f32.mrb[0].mxu0
    %v4017 = vadd.f32 %v3904, %v4016
    %v4018 = vpop.f32.mrb[0].mxu0
    %v4019 = vadd.f32 %v3906, %v4018
    %v4020 = vpop.f32.mrb[0].mxu0
    %v4021 = vadd.f32 %v3908, %v4020
    %v4022 = vpop.f32.mrb[0].mxu0
    %v4023 = vadd.f32 %v3910, %v4022
    %4024 = vmatprep.mubr.bf16.mxu0 %v3064
    %4025 = vmatmul.mubr.bf16.gmra.mrb[0].mxu0 %v3063
    %v4026 = vpop.f32.mrb[0].mxu0
    %v4027 = vadd.f32 %v3914, %v4026
    %v4028 = vpop.f32.mrb[0].mxu0
    %v4029 = vadd.f32 %v3916, %v4028
    %v4030 = vpop.f32.mrb[0].mxu0
    %v4031 = vadd.f32 %v3918, %v4030
    %v4032 = vpop.f32.mrb[0].mxu0
    %v4033 = vadd.f32 %v3920, %v4032
    %4034 = vmatprep.mubr.bf16.mxu0 %v3068
    %4035 = vmatmul.mubr.bf16.gmra.mrb[0].mxu0 %v3067
    %v4036 = vpop.f32.mrb[0].mxu0
    %v4037 = vadd.f32 %v3924, %v4036
    %v4038 = vpop.f32.mrb[0].mxu0
    %v4039 = vadd.f32 %v3926, %v4038
    %v4040 = vpop.f32.mrb[0].mxu0
    %v4041 = vadd.f32 %v3928, %v4040
    %v4042 = vpop.f32.mrb[0].mxu0
    %v4043 = vadd.f32 %v3930, %v4042
    %4044 = vmatprep.mubr.bf16.mxu0 %v3072
    %4045 = vmatmul.mubr.bf16.gmra.mrb[0].mxu0 %v3071
    %v4046 = vpop.f32.mrb[0].mxu0
    %v4047 = vadd.f32 %v3934, %v4046
    %v4048 = vpop.f32.mrb[0].mxu0
    %v4049 = vadd.f32 %v3936, %v4048
    %v4050 = vpop.f32.mrb[0].mxu0
    %v4051 = vadd.f32 %v3938, %v4050
    %v4052 = vpop.f32.mrb[0].mxu0
    %v4053 = vadd.f32 %v3940, %v4052
    %4054 = vmatprep.mubr.bf16.mxu0 %v3076
    %4055 = vmatmul.mubr.bf16.gmra.mrb[0].mxu0 %v3075
    %v4056 = vpop.f32.mrb[0].mxu0
    %v4057 = vadd.f32 %v3944, %v4056
    %v4058 = vpop.f32.mrb[0].mxu0
    %v4059 = vadd.f32 %v3946, %v4058
    %v4060 = vpop.f32.mrb[0].mxu0
    %v4061 = vadd.f32 %v3948, %v4060
    %v4062 = vpop.f32.mrb[0].mxu0
    %v4063 = vadd.f32 %v3950, %v4062
    %4064 = vmatprep.mubr.bf16.mxu0 %v3080
    %4065 = vmatmul.mubr.bf16.gmra.mrb[0].mxu0 %v3079
    %v4066 = vpop.f32.mrb[0].mxu0
    %v4067 = vadd.f32 %v3954, %v4066
    %v4068 = vpop.f32.mrb[0].mxu0
    %v4069 = vadd.f32 %v3956, %v4068
    %v4070 = vpop.f32.mrb[0].mxu0
    %v4071 = vadd.f32 %v3958, %v4070
    %v4072 = vpop.f32.mrb[0].mxu0
    %v4073 = vadd.f32 %v3960, %v4072
    %4074 = vdwg.mxu0
    %4075 = vmatprep.subr.bf16.mxu0 %v3596
    %4076 = vmatpush1.bf16.msra.mxu0 %v3595
    %4077 = vmatprep.subr.bf16.mxu0 %v3600
    %4078 = vmatpush1.bf16.msra.mxu0 %v3599
    %4079 = vmatprep.subr.bf16.mxu0 %v3604
    %4080 = vmatpush1.bf16.msra.mxu0 %v3603
    %4081 = vmatprep.subr.bf16.mxu0 %v3608
    %4082 = vmatpush1.bf16.msra.mxu0 %v3607
    %4083 = vmatprep.subr.bf16.mxu0 %v3612
    %4084 = vmatpush1.bf16.msra.mxu0 %v3611
    %4085 = vmatprep.subr.bf16.mxu0 %v3616
    %4086 = vmatpush1.bf16.msra.mxu0 %v3615
    %4087 = vmatprep.subr.bf16.mxu0 %v3620
    %4088 = vmatpush1.bf16.msra.mxu0 %v3619
    %4089 = vmatprep.subr.bf16.mxu0 %v3624
    %4090 = vmatpush1.bf16.msra.mxu0 %v3623
    %4091 = vmatprep.subr.bf16.mxu0 %v3628
    %4092 = vmatpush1.bf16.msra.mxu0 %v3627
    %4093 = vmatprep.subr.bf16.mxu0 %v3632
    %4094 = vmatpush1.bf16.msra.mxu0 %v3631
    %4095 = vmatprep.subr.bf16.mxu0 %v3636
    %4096 = vmatpush1.bf16.msra.mxu0 %v3635
    %4097 = vmatprep.subr.bf16.mxu0 %v3640
    %4098 = vmatpush1.bf16.msra.mxu0 %v3639
    %4099 = vmatprep.subr.bf16.mxu0 %v3644
    %4100 = vmatpush1.bf16.msra.mxu0 %v3643
    %4101 = vmatprep.subr.bf16.mxu0 %v3648
    %4102 = vmatpush1.bf16.msra.mxu0 %v3647
    %4103 = vmatprep.subr.bf16.mxu0 %v3652
    %4104 = vmatpush1.bf16.msra.mxu0 %v3651
    %4105 = vmatprep.subr.bf16.mxu0 %v3656
    %4106 = vmatpush1.bf16.msra.mxu0 %v3655
    %4107 = vmatprep.mubr.bf16.mxu0 %v3050
    %4108 = vmatmul.mubr.bf16.gmra.mrb[0].mxu0 %v3049
    %v4109 = vpop.f32.mrb[0].mxu0
    %v4110 = vadd.f32 0.0, %v4109
    %v4111 = vpop.f32.mrb[0].mxu0
    %v4112 = vadd.f32 0.0, %v4111
    %v4113 = vpop.f32.mrb[0].mxu0
    %v4114 = vadd.f32 0.0, %v4113
    %v4115 = vpop.f32.mrb[0].mxu0
    %v4116 = vadd.f32 0.0, %v4115
    %4117 = vmatprep.mubr.bf16.mxu0 %v3054
    %4118 = vmatmul.mubr.bf16.gmra.mrb[0].mxu0 %v3053
    %v4119 = vpop.f32.mrb[0].mxu0
    %v4120 = vadd.f32 0.0, %v4119
    %v4121 = vpop.f32.mrb[0].mxu0
    %v4122 = vadd.f32 0.0, %v4121
    %v4123 = vpop.f32.mrb[0].mxu0
    %v4124 = vadd.f32 0.0, %v4123
    %v4125 = vpop.f32.mrb[0].mxu0
    %v4126 = vadd.f32 0.0, %v4125
    %4127 = vmatprep.mubr.bf16.mxu0 %v3058
    %4128 = vmatmul.mubr.bf16.gmra.mrb[0].mxu0 %v3057
    %v4129 = vpop.f32.mrb[0].mxu0
    %v4130 = vadd.f32 0.0, %v4129
    %v4131 = vpop.f32.mrb[0].mxu0
    %v4132 = vadd.f32 0.0, %v4131
    %v4133 = vpop.f32.mrb[0].mxu0
    %v4134 = vadd.f32 0.0, %v4133
    %v4135 = vpop.f32.mrb[0].mxu0
    %v4136 = vadd.f32 0.0, %v4135
    %4137 = vmatprep.mubr.bf16.mxu0 %v3062
    %4138 = vmatmul.mubr.bf16.gmra.mrb[0].mxu0 %v3061
    %v4139 = vpop.f32.mrb[0].mxu0
    %v4140 = vadd.f32 0.0, %v4139
    %v4141 = vpop.f32.mrb[0].mxu0
    %v4142 = vadd.f32 0.0, %v4141
    %v4143 = vpop.f32.mrb[0].mxu0
    %v4144 = vadd.f32 0.0, %v4143
    %v4145 = vpop.f32.mrb[0].mxu0
    %v4146 = vadd.f32 0.0, %v4145
    %4147 = vmatprep.mubr.bf16.mxu0 %v3066
    %4148 = vmatmul.mubr.bf16.gmra.mrb[0].mxu0 %v3065
    %v4149 = vpop.f32.mrb[0].mxu0
    %v4150 = vadd.f32 0.0, %v4149
    %v4151 = vpop.f32.mrb[0].mxu0
    %v4152 = vadd.f32 0.0, %v4151
    %v4153 = vpop.f32.mrb[0].mxu0
    %v4154 = vadd.f32 0.0, %v4153
    %v4155 = vpop.f32.mrb[0].mxu0
    %v4156 = vadd.f32 0.0, %v4155
    %4157 = vmatprep.mubr.bf16.mxu0 %v3070
    %4158 = vmatmul.mubr.bf16.gmra.mrb[0].mxu0 %v3069
    %v4159 = vpop.f32.mrb[0].mxu0
    %v4160 = vadd.f32 0.0, %v4159
    %v4161 = vpop.f32.mrb[0].mxu0
    %v4162 = vadd.f32 0.0, %v4161
    %v4163 = vpop.f32.mrb[0].mxu0
    %v4164 = vadd.f32 0.0, %v4163
    %v4165 = vpop.f32.mrb[0].mxu0
    %v4166 = vadd.f32 0.0, %v4165
    %4167 = vmatprep.mubr.bf16.mxu0 %v3074
    %4168 = vmatmul.mubr.bf16.gmra.mrb[0].mxu0 %v3073
    %v4169 = vpop.f32.mrb[0].mxu0
    %v4170 = vadd.f32 0.0, %v4169
    %v4171 = vpop.f32.mrb[0].mxu0
    %v4172 = vadd.f32 0.0, %v4171
    %v4173 = vpop.f32.mrb[0].mxu0
    %v4174 = vadd.f32 0.0, %v4173
    %v4175 = vpop.f32.mrb[0].mxu0
    %v4176 = vadd.f32 0.0, %v4175
    %4177 = vmatprep.mubr.bf16.mxu0 %v3078
    %4178 = vmatmul.mubr.bf16.gmra.mrb[0].mxu0 %v3077
    %v4179 = vpop.f32.mrb[0].mxu0
    %v4180 = vadd.f32 0.0, %v4179
    %v4181 = vpop.f32.mrb[0].mxu0
    %v4182 = vadd.f32 0.0, %v4181
    %v4183 = vpop.f32.mrb[0].mxu0
    %v4184 = vadd.f32 0.0, %v4183
    %v4185 = vpop.f32.mrb[0].mxu0
    %v4186 = vadd.f32 0.0, %v4185
    %4187 = vdwg.mxu0
    %4188 = vmatprep.subr.bf16.mxu0 %v3660
    %4189 = vmatpush1.bf16.msra.mxu0 %v3659
    %4190 = vmatprep.subr.bf16.mxu0 %v3664
    %4191 = vmatpush1.bf16.msra.mxu0 %v3663
    %4192 = vmatprep.subr.bf16.mxu0 %v3668
    %4193 = vmatpush1.bf16.msra.mxu0 %v3667
    %4194 = vmatprep.subr.bf16.mxu0 %v3672
    %4195 = vmatpush1.bf16.msra.mxu0 %v3671
    %4196 = vmatprep.subr.bf16.mxu0 %v3676
    %4197 = vmatpush1.bf16.msra.mxu0 %v3675
    %4198 = vmatprep.subr.bf16.mxu0 %v3680
    %4199 = vmatpush1.bf16.msra.mxu0 %v3679
    %4200 = vmatprep.subr.bf16.mxu0 %v3684
    %4201 = vmatpush1.bf16.msra.mxu0 %v3683
    %4202 = vmatprep.subr.bf16.mxu0 %v3688
    %4203 = vmatpush1.bf16.msra.mxu0 %v3687
    %4204 = vmatprep.subr.bf16.mxu0 %v3692
    %4205 = vmatpush1.bf16.msra.mxu0 %v3691
    %4206 = vmatprep.subr.bf16.mxu0 %v3696
    %4207 = vmatpush1.bf16.msra.mxu0 %v3695
    %4208 = vmatprep.subr.bf16.mxu0 %v3700
    %4209 = vmatpush1.bf16.msra.mxu0 %v3699
    %4210 = vmatprep.subr.bf16.mxu0 %v3704
    %4211 = vmatpush1.bf16.msra.mxu0 %v3703
    %4212 = vmatprep.subr.bf16.mxu0 %v3708
    %4213 = vmatpush1.bf16.msra.mxu0 %v3707
    %4214 = vmatprep.subr.bf16.mxu0 %v3712
    %4215 = vmatpush1.bf16.msra.mxu0 %v3711
    %4216 = vmatprep.subr.bf16.mxu0 %v3716
    %4217 = vmatpush1.bf16.msra.mxu0 %v3715
    %4218 = vmatprep.subr.bf16.mxu0 %v3720
    %4219 = vmatpush1.bf16.msra.mxu0 %v3719
    %4220 = vmatprep.mubr.bf16.mxu0 %v3052
    %4221 = vmatmul.mubr.bf16.gmra.mrb[0].mxu0 %v3051
    %v4222 = vpop.f32.mrb[0].mxu0
    %v4223 = vadd.f32 %v4110, %v4222
    %v4224 = vpop.f32.mrb[0].mxu0
    %v4225 = vadd.f32 %v4112, %v4224
    %v4226 = vpop.f32.mrb[0].mxu0
    %v4227 = vadd.f32 %v4114, %v4226
    %v4228 = vpop.f32.mrb[0].mxu0
    %v4229 = vadd.f32 %v4116, %v4228
    %4230 = vmatprep.mubr.bf16.mxu0 %v3056
    %4231 = vmatmul.mubr.bf16.gmra.mrb[0].mxu0 %v3055
    %v4232 = vpop.f32.mrb[0].mxu0
    %v4233 = vadd.f32 %v4120, %v4232
    %v4234 = vpop.f32.mrb[0].mxu0
    %v4235 = vadd.f32 %v4122, %v4234
    %v4236 = vpop.f32.mrb[0].mxu0
    %v4237 = vadd.f32 %v4124, %v4236
    %v4238 = vpop.f32.mrb[0].mxu0
    %v4239 = vadd.f32 %v4126, %v4238
    %4240 = vmatprep.mubr.bf16.mxu0 %v3060
    %4241 = vmatmul.mubr.bf16.gmra.mrb[0].mxu0 %v3059
    %v4242 = vpop.f32.mrb[0].mxu0
    %v4243 = vadd.f32 %v4130, %v4242
    %v4244 = vpop.f32.mrb[0].mxu0
    %v4245 = vadd.f32 %v4132, %v4244
    %v4246 = vpop.f32.mrb[0].mxu0
    %v4247 = vadd.f32 %v4134, %v4246
    %v4248 = vpop.f32.mrb[0].mxu0
    %v4249 = vadd.f32 %v4136, %v4248
    %4250 = vmatprep.mubr.bf16.mxu0 %v3064
    %4251 = vmatmul.mubr.bf16.gmra.mrb[0].mxu0 %v3063
    %v4252 = vpop.f32.mrb[0].mxu0
    %v4253 = vadd.f32 %v4140, %v4252
    %v4254 = vpop.f32.mrb[0].mxu0
    %v4255 = vadd.f32 %v4142, %v4254
    %v4256 = vpop.f32.mrb[0].mxu0
    %v4257 = vadd.f32 %v4144, %v4256
    %v4258 = vpop.f32.mrb[0].mxu0
    %v4259 = vadd.f32 %v4146, %v4258
    %4260 = vmatprep.mubr.bf16.mxu0 %v3068
    %4261 = vmatmul.mubr.bf16.gmra.mrb[0].mxu0 %v3067
    %v4262 = vpop.f32.mrb[0].mxu0
    %v4263 = vadd.f32 %v4150, %v4262
    %v4264 = vpop.f32.mrb[0].mxu0
    %v4265 = vadd.f32 %v4152, %v4264
    %v4266 = vpop.f32.mrb[0].mxu0
    %v4267 = vadd.f32 %v4154, %v4266
    %v4268 = vpop.f32.mrb[0].mxu0
    %v4269 = vadd.f32 %v4156, %v4268
    %4270 = vmatprep.mubr.bf16.mxu0 %v3072
    %4271 = vmatmul.mubr.bf16.gmra.mrb[0].mxu0 %v3071
    %v4272 = vpop.f32.mrb[0].mxu0
    %v4273 = vadd.f32 %v4160, %v4272
    %v4274 = vpop.f32.mrb[0].mxu0
    %v4275 = vadd.f32 %v4162, %v4274
    %v4276 = vpop.f32.mrb[0].mxu0
    %v4277 = vadd.f32 %v4164, %v4276
    %v4278 = vpop.f32.mrb[0].mxu0
    %v4279 = vadd.f32 %v4166, %v4278
    %4280 = vmatprep.mubr.bf16.mxu0 %v3076
    %4281 = vmatmul.mubr.bf16.gmra.mrb[0].mxu0 %v3075
    %v4282 = vpop.f32.mrb[0].mxu0
    %v4283 = vadd.f32 %v4170, %v4282
    %v4284 = vpop.f32.mrb[0].mxu0
    %v4285 = vadd.f32 %v4172, %v4284
    %v4286 = vpop.f32.mrb[0].mxu0
    %v4287 = vadd.f32 %v4174, %v4286
    %v4288 = vpop.f32.mrb[0].mxu0
    %v4289 = vadd.f32 %v4176, %v4288
    %4290 = vmatprep.mubr.bf16.mxu0 %v3080
    %4291 = vmatmul.mubr.bf16.gmra.mrb[0].mxu0 %v3079
    %v4292 = vpop.f32.mrb[0].mxu0
    %v4293 = vadd.f32 %v4180, %v4292
    %v4294 = vpop.f32.mrb[0].mxu0
    %v4295 = vadd.f32 %v4182, %v4294
    %v4296 = vpop.f32.mrb[0].mxu0
    %v4297 = vadd.f32 %v4184, %v4296
    %v4298 = vpop.f32.mrb[0].mxu0
    %v4299 = vadd.f32 %v4186, %v4298
    %4300 = vdwg.mxu0
    %v4429 = vunpack.c.l.b16 %v1615
    %v4430 = vunpack.c.h.b16 %v1615
    %v4431 = vunpack.c.l.b16 %v1616
    %v4432 = vunpack.c.h.b16 %v1616
    %v4433 = vunpack.c.l.b16 %v1617
    %v4434 = vunpack.c.h.b16 %v1617
    %v4435 = vunpack.c.l.b16 %v1618
    %v4436 = vunpack.c.h.b16 %v1618
    %v4437 = vunpack.c.l.b16 %v1619
    %v4438 = vunpack.c.h.b16 %v1619
    %v4439 = vunpack.c.l.b16 %v1620
    %v4440 = vunpack.c.h.b16 %v1620
    %v4441 = vunpack.c.l.b16 %v1621
    %v4442 = vunpack.c.h.b16 %v1621
    %v4443 = vunpack.c.l.b16 %v1622
    %v4444 = vunpack.c.h.b16 %v1622
    %v4445 = vunpack.c.l.b16 %v1623
    %v4446 = vunpack.c.h.b16 %v1623
    %v4447 = vunpack.c.l.b16 %v1624
    %v4448 = vunpack.c.h.b16 %v1624
    %v4449 = vunpack.c.l.b16 %v1625
    %v4450 = vunpack.c.h.b16 %v1625
    %v4451 = vunpack.c.l.b16 %v1626
    %v4452 = vunpack.c.h.b16 %v1626
    %v4453 = vunpack.c.l.b16 %v1627
    %v4454 = vunpack.c.h.b16 %v1627
    %v4455 = vunpack.c.l.b16 %v1628
    %v4456 = vunpack.c.h.b16 %v1628
    %v4457 = vunpack.c.l.b16 %v1629
    %v4458 = vunpack.c.h.b16 %v1629
    %v4459 = vunpack.c.l.b16 %v1630
    %v4460 = vunpack.c.h.b16 %v1630
    %v4461 = vunpack.c.l.b16 %v1631
    %v4462 = vunpack.c.h.b16 %v1631
    %v4463 = vunpack.c.l.b16 %v1632
    %v4464 = vunpack.c.h.b16 %v1632
    %v4465 = vunpack.c.l.b16 %v1633
    %v4466 = vunpack.c.h.b16 %v1633
    %v4467 = vunpack.c.l.b16 %v1634
    %v4468 = vunpack.c.h.b16 %v1634
    %v4469 = vunpack.c.l.b16 %v1635
    %v4470 = vunpack.c.h.b16 %v1635
    %v4471 = vunpack.c.l.b16 %v1636
    %v4472 = vunpack.c.h.b16 %v1636
    %v4473 = vunpack.c.l.b16 %v1637
    %v4474 = vunpack.c.h.b16 %v1637
    %v4475 = vunpack.c.l.b16 %v1638
    %v4476 = vunpack.c.h.b16 %v1638
    %v4477 = vunpack.c.l.b16 %v1639
    %v4478 = vunpack.c.h.b16 %v1639
    %v4479 = vunpack.c.l.b16 %v1640
    %v4480 = vunpack.c.h.b16 %v1640
    %v4481 = vunpack.c.l.b16 %v1641
    %v4482 = vunpack.c.h.b16 %v1641
    %v4483 = vunpack.c.l.b16 %v1642
    %v4484 = vunpack.c.h.b16 %v1642
    %v4485 = vunpack.c.l.b16 %v1643
    %v4486 = vunpack.c.h.b16 %v1643
    %v4487 = vunpack.c.l.b16 %v1644
    %v4488 = vunpack.c.h.b16 %v1644
    %v4489 = vunpack.c.l.b16 %v1645
    %v4490 = vunpack.c.h.b16 %v1645
    %v4491 = vunpack.c.l.b16 %v1646
    %v4492 = vunpack.c.h.b16 %v1646
    %v4493 = vunpack.c.l.b16 %v1647
    %v4494 = vunpack.c.h.b16 %v1647
    %v4495 = vunpack.c.l.b16 %v1648
    %v4496 = vunpack.c.h.b16 %v1648
    %v4497 = vunpack.c.l.b16 %v1649
    %v4498 = vunpack.c.h.b16 %v1649
    %v4499 = vunpack.c.l.b16 %v1650
    %v4500 = vunpack.c.h.b16 %v1650
    %v4501 = vunpack.c.l.b16 %v1651
    %v4502 = vunpack.c.h.b16 %v1651
    %v4503 = vunpack.c.l.b16 %v1652
    %v4504 = vunpack.c.h.b16 %v1652
    %v4505 = vunpack.c.l.b16 %v1653
    %v4506 = vunpack.c.h.b16 %v1653
    %v4507 = vunpack.c.l.b16 %v1654
    %v4508 = vunpack.c.h.b16 %v1654
    %v4509 = vunpack.c.l.b16 %v1655
    %v4510 = vunpack.c.h.b16 %v1655
    %v4511 = vunpack.c.l.b16 %v1656
    %v4512 = vunpack.c.h.b16 %v1656
    %v4513 = vunpack.c.l.b16 %v1657
    %v4514 = vunpack.c.h.b16 %v1657
    %v4515 = vunpack.c.l.b16 %v1658
    %v4516 = vunpack.c.h.b16 %v1658
    %v4517 = vunpack.c.l.b16 %v1659
    %v4518 = vunpack.c.h.b16 %v1659
    %v4519 = vunpack.c.l.b16 %v1660
    %v4520 = vunpack.c.h.b16 %v1660
    %v4521 = vunpack.c.l.b16 %v1661
    %v4522 = vunpack.c.h.b16 %v1661
    %v4523 = vunpack.c.l.b16 %v1662
    %v4524 = vunpack.c.h.b16 %v1662
    %v4525 = vunpack.c.l.b16 %v1663
    %v4526 = vunpack.c.h.b16 %v1663
    %v4527 = vunpack.c.l.b16 %v1664
    %v4528 = vunpack.c.h.b16 %v1664
    %v4529 = vunpack.c.l.b16 %v1665
    %v4530 = vunpack.c.h.b16 %v1665
    %v4531 = vunpack.c.l.b16 %v1666
    %v4532 = vunpack.c.h.b16 %v1666
    %v4533 = vunpack.c.l.b16 %v1667
    %v4534 = vunpack.c.h.b16 %v1667
    %v4535 = vunpack.c.l.b16 %v1668
    %v4536 = vunpack.c.h.b16 %v1668
    %v4537 = vunpack.c.l.b16 %v1669
    %v4538 = vunpack.c.h.b16 %v1669
    %v4539 = vunpack.c.l.b16 %v1670
    %v4540 = vunpack.c.h.b16 %v1670
    %v4541 = vunpack.c.l.b16 %v1671
    %v4542 = vunpack.c.h.b16 %v1671
    %v4543 = vunpack.c.l.b16 %v1672
    %v4544 = vunpack.c.h.b16 %v1672
    %v4545 = vunpack.c.l.b16 %v1673
    %v4546 = vunpack.c.h.b16 %v1673
    %v4547 = vunpack.c.l.b16 %v1674
    %v4548 = vunpack.c.h.b16 %v1674
    %v4549 = vunpack.c.l.b16 %v1675
    %v4550 = vunpack.c.h.b16 %v1675
    %v4551 = vunpack.c.l.b16 %v1676
    %v4552 = vunpack.c.h.b16 %v1676
    %v4553 = vunpack.c.l.b16 %v1677
    %v4554 = vunpack.c.h.b16 %v1677
    %v4555 = vunpack.c.l.b16 %v1678
    %v4556 = vunpack.c.h.b16 %v1678
    %v4557 = vunpack.c.l.b16 %v1679
    %v4558 = vunpack.c.h.b16 %v1679
    %v4559 = vunpack.c.l.b16 %v1680
    %v4560 = vunpack.c.h.b16 %v1680
    %v4561 = vunpack.c.l.b16 %v1681
    %v4562 = vunpack.c.h.b16 %v1681
    %v4563 = vunpack.c.l.b16 %v1682
    %v4564 = vunpack.c.h.b16 %v1682
    %v4565 = vunpack.c.l.b16 %v1683
    %v4566 = vunpack.c.h.b16 %v1683
    %v4567 = vunpack.c.l.b16 %v1684
    %v4568 = vunpack.c.h.b16 %v1684
    %v4569 = vunpack.c.l.b16 %v1685
    %v4570 = vunpack.c.h.b16 %v1685
    %v4571 = vunpack.c.l.b16 %v1686
    %v4572 = vunpack.c.h.b16 %v1686
    %v4573 = vunpack.c.l.b16 %v1687
    %v4574 = vunpack.c.h.b16 %v1687
    %v4575 = vunpack.c.l.b16 %v1688
    %v4576 = vunpack.c.h.b16 %v1688
    %v4577 = vunpack.c.l.b16 %v1689
    %v4578 = vunpack.c.h.b16 %v1689
    %v4579 = vunpack.c.l.b16 %v1690
    %v4580 = vunpack.c.h.b16 %v1690
    %v4581 = vunpack.c.l.b16 %v1691
    %v4582 = vunpack.c.h.b16 %v1691
    %v4583 = vunpack.c.l.b16 %v1692
    %v4584 = vunpack.c.h.b16 %v1692
    %v4585 = vunpack.c.l.b16 %v1693
    %v4586 = vunpack.c.h.b16 %v1693
    %v4587 = vunpack.c.l.b16 %v1694
    %v4588 = vunpack.c.h.b16 %v1694
    %v4589 = vunpack.c.l.b16 %v1695
    %v4590 = vunpack.c.h.b16 %v1695
    %v4591 = vunpack.c.l.b16 %v1696
    %v4592 = vunpack.c.h.b16 %v1696
    %v4593 = vunpack.c.l.b16 %v1697
    %v4594 = vunpack.c.h.b16 %v1697
    %v4595 = vunpack.c.l.b16 %v1698
    %v4596 = vunpack.c.h.b16 %v1698
    %v4597 = vunpack.c.l.b16 %v1699
    %v4598 = vunpack.c.h.b16 %v1699
    %v4599 = vunpack.c.l.b16 %v1700
    %v4600 = vunpack.c.h.b16 %v1700
    %v4601 = vunpack.c.l.b16 %v1701
    %v4602 = vunpack.c.h.b16 %v1701
    %v4603 = vunpack.c.l.b16 %v1702
    %v4604 = vunpack.c.h.b16 %v1702
    %v4605 = vunpack.c.l.b16 %v1703
    %v4606 = vunpack.c.h.b16 %v1703
    %v4607 = vunpack.c.l.b16 %v1704
    %v4608 = vunpack.c.h.b16 %v1704
    %v4609 = vunpack.c.l.b16 %v1705
    %v4610 = vunpack.c.h.b16 %v1705
    %v4611 = vunpack.c.l.b16 %v1706
    %v4612 = vunpack.c.h.b16 %v1706
    %v4613 = vunpack.c.l.b16 %v1707
    %v4614 = vunpack.c.h.b16 %v1707
    %v4615 = vunpack.c.l.b16 %v1708
    %v4616 = vunpack.c.h.b16 %v1708
    %v4617 = vunpack.c.l.b16 %v1709
    %v4618 = vunpack.c.h.b16 %v1709
    %v4619 = vunpack.c.l.b16 %v1710
    %v4620 = vunpack.c.h.b16 %v1710
    %v4621 = vunpack.c.l.b16 %v1711
    %v4622 = vunpack.c.h.b16 %v1711
    %v4623 = vunpack.c.l.b16 %v1712
    %v4624 = vunpack.c.h.b16 %v1712
    %v4625 = vunpack.c.l.b16 %v1713
    %v4626 = vunpack.c.h.b16 %v1713
    %v4627 = vunpack.c.l.b16 %v1714
    %v4628 = vunpack.c.h.b16 %v1714
    %v4629 = vunpack.c.l.b16 %v1715
    %v4630 = vunpack.c.h.b16 %v1715
    %v4631 = vunpack.c.l.b16 %v1716
    %v4632 = vunpack.c.h.b16 %v1716
    %v4633 = vunpack.c.l.b16 %v1717
    %v4634 = vunpack.c.h.b16 %v1717
    %v4635 = vunpack.c.l.b16 %v1718
    %v4636 = vunpack.c.h.b16 %v1718
    %v4637 = vunpack.c.l.b16 %v1719
    %v4638 = vunpack.c.h.b16 %v1719
    %v4639 = vunpack.c.l.b16 %v1720
    %v4640 = vunpack.c.h.b16 %v1720
    %v4641 = vunpack.c.l.b16 %v1721
    %v4642 = vunpack.c.h.b16 %v1721
    %v4643 = vunpack.c.l.b16 %v1722
    %v4644 = vunpack.c.h.b16 %v1722
    %v4645 = vunpack.c.l.b16 %v1723
    %v4646 = vunpack.c.h.b16 %v1723
    %v4647 = vunpack.c.l.b16 %v1724
    %v4648 = vunpack.c.h.b16 %v1724
    %v4649 = vunpack.c.l.b16 %v1725
    %v4650 = vunpack.c.h.b16 %v1725
    %v4651 = vunpack.c.l.b16 %v1726
    %v4652 = vunpack.c.h.b16 %v1726
    %v4653 = vunpack.c.l.b16 %v1727
    %v4654 = vunpack.c.h.b16 %v1727
    %v4655 = vunpack.c.l.b16 %v1728
    %v4656 = vunpack.c.h.b16 %v1728
    %v4657 = vunpack.c.l.b16 %v1729
    %v4658 = vunpack.c.h.b16 %v1729
    %v4659 = vunpack.c.l.b16 %v1730
    %v4660 = vunpack.c.h.b16 %v1730
    %v4661 = vunpack.c.l.b16 %v1731
    %v4662 = vunpack.c.h.b16 %v1731
    %v4663 = vunpack.c.l.b16 %v1732
    %v4664 = vunpack.c.h.b16 %v1732
    %v4665 = vunpack.c.l.b16 %v1733
    %v4666 = vunpack.c.h.b16 %v1733
    %v4667 = vunpack.c.l.b16 %v1734
    %v4668 = vunpack.c.h.b16 %v1734
    %v4669 = vunpack.c.l.b16 %v1735
    %v4670 = vunpack.c.h.b16 %v1735
    %v4671 = vunpack.c.l.b16 %v1736
    %v4672 = vunpack.c.h.b16 %v1736
    %v4673 = vunpack.c.l.b16 %v1737
    %v4674 = vunpack.c.h.b16 %v1737
    %v4675 = vunpack.c.l.b16 %v1738
    %v4676 = vunpack.c.h.b16 %v1738
    %v4677 = vunpack.c.l.b16 %v1739
    %v4678 = vunpack.c.h.b16 %v1739
    %v4679 = vunpack.c.l.b16 %v1740
    %v4680 = vunpack.c.h.b16 %v1740
    %v4681 = vunpack.c.l.b16 %v1741
    %v4682 = vunpack.c.h.b16 %v1741
    %v4683 = vunpack.c.l.b16 %v1742
    %v4684 = vunpack.c.h.b16 %v1742
    %v4685 = vpack.c.b16 %v4433, %v4429
    %v4686 = vpack.c.b16 %v4434, %v4430
    %v4687 = vpack.c.b16 %v4435, %v4431
    %v4688 = vpack.c.b16 %v4436, %v4432
    %v4689 = vpack.c.b16 %v4441, %v4437
    %v4690 = vpack.c.b16 %v4442, %v4438
    %v4691 = vpack.c.b16 %v4443, %v4439
    %v4692 = vpack.c.b16 %v4444, %v4440
    %v4693 = vpack.c.b16 %v4449, %v4445
    %v4694 = vpack.c.b16 %v4450, %v4446
    %v4695 = vpack.c.b16 %v4451, %v4447
    %v4696 = vpack.c.b16 %v4452, %v4448
    %v4697 = vpack.c.b16 %v4457, %v4453
    %v4698 = vpack.c.b16 %v4458, %v4454
    %v4699 = vpack.c.b16 %v4459, %v4455
    %v4700 = vpack.c.b16 %v4460, %v4456
    %v4701 = vpack.c.b16 %v4465, %v4461
    %v4702 = vpack.c.b16 %v4466, %v4462
    %v4703 = vpack.c.b16 %v4467, %v4463
    %v4704 = vpack.c.b16 %v4468, %v4464
    %v4705 = vpack.c.b16 %v4473, %v4469
    %v4706 = vpack.c.b16 %v4474, %v4470
    %v4707 = vpack.c.b16 %v4475, %v4471
    %v4708 = vpack.c.b16 %v4476, %v4472
    %v4709 = vpack.c.b16 %v4481, %v4477
    %v4710 = vpack.c.b16 %v4482, %v4478
    %v4711 = vpack.c.b16 %v4483, %v4479
    %v4712 = vpack.c.b16 %v4484, %v4480
    %v4713 = vpack.c.b16 %v4489, %v4485
    %v4714 = vpack.c.b16 %v4490, %v4486
    %v4715 = vpack.c.b16 %v4491, %v4487
    %v4716 = vpack.c.b16 %v4492, %v4488
    %v4717 = vpack.c.b16 %v4497, %v4493
    %v4718 = vpack.c.b16 %v4498, %v4494
    %v4719 = vpack.c.b16 %v4499, %v4495
    %v4720 = vpack.c.b16 %v4500, %v4496
    %v4721 = vpack.c.b16 %v4505, %v4501
    %v4722 = vpack.c.b16 %v4506, %v4502
    %v4723 = vpack.c.b16 %v4507, %v4503
    %v4724 = vpack.c.b16 %v4508, %v4504
    %v4725 = vpack.c.b16 %v4513, %v4509
    %v4726 = vpack.c.b16 %v4514, %v4510
    %v4727 = vpack.c.b16 %v4515, %v4511
    %v4728 = vpack.c.b16 %v4516, %v4512
    %v4729 = vpack.c.b16 %v4521, %v4517
    %v4730 = vpack.c.b16 %v4522, %v4518
    %v4731 = vpack.c.b16 %v4523, %v4519
    %v4732 = vpack.c.b16 %v4524, %v4520
    %v4733 = vpack.c.b16 %v4529, %v4525
    %v4734 = vpack.c.b16 %v4530, %v4526
    %v4735 = vpack.c.b16 %v4531, %v4527
    %v4736 = vpack.c.b16 %v4532, %v4528
    %v4737 = vpack.c.b16 %v4537, %v4533
    %v4738 = vpack.c.b16 %v4538, %v4534
    %v4739 = vpack.c.b16 %v4539, %v4535
    %v4740 = vpack.c.b16 %v4540, %v4536
    %v4741 = vpack.c.b16 %v4545, %v4541
    %v4742 = vpack.c.b16 %v4546, %v4542
    %v4743 = vpack.c.b16 %v4547, %v4543
    %v4744 = vpack.c.b16 %v4548, %v4544
    %v4745 = vpack.c.b16 %v4553, %v4549
    %v4746 = vpack.c.b16 %v4554, %v4550
    %v4747 = vpack.c.b16 %v4555, %v4551
    %v4748 = vpack.c.b16 %v4556, %v4552
    %v4749 = vpack.c.b16 %v4561, %v4557
    %v4750 = vpack.c.b16 %v4562, %v4558
    %v4751 = vpack.c.b16 %v4563, %v4559
    %v4752 = vpack.c.b16 %v4564, %v4560
    %v4753 = vpack.c.b16 %v4569, %v4565
    %v4754 = vpack.c.b16 %v4570, %v4566
    %v4755 = vpack.c.b16 %v4571, %v4567
    %v4756 = vpack.c.b16 %v4572, %v4568
    %v4757 = vpack.c.b16 %v4577, %v4573
    %v4758 = vpack.c.b16 %v4578, %v4574
    %v4759 = vpack.c.b16 %v4579, %v4575
    %v4760 = vpack.c.b16 %v4580, %v4576
    %v4761 = vpack.c.b16 %v4585, %v4581
    %v4762 = vpack.c.b16 %v4586, %v4582
    %v4763 = vpack.c.b16 %v4587, %v4583
    %v4764 = vpack.c.b16 %v4588, %v4584
    %v4765 = vpack.c.b16 %v4593, %v4589
    %v4766 = vpack.c.b16 %v4594, %v4590
    %v4767 = vpack.c.b16 %v4595, %v4591
    %v4768 = vpack.c.b16 %v4596, %v4592
    %v4769 = vpack.c.b16 %v4601, %v4597
    %v4770 = vpack.c.b16 %v4602, %v4598
    %v4771 = vpack.c.b16 %v4603, %v4599
    %v4772 = vpack.c.b16 %v4604, %v4600
    %v4773 = vpack.c.b16 %v4609, %v4605
    %v4774 = vpack.c.b16 %v4610, %v4606
    %v4775 = vpack.c.b16 %v4611, %v4607
    %v4776 = vpack.c.b16 %v4612, %v4608
    %v4777 = vpack.c.b16 %v4617, %v4613
    %v4778 = vpack.c.b16 %v4618, %v4614
    %v4779 = vpack.c.b16 %v4619, %v4615
    %v4780 = vpack.c.b16 %v4620, %v4616
    %v4781 = vpack.c.b16 %v4625, %v4621
    %v4782 = vpack.c.b16 %v4626, %v4622
    %v4783 = vpack.c.b16 %v4627, %v4623
    %v4784 = vpack.c.b16 %v4628, %v4624
    %v4785 = vpack.c.b16 %v4633, %v4629
    %v4786 = vpack.c.b16 %v4634, %v4630
    %v4787 = vpack.c.b16 %v4635, %v4631
    %v4788 = vpack.c.b16 %v4636, %v4632
    %v4789 = vpack.c.b16 %v4641, %v4637
    %v4790 = vpack.c.b16 %v4642, %v4638
    %v4791 = vpack.c.b16 %v4643, %v4639
    %v4792 = vpack.c.b16 %v4644, %v4640
    %v4793 = vpack.c.b16 %v4649, %v4645
    %v4794 = vpack.c.b16 %v4650, %v4646
    %v4795 = vpack.c.b16 %v4651, %v4647
    %v4796 = vpack.c.b16 %v4652, %v4648
    %v4797 = vpack.c.b16 %v4657, %v4653
    %v4798 = vpack.c.b16 %v4658, %v4654
    %v4799 = vpack.c.b16 %v4659, %v4655
    %v4800 = vpack.c.b16 %v4660, %v4656
    %v4801 = vpack.c.b16 %v4665, %v4661
    %v4802 = vpack.c.b16 %v4666, %v4662
    %v4803 = vpack.c.b16 %v4667, %v4663
    %v4804 = vpack.c.b16 %v4668, %v4664
    %v4805 = vpack.c.b16 %v4673, %v4669
    %v4806 = vpack.c.b16 %v4674, %v4670
    %v4807 = vpack.c.b16 %v4675, %v4671
    %v4808 = vpack.c.b16 %v4676, %v4672
    %v4809 = vpack.c.b16 %v4681, %v4677
    %v4810 = vpack.c.b16 %v4682, %v4678
    %v4811 = vpack.c.b16 %v4683, %v4679
    %v4812 = vpack.c.b16 %v4684, %v4680
    %4941 = vmatprep.subr.bf16.mxu0 %v4686
    %4942 = vmatpush1.bf16.msra.mxu0 %v4685
    %4943 = vmatprep.subr.bf16.mxu0 %v4690
    %4944 = vmatpush1.bf16.msra.mxu0 %v4689
    %4945 = vmatprep.subr.bf16.mxu0 %v4694
    %4946 = vmatpush1.bf16.msra.mxu0 %v4693
    %4947 = vmatprep.subr.bf16.mxu0 %v4698
    %4948 = vmatpush1.bf16.msra.mxu0 %v4697
    %4949 = vmatprep.subr.bf16.mxu0 %v4702
    %4950 = vmatpush1.bf16.msra.mxu0 %v4701
    %4951 = vmatprep.subr.bf16.mxu0 %v4706
    %4952 = vmatpush1.bf16.msra.mxu0 %v4705
    %4953 = vmatprep.subr.bf16.mxu0 %v4710
    %4954 = vmatpush1.bf16.msra.mxu0 %v4709
    %4955 = vmatprep.subr.bf16.mxu0 %v4714
    %4956 = vmatpush1.bf16.msra.mxu0 %v4713
    %4957 = vmatprep.subr.bf16.mxu0 %v4718
    %4958 = vmatpush1.bf16.msra.mxu0 %v4717
    %4959 = vmatprep.subr.bf16.mxu0 %v4722
    %4960 = vmatpush1.bf16.msra.mxu0 %v4721
    %4961 = vmatprep.subr.bf16.mxu0 %v4726
    %4962 = vmatpush1.bf16.msra.mxu0 %v4725
    %4963 = vmatprep.subr.bf16.mxu0 %v4730
    %4964 = vmatpush1.bf16.msra.mxu0 %v4729
    %4965 = vmatprep.subr.bf16.mxu0 %v4734
    %4966 = vmatpush1.bf16.msra.mxu0 %v4733
    %4967 = vmatprep.subr.bf16.mxu0 %v4738
    %4968 = vmatpush1.bf16.msra.mxu0 %v4737
    %4969 = vmatprep.subr.bf16.mxu0 %v4742
    %4970 = vmatpush1.bf16.msra.mxu0 %v4741
    %4971 = vmatprep.subr.bf16.mxu0 %v4746
    %4972 = vmatpush1.bf16.msra.mxu0 %v4745
    %4973 = vmatprep.mubr.bf16.mxu0 %v1584
    %4974 = vmatmul.mubr.bf16.gmra.mrb[0].mxu0 %v1583
    %v4975 = vpop.f32.mrb[0].mxu0
    %v4976 = vadd.f32 %v3997, %v4975
    %v4977 = vpop.f32.mrb[0].mxu0
    %v4978 = vadd.f32 %v3999, %v4977
    %v4979 = vpop.f32.mrb[0].mxu0
    %v4980 = vadd.f32 %v4001, %v4979
    %v4981 = vpop.f32.mrb[0].mxu0
    %v4982 = vadd.f32 %v4003, %v4981
    %4983 = vmatprep.mubr.bf16.mxu0 %v1588
    %4984 = vmatmul.mubr.bf16.gmra.mrb[0].mxu0 %v1587
    %v4985 = vpop.f32.mrb[0].mxu0
    %v4986 = vadd.f32 %v4007, %v4985
    %v4987 = vpop.f32.mrb[0].mxu0
    %v4988 = vadd.f32 %v4009, %v4987
    %v4989 = vpop.f32.mrb[0].mxu0
    %v4990 = vadd.f32 %v4011, %v4989
    %v4991 = vpop.f32.mrb[0].mxu0
    %v4992 = vadd.f32 %v4013, %v4991
    %4993 = vmatprep.mubr.bf16.mxu0 %v1592
    %4994 = vmatmul.mubr.bf16.gmra.mrb[0].mxu0 %v1591
    %v4995 = vpop.f32.mrb[0].mxu0
    %v4996 = vadd.f32 %v4017, %v4995
    %v4997 = vpop.f32.mrb[0].mxu0
    %v4998 = vadd.f32 %v4019, %v4997
    %v4999 = vpop.f32.mrb[0].mxu0
    %v5000 = vadd.f32 %v4021, %v4999
    %v5001 = vpop.f32.mrb[0].mxu0
    %v5002 = vadd.f32 %v4023, %v5001
    %5003 = vmatprep.mubr.bf16.mxu0 %v1596
    %5004 = vmatmul.mubr.bf16.gmra.mrb[0].mxu0 %v1595
    %v5005 = vpop.f32.mrb[0].mxu0
    %v5006 = vadd.f32 %v4027, %v5005
    %v5007 = vpop.f32.mrb[0].mxu0
    %v5008 = vadd.f32 %v4029, %v5007
    %v5009 = vpop.f32.mrb[0].mxu0
    %v5010 = vadd.f32 %v4031, %v5009
    %v5011 = vpop.f32.mrb[0].mxu0
    %v5012 = vadd.f32 %v4033, %v5011
    %5013 = vmatprep.mubr.bf16.mxu0 %v1600
    %5014 = vmatmul.mubr.bf16.gmra.mrb[0].mxu0 %v1599
    %v5015 = vpop.f32.mrb[0].mxu0
    %v5016 = vadd.f32 %v4037, %v5015
    %v5017 = vpop.f32.mrb[0].mxu0
    %v5018 = vadd.f32 %v4039, %v5017
    %v5019 = vpop.f32.mrb[0].mxu0
    %v5020 = vadd.f32 %v4041, %v5019
    %v5021 = vpop.f32.mrb[0].mxu0
    %v5022 = vadd.f32 %v4043, %v5021
    %5023 = vmatprep.mubr.bf16.mxu0 %v1604
    %5024 = vmatmul.mubr.bf16.gmra.mrb[0].mxu0 %v1603
    %v5025 = vpop.f32.mrb[0].mxu0
    %v5026 = vadd.f32 %v4047, %v5025
    %v5027 = vpop.f32.mrb[0].mxu0
    %v5028 = vadd.f32 %v4049, %v5027
    %v5029 = vpop.f32.mrb[0].mxu0
    %v5030 = vadd.f32 %v4051, %v5029
    %v5031 = vpop.f32.mrb[0].mxu0
    %v5032 = vadd.f32 %v4053, %v5031
    %5033 = vmatprep.mubr.bf16.mxu0 %v1608
    %5034 = vmatmul.mubr.bf16.gmra.mrb[0].mxu0 %v1607
    %v5035 = vpop.f32.mrb[0].mxu0
    %v5036 = vadd.f32 %v4057, %v5035
    %v5037 = vpop.f32.mrb[0].mxu0
    %v5038 = vadd.f32 %v4059, %v5037
    %v5039 = vpop.f32.mrb[0].mxu0
    %v5040 = vadd.f32 %v4061, %v5039
    %v5041 = vpop.f32.mrb[0].mxu0
    %v5042 = vadd.f32 %v4063, %v5041
    %5043 = vmatprep.mubr.bf16.mxu0 %v1612
    %5044 = vmatmul.mubr.bf16.gmra.mrb[0].mxu0 %v1611
    %v5045 = vpop.f32.mrb[0].mxu0
    %v5046 = vadd.f32 %v4067, %v5045
    %v5047 = vpop.f32.mrb[0].mxu0
    %v5048 = vadd.f32 %v4069, %v5047
    %v5049 = vpop.f32.mrb[0].mxu0
    %v5050 = vadd.f32 %v4071, %v5049
    %v5051 = vpop.f32.mrb[0].mxu0
    %v5052 = vadd.f32 %v4073, %v5051
    %5053 = vdwg.mxu0
    %5054 = vmatprep.subr.bf16.mxu0 %v4750
    %5055 = vmatpush1.bf16.msra.mxu0 %v4749
    %5056 = vmatprep.subr.bf16.mxu0 %v4754
    %5057 = vmatpush1.bf16.msra.mxu0 %v4753
    %5058 = vmatprep.subr.bf16.mxu0 %v4758
    %5059 = vmatpush1.bf16.msra.mxu0 %v4757
    %5060 = vmatprep.subr.bf16.mxu0 %v4762
    %5061 = vmatpush1.bf16.msra.mxu0 %v4761
    %5062 = vmatprep.subr.bf16.mxu0 %v4766
    %5063 = vmatpush1.bf16.msra.mxu0 %v4765
    %5064 = vmatprep.subr.bf16.mxu0 %v4770
    %5065 = vmatpush1.bf16.msra.mxu0 %v4769
    %5066 = vmatprep.subr.bf16.mxu0 %v4774
    %5067 = vmatpush1.bf16.msra.mxu0 %v4773
    %5068 = vmatprep.subr.bf16.mxu0 %v4778
    %5069 = vmatpush1.bf16.msra.mxu0 %v4777
    %5070 = vmatprep.subr.bf16.mxu0 %v4782
    %5071 = vmatpush1.bf16.msra.mxu0 %v4781
    %5072 = vmatprep.subr.bf16.mxu0 %v4786
    %5073 = vmatpush1.bf16.msra.mxu0 %v4785
    %5074 = vmatprep.subr.bf16.mxu0 %v4790
    %5075 = vmatpush1.bf16.msra.mxu0 %v4789
    %5076 = vmatprep.subr.bf16.mxu0 %v4794
    %5077 = vmatpush1.bf16.msra.mxu0 %v4793
    %5078 = vmatprep.subr.bf16.mxu0 %v4798
    %5079 = vmatpush1.bf16.msra.mxu0 %v4797
    %5080 = vmatprep.subr.bf16.mxu0 %v4802
    %5081 = vmatpush1.bf16.msra.mxu0 %v4801
    %5082 = vmatprep.subr.bf16.mxu0 %v4806
    %5083 = vmatpush1.bf16.msra.mxu0 %v4805
    %5084 = vmatprep.subr.bf16.mxu0 %v4810
    %5085 = vmatpush1.bf16.msra.mxu0 %v4809
    %5086 = vmatprep.mubr.bf16.mxu0 %v1586
    %5087 = vmatmul.mubr.bf16.gmra.mrb[0].mxu0 %v1585
    %v5088 = vpop.f32.mrb[0].mxu0
    %v5089 = vadd.f32 %v4976, %v5088
    %v5090 = vpop.f32.mrb[0].mxu0
    %v5091 = vadd.f32 %v4978, %v5090
    %v5092 = vpop.f32.mrb[0].mxu0
    %v5093 = vadd.f32 %v4980, %v5092
    %v5094 = vpop.f32.mrb[0].mxu0
    %v5095 = vadd.f32 %v4982, %v5094
    %5096 = vmatprep.mubr.bf16.mxu0 %v1590
    %5097 = vmatmul.mubr.bf16.gmra.mrb[0].mxu0 %v1589
    %v5098 = vpop.f32.mrb[0].mxu0
    %v5099 = vadd.f32 %v4986, %v5098
    %v5100 = vpop.f32.mrb[0].mxu0
    %v5101 = vadd.f32 %v4988, %v5100
    %v5102 = vpop.f32.mrb[0].mxu0
    %v5103 = vadd.f32 %v4990, %v5102
    %v5104 = vpop.f32.mrb[0].mxu0
    %v5105 = vadd.f32 %v4992, %v5104
    %5106 = vmatprep.mubr.bf16.mxu0 %v1594
    %5107 = vmatmul.mubr.bf16.gmra.mrb[0].mxu0 %v1593
    %v5108 = vpop.f32.mrb[0].mxu0
    %v5109 = vadd.f32 %v4996, %v5108
    %v5110 = vpop.f32.mrb[0].mxu0
    %v5111 = vadd.f32 %v4998, %v5110
    %v5112 = vpop.f32.mrb[0].mxu0
    %v5113 = vadd.f32 %v5000, %v5112
    %v5114 = vpop.f32.mrb[0].mxu0
    %v5115 = vadd.f32 %v5002, %v5114
    %5116 = vmatprep.mubr.bf16.mxu0 %v1598
    %5117 = vmatmul.mubr.bf16.gmra.mrb[0].mxu0 %v1597
    %v5118 = vpop.f32.mrb[0].mxu0
    %v5119 = vadd.f32 %v5006, %v5118
    %v5120 = vpop.f32.mrb[0].mxu0
    %v5121 = vadd.f32 %v5008, %v5120
    %v5122 = vpop.f32.mrb[0].mxu0
    %v5123 = vadd.f32 %v5010, %v5122
    %v5124 = vpop.f32.mrb[0].mxu0
    %v5125 = vadd.f32 %v5012, %v5124
    %5126 = vmatprep.mubr.bf16.mxu0 %v1602
    %5127 = vmatmul.mubr.bf16.gmra.mrb[0].mxu0 %v1601
    %v5128 = vpop.f32.mrb[0].mxu0
    %v5129 = vadd.f32 %v5016, %v5128
    %v5130 = vpop.f32.mrb[0].mxu0
    %v5131 = vadd.f32 %v5018, %v5130
    %v5132 = vpop.f32.mrb[0].mxu0
    %v5133 = vadd.f32 %v5020, %v5132
    %v5134 = vpop.f32.mrb[0].mxu0
    %v5135 = vadd.f32 %v5022, %v5134
    %5136 = vmatprep.mubr.bf16.mxu0 %v1606
    %5137 = vmatmul.mubr.bf16.gmra.mrb[0].mxu0 %v1605
    %v5138 = vpop.f32.mrb[0].mxu0
    %v5139 = vadd.f32 %v5026, %v5138
    %v5140 = vpop.f32.mrb[0].mxu0
    %v5141 = vadd.f32 %v5028, %v5140
    %v5142 = vpop.f32.mrb[0].mxu0
    %v5143 = vadd.f32 %v5030, %v5142
    %v5144 = vpop.f32.mrb[0].mxu0
    %v5145 = vadd.f32 %v5032, %v5144
    %5146 = vmatprep.mubr.bf16.mxu0 %v1610
    %5147 = vmatmul.mubr.bf16.gmra.mrb[0].mxu0 %v1609
    %v5148 = vpop.f32.mrb[0].mxu0
    %v5149 = vadd.f32 %v5036, %v5148
    %v5150 = vpop.f32.mrb[0].mxu0
    %v5151 = vadd.f32 %v5038, %v5150
    %v5152 = vpop.f32.mrb[0].mxu0
    %v5153 = vadd.f32 %v5040, %v5152
    %v5154 = vpop.f32.mrb[0].mxu0
    %v5155 = vadd.f32 %v5042, %v5154
    %5156 = vmatprep.mubr.bf16.mxu0 %v1614
    %5157 = vmatmul.mubr.bf16.gmra.mrb[0].mxu0 %v1613
    %v5158 = vpop.f32.mrb[0].mxu0
    %v5159 = vadd.f32 %v5046, %v5158
    %v5160 = vpop.f32.mrb[0].mxu0
    %v5161 = vadd.f32 %v5048, %v5160
    %v5162 = vpop.f32.mrb[0].mxu0
    %v5163 = vadd.f32 %v5050, %v5162
    %v5164 = vpop.f32.mrb[0].mxu0
    %v5165 = vadd.f32 %v5052, %v5164
    %5166 = vdwg.mxu0
    %5167 = vmatprep.subr.bf16.mxu0 %v4688
    %5168 = vmatpush1.bf16.msra.mxu0 %v4687
    %5169 = vmatprep.subr.bf16.mxu0 %v4692
    %5170 = vmatpush1.bf16.msra.mxu0 %v4691
    %5171 = vmatprep.subr.bf16.mxu0 %v4696
    %5172 = vmatpush1.bf16.msra.mxu0 %v4695
    %5173 = vmatprep.subr.bf16.mxu0 %v4700
    %5174 = vmatpush1.bf16.msra.mxu0 %v4699
    %5175 = vmatprep.subr.bf16.mxu0 %v4704
    %5176 = vmatpush1.bf16.msra.mxu0 %v4703
    %5177 = vmatprep.subr.bf16.mxu0 %v4708
    %5178 = vmatpush1.bf16.msra.mxu0 %v4707
    %5179 = vmatprep.subr.bf16.mxu0 %v4712
    %5180 = vmatpush1.bf16.msra.mxu0 %v4711
    %5181 = vmatprep.subr.bf16.mxu0 %v4716
    %5182 = vmatpush1.bf16.msra.mxu0 %v4715
    %5183 = vmatprep.subr.bf16.mxu0 %v4720
    %5184 = vmatpush1.bf16.msra.mxu0 %v4719
    %5185 = vmatprep.subr.bf16.mxu0 %v4724
    %5186 = vmatpush1.bf16.msra.mxu0 %v4723
    %5187 = vmatprep.subr.bf16.mxu0 %v4728
    %5188 = vmatpush1.bf16.msra.mxu0 %v4727
    %5189 = vmatprep.subr.bf16.mxu0 %v4732
    %5190 = vmatpush1.bf16.msra.mxu0 %v4731
    %5191 = vmatprep.subr.bf16.mxu0 %v4736
    %5192 = vmatpush1.bf16.msra.mxu0 %v4735
    %5193 = vmatprep.subr.bf16.mxu0 %v4740
    %5194 = vmatpush1.bf16.msra.mxu0 %v4739
    %5195 = vmatprep.subr.bf16.mxu0 %v4744
    %5196 = vmatpush1.bf16.msra.mxu0 %v4743
    %5197 = vmatprep.subr.bf16.mxu0 %v4748
    %5198 = vmatpush1.bf16.msra.mxu0 %v4747
    %5199 = vmatprep.mubr.bf16.mxu0 %v1584
    %5200 = vmatmul.mubr.bf16.gmra.mrb[0].mxu0 %v1583
    %v5201 = vpop.f32.mrb[0].mxu0
    %v5202 = vadd.f32 %v4223, %v5201
    %v5203 = vpop.f32.mrb[0].mxu0
    %v5204 = vadd.f32 %v4225, %v5203
    %v5205 = vpop.f32.mrb[0].mxu0
    %v5206 = vadd.f32 %v4227, %v5205
    %v5207 = vpop.f32.mrb[0].mxu0
    %v5208 = vadd.f32 %v4229, %v5207
    %5209 = vmatprep.mubr.bf16.mxu0 %v1588
    %5210 = vmatmul.mubr.bf16.gmra.mrb[0].mxu0 %v1587
    %v5211 = vpop.f32.mrb[0].mxu0
    %v5212 = vadd.f32 %v4233, %v5211
    %v5213 = vpop.f32.mrb[0].mxu0
    %v5214 = vadd.f32 %v4235, %v5213
    %v5215 = vpop.f32.mrb[0].mxu0
    %v5216 = vadd.f32 %v4237, %v5215
    %v5217 = vpop.f32.mrb[0].mxu0
    %v5218 = vadd.f32 %v4239, %v5217
    %5219 = vmatprep.mubr.bf16.mxu0 %v1592
    %5220 = vmatmul.mubr.bf16.gmra.mrb[0].mxu0 %v1591
    %v5221 = vpop.f32.mrb[0].mxu0
    %v5222 = vadd.f32 %v4243, %v5221
    %v5223 = vpop.f32.mrb[0].mxu0
    %v5224 = vadd.f32 %v4245, %v5223
    %v5225 = vpop.f32.mrb[0].mxu0
    %v5226 = vadd.f32 %v4247, %v5225
    %v5227 = vpop.f32.mrb[0].mxu0
    %v5228 = vadd.f32 %v4249, %v5227
    %5229 = vmatprep.mubr.bf16.mxu0 %v1596
    %5230 = vmatmul.mubr.bf16.gmra.mrb[0].mxu0 %v1595
    %v5231 = vpop.f32.mrb[0].mxu0
    %v5232 = vadd.f32 %v4253, %v5231
    %v5233 = vpop.f32.mrb[0].mxu0
    %v5234 = vadd.f32 %v4255, %v5233
    %v5235 = vpop.f32.mrb[0].mxu0
    %v5236 = vadd.f32 %v4257, %v5235
    %v5237 = vpop.f32.mrb[0].mxu0
    %v5238 = vadd.f32 %v4259, %v5237
    %5239 = vmatprep.mubr.bf16.mxu0 %v1600
    %5240 = vmatmul.mubr.bf16.gmra.mrb[0].mxu0 %v1599
    %v5241 = vpop.f32.mrb[0].mxu0
    %v5242 = vadd.f32 %v4263, %v5241
    %v5243 = vpop.f32.mrb[0].mxu0
    %v5244 = vadd.f32 %v4265, %v5243
    %v5245 = vpop.f32.mrb[0].mxu0
    %v5246 = vadd.f32 %v4267, %v5245
    %v5247 = vpop.f32.mrb[0].mxu0
    %v5248 = vadd.f32 %v4269, %v5247
    %5249 = vmatprep.mubr.bf16.mxu0 %v1604
    %5250 = vmatmul.mubr.bf16.gmra.mrb[0].mxu0 %v1603
    %v5251 = vpop.f32.mrb[0].mxu0
    %v5252 = vadd.f32 %v4273, %v5251
    %v5253 = vpop.f32.mrb[0].mxu0
    %v5254 = vadd.f32 %v4275, %v5253
    %v5255 = vpop.f32.mrb[0].mxu0
    %v5256 = vadd.f32 %v4277, %v5255
    %v5257 = vpop.f32.mrb[0].mxu0
    %v5258 = vadd.f32 %v4279, %v5257
    %5259 = vmatprep.mubr.bf16.mxu0 %v1608
    %5260 = vmatmul.mubr.bf16.gmra.mrb[0].mxu0 %v1607
    %v5261 = vpop.f32.mrb[0].mxu0
    %v5262 = vadd.f32 %v4283, %v5261
    %v5263 = vpop.f32.mrb[0].mxu0
    %v5264 = vadd.f32 %v4285, %v5263
    %v5265 = vpop.f32.mrb[0].mxu0
    %v5266 = vadd.f32 %v4287, %v5265
    %v5267 = vpop.f32.mrb[0].mxu0
    %v5268 = vadd.f32 %v4289, %v5267
    %5269 = vmatprep.mubr.bf16.mxu0 %v1612
    %5270 = vmatmul.mubr.bf16.gmra.mrb[0].mxu0 %v1611
    %v5271 = vpop.f32.mrb[0].mxu0
    %v5272 = vadd.f32 %v4293, %v5271
    %v5273 = vpop.f32.mrb[0].mxu0
    %v5274 = vadd.f32 %v4295, %v5273
    %v5275 = vpop.f32.mrb[0].mxu0
    %v5276 = vadd.f32 %v4297, %v5275
    %v5277 = vpop.f32.mrb[0].mxu0
    %v5278 = vadd.f32 %v4299, %v5277
    %5279 = vdwg.mxu0
    %5280 = vmatprep.subr.bf16.mxu0 %v4752
    %5281 = vmatpush1.bf16.msra.mxu0 %v4751
    %5282 = vmatprep.subr.bf16.mxu0 %v4756
    %5283 = vmatpush1.bf16.msra.mxu0 %v4755
    %5284 = vmatprep.subr.bf16.mxu0 %v4760
    %5285 = vmatpush1.bf16.msra.mxu0 %v4759
    %5286 = vmatprep.subr.bf16.mxu0 %v4764
    %5287 = vmatpush1.bf16.msra.mxu0 %v4763
    %5288 = vmatprep.subr.bf16.mxu0 %v4768
    %5289 = vmatpush1.bf16.msra.mxu0 %v4767
    %5290 = vmatprep.subr.bf16.mxu0 %v4772
    %5291 = vmatpush1.bf16.msra.mxu0 %v4771
    %5292 = vmatprep.subr.bf16.mxu0 %v4776
    %5293 = vmatpush1.bf16.msra.mxu0 %v4775
    %5294 = vmatprep.subr.bf16.mxu0 %v4780
    %5295 = vmatpush1.bf16.msra.mxu0 %v4779
    %5296 = vmatprep.subr.bf16.mxu0 %v4784
    %5297 = vmatpush1.bf16.msra.mxu0 %v4783
    %5298 = vmatprep.subr.bf16.mxu0 %v4788
    %5299 = vmatpush1.bf16.msra.mxu0 %v4787
    %5300 = vmatprep.subr.bf16.mxu0 %v4792
    %5301 = vmatpush1.bf16.msra.mxu0 %v4791
    %5302 = vmatprep.subr.bf16.mxu0 %v4796
    %5303 = vmatpush1.bf16.msra.mxu0 %v4795
    %5304 = vmatprep.subr.bf16.mxu0 %v4800
    %5305 = vmatpush1.bf16.msra.mxu0 %v4799
    %5306 = vmatprep.subr.bf16.mxu0 %v4804
    %5307 = vmatpush1.bf16.msra.mxu0 %v4803
    %5308 = vmatprep.subr.bf16.mxu0 %v4808
    %5309 = vmatpush1.bf16.msra.mxu0 %v4807
    %5310 = vmatprep.subr.bf16.mxu0 %v4812
    %5311 = vmatpush1.bf16.msra.mxu0 %v4811
    %5312 = vmatprep.mubr.bf16.mxu0 %v1586
    %5313 = vmatmul.mubr.bf16.gmra.mrb[0].mxu0 %v1585
    %v5314 = vpop.f32.mrb[0].mxu0
    %v5315 = vadd.f32 %v5202, %v5314
    %v5316 = vpop.f32.mrb[0].mxu0
    %v5317 = vadd.f32 %v5204, %v5316
    %v5318 = vpop.f32.mrb[0].mxu0
    %v5319 = vadd.f32 %v5206, %v5318
    %v5320 = vpop.f32.mrb[0].mxu0
    %v5321 = vadd.f32 %v5208, %v5320
    %5322 = vmatprep.mubr.bf16.mxu0 %v1590
    %5323 = vmatmul.mubr.bf16.gmra.mrb[0].mxu0 %v1589
    %v5324 = vpop.f32.mrb[0].mxu0
    %v5325 = vadd.f32 %v5212, %v5324
    %v5326 = vpop.f32.mrb[0].mxu0
    %v5327 = vadd.f32 %v5214, %v5326
    %v5328 = vpop.f32.mrb[0].mxu0
    %v5329 = vadd.f32 %v5216, %v5328
    %v5330 = vpop.f32.mrb[0].mxu0
    %v5331 = vadd.f32 %v5218, %v5330
    %5332 = vmatprep.mubr.bf16.mxu0 %v1594
    %5333 = vmatmul.mubr.bf16.gmra.mrb[0].mxu0 %v1593
    %v5334 = vpop.f32.mrb[0].mxu0
    %v5335 = vadd.f32 %v5222, %v5334
    %v5336 = vpop.f32.mrb[0].mxu0
    %v5337 = vadd.f32 %v5224, %v5336
    %v5338 = vpop.f32.mrb[0].mxu0
    %v5339 = vadd.f32 %v5226, %v5338
    %v5340 = vpop.f32.mrb[0].mxu0
    %v5341 = vadd.f32 %v5228, %v5340
    %5342 = vmatprep.mubr.bf16.mxu0 %v1598
    %5343 = vmatmul.mubr.bf16.gmra.mrb[0].mxu0 %v1597
    %v5344 = vpop.f32.mrb[0].mxu0
    %v5345 = vadd.f32 %v5232, %v5344
    %v5346 = vpop.f32.mrb[0].mxu0
    %v5347 = vadd.f32 %v5234, %v5346
    %v5348 = vpop.f32.mrb[0].mxu0
    %v5349 = vadd.f32 %v5236, %v5348
    %v5350 = vpop.f32.mrb[0].mxu0
    %v5351 = vadd.f32 %v5238, %v5350
    %5352 = vmatprep.mubr.bf16.mxu0 %v1602
    %5353 = vmatmul.mubr.bf16.gmra.mrb[0].mxu0 %v1601
    %v5354 = vpop.f32.mrb[0].mxu0
    %v5355 = vadd.f32 %v5242, %v5354
    %v5356 = vpop.f32.mrb[0].mxu0
    %v5357 = vadd.f32 %v5244, %v5356
    %v5358 = vpop.f32.mrb[0].mxu0
    %v5359 = vadd.f32 %v5246, %v5358
    %v5360 = vpop.f32.mrb[0].mxu0
    %v5361 = vadd.f32 %v5248, %v5360
    %5362 = vmatprep.mubr.bf16.mxu0 %v1606
    %5363 = vmatmul.mubr.bf16.gmra.mrb[0].mxu0 %v1605
    %v5364 = vpop.f32.mrb[0].mxu0
    %v5365 = vadd.f32 %v5252, %v5364
    %v5366 = vpop.f32.mrb[0].mxu0
    %v5367 = vadd.f32 %v5254, %v5366
    %v5368 = vpop.f32.mrb[0].mxu0
    %v5369 = vadd.f32 %v5256, %v5368
    %v5370 = vpop.f32.mrb[0].mxu0
    %v5371 = vadd.f32 %v5258, %v5370
    %5372 = vmatprep.mubr.bf16.mxu0 %v1610
    %5373 = vmatmul.mubr.bf16.gmra.mrb[0].mxu0 %v1609
    %v5374 = vpop.f32.mrb[0].mxu0
    %v5375 = vadd.f32 %v5262, %v5374
    %v5376 = vpop.f32.mrb[0].mxu0
    %v5377 = vadd.f32 %v5264, %v5376
    %v5378 = vpop.f32.mrb[0].mxu0
    %v5379 = vadd.f32 %v5266, %v5378
    %v5380 = vpop.f32.mrb[0].mxu0
    %v5381 = vadd.f32 %v5268, %v5380
    %5382 = vmatprep.mubr.bf16.mxu0 %v1614
    %5383 = vmatmul.mubr.bf16.gmra.mrb[0].mxu0 %v1613
    %v5384 = vpop.f32.mrb[0].mxu0
    %v5385 = vadd.f32 %v5272, %v5384
    %v5386 = vpop.f32.mrb[0].mxu0
    %v5387 = vadd.f32 %v5274, %v5386
    %v5388 = vpop.f32.mrb[0].mxu0
    %v5389 = vadd.f32 %v5276, %v5388
    %v5390 = vpop.f32.mrb[0].mxu0
    %v5391 = vadd.f32 %v5278, %v5390
    %5392 = vdwg.mxu0
    %v5393 = vld [vmem:[#allocation5 + $0x20] sm:$0xff]
    %v5394 = vld [vmem:[#allocation5 + $0x28] sm:$0xff]
    %v5395 = vld [vmem:[#allocation5 + $0x60] sm:$0xff]
    %v5396 = vld [vmem:[#allocation5 + $0x68] sm:$0xff]
    %v5397 = vld [vmem:[#allocation5 + $0xa0] sm:$0xff]
    %v5398 = vld [vmem:[#allocation5 + $0xa8] sm:$0xff]
    %v5399 = vld [vmem:[#allocation5 + $0xe0] sm:$0xff]
    %v5400 = vld [vmem:[#allocation5 + $0xe8] sm:$0xff]
    %v5401 = vld [vmem:[#allocation5 + $0x120] sm:$0xff]
    %v5402 = vld [vmem:[#allocation5 + $0x128] sm:$0xff]
    %v5403 = vld [vmem:[#allocation5 + $0x160] sm:$0xff]
    %v5404 = vld [vmem:[#allocation5 + $0x168] sm:$0xff]
    %v5405 = vld [vmem:[#allocation5 + $0x1a0] sm:$0xff]
    %v5406 = vld [vmem:[#allocation5 + $0x1a8] sm:$0xff]
    %v5407 = vld [vmem:[#allocation5 + $0x1e0] sm:$0xff]
    %v5408 = vld [vmem:[#allocation5 + $0x1e8] sm:$0xff]
    %v5409 = vld [vmem:[#allocation5 + $0x220] sm:$0xff]
    %v5410 = vld [vmem:[#allocation5 + $0x228] sm:$0xff]
    %v5411 = vld [vmem:[#allocation5 + $0x260] sm:$0xff]
    %v5412 = vld [vmem:[#allocation5 + $0x268] sm:$0xff]
    %v5413 = vld [vmem:[#allocation5 + $0x2a0] sm:$0xff]
    %v5414 = vld [vmem:[#allocation5 + $0x2a8] sm:$0xff]
    %v5415 = vld [vmem:[#allocation5 + $0x2e0] sm:$0xff]
    %v5416 = vld [vmem:[#allocation5 + $0x2e8] sm:$0xff]
    %v5417 = vld [vmem:[#allocation5 + $0x320] sm:$0xff]
    %v5418 = vld [vmem:[#allocation5 + $0x328] sm:$0xff]
    %v5419 = vld [vmem:[#allocation5 + $0x360] sm:$0xff]
    %v5420 = vld [vmem:[#allocation5 + $0x368] sm:$0xff]
    %v5421 = vld [vmem:[#allocation5 + $0x3a0] sm:$0xff]
    %v5422 = vld [vmem:[#allocation5 + $0x3a8] sm:$0xff]
    %v5423 = vld [vmem:[#allocation5 + $0x3e0] sm:$0xff]
    %v5424 = vld [vmem:[#allocation5 + $0x3e8] sm:$0xff]
    %v5425 = vld [vmem:[#allocation5 + $0x420] sm:$0xff]
    %v5426 = vld [vmem:[#allocation5 + $0x428] sm:$0xff]
    %v5427 = vld [vmem:[#allocation5 + $0x460] sm:$0xff]
    %v5428 = vld [vmem:[#allocation5 + $0x468] sm:$0xff]
    %v5429 = vld [vmem:[#allocation5 + $0x4a0] sm:$0xff]
    %v5430 = vld [vmem:[#allocation5 + $0x4a8] sm:$0xff]
    %v5431 = vld [vmem:[#allocation5 + $0x4e0] sm:$0xff]
    %v5432 = vld [vmem:[#allocation5 + $0x4e8] sm:$0xff]
    %v5433 = vld [vmem:[#allocation5 + $0x520] sm:$0xff]
    %v5434 = vld [vmem:[#allocation5 + $0x528] sm:$0xff]
    %v5435 = vld [vmem:[#allocation5 + $0x560] sm:$0xff]
    %v5436 = vld [vmem:[#allocation5 + $0x568] sm:$0xff]
    %v5437 = vld [vmem:[#allocation5 + $0x5a0] sm:$0xff]
    %v5438 = vld [vmem:[#allocation5 + $0x5a8] sm:$0xff]
    %v5439 = vld [vmem:[#allocation5 + $0x5e0] sm:$0xff]
    %v5440 = vld [vmem:[#allocation5 + $0x5e8] sm:$0xff]
    %v5441 = vld [vmem:[#allocation5 + $0x620] sm:$0xff]
    %v5442 = vld [vmem:[#allocation5 + $0x628] sm:$0xff]
    %v5443 = vld [vmem:[#allocation5 + $0x660] sm:$0xff]
    %v5444 = vld [vmem:[#allocation5 + $0x668] sm:$0xff]
    %v5445 = vld [vmem:[#allocation5 + $0x6a0] sm:$0xff]
    %v5446 = vld [vmem:[#allocation5 + $0x6a8] sm:$0xff]
    %v5447 = vld [vmem:[#allocation5 + $0x6e0] sm:$0xff]
    %v5448 = vld [vmem:[#allocation5 + $0x6e8] sm:$0xff]
    %v5449 = vld [vmem:[#allocation5 + $0x720] sm:$0xff]
    %v5450 = vld [vmem:[#allocation5 + $0x728] sm:$0xff]
    %v5451 = vld [vmem:[#allocation5 + $0x760] sm:$0xff]
    %v5452 = vld [vmem:[#allocation5 + $0x768] sm:$0xff]
    %v5453 = vld [vmem:[#allocation5 + $0x7a0] sm:$0xff]
    %v5454 = vld [vmem:[#allocation5 + $0x7a8] sm:$0xff]
    %v5455 = vld [vmem:[#allocation5 + $0x7e0] sm:$0xff]
    %v5456 = vld [vmem:[#allocation5 + $0x7e8] sm:$0xff]
    %v5457 = vld [vmem:[#allocation5 + $0x820] sm:$0xff]
    %v5458 = vld [vmem:[#allocation5 + $0x828] sm:$0xff]
    %v5459 = vld [vmem:[#allocation5 + $0x860] sm:$0xff]
    %v5460 = vld [vmem:[#allocation5 + $0x868] sm:$0xff]
    %v5461 = vld [vmem:[#allocation5 + $0x8a0] sm:$0xff]
    %v5462 = vld [vmem:[#allocation5 + $0x8a8] sm:$0xff]
    %v5463 = vld [vmem:[#allocation5 + $0x8e0] sm:$0xff]
    %v5464 = vld [vmem:[#allocation5 + $0x8e8] sm:$0xff]
    %v5465 = vld [vmem:[#allocation5 + $0x920] sm:$0xff]
    %v5466 = vld [vmem:[#allocation5 + $0x928] sm:$0xff]
    %v5467 = vld [vmem:[#allocation5 + $0x960] sm:$0xff]
    %v5468 = vld [vmem:[#allocation5 + $0x968] sm:$0xff]
    %v5469 = vld [vmem:[#allocation5 + $0x9a0] sm:$0xff]
    %v5470 = vld [vmem:[#allocation5 + $0x9a8] sm:$0xff]
    %v5471 = vld [vmem:[#allocation5 + $0x9e0] sm:$0xff]
    %v5472 = vld [vmem:[#allocation5 + $0x9e8] sm:$0xff]
    %v5473 = vld [vmem:[#allocation5 + $0xa20] sm:$0xff]
    %v5474 = vld [vmem:[#allocation5 + $0xa28] sm:$0xff]
    %v5475 = vld [vmem:[#allocation5 + $0xa60] sm:$0xff]
    %v5476 = vld [vmem:[#allocation5 + $0xa68] sm:$0xff]
    %v5477 = vld [vmem:[#allocation5 + $0xaa0] sm:$0xff]
    %v5478 = vld [vmem:[#allocation5 + $0xaa8] sm:$0xff]
    %v5479 = vld [vmem:[#allocation5 + $0xae0] sm:$0xff]
    %v5480 = vld [vmem:[#allocation5 + $0xae8] sm:$0xff]
    %v5481 = vld [vmem:[#allocation5 + $0xb20] sm:$0xff]
    %v5482 = vld [vmem:[#allocation5 + $0xb28] sm:$0xff]
    %v5483 = vld [vmem:[#allocation5 + $0xb60] sm:$0xff]
    %v5484 = vld [vmem:[#allocation5 + $0xb68] sm:$0xff]
    %v5485 = vld [vmem:[#allocation5 + $0xba0] sm:$0xff]
    %v5486 = vld [vmem:[#allocation5 + $0xba8] sm:$0xff]
    %v5487 = vld [vmem:[#allocation5 + $0xbe0] sm:$0xff]
    %v5488 = vld [vmem:[#allocation5 + $0xbe8] sm:$0xff]
    %v5489 = vld [vmem:[#allocation5 + $0xc20] sm:$0xff]
    %v5490 = vld [vmem:[#allocation5 + $0xc28] sm:$0xff]
    %v5491 = vld [vmem:[#allocation5 + $0xc60] sm:$0xff]
    %v5492 = vld [vmem:[#allocation5 + $0xc68] sm:$0xff]
    %v5493 = vld [vmem:[#allocation5 + $0xca0] sm:$0xff]
    %v5494 = vld [vmem:[#allocation5 + $0xca8] sm:$0xff]
    %v5495 = vld [vmem:[#allocation5 + $0xce0] sm:$0xff]
    %v5496 = vld [vmem:[#allocation5 + $0xce8] sm:$0xff]
    %v5497 = vld [vmem:[#allocation5 + $0xd20] sm:$0xff]
    %v5498 = vld [vmem:[#allocation5 + $0xd28] sm:$0xff]
    %v5499 = vld [vmem:[#allocation5 + $0xd60] sm:$0xff]
    %v5500 = vld [vmem:[#allocation5 + $0xd68] sm:$0xff]
    %v5501 = vld [vmem:[#allocation5 + $0xda0] sm:$0xff]
    %v5502 = vld [vmem:[#allocation5 + $0xda8] sm:$0xff]
    %v5503 = vld [vmem:[#allocation5 + $0xde0] sm:$0xff]
    %v5504 = vld [vmem:[#allocation5 + $0xde8] sm:$0xff]
    %v5505 = vld [vmem:[#allocation5 + $0xe20] sm:$0xff]
    %v5506 = vld [vmem:[#allocation5 + $0xe28] sm:$0xff]
    %v5507 = vld [vmem:[#allocation5 + $0xe60] sm:$0xff]
    %v5508 = vld [vmem:[#allocation5 + $0xe68] sm:$0xff]
    %v5509 = vld [vmem:[#allocation5 + $0xea0] sm:$0xff]
    %v5510 = vld [vmem:[#allocation5 + $0xea8] sm:$0xff]
    %v5511 = vld [vmem:[#allocation5 + $0xee0] sm:$0xff]
    %v5512 = vld [vmem:[#allocation5 + $0xee8] sm:$0xff]
    %v5513 = vld [vmem:[#allocation5 + $0xf20] sm:$0xff]
    %v5514 = vld [vmem:[#allocation5 + $0xf28] sm:$0xff]
    %v5515 = vld [vmem:[#allocation5 + $0xf60] sm:$0xff]
    %v5516 = vld [vmem:[#allocation5 + $0xf68] sm:$0xff]
    %v5517 = vld [vmem:[#allocation5 + $0xfa0] sm:$0xff]
    %v5518 = vld [vmem:[#allocation5 + $0xfa8] sm:$0xff]
    %v5519 = vld [vmem:[#allocation5 + $0xfe0] sm:$0xff]
    %v5520 = vld [vmem:[#allocation5 + $0xfe8] sm:$0xff]
    %v5521 = vld [vmem:[#allocation7 + $0x8] sm:$0xf]
    %v5523 = vlaneseq
    %v5524 = vshrl.u32 %v5523, 7
    %v5525 = vsub.s32 0, %v5524
    %v5526 = vrot.slane %v5521, %v5525
    %v5527 = vlaneseq
    %v5528 = vshrl.u32 %v5527, 7
    %v5529 = vsub.s32 1, %v5528
    %v5530 = vrot.slane %v5521, %v5529
    %v5531 = vlaneseq
    %v5532 = vshrl.u32 %v5531, 7
    %v5533 = vsub.s32 2, %v5532
    %v5534 = vrot.slane %v5521, %v5533
    %v5535 = vlaneseq
    %v5536 = vshrl.u32 %v5535, 7
    %v5537 = vsub.s32 3, %v5536
    %v5538 = vrot.slane %v5521, %v5537
    %v5671 = vunpack.c.l.b16 %v5393
    %v5672 = vunpack.c.h.b16 %v5393
    %v5673 = vunpack.c.l.b16 %v5394
    %v5674 = vunpack.c.h.b16 %v5394
    %v5675 = vunpack.c.l.b16 %v5395
    %v5676 = vunpack.c.h.b16 %v5395
    %v5677 = vunpack.c.l.b16 %v5396
    %v5678 = vunpack.c.h.b16 %v5396
    %v5679 = vunpack.c.l.b16 %v5397
    %v5680 = vunpack.c.h.b16 %v5397
    %v5681 = vunpack.c.l.b16 %v5398
    %v5682 = vunpack.c.h.b16 %v5398
    %v5683 = vunpack.c.l.b16 %v5399
    %v5684 = vunpack.c.h.b16 %v5399
    %v5685 = vunpack.c.l.b16 %v5400
    %v5686 = vunpack.c.h.b16 %v5400
    %v5687 = vunpack.c.l.b16 %v5401
    %v5688 = vunpack.c.h.b16 %v5401
    %v5689 = vunpack.c.l.b16 %v5402
    %v5690 = vunpack.c.h.b16 %v5402
    %v5691 = vunpack.c.l.b16 %v5403
    %v5692 = vunpack.c.h.b16 %v5403
    %v5693 = vunpack.c.l.b16 %v5404
    %v5694 = vunpack.c.h.b16 %v5404
    %v5695 = vunpack.c.l.b16 %v5405
    %v5696 = vunpack.c.h.b16 %v5405
    %v5697 = vunpack.c.l.b16 %v5406
    %v5698 = vunpack.c.h.b16 %v5406
    %v5699 = vunpack.c.l.b16 %v5407
    %v5700 = vunpack.c.h.b16 %v5407
    %v5701 = vunpack.c.l.b16 %v5408
    %v5702 = vunpack.c.h.b16 %v5408
    %v5703 = vunpack.c.l.b16 %v5409
    %v5704 = vunpack.c.h.b16 %v5409
    %v5705 = vunpack.c.l.b16 %v5410
    %v5706 = vunpack.c.h.b16 %v5410
    %v5707 = vunpack.c.l.b16 %v5411
    %v5708 = vunpack.c.h.b16 %v5411
    %v5709 = vunpack.c.l.b16 %v5412
    %v5710 = vunpack.c.h.b16 %v5412
    %v5711 = vunpack.c.l.b16 %v5413
    %v5712 = vunpack.c.h.b16 %v5413
    %v5713 = vunpack.c.l.b16 %v5414
    %v5714 = vunpack.c.h.b16 %v5414
    %v5715 = vunpack.c.l.b16 %v5415
    %v5716 = vunpack.c.h.b16 %v5415
    %v5717 = vunpack.c.l.b16 %v5416
    %v5718 = vunpack.c.h.b16 %v5416
    %v5719 = vunpack.c.l.b16 %v5417
    %v5720 = vunpack.c.h.b16 %v5417
    %v5721 = vunpack.c.l.b16 %v5418
    %v5722 = vunpack.c.h.b16 %v5418
    %v5723 = vunpack.c.l.b16 %v5419
    %v5724 = vunpack.c.h.b16 %v5419
    %v5725 = vunpack.c.l.b16 %v5420
    %v5726 = vunpack.c.h.b16 %v5420
    %v5727 = vunpack.c.l.b16 %v5421
    %v5728 = vunpack.c.h.b16 %v5421
    %v5729 = vunpack.c.l.b16 %v5422
    %v5730 = vunpack.c.h.b16 %v5422
    %v5731 = vunpack.c.l.b16 %v5423
    %v5732 = vunpack.c.h.b16 %v5423
    %v5733 = vunpack.c.l.b16 %v5424
    %v5734 = vunpack.c.h.b16 %v5424
    %v5735 = vunpack.c.l.b16 %v5425
    %v5736 = vunpack.c.h.b16 %v5425
    %v5737 = vunpack.c.l.b16 %v5426
    %v5738 = vunpack.c.h.b16 %v5426
    %v5739 = vunpack.c.l.b16 %v5427
    %v5740 = vunpack.c.h.b16 %v5427
    %v5741 = vunpack.c.l.b16 %v5428
    %v5742 = vunpack.c.h.b16 %v5428
    %v5743 = vunpack.c.l.b16 %v5429
    %v5744 = vunpack.c.h.b16 %v5429
    %v5745 = vunpack.c.l.b16 %v5430
    %v5746 = vunpack.c.h.b16 %v5430
    %v5747 = vunpack.c.l.b16 %v5431
    %v5748 = vunpack.c.h.b16 %v5431
    %v5749 = vunpack.c.l.b16 %v5432
    %v5750 = vunpack.c.h.b16 %v5432
    %v5751 = vunpack.c.l.b16 %v5433
    %v5752 = vunpack.c.h.b16 %v5433
    %v5753 = vunpack.c.l.b16 %v5434
    %v5754 = vunpack.c.h.b16 %v5434
    %v5755 = vunpack.c.l.b16 %v5435
    %v5756 = vunpack.c.h.b16 %v5435
    %v5757 = vunpack.c.l.b16 %v5436
    %v5758 = vunpack.c.h.b16 %v5436
    %v5759 = vunpack.c.l.b16 %v5437
    %v5760 = vunpack.c.h.b16 %v5437
    %v5761 = vunpack.c.l.b16 %v5438
    %v5762 = vunpack.c.h.b16 %v5438
    %v5763 = vunpack.c.l.b16 %v5439
    %v5764 = vunpack.c.h.b16 %v5439
    %v5765 = vunpack.c.l.b16 %v5440
    %v5766 = vunpack.c.h.b16 %v5440
    %v5767 = vunpack.c.l.b16 %v5441
    %v5768 = vunpack.c.h.b16 %v5441
    %v5769 = vunpack.c.l.b16 %v5442
    %v5770 = vunpack.c.h.b16 %v5442
    %v5771 = vunpack.c.l.b16 %v5443
    %v5772 = vunpack.c.h.b16 %v5443
    %v5773 = vunpack.c.l.b16 %v5444
    %v5774 = vunpack.c.h.b16 %v5444
    %v5775 = vunpack.c.l.b16 %v5445
    %v5776 = vunpack.c.h.b16 %v5445
    %v5777 = vunpack.c.l.b16 %v5446
    %v5778 = vunpack.c.h.b16 %v5446
    %v5779 = vunpack.c.l.b16 %v5447
    %v5780 = vunpack.c.h.b16 %v5447
    %v5781 = vunpack.c.l.b16 %v5448
    %v5782 = vunpack.c.h.b16 %v5448
    %v5783 = vunpack.c.l.b16 %v5449
    %v5784 = vunpack.c.h.b16 %v5449
    %v5785 = vunpack.c.l.b16 %v5450
    %v5786 = vunpack.c.h.b16 %v5450
    %v5787 = vunpack.c.l.b16 %v5451
    %v5788 = vunpack.c.h.b16 %v5451
    %v5789 = vunpack.c.l.b16 %v5452
    %v5790 = vunpack.c.h.b16 %v5452
    %v5791 = vunpack.c.l.b16 %v5453
    %v5792 = vunpack.c.h.b16 %v5453
    %v5793 = vunpack.c.l.b16 %v5454
    %v5794 = vunpack.c.h.b16 %v5454
    %v5795 = vunpack.c.l.b16 %v5455
    %v5796 = vunpack.c.h.b16 %v5455
    %v5797 = vunpack.c.l.b16 %v5456
    %v5798 = vunpack.c.h.b16 %v5456
    %v5799 = vunpack.c.l.b16 %v5457
    %v5800 = vunpack.c.h.b16 %v5457
    %v5801 = vunpack.c.l.b16 %v5458
    %v5802 = vunpack.c.h.b16 %v5458
    %v5803 = vunpack.c.l.b16 %v5459
    %v5804 = vunpack.c.h.b16 %v5459
    %v5805 = vunpack.c.l.b16 %v5460
    %v5806 = vunpack.c.h.b16 %v5460
    %v5807 = vunpack.c.l.b16 %v5461
    %v5808 = vunpack.c.h.b16 %v5461
    %v5809 = vunpack.c.l.b16 %v5462
    %v5810 = vunpack.c.h.b16 %v5462
    %v5811 = vunpack.c.l.b16 %v5463
    %v5812 = vunpack.c.h.b16 %v5463
    %v5813 = vunpack.c.l.b16 %v5464
    %v5814 = vunpack.c.h.b16 %v5464
    %v5815 = vunpack.c.l.b16 %v5465
    %v5816 = vunpack.c.h.b16 %v5465
    %v5817 = vunpack.c.l.b16 %v5466
    %v5818 = vunpack.c.h.b16 %v5466
    %v5819 = vunpack.c.l.b16 %v5467
    %v5820 = vunpack.c.h.b16 %v5467
    %v5821 = vunpack.c.l.b16 %v5468
    %v5822 = vunpack.c.h.b16 %v5468
    %v5823 = vunpack.c.l.b16 %v5469
    %v5824 = vunpack.c.h.b16 %v5469
    %v5825 = vunpack.c.l.b16 %v5470
    %v5826 = vunpack.c.h.b16 %v5470
    %v5827 = vunpack.c.l.b16 %v5471
    %v5828 = vunpack.c.h.b16 %v5471
    %v5829 = vunpack.c.l.b16 %v5472
    %v5830 = vunpack.c.h.b16 %v5472
    %v5831 = vunpack.c.l.b16 %v5473
    %v5832 = vunpack.c.h.b16 %v5473
    %v5833 = vunpack.c.l.b16 %v5474
    %v5834 = vunpack.c.h.b16 %v5474
    %v5835 = vunpack.c.l.b16 %v5475
    %v5836 = vunpack.c.h.b16 %v5475
    %v5837 = vunpack.c.l.b16 %v5476
    %v5838 = vunpack.c.h.b16 %v5476
    %v5839 = vunpack.c.l.b16 %v5477
    %v5840 = vunpack.c.h.b16 %v5477
    %v5841 = vunpack.c.l.b16 %v5478
    %v5842 = vunpack.c.h.b16 %v5478
    %v5843 = vunpack.c.l.b16 %v5479
    %v5844 = vunpack.c.h.b16 %v5479
    %v5845 = vunpack.c.l.b16 %v5480
    %v5846 = vunpack.c.h.b16 %v5480
    %v5847 = vunpack.c.l.b16 %v5481
    %v5848 = vunpack.c.h.b16 %v5481
    %v5849 = vunpack.c.l.b16 %v5482
    %v5850 = vunpack.c.h.b16 %v5482
    %v5851 = vunpack.c.l.b16 %v5483
    %v5852 = vunpack.c.h.b16 %v5483
    %v5853 = vunpack.c.l.b16 %v5484
    %v5854 = vunpack.c.h.b16 %v5484
    %v5855 = vunpack.c.l.b16 %v5485
    %v5856 = vunpack.c.h.b16 %v5485
    %v5857 = vunpack.c.l.b16 %v5486
    %v5858 = vunpack.c.h.b16 %v5486
    %v5859 = vunpack.c.l.b16 %v5487
    %v5860 = vunpack.c.h.b16 %v5487
    %v5861 = vunpack.c.l.b16 %v5488
    %v5862 = vunpack.c.h.b16 %v5488
    %v5863 = vunpack.c.l.b16 %v5489
    %v5864 = vunpack.c.h.b16 %v5489
    %v5865 = vunpack.c.l.b16 %v5490
    %v5866 = vunpack.c.h.b16 %v5490
    %v5867 = vunpack.c.l.b16 %v5491
    %v5868 = vunpack.c.h.b16 %v5491
    %v5869 = vunpack.c.l.b16 %v5492
    %v5870 = vunpack.c.h.b16 %v5492
    %v5871 = vunpack.c.l.b16 %v5493
    %v5872 = vunpack.c.h.b16 %v5493
    %v5873 = vunpack.c.l.b16 %v5494
    %v5874 = vunpack.c.h.b16 %v5494
    %v5875 = vunpack.c.l.b16 %v5495
    %v5876 = vunpack.c.h.b16 %v5495
    %v5877 = vunpack.c.l.b16 %v5496
    %v5878 = vunpack.c.h.b16 %v5496
    %v5879 = vunpack.c.l.b16 %v5497
    %v5880 = vunpack.c.h.b16 %v5497
    %v5881 = vunpack.c.l.b16 %v5498
    %v5882 = vunpack.c.h.b16 %v5498
    %v5883 = vunpack.c.l.b16 %v5499
    %v5884 = vunpack.c.h.b16 %v5499
    %v5885 = vunpack.c.l.b16 %v5500
    %v5886 = vunpack.c.h.b16 %v5500
    %v5887 = vunpack.c.l.b16 %v5501
    %v5888 = vunpack.c.h.b16 %v5501
    %v5889 = vunpack.c.l.b16 %v5502
    %v5890 = vunpack.c.h.b16 %v5502
    %v5891 = vunpack.c.l.b16 %v5503
    %v5892 = vunpack.c.h.b16 %v5503
    %v5893 = vunpack.c.l.b16 %v5504
    %v5894 = vunpack.c.h.b16 %v5504
    %v5895 = vunpack.c.l.b16 %v5505
    %v5896 = vunpack.c.h.b16 %v5505
    %v5897 = vunpack.c.l.b16 %v5506
    %v5898 = vunpack.c.h.b16 %v5506
    %v5899 = vunpack.c.l.b16 %v5507
    %v5900 = vunpack.c.h.b16 %v5507
    %v5901 = vunpack.c.l.b16 %v5508
    %v5902 = vunpack.c.h.b16 %v5508
    %v5903 = vunpack.c.l.b16 %v5509
    %v5904 = vunpack.c.h.b16 %v5509
    %v5905 = vunpack.c.l.b16 %v5510
    %v5906 = vunpack.c.h.b16 %v5510
    %v5907 = vunpack.c.l.b16 %v5511
    %v5908 = vunpack.c.h.b16 %v5511
    %v5909 = vunpack.c.l.b16 %v5512
    %v5910 = vunpack.c.h.b16 %v5512
    %v5911 = vunpack.c.l.b16 %v5513
    %v5912 = vunpack.c.h.b16 %v5513
    %v5913 = vunpack.c.l.b16 %v5514
    %v5914 = vunpack.c.h.b16 %v5514
    %v5915 = vunpack.c.l.b16 %v5515
    %v5916 = vunpack.c.h.b16 %v5515
    %v5917 = vunpack.c.l.b16 %v5516
    %v5918 = vunpack.c.h.b16 %v5516
    %v5919 = vunpack.c.l.b16 %v5517
    %v5920 = vunpack.c.h.b16 %v5517
    %v5921 = vunpack.c.l.b16 %v5518
    %v5922 = vunpack.c.h.b16 %v5518
    %v5923 = vunpack.c.l.b16 %v5519
    %v5924 = vunpack.c.h.b16 %v5519
    %v5925 = vunpack.c.l.b16 %v5520
    %v5926 = vunpack.c.h.b16 %v5520
    %v5927 = vpack.c.b16 %v5675, %v5671
    %v5928 = vpack.c.b16 %v5676, %v5672
    %v5929 = vpack.c.b16 %v5677, %v5673
    %v5930 = vpack.c.b16 %v5678, %v5674
    %v5931 = vpack.c.b16 %v5683, %v5679
    %v5932 = vpack.c.b16 %v5684, %v5680
    %v5933 = vpack.c.b16 %v5685, %v5681
    %v5934 = vpack.c.b16 %v5686, %v5682
    %v5935 = vpack.c.b16 %v5691, %v5687
    %v5936 = vpack.c.b16 %v5692, %v5688
    %v5937 = vpack.c.b16 %v5693, %v5689
    %v5938 = vpack.c.b16 %v5694, %v5690
    %v5939 = vpack.c.b16 %v5699, %v5695
    %v5940 = vpack.c.b16 %v5700, %v5696
    %v5941 = vpack.c.b16 %v5701, %v5697
    %v5942 = vpack.c.b16 %v5702, %v5698
    %v5943 = vpack.c.b16 %v5707, %v5703
    %v5944 = vpack.c.b16 %v5708, %v5704
    %v5945 = vpack.c.b16 %v5709, %v5705
    %v5946 = vpack.c.b16 %v5710, %v5706
    %v5947 = vpack.c.b16 %v5715, %v5711
    %v5948 = vpack.c.b16 %v5716, %v5712
    %v5949 = vpack.c.b16 %v5717, %v5713
    %v5950 = vpack.c.b16 %v5718, %v5714
    %v5951 = vpack.c.b16 %v5723, %v5719
    %v5952 = vpack.c.b16 %v5724, %v5720
    %v5953 = vpack.c.b16 %v5725, %v5721
    %v5954 = vpack.c.b16 %v5726, %v5722
    %v5955 = vpack.c.b16 %v5731, %v5727
    %v5956 = vpack.c.b16 %v5732, %v5728
    %v5957 = vpack.c.b16 %v5733, %v5729
    %v5958 = vpack.c.b16 %v5734, %v5730
    %v5959 = vpack.c.b16 %v5739, %v5735
    %v5960 = vpack.c.b16 %v5740, %v5736
    %v5961 = vpack.c.b16 %v5741, %v5737
    %v5962 = vpack.c.b16 %v5742, %v5738
    %v5963 = vpack.c.b16 %v5747, %v5743
    %v5964 = vpack.c.b16 %v5748, %v5744
    %v5965 = vpack.c.b16 %v5749, %v5745
    %v5966 = vpack.c.b16 %v5750, %v5746
    %v5967 = vpack.c.b16 %v5755, %v5751
    %v5968 = vpack.c.b16 %v5756, %v5752
    %v5969 = vpack.c.b16 %v5757, %v5753
    %v5970 = vpack.c.b16 %v5758, %v5754
    %v5971 = vpack.c.b16 %v5763, %v5759
    %v5972 = vpack.c.b16 %v5764, %v5760
    %v5973 = vpack.c.b16 %v5765, %v5761
    %v5974 = vpack.c.b16 %v5766, %v5762
    %v5975 = vpack.c.b16 %v5771, %v5767
    %v5976 = vpack.c.b16 %v5772, %v5768
    %v5977 = vpack.c.b16 %v5773, %v5769
    %v5978 = vpack.c.b16 %v5774, %v5770
    %v5979 = vpack.c.b16 %v5779, %v5775
    %v5980 = vpack.c.b16 %v5780, %v5776
    %v5981 = vpack.c.b16 %v5781, %v5777
    %v5982 = vpack.c.b16 %v5782, %v5778
    %v5983 = vpack.c.b16 %v5787, %v5783
    %v5984 = vpack.c.b16 %v5788, %v5784
    %v5985 = vpack.c.b16 %v5789, %v5785
    %v5986 = vpack.c.b16 %v5790, %v5786
    %v5987 = vpack.c.b16 %v5795, %v5791
    %v5988 = vpack.c.b16 %v5796, %v5792
    %v5989 = vpack.c.b16 %v5797, %v5793
    %v5990 = vpack.c.b16 %v5798, %v5794
    %v5991 = vpack.c.b16 %v5803, %v5799
    %v5992 = vpack.c.b16 %v5804, %v5800
    %v5993 = vpack.c.b16 %v5805, %v5801
    %v5994 = vpack.c.b16 %v5806, %v5802
    %v5995 = vpack.c.b16 %v5811, %v5807
    %v5996 = vpack.c.b16 %v5812, %v5808
    %v5997 = vpack.c.b16 %v5813, %v5809
    %v5998 = vpack.c.b16 %v5814, %v5810
    %v5999 = vpack.c.b16 %v5819, %v5815
    %v6000 = vpack.c.b16 %v5820, %v5816
    %v6001 = vpack.c.b16 %v5821, %v5817
    %v6002 = vpack.c.b16 %v5822, %v5818
    %v6003 = vpack.c.b16 %v5827, %v5823
    %v6004 = vpack.c.b16 %v5828, %v5824
    %v6005 = vpack.c.b16 %v5829, %v5825
    %v6006 = vpack.c.b16 %v5830, %v5826
    %v6007 = vpack.c.b16 %v5835, %v5831
    %v6008 = vpack.c.b16 %v5836, %v5832
    %v6009 = vpack.c.b16 %v5837, %v5833
    %v6010 = vpack.c.b16 %v5838, %v5834
    %v6011 = vpack.c.b16 %v5843, %v5839
    %v6012 = vpack.c.b16 %v5844, %v5840
    %v6013 = vpack.c.b16 %v5845, %v5841
    %v6014 = vpack.c.b16 %v5846, %v5842
    %v6015 = vpack.c.b16 %v5851, %v5847
    %v6016 = vpack.c.b16 %v5852, %v5848
    %v6017 = vpack.c.b16 %v5853, %v5849
    %v6018 = vpack.c.b16 %v5854, %v5850
    %v6019 = vpack.c.b16 %v5859, %v5855
    %v6020 = vpack.c.b16 %v5860, %v5856
    %v6021 = vpack.c.b16 %v5861, %v5857
    %v6022 = vpack.c.b16 %v5862, %v5858
    %v6023 = vpack.c.b16 %v5867, %v5863
    %v6024 = vpack.c.b16 %v5868, %v5864
    %v6025 = vpack.c.b16 %v5869, %v5865
    %v6026 = vpack.c.b16 %v5870, %v5866
    %v6027 = vpack.c.b16 %v5875, %v5871
    %v6028 = vpack.c.b16 %v5876, %v5872
    %v6029 = vpack.c.b16 %v5877, %v5873
    %v6030 = vpack.c.b16 %v5878, %v5874
    %v6031 = vpack.c.b16 %v5883, %v5879
    %v6032 = vpack.c.b16 %v5884, %v5880
    %v6033 = vpack.c.b16 %v5885, %v5881
    %v6034 = vpack.c.b16 %v5886, %v5882
    %v6035 = vpack.c.b16 %v5891, %v5887
    %v6036 = vpack.c.b16 %v5892, %v5888
    %v6037 = vpack.c.b16 %v5893, %v5889
    %v6038 = vpack.c.b16 %v5894, %v5890
    %v6039 = vpack.c.b16 %v5899, %v5895
    %v6040 = vpack.c.b16 %v5900, %v5896
    %v6041 = vpack.c.b16 %v5901, %v5897
    %v6042 = vpack.c.b16 %v5902, %v5898
    %v6043 = vpack.c.b16 %v5907, %v5903
    %v6044 = vpack.c.b16 %v5908, %v5904
    %v6045 = vpack.c.b16 %v5909, %v5905
    %v6046 = vpack.c.b16 %v5910, %v5906
    %v6047 = vpack.c.b16 %v5915, %v5911
    %v6048 = vpack.c.b16 %v5916, %v5912
    %v6049 = vpack.c.b16 %v5917, %v5913
    %v6050 = vpack.c.b16 %v5918, %v5914
    %v6051 = vpack.c.b16 %v5923, %v5919
    %v6052 = vpack.c.b16 %v5924, %v5920
    %v6053 = vpack.c.b16 %v5925, %v5921
    %v6054 = vpack.c.b16 %v5926, %v5922
    %6183 = vmatprep.subr.bf16.mxu0 %v5928
    %6184 = vmatpush1.bf16.msra.mxu0 %v5927
    %6185 = vmatprep.subr.bf16.mxu0 %v5932
    %6186 = vmatpush1.bf16.msra.mxu0 %v5931
    %6187 = vmatprep.subr.bf16.mxu0 %v5936
    %6188 = vmatpush1.bf16.msra.mxu0 %v5935
    %6189 = vmatprep.subr.bf16.mxu0 %v5940
    %6190 = vmatpush1.bf16.msra.mxu0 %v5939
    %6191 = vmatprep.subr.bf16.mxu0 %v5944
    %6192 = vmatpush1.bf16.msra.mxu0 %v5943
    %6193 = vmatprep.subr.bf16.mxu0 %v5948
    %6194 = vmatpush1.bf16.msra.mxu0 %v5947
    %6195 = vmatprep.subr.bf16.mxu0 %v5952
    %6196 = vmatpush1.bf16.msra.mxu0 %v5951
    %6197 = vmatprep.subr.bf16.mxu0 %v5956
    %6198 = vmatpush1.bf16.msra.mxu0 %v5955
    %6199 = vmatprep.subr.bf16.mxu0 %v5960
    %6200 = vmatpush1.bf16.msra.mxu0 %v5959
    %6201 = vmatprep.subr.bf16.mxu0 %v5964
    %6202 = vmatpush1.bf16.msra.mxu0 %v5963
    %6203 = vmatprep.subr.bf16.mxu0 %v5968
    %6204 = vmatpush1.bf16.msra.mxu0 %v5967
    %6205 = vmatprep.subr.bf16.mxu0 %v5972
    %6206 = vmatpush1.bf16.msra.mxu0 %v5971
    %6207 = vmatprep.subr.bf16.mxu0 %v5976
    %6208 = vmatpush1.bf16.msra.mxu0 %v5975
    %6209 = vmatprep.subr.bf16.mxu0 %v5980
    %6210 = vmatpush1.bf16.msra.mxu0 %v5979
    %6211 = vmatprep.subr.bf16.mxu0 %v5984
    %6212 = vmatpush1.bf16.msra.mxu0 %v5983
    %6213 = vmatprep.subr.bf16.mxu0 %v5988
    %6214 = vmatpush1.bf16.msra.mxu0 %v5987
    %6215 = vmatprep.mubr.bf16.mxu0 %v364
    %6216 = vmatmul.mubr.bf16.gmra.mrb[0].mxu0 %v363
    %v6217 = vpop.f32.mrb[0].mxu0
    %v6218 = vadd.f32 %v5526, %v6217
    %v6219 = vpop.f32.mrb[0].mxu0
    %v6220 = vadd.f32 %v5530, %v6219
    %v6221 = vpop.f32.mrb[0].mxu0
    %v6222 = vadd.f32 %v5526, %v6221
    %v6223 = vpop.f32.mrb[0].mxu0
    %v6224 = vadd.f32 %v5530, %v6223
    %6225 = vmatprep.mubr.bf16.mxu0 %v368
    %6226 = vmatmul.mubr.bf16.gmra.mrb[0].mxu0 %v367
    %v6227 = vpop.f32.mrb[0].mxu0
    %v6228 = vadd.f32 %v5526, %v6227
    %v6229 = vpop.f32.mrb[0].mxu0
    %v6230 = vadd.f32 %v5530, %v6229
    %v6231 = vpop.f32.mrb[0].mxu0
    %v6232 = vadd.f32 %v5526, %v6231
    %v6233 = vpop.f32.mrb[0].mxu0
    %v6234 = vadd.f32 %v5530, %v6233
    %6235 = vmatprep.mubr.bf16.mxu0 %v372
    %6236 = vmatmul.mubr.bf16.gmra.mrb[0].mxu0 %v371
    %v6237 = vpop.f32.mrb[0].mxu0
    %v6238 = vadd.f32 %v5526, %v6237
    %v6239 = vpop.f32.mrb[0].mxu0
    %v6240 = vadd.f32 %v5530, %v6239
    %v6241 = vpop.f32.mrb[0].mxu0
    %v6242 = vadd.f32 %v5526, %v6241
    %v6243 = vpop.f32.mrb[0].mxu0
    %v6244 = vadd.f32 %v5530, %v6243
    %6245 = vmatprep.mubr.bf16.mxu0 %v376
    %6246 = vmatmul.mubr.bf16.gmra.mrb[0].mxu0 %v375
    %v6247 = vpop.f32.mrb[0].mxu0
    %v6248 = vadd.f32 %v5526, %v6247
    %v6249 = vpop.f32.mrb[0].mxu0
    %v6250 = vadd.f32 %v5530, %v6249
    %v6251 = vpop.f32.mrb[0].mxu0
    %v6252 = vadd.f32 %v5526, %v6251
    %v6253 = vpop.f32.mrb[0].mxu0
    %v6254 = vadd.f32 %v5530, %v6253
    %6255 = vmatprep.mubr.bf16.mxu0 %v380
    %6256 = vmatmul.mubr.bf16.gmra.mrb[0].mxu0 %v379
    %v6257 = vpop.f32.mrb[0].mxu0
    %v6258 = vadd.f32 %v5526, %v6257
    %v6259 = vpop.f32.mrb[0].mxu0
    %v6260 = vadd.f32 %v5530, %v6259
    %v6261 = vpop.f32.mrb[0].mxu0
    %v6262 = vadd.f32 %v5526, %v6261
    %v6263 = vpop.f32.mrb[0].mxu0
    %v6264 = vadd.f32 %v5530, %v6263
    %6265 = vmatprep.mubr.bf16.mxu0 %v384
    %6266 = vmatmul.mubr.bf16.gmra.mrb[0].mxu0 %v383
    %v6267 = vpop.f32.mrb[0].mxu0
    %v6268 = vadd.f32 %v5526, %v6267
    %v6269 = vpop.f32.mrb[0].mxu0
    %v6270 = vadd.f32 %v5530, %v6269
    %v6271 = vpop.f32.mrb[0].mxu0
    %v6272 = vadd.f32 %v5526, %v6271
    %v6273 = vpop.f32.mrb[0].mxu0
    %v6274 = vadd.f32 %v5530, %v6273
    %6275 = vmatprep.mubr.bf16.mxu0 %v388
    %6276 = vmatmul.mubr.bf16.gmra.mrb[0].mxu0 %v387
    %v6277 = vpop.f32.mrb[0].mxu0
    %v6278 = vadd.f32 %v5526, %v6277
    %v6279 = vpop.f32.mrb[0].mxu0
    %v6280 = vadd.f32 %v5530, %v6279
    %v6281 = vpop.f32.mrb[0].mxu0
    %v6282 = vadd.f32 %v5526, %v6281
    %v6283 = vpop.f32.mrb[0].mxu0
    %v6284 = vadd.f32 %v5530, %v6283
    %6285 = vmatprep.mubr.bf16.mxu0 %v392
    %6286 = vmatmul.mubr.bf16.gmra.mrb[0].mxu0 %v391
    %v6287 = vpop.f32.mrb[0].mxu0
    %v6288 = vadd.f32 %v5526, %v6287
    %v6289 = vpop.f32.mrb[0].mxu0
    %v6290 = vadd.f32 %v5530, %v6289
    %v6291 = vpop.f32.mrb[0].mxu0
    %v6292 = vadd.f32 %v5526, %v6291
    %v6293 = vpop.f32.mrb[0].mxu0
    %v6294 = vadd.f32 %v5530, %v6293
    %6295 = vdwg.mxu0
    %6296 = vmatprep.subr.bf16.mxu0 %v5992
    %6297 = vmatpush1.bf16.msra.mxu0 %v5991
    %6298 = vmatprep.subr.bf16.mxu0 %v5996
    %6299 = vmatpush1.bf16.msra.mxu0 %v5995
    %6300 = vmatprep.subr.bf16.mxu0 %v6000
    %6301 = vmatpush1.bf16.msra.mxu0 %v5999
    %6302 = vmatprep.subr.bf16.mxu0 %v6004
    %6303 = vmatpush1.bf16.msra.mxu0 %v6003
    %6304 = vmatprep.subr.bf16.mxu0 %v6008
    %6305 = vmatpush1.bf16.msra.mxu0 %v6007
    %6306 = vmatprep.subr.bf16.mxu0 %v6012
    %6307 = vmatpush1.bf16.msra.mxu0 %v6011
    %6308 = vmatprep.subr.bf16.mxu0 %v6016
    %6309 = vmatpush1.bf16.msra.mxu0 %v6015
    %6310 = vmatprep.subr.bf16.mxu0 %v6020
    %6311 = vmatpush1.bf16.msra.mxu0 %v6019
    %6312 = vmatprep.subr.bf16.mxu0 %v6024
    %6313 = vmatpush1.bf16.msra.mxu0 %v6023
    %6314 = vmatprep.subr.bf16.mxu0 %v6028
    %6315 = vmatpush1.bf16.msra.mxu0 %v6027
    %6316 = vmatprep.subr.bf16.mxu0 %v6032
    %6317 = vmatpush1.bf16.msra.mxu0 %v6031
    %6318 = vmatprep.subr.bf16.mxu0 %v6036
    %6319 = vmatpush1.bf16.msra.mxu0 %v6035
    %6320 = vmatprep.subr.bf16.mxu0 %v6040
    %6321 = vmatpush1.bf16.msra.mxu0 %v6039
    %6322 = vmatprep.subr.bf16.mxu0 %v6044
    %6323 = vmatpush1.bf16.msra.mxu0 %v6043
    %6324 = vmatprep.subr.bf16.mxu0 %v6048
    %6325 = vmatpush1.bf16.msra.mxu0 %v6047
    %6326 = vmatprep.subr.bf16.mxu0 %v6052
    %6327 = vmatpush1.bf16.msra.mxu0 %v6051
    %6328 = vmatprep.mubr.bf16.mxu0 %v366
    %6329 = vmatmul.mubr.bf16.gmra.mrb[0].mxu0 %v365
    %v6330 = vpop.f32.mrb[0].mxu0
    %v6331 = vadd.f32 %v6218, %v6330
    %v6332 = vpop.f32.mrb[0].mxu0
    %v6333 = vadd.f32 %v6220, %v6332
    %v6334 = vpop.f32.mrb[0].mxu0
    %v6335 = vadd.f32 %v6222, %v6334
    %v6336 = vpop.f32.mrb[0].mxu0
    %v6337 = vadd.f32 %v6224, %v6336
    %6338 = vmatprep.mubr.bf16.mxu0 %v370
    %6339 = vmatmul.mubr.bf16.gmra.mrb[0].mxu0 %v369
    %v6340 = vpop.f32.mrb[0].mxu0
    %v6341 = vadd.f32 %v6228, %v6340
    %v6342 = vpop.f32.mrb[0].mxu0
    %v6343 = vadd.f32 %v6230, %v6342
    %v6344 = vpop.f32.mrb[0].mxu0
    %v6345 = vadd.f32 %v6232, %v6344
    %v6346 = vpop.f32.mrb[0].mxu0
    %v6347 = vadd.f32 %v6234, %v6346
    %6348 = vmatprep.mubr.bf16.mxu0 %v374
    %6349 = vmatmul.mubr.bf16.gmra.mrb[0].mxu0 %v373
    %v6350 = vpop.f32.mrb[0].mxu0
    %v6351 = vadd.f32 %v6238, %v6350
    %v6352 = vpop.f32.mrb[0].mxu0
    %v6353 = vadd.f32 %v6240, %v6352
    %v6354 = vpop.f32.mrb[0].mxu0
    %v6355 = vadd.f32 %v6242, %v6354
    %v6356 = vpop.f32.mrb[0].mxu0
    %v6357 = vadd.f32 %v6244, %v6356
    %6358 = vmatprep.mubr.bf16.mxu0 %v378
    %6359 = vmatmul.mubr.bf16.gmra.mrb[0].mxu0 %v377
    %v6360 = vpop.f32.mrb[0].mxu0
    %v6361 = vadd.f32 %v6248, %v6360
    %v6362 = vpop.f32.mrb[0].mxu0
    %v6363 = vadd.f32 %v6250, %v6362
    %v6364 = vpop.f32.mrb[0].mxu0
    %v6365 = vadd.f32 %v6252, %v6364
    %v6366 = vpop.f32.mrb[0].mxu0
    %v6367 = vadd.f32 %v6254, %v6366
    %6368 = vmatprep.mubr.bf16.mxu0 %v382
    %6369 = vmatmul.mubr.bf16.gmra.mrb[0].mxu0 %v381
    %v6370 = vpop.f32.mrb[0].mxu0
    %v6371 = vadd.f32 %v6258, %v6370
    %v6372 = vpop.f32.mrb[0].mxu0
    %v6373 = vadd.f32 %v6260, %v6372
    %v6374 = vpop.f32.mrb[0].mxu0
    %v6375 = vadd.f32 %v6262, %v6374
    %v6376 = vpop.f32.mrb[0].mxu0
    %v6377 = vadd.f32 %v6264, %v6376
    %6378 = vmatprep.mubr.bf16.mxu0 %v386
    %6379 = vmatmul.mubr.bf16.gmra.mrb[0].mxu0 %v385
    %v6380 = vpop.f32.mrb[0].mxu0
    %v6381 = vadd.f32 %v6268, %v6380
    %v6382 = vpop.f32.mrb[0].mxu0
    %v6383 = vadd.f32 %v6270, %v6382
    %v6384 = vpop.f32.mrb[0].mxu0
    %v6385 = vadd.f32 %v6272, %v6384
    %v6386 = vpop.f32.mrb[0].mxu0
    %v6387 = vadd.f32 %v6274, %v6386
    %6388 = vmatprep.mubr.bf16.mxu0 %v390
    %6389 = vmatmul.mubr.bf16.gmra.mrb[0].mxu0 %v389
    %v6390 = vpop.f32.mrb[0].mxu0
    %v6391 = vadd.f32 %v6278, %v6390
    %v6392 = vpop.f32.mrb[0].mxu0
    %v6393 = vadd.f32 %v6280, %v6392
    %v6394 = vpop.f32.mrb[0].mxu0
    %v6395 = vadd.f32 %v6282, %v6394
    %v6396 = vpop.f32.mrb[0].mxu0
    %v6397 = vadd.f32 %v6284, %v6396
    %6398 = vmatprep.mubr.bf16.mxu0 %v394
    %6399 = vmatmul.mubr.bf16.gmra.mrb[0].mxu0 %v393
    %v6400 = vpop.f32.mrb[0].mxu0
    %v6401 = vadd.f32 %v6288, %v6400
    %v6402 = vpop.f32.mrb[0].mxu0
    %v6403 = vadd.f32 %v6290, %v6402
    %v6404 = vpop.f32.mrb[0].mxu0
    %v6405 = vadd.f32 %v6292, %v6404
    %v6406 = vpop.f32.mrb[0].mxu0
    %v6407 = vadd.f32 %v6294, %v6406
    %6408 = vdwg.mxu0
    %6409 = vmatprep.subr.bf16.mxu0 %v5930
    %6410 = vmatpush1.bf16.msra.mxu0 %v5929
    %6411 = vmatprep.subr.bf16.mxu0 %v5934
    %6412 = vmatpush1.bf16.msra.mxu0 %v5933
    %6413 = vmatprep.subr.bf16.mxu0 %v5938
    %6414 = vmatpush1.bf16.msra.mxu0 %v5937
    %6415 = vmatprep.subr.bf16.mxu0 %v5942
    %6416 = vmatpush1.bf16.msra.mxu0 %v5941
    %6417 = vmatprep.subr.bf16.mxu0 %v5946
    %6418 = vmatpush1.bf16.msra.mxu0 %v5945
    %6419 = vmatprep.subr.bf16.mxu0 %v5950
    %6420 = vmatpush1.bf16.msra.mxu0 %v5949
    %6421 = vmatprep.subr.bf16.mxu0 %v5954
    %6422 = vmatpush1.bf16.msra.mxu0 %v5953
    %6423 = vmatprep.subr.bf16.mxu0 %v5958
    %6424 = vmatpush1.bf16.msra.mxu0 %v5957
    %6425 = vmatprep.subr.bf16.mxu0 %v5962
    %6426 = vmatpush1.bf16.msra.mxu0 %v5961
    %6427 = vmatprep.subr.bf16.mxu0 %v5966
    %6428 = vmatpush1.bf16.msra.mxu0 %v5965
    %6429 = vmatprep.subr.bf16.mxu0 %v5970
    %6430 = vmatpush1.bf16.msra.mxu0 %v5969
    %6431 = vmatprep.subr.bf16.mxu0 %v5974
    %6432 = vmatpush1.bf16.msra.mxu0 %v5973
    %6433 = vmatprep.subr.bf16.mxu0 %v5978
    %6434 = vmatpush1.bf16.msra.mxu0 %v5977
    %6435 = vmatprep.subr.bf16.mxu0 %v5982
    %6436 = vmatpush1.bf16.msra.mxu0 %v5981
    %6437 = vmatprep.subr.bf16.mxu0 %v5986
    %6438 = vmatpush1.bf16.msra.mxu0 %v5985
    %6439 = vmatprep.subr.bf16.mxu0 %v5990
    %6440 = vmatpush1.bf16.msra.mxu0 %v5989
    %6441 = vmatprep.mubr.bf16.mxu0 %v364
    %6442 = vmatmul.mubr.bf16.gmra.mrb[0].mxu0 %v363
    %v6443 = vpop.f32.mrb[0].mxu0
    %v6444 = vadd.f32 %v5534, %v6443
    %v6445 = vpop.f32.mrb[0].mxu0
    %v6446 = vadd.f32 %v5538, %v6445
    %v6447 = vpop.f32.mrb[0].mxu0
    %v6448 = vadd.f32 %v5534, %v6447
    %v6449 = vpop.f32.mrb[0].mxu0
    %v6450 = vadd.f32 %v5538, %v6449
    %6451 = vmatprep.mubr.bf16.mxu0 %v368
    %6452 = vmatmul.mubr.bf16.gmra.mrb[0].mxu0 %v367
    %v6453 = vpop.f32.mrb[0].mxu0
    %v6454 = vadd.f32 %v5534, %v6453
    %v6455 = vpop.f32.mrb[0].mxu0
    %v6456 = vadd.f32 %v5538, %v6455
    %v6457 = vpop.f32.mrb[0].mxu0
    %v6458 = vadd.f32 %v5534, %v6457
    %v6459 = vpop.f32.mrb[0].mxu0
    %v6460 = vadd.f32 %v5538, %v6459
    %6461 = vmatprep.mubr.bf16.mxu0 %v372
    %6462 = vmatmul.mubr.bf16.gmra.mrb[0].mxu0 %v371
    %v6463 = vpop.f32.mrb[0].mxu0
    %v6464 = vadd.f32 %v5534, %v6463
    %v6465 = vpop.f32.mrb[0].mxu0
    %v6466 = vadd.f32 %v5538, %v6465
    %v6467 = vpop.f32.mrb[0].mxu0
    %v6468 = vadd.f32 %v5534, %v6467
    %v6469 = vpop.f32.mrb[0].mxu0
    %v6470 = vadd.f32 %v5538, %v6469
    %6471 = vmatprep.mubr.bf16.mxu0 %v376
    %6472 = vmatmul.mubr.bf16.gmra.mrb[0].mxu0 %v375
    %v6473 = vpop.f32.mrb[0].mxu0
    %v6474 = vadd.f32 %v5534, %v6473
    %v6475 = vpop.f32.mrb[0].mxu0
    %v6476 = vadd.f32 %v5538, %v6475
    %v6477 = vpop.f32.mrb[0].mxu0
    %v6478 = vadd.f32 %v5534, %v6477
    %v6479 = vpop.f32.mrb[0].mxu0
    %v6480 = vadd.f32 %v5538, %v6479
    %6481 = vmatprep.mubr.bf16.mxu0 %v380
    %6482 = vmatmul.mubr.bf16.gmra.mrb[0].mxu0 %v379
    %v6483 = vpop.f32.mrb[0].mxu0
    %v6484 = vadd.f32 %v5534, %v6483
    %v6485 = vpop.f32.mrb[0].mxu0
    %v6486 = vadd.f32 %v5538, %v6485
    %v6487 = vpop.f32.mrb[0].mxu0
    %v6488 = vadd.f32 %v5534, %v6487
    %v6489 = vpop.f32.mrb[0].mxu0
    %v6490 = vadd.f32 %v5538, %v6489
    %6491 = vmatprep.mubr.bf16.mxu0 %v384
    %6492 = vmatmul.mubr.bf16.gmra.mrb[0].mxu0 %v383
    %v6493 = vpop.f32.mrb[0].mxu0
    %v6494 = vadd.f32 %v5534, %v6493
    %v6495 = vpop.f32.mrb[0].mxu0
    %v6496 = vadd.f32 %v5538, %v6495
    %v6497 = vpop.f32.mrb[0].mxu0
    %v6498 = vadd.f32 %v5534, %v6497
    %v6499 = vpop.f32.mrb[0].mxu0
    %v6500 = vadd.f32 %v5538, %v6499
    %6501 = vmatprep.mubr.bf16.mxu0 %v388
    %6502 = vmatmul.mubr.bf16.gmra.mrb[0].mxu0 %v387
    %v6503 = vpop.f32.mrb[0].mxu0
    %v6504 = vadd.f32 %v5534, %v6503
    %v6505 = vpop.f32.mrb[0].mxu0
    %v6506 = vadd.f32 %v5538, %v6505
    %v6507 = vpop.f32.mrb[0].mxu0
    %v6508 = vadd.f32 %v5534, %v6507
    %v6509 = vpop.f32.mrb[0].mxu0
    %v6510 = vadd.f32 %v5538, %v6509
    %6511 = vmatprep.mubr.bf16.mxu0 %v392
    %6512 = vmatmul.mubr.bf16.gmra.mrb[0].mxu0 %v391
    %v6513 = vpop.f32.mrb[0].mxu0
    %v6514 = vadd.f32 %v5534, %v6513
    %v6515 = vpop.f32.mrb[0].mxu0
    %v6516 = vadd.f32 %v5538, %v6515
    %v6517 = vpop.f32.mrb[0].mxu0
    %v6518 = vadd.f32 %v5534, %v6517
    %v6519 = vpop.f32.mrb[0].mxu0
    %v6520 = vadd.f32 %v5538, %v6519
    %6521 = vdwg.mxu0
    %6522 = vmatprep.subr.bf16.mxu0 %v5994
    %6523 = vmatpush1.bf16.msra.mxu0 %v5993
    %6524 = vmatprep.subr.bf16.mxu0 %v5998
    %6525 = vmatpush1.bf16.msra.mxu0 %v5997
    %6526 = vmatprep.subr.bf16.mxu0 %v6002
    %6527 = vmatpush1.bf16.msra.mxu0 %v6001
    %6528 = vmatprep.subr.bf16.mxu0 %v6006
    %6529 = vmatpush1.bf16.msra.mxu0 %v6005
    %6530 = vmatprep.subr.bf16.mxu0 %v6010
    %6531 = vmatpush1.bf16.msra.mxu0 %v6009
    %6532 = vmatprep.subr.bf16.mxu0 %v6014
    %6533 = vmatpush1.bf16.msra.mxu0 %v6013
    %6534 = vmatprep.subr.bf16.mxu0 %v6018
    %6535 = vmatpush1.bf16.msra.mxu0 %v6017
    %6536 = vmatprep.subr.bf16.mxu0 %v6022
    %6537 = vmatpush1.bf16.msra.mxu0 %v6021
    %6538 = vmatprep.subr.bf16.mxu0 %v6026
    %6539 = vmatpush1.bf16.msra.mxu0 %v6025
    %6540 = vmatprep.subr.bf16.mxu0 %v6030
    %6541 = vmatpush1.bf16.msra.mxu0 %v6029
    %6542 = vmatprep.subr.bf16.mxu0 %v6034
    %6543 = vmatpush1.bf16.msra.mxu0 %v6033
    %6544 = vmatprep.subr.bf16.mxu0 %v6038
    %6545 = vmatpush1.bf16.msra.mxu0 %v6037
    %6546 = vmatprep.subr.bf16.mxu0 %v6042
    %6547 = vmatpush1.bf16.msra.mxu0 %v6041
    %6548 = vmatprep.subr.bf16.mxu0 %v6046
    %6549 = vmatpush1.bf16.msra.mxu0 %v6045
    %6550 = vmatprep.subr.bf16.mxu0 %v6050
    %6551 = vmatpush1.bf16.msra.mxu0 %v6049
    %6552 = vmatprep.subr.bf16.mxu0 %v6054
    %6553 = vmatpush1.bf16.msra.mxu0 %v6053
    %6554 = vmatprep.mubr.bf16.mxu0 %v366
    %6555 = vmatmul.mubr.bf16.gmra.mrb[0].mxu0 %v365
    %v6556 = vpop.f32.mrb[0].mxu0
    %v6557 = vadd.f32 %v6444, %v6556
    %v6558 = vpop.f32.mrb[0].mxu0
    %v6559 = vadd.f32 %v6446, %v6558
    %v6560 = vpop.f32.mrb[0].mxu0
    %v6561 = vadd.f32 %v6448, %v6560
    %v6562 = vpop.f32.mrb[0].mxu0
    %v6563 = vadd.f32 %v6450, %v6562
    %6564 = vmatprep.mubr.bf16.mxu0 %v370
    %6565 = vmatmul.mubr.bf16.gmra.mrb[0].mxu0 %v369
    %v6566 = vpop.f32.mrb[0].mxu0
    %v6567 = vadd.f32 %v6454, %v6566
    %v6568 = vpop.f32.mrb[0].mxu0
    %v6569 = vadd.f32 %v6456, %v6568
    %v6570 = vpop.f32.mrb[0].mxu0
    %v6571 = vadd.f32 %v6458, %v6570
    %v6572 = vpop.f32.mrb[0].mxu0
    %v6573 = vadd.f32 %v6460, %v6572
    %6574 = vmatprep.mubr.bf16.mxu0 %v374
    %6575 = vmatmul.mubr.bf16.gmra.mrb[0].mxu0 %v373
    %v6576 = vpop.f32.mrb[0].mxu0
    %v6577 = vadd.f32 %v6464, %v6576
    %v6578 = vpop.f32.mrb[0].mxu0
    %v6579 = vadd.f32 %v6466, %v6578
    %v6580 = vpop.f32.mrb[0].mxu0
    %v6581 = vadd.f32 %v6468, %v6580
    %v6582 = vpop.f32.mrb[0].mxu0
    %v6583 = vadd.f32 %v6470, %v6582
    %6584 = vmatprep.mubr.bf16.mxu0 %v378
    %6585 = vmatmul.mubr.bf16.gmra.mrb[0].mxu0 %v377
    %v6586 = vpop.f32.mrb[0].mxu0
    %v6587 = vadd.f32 %v6474, %v6586
    %v6588 = vpop.f32.mrb[0].mxu0
    %v6589 = vadd.f32 %v6476, %v6588
    %v6590 = vpop.f32.mrb[0].mxu0
    %v6591 = vadd.f32 %v6478, %v6590
    %v6592 = vpop.f32.mrb[0].mxu0
    %v6593 = vadd.f32 %v6480, %v6592
    %6594 = vmatprep.mubr.bf16.mxu0 %v382
    %6595 = vmatmul.mubr.bf16.gmra.mrb[0].mxu0 %v381
    %v6596 = vpop.f32.mrb[0].mxu0
    %v6597 = vadd.f32 %v6484, %v6596
    %v6598 = vpop.f32.mrb[0].mxu0
    %v6599 = vadd.f32 %v6486, %v6598
    %v6600 = vpop.f32.mrb[0].mxu0
    %v6601 = vadd.f32 %v6488, %v6600
    %v6602 = vpop.f32.mrb[0].mxu0
    %v6603 = vadd.f32 %v6490, %v6602
    %6604 = vmatprep.mubr.bf16.mxu0 %v386
    %6605 = vmatmul.mubr.bf16.gmra.mrb[0].mxu0 %v385
    %v6606 = vpop.f32.mrb[0].mxu0
    %v6607 = vadd.f32 %v6494, %v6606
    %v6608 = vpop.f32.mrb[0].mxu0
    %v6609 = vadd.f32 %v6496, %v6608
    %v6610 = vpop.f32.mrb[0].mxu0
    %v6611 = vadd.f32 %v6498, %v6610
    %v6612 = vpop.f32.mrb[0].mxu0
    %v6613 = vadd.f32 %v6500, %v6612
    %6614 = vmatprep.mubr.bf16.mxu0 %v390
    %6615 = vmatmul.mubr.bf16.gmra.mrb[0].mxu0 %v389
    %v6616 = vpop.f32.mrb[0].mxu0
    %v6617 = vadd.f32 %v6504, %v6616
    %v6618 = vpop.f32.mrb[0].mxu0
    %v6619 = vadd.f32 %v6506, %v6618
    %v6620 = vpop.f32.mrb[0].mxu0
    %v6621 = vadd.f32 %v6508, %v6620
    %v6622 = vpop.f32.mrb[0].mxu0
    %v6623 = vadd.f32 %v6510, %v6622
    %6624 = vmatprep.mubr.bf16.mxu0 %v394
    %6625 = vmatmul.mubr.bf16.gmra.mrb[0].mxu0 %v393
    %v6626 = vpop.f32.mrb[0].mxu0
    %v6627 = vadd.f32 %v6514, %v6626
    %v6628 = vpop.f32.mrb[0].mxu0
    %v6629 = vadd.f32 %v6516, %v6628
    %v6630 = vpop.f32.mrb[0].mxu0
    %v6631 = vadd.f32 %v6518, %v6630
    %v6632 = vpop.f32.mrb[0].mxu0
    %v6633 = vadd.f32 %v6520, %v6632
    %6634 = vdwg.mxu0
    %v6635 = vmax.f32 %v6331, 0.0
    %v6636 = vmax.f32 %v6333, 0.0
    %v6637 = vmax.f32 %v6557, 0.0
    %v6638 = vmax.f32 %v6559, 0.0
    %v6639 = vmax.f32 %v6335, 0.0
    %v6640 = vmax.f32 %v6337, 0.0
    %v6641 = vmax.f32 %v6561, 0.0
    %v6642 = vmax.f32 %v6563, 0.0
    %v6643 = vmax.f32 %v6341, 0.0
    %v6644 = vmax.f32 %v6343, 0.0
    %v6645 = vmax.f32 %v6567, 0.0
    %v6646 = vmax.f32 %v6569, 0.0
    %v6647 = vmax.f32 %v6345, 0.0
    %v6648 = vmax.f32 %v6347, 0.0
    %v6649 = vmax.f32 %v6571, 0.0
    %v6650 = vmax.f32 %v6573, 0.0
    %v6651 = vmax.f32 %v6351, 0.0
    %v6652 = vmax.f32 %v6353, 0.0
    %v6653 = vmax.f32 %v6577, 0.0
    %v6654 = vmax.f32 %v6579, 0.0
    %v6655 = vmax.f32 %v6355, 0.0
    %v6656 = vmax.f32 %v6357, 0.0
    %v6657 = vmax.f32 %v6581, 0.0
    %v6658 = vmax.f32 %v6583, 0.0
    %v6659 = vmax.f32 %v6361, 0.0
    %v6660 = vmax.f32 %v6363, 0.0
    %v6661 = vmax.f32 %v6587, 0.0
    %v6662 = vmax.f32 %v6589, 0.0
    %v6663 = vmax.f32 %v6365, 0.0
    %v6664 = vmax.f32 %v6367, 0.0
    %v6665 = vmax.f32 %v6591, 0.0
    %v6666 = vmax.f32 %v6593, 0.0
    %v6667 = vmax.f32 %v6371, 0.0
    %v6668 = vmax.f32 %v6373, 0.0
    %v6669 = vmax.f32 %v6597, 0.0
    %v6670 = vmax.f32 %v6599, 0.0
    %v6671 = vmax.f32 %v6375, 0.0
    %v6672 = vmax.f32 %v6377, 0.0
    %v6673 = vmax.f32 %v6601, 0.0
    %v6674 = vmax.f32 %v6603, 0.0
    %v6675 = vmax.f32 %v6381, 0.0
    %v6676 = vmax.f32 %v6383, 0.0
    %v6677 = vmax.f32 %v6607, 0.0
    %v6678 = vmax.f32 %v6609, 0.0
    %v6679 = vmax.f32 %v6385, 0.0
    %v6680 = vmax.f32 %v6387, 0.0
    %v6681 = vmax.f32 %v6611, 0.0
    %v6682 = vmax.f32 %v6613, 0.0
    %v6683 = vmax.f32 %v6391, 0.0
    %v6684 = vmax.f32 %v6393, 0.0
    %v6685 = vmax.f32 %v6617, 0.0
    %v6686 = vmax.f32 %v6619, 0.0
    %v6687 = vmax.f32 %v6395, 0.0
    %v6688 = vmax.f32 %v6397, 0.0
    %v6689 = vmax.f32 %v6621, 0.0
    %v6690 = vmax.f32 %v6623, 0.0
    %v6691 = vmax.f32 %v6401, 0.0
    %v6692 = vmax.f32 %v6403, 0.0
    %v6693 = vmax.f32 %v6627, 0.0
    %v6694 = vmax.f32 %v6629, 0.0
    %v6695 = vmax.f32 %v6405, 0.0
    %v6696 = vmax.f32 %v6407, 0.0
    %v6697 = vmax.f32 %v6631, 0.0
    %v6698 = vmax.f32 %v6633, 0.0
    %v6699 = vpack.c.bf16 %v6639, %v6635
    %v6700 = vpack.c.bf16 %v6640, %v6636
    %v6701 = vpack.c.bf16 %v6641, %v6637
    %v6702 = vpack.c.bf16 %v6642, %v6638
    %v6703 = vpack.c.bf16 %v6647, %v6643
    %v6704 = vpack.c.bf16 %v6648, %v6644
    %v6705 = vpack.c.bf16 %v6649, %v6645
    %v6706 = vpack.c.bf16 %v6650, %v6646
    %v6707 = vpack.c.bf16 %v6655, %v6651
    %v6708 = vpack.c.bf16 %v6656, %v6652
    %v6709 = vpack.c.bf16 %v6657, %v6653
    %v6710 = vpack.c.bf16 %v6658, %v6654
    %v6711 = vpack.c.bf16 %v6663, %v6659
    %v6712 = vpack.c.bf16 %v6664, %v6660
    %v6713 = vpack.c.bf16 %v6665, %v6661
    %v6714 = vpack.c.bf16 %v6666, %v6662
    %v6715 = vpack.c.bf16 %v6671, %v6667
    %v6716 = vpack.c.bf16 %v6672, %v6668
    %v6717 = vpack.c.bf16 %v6673, %v6669
    %v6718 = vpack.c.bf16 %v6674, %v6670
    %v6719 = vpack.c.bf16 %v6679, %v6675
    %v6720 = vpack.c.bf16 %v6680, %v6676
    %v6721 = vpack.c.bf16 %v6681, %v6677
    %v6722 = vpack.c.bf16 %v6682, %v6678
    %v6723 = vpack.c.bf16 %v6687, %v6683
    %v6724 = vpack.c.bf16 %v6688, %v6684
    %v6725 = vpack.c.bf16 %v6689, %v6685
    %v6726 = vpack.c.bf16 %v6690, %v6686
    %v6727 = vpack.c.bf16 %v6695, %v6691
    %v6728 = vpack.c.bf16 %v6696, %v6692
    %v6729 = vpack.c.bf16 %v6697, %v6693
    %v6730 = vpack.c.bf16 %v6698, %v6694
    %v6731 = vld [vmem:[#allocation8 + $0x800] sm:$0xff]
    %v6732 = vld [vmem:[#allocation8 + $0x808] sm:$0xff]
    %v6733 = vld [vmem:[#allocation8 + $0x810] sm:$0xff]
    %v6734 = vld [vmem:[#allocation8 + $0x818] sm:$0xff]
    %v6735 = vld [vmem:[#allocation8 + $0x820] sm:$0xff]
    %v6736 = vld [vmem:[#allocation8 + $0x828] sm:$0xff]
    %v6737 = vld [vmem:[#allocation8 + $0x830] sm:$0xff]
    %v6738 = vld [vmem:[#allocation8 + $0x838] sm:$0xff]
    %v6739 = vld [vmem:[#allocation8 + $0x840] sm:$0xff]
    %v6740 = vld [vmem:[#allocation8 + $0x848] sm:$0xff]
    %v6741 = vld [vmem:[#allocation8 + $0x850] sm:$0xff]
    %v6742 = vld [vmem:[#allocation8 + $0x858] sm:$0xff]
    %v6743 = vld [vmem:[#allocation8 + $0x860] sm:$0xff]
    %v6744 = vld [vmem:[#allocation8 + $0x868] sm:$0xff]
    %v6745 = vld [vmem:[#allocation8 + $0x870] sm:$0xff]
    %v6746 = vld [vmem:[#allocation8 + $0x878] sm:$0xff]
    %v6747 = vld [vmem:[#allocation8 + $0x880] sm:$0xff]
    %v6748 = vld [vmem:[#allocation8 + $0x888] sm:$0xff]
    %v6749 = vld [vmem:[#allocation8 + $0x890] sm:$0xff]
    %v6750 = vld [vmem:[#allocation8 + $0x898] sm:$0xff]
    %v6751 = vld [vmem:[#allocation8 + $0x8a0] sm:$0xff]
    %v6752 = vld [vmem:[#allocation8 + $0x8a8] sm:$0xff]
    %v6753 = vld [vmem:[#allocation8 + $0x8b0] sm:$0xff]
    %v6754 = vld [vmem:[#allocation8 + $0x8b8] sm:$0xff]
    %v6755 = vld [vmem:[#allocation8 + $0x8c0] sm:$0xff]
    %v6756 = vld [vmem:[#allocation8 + $0x8c8] sm:$0xff]
    %v6757 = vld [vmem:[#allocation8 + $0x8d0] sm:$0xff]
    %v6758 = vld [vmem:[#allocation8 + $0x8d8] sm:$0xff]
    %v6759 = vld [vmem:[#allocation8 + $0x8e0] sm:$0xff]
    %v6760 = vld [vmem:[#allocation8 + $0x8e8] sm:$0xff]
    %v6761 = vld [vmem:[#allocation8 + $0x8f0] sm:$0xff]
    %v6762 = vld [vmem:[#allocation8 + $0x8f8] sm:$0xff]
    %v6763 = vld [vmem:[#allocation8 + $0x900] sm:$0xff]
    %v6764 = vld [vmem:[#allocation8 + $0x908] sm:$0xff]
    %v6765 = vld [vmem:[#allocation8 + $0x910] sm:$0xff]
    %v6766 = vld [vmem:[#allocation8 + $0x918] sm:$0xff]
    %v6767 = vld [vmem:[#allocation8 + $0x920] sm:$0xff]
    %v6768 = vld [vmem:[#allocation8 + $0x928] sm:$0xff]
    %v6769 = vld [vmem:[#allocation8 + $0x930] sm:$0xff]
    %v6770 = vld [vmem:[#allocation8 + $0x938] sm:$0xff]
    %v6771 = vld [vmem:[#allocation8 + $0x940] sm:$0xff]
    %v6772 = vld [vmem:[#allocation8 + $0x948] sm:$0xff]
    %v6773 = vld [vmem:[#allocation8 + $0x950] sm:$0xff]
    %v6774 = vld [vmem:[#allocation8 + $0x958] sm:$0xff]
    %v6775 = vld [vmem:[#allocation8 + $0x960] sm:$0xff]
    %v6776 = vld [vmem:[#allocation8 + $0x968] sm:$0xff]
    %v6777 = vld [vmem:[#allocation8 + $0x970] sm:$0xff]
    %v6778 = vld [vmem:[#allocation8 + $0x978] sm:$0xff]
    %v6779 = vld [vmem:[#allocation8 + $0x980] sm:$0xff]
    %v6780 = vld [vmem:[#allocation8 + $0x988] sm:$0xff]
    %v6781 = vld [vmem:[#allocation8 + $0x990] sm:$0xff]
    %v6782 = vld [vmem:[#allocation8 + $0x998] sm:$0xff]
    %v6783 = vld [vmem:[#allocation8 + $0x9a0] sm:$0xff]
    %v6784 = vld [vmem:[#allocation8 + $0x9a8] sm:$0xff]
    %v6785 = vld [vmem:[#allocation8 + $0x9b0] sm:$0xff]
    %v6786 = vld [vmem:[#allocation8 + $0x9b8] sm:$0xff]
    %v6787 = vld [vmem:[#allocation8 + $0x9c0] sm:$0xff]
    %v6788 = vld [vmem:[#allocation8 + $0x9c8] sm:$0xff]
    %v6789 = vld [vmem:[#allocation8 + $0x9d0] sm:$0xff]
    %v6790 = vld [vmem:[#allocation8 + $0x9d8] sm:$0xff]
    %v6791 = vld [vmem:[#allocation8 + $0x9e0] sm:$0xff]
    %v6792 = vld [vmem:[#allocation8 + $0x9e8] sm:$0xff]
    %v6793 = vld [vmem:[#allocation8 + $0x9f0] sm:$0xff]
    %v6794 = vld [vmem:[#allocation8 + $0x9f8] sm:$0xff]
    %v6795 = vld [vmem:[#allocation8 + $0xa00] sm:$0xff]
    %v6796 = vld [vmem:[#allocation8 + $0xa08] sm:$0xff]
    %v6797 = vld [vmem:[#allocation8 + $0xa10] sm:$0xff]
    %v6798 = vld [vmem:[#allocation8 + $0xa18] sm:$0xff]
    %v6799 = vld [vmem:[#allocation8 + $0xa20] sm:$0xff]
    %v6800 = vld [vmem:[#allocation8 + $0xa28] sm:$0xff]
    %v6801 = vld [vmem:[#allocation8 + $0xa30] sm:$0xff]
    %v6802 = vld [vmem:[#allocation8 + $0xa38] sm:$0xff]
    %v6803 = vld [vmem:[#allocation8 + $0xa40] sm:$0xff]
    %v6804 = vld [vmem:[#allocation8 + $0xa48] sm:$0xff]
    %v6805 = vld [vmem:[#allocation8 + $0xa50] sm:$0xff]
    %v6806 = vld [vmem:[#allocation8 + $0xa58] sm:$0xff]
    %v6807 = vld [vmem:[#allocation8 + $0xa60] sm:$0xff]
    %v6808 = vld [vmem:[#allocation8 + $0xa68] sm:$0xff]
    %v6809 = vld [vmem:[#allocation8 + $0xa70] sm:$0xff]
    %v6810 = vld [vmem:[#allocation8 + $0xa78] sm:$0xff]
    %v6811 = vld [vmem:[#allocation8 + $0xa80] sm:$0xff]
    %v6812 = vld [vmem:[#allocation8 + $0xa88] sm:$0xff]
    %v6813 = vld [vmem:[#allocation8 + $0xa90] sm:$0xff]
    %v6814 = vld [vmem:[#allocation8 + $0xa98] sm:$0xff]
    %v6815 = vld [vmem:[#allocation8 + $0xaa0] sm:$0xff]
    %v6816 = vld [vmem:[#allocation8 + $0xaa8] sm:$0xff]
    %v6817 = vld [vmem:[#allocation8 + $0xab0] sm:$0xff]
    %v6818 = vld [vmem:[#allocation8 + $0xab8] sm:$0xff]
    %v6819 = vld [vmem:[#allocation8 + $0xac0] sm:$0xff]
    %v6820 = vld [vmem:[#allocation8 + $0xac8] sm:$0xff]
    %v6821 = vld [vmem:[#allocation8 + $0xad0] sm:$0xff]
    %v6822 = vld [vmem:[#allocation8 + $0xad8] sm:$0xff]
    %v6823 = vld [vmem:[#allocation8 + $0xae0] sm:$0xff]
    %v6824 = vld [vmem:[#allocation8 + $0xae8] sm:$0xff]
    %v6825 = vld [vmem:[#allocation8 + $0xaf0] sm:$0xff]
    %v6826 = vld [vmem:[#allocation8 + $0xaf8] sm:$0xff]
    %v6827 = vld [vmem:[#allocation8 + $0xb00] sm:$0xff]
    %v6828 = vld [vmem:[#allocation8 + $0xb08] sm:$0xff]
    %v6829 = vld [vmem:[#allocation8 + $0xb10] sm:$0xff]
    %v6830 = vld [vmem:[#allocation8 + $0xb18] sm:$0xff]
    %v6831 = vld [vmem:[#allocation8 + $0xb20] sm:$0xff]
    %v6832 = vld [vmem:[#allocation8 + $0xb28] sm:$0xff]
    %v6833 = vld [vmem:[#allocation8 + $0xb30] sm:$0xff]
    %v6834 = vld [vmem:[#allocation8 + $0xb38] sm:$0xff]
    %v6835 = vld [vmem:[#allocation8 + $0xb40] sm:$0xff]
    %v6836 = vld [vmem:[#allocation8 + $0xb48] sm:$0xff]
    %v6837 = vld [vmem:[#allocation8 + $0xb50] sm:$0xff]
    %v6838 = vld [vmem:[#allocation8 + $0xb58] sm:$0xff]
    %v6839 = vld [vmem:[#allocation8 + $0xb60] sm:$0xff]
    %v6840 = vld [vmem:[#allocation8 + $0xb68] sm:$0xff]
    %v6841 = vld [vmem:[#allocation8 + $0xb70] sm:$0xff]
    %v6842 = vld [vmem:[#allocation8 + $0xb78] sm:$0xff]
    %v6843 = vld [vmem:[#allocation8 + $0xb80] sm:$0xff]
    %v6844 = vld [vmem:[#allocation8 + $0xb88] sm:$0xff]
    %v6845 = vld [vmem:[#allocation8 + $0xb90] sm:$0xff]
    %v6846 = vld [vmem:[#allocation8 + $0xb98] sm:$0xff]
    %v6847 = vld [vmem:[#allocation8 + $0xba0] sm:$0xff]
    %v6848 = vld [vmem:[#allocation8 + $0xba8] sm:$0xff]
    %v6849 = vld [vmem:[#allocation8 + $0xbb0] sm:$0xff]
    %v6850 = vld [vmem:[#allocation8 + $0xbb8] sm:$0xff]
    %v6851 = vld [vmem:[#allocation8 + $0xbc0] sm:$0xff]
    %v6852 = vld [vmem:[#allocation8 + $0xbc8] sm:$0xff]
    %v6853 = vld [vmem:[#allocation8 + $0xbd0] sm:$0xff]
    %v6854 = vld [vmem:[#allocation8 + $0xbd8] sm:$0xff]
    %v6855 = vld [vmem:[#allocation8 + $0xbe0] sm:$0xff]
    %v6856 = vld [vmem:[#allocation8 + $0xbe8] sm:$0xff]
    %v6857 = vld [vmem:[#allocation8 + $0xbf0] sm:$0xff]
    %v6858 = vld [vmem:[#allocation8 + $0xbf8] sm:$0xff]
    %v6987 = vunpack.c.l.b16 %v6731
    %v6988 = vunpack.c.h.b16 %v6731
    %v6989 = vunpack.c.l.b16 %v6732
    %v6990 = vunpack.c.h.b16 %v6732
    %v6991 = vunpack.c.l.b16 %v6733
    %v6992 = vunpack.c.h.b16 %v6733
    %v6993 = vunpack.c.l.b16 %v6734
    %v6994 = vunpack.c.h.b16 %v6734
    %v6995 = vunpack.c.l.b16 %v6735
    %v6996 = vunpack.c.h.b16 %v6735
    %v6997 = vunpack.c.l.b16 %v6736
    %v6998 = vunpack.c.h.b16 %v6736
    %v6999 = vunpack.c.l.b16 %v6737
    %v7000 = vunpack.c.h.b16 %v6737
    %v7001 = vunpack.c.l.b16 %v6738
    %v7002 = vunpack.c.h.b16 %v6738
    %v7003 = vunpack.c.l.b16 %v6739
    %v7004 = vunpack.c.h.b16 %v6739
    %v7005 = vunpack.c.l.b16 %v6740
    %v7006 = vunpack.c.h.b16 %v6740
    %v7007 = vunpack.c.l.b16 %v6741
    %v7008 = vunpack.c.h.b16 %v6741
    %v7009 = vunpack.c.l.b16 %v6742
    %v7010 = vunpack.c.h.b16 %v6742
    %v7011 = vunpack.c.l.b16 %v6743
    %v7012 = vunpack.c.h.b16 %v6743
    %v7013 = vunpack.c.l.b16 %v6744
    %v7014 = vunpack.c.h.b16 %v6744
    %v7015 = vunpack.c.l.b16 %v6745
    %v7016 = vunpack.c.h.b16 %v6745
    %v7017 = vunpack.c.l.b16 %v6746
    %v7018 = vunpack.c.h.b16 %v6746
    %v7019 = vunpack.c.l.b16 %v6747
    %v7020 = vunpack.c.h.b16 %v6747
    %v7021 = vunpack.c.l.b16 %v6748
    %v7022 = vunpack.c.h.b16 %v6748
    %v7023 = vunpack.c.l.b16 %v6749
    %v7024 = vunpack.c.h.b16 %v6749
    %v7025 = vunpack.c.l.b16 %v6750
    %v7026 = vunpack.c.h.b16 %v6750
    %v7027 = vunpack.c.l.b16 %v6751
    %v7028 = vunpack.c.h.b16 %v6751
    %v7029 = vunpack.c.l.b16 %v6752
    %v7030 = vunpack.c.h.b16 %v6752
    %v7031 = vunpack.c.l.b16 %v6753
    %v7032 = vunpack.c.h.b16 %v6753
    %v7033 = vunpack.c.l.b16 %v6754
    %v7034 = vunpack.c.h.b16 %v6754
    %v7035 = vunpack.c.l.b16 %v6755
    %v7036 = vunpack.c.h.b16 %v6755
    %v7037 = vunpack.c.l.b16 %v6756
    %v7038 = vunpack.c.h.b16 %v6756
    %v7039 = vunpack.c.l.b16 %v6757
    %v7040 = vunpack.c.h.b16 %v6757
    %v7041 = vunpack.c.l.b16 %v6758
    %v7042 = vunpack.c.h.b16 %v6758
    %v7043 = vunpack.c.l.b16 %v6759
    %v7044 = vunpack.c.h.b16 %v6759
    %v7045 = vunpack.c.l.b16 %v6760
    %v7046 = vunpack.c.h.b16 %v6760
    %v7047 = vunpack.c.l.b16 %v6761
    %v7048 = vunpack.c.h.b16 %v6761
    %v7049 = vunpack.c.l.b16 %v6762
    %v7050 = vunpack.c.h.b16 %v6762
    %v7051 = vunpack.c.l.b16 %v6763
    %v7052 = vunpack.c.h.b16 %v6763
    %v7053 = vunpack.c.l.b16 %v6764
    %v7054 = vunpack.c.h.b16 %v6764
    %v7055 = vunpack.c.l.b16 %v6765
    %v7056 = vunpack.c.h.b16 %v6765
    %v7057 = vunpack.c.l.b16 %v6766
    %v7058 = vunpack.c.h.b16 %v6766
    %v7059 = vunpack.c.l.b16 %v6767
    %v7060 = vunpack.c.h.b16 %v6767
    %v7061 = vunpack.c.l.b16 %v6768
    %v7062 = vunpack.c.h.b16 %v6768
    %v7063 = vunpack.c.l.b16 %v6769
    %v7064 = vunpack.c.h.b16 %v6769
    %v7065 = vunpack.c.l.b16 %v6770
    %v7066 = vunpack.c.h.b16 %v6770
    %v7067 = vunpack.c.l.b16 %v6771
    %v7068 = vunpack.c.h.b16 %v6771
    %v7069 = vunpack.c.l.b16 %v6772
    %v7070 = vunpack.c.h.b16 %v6772
    %v7071 = vunpack.c.l.b16 %v6773
    %v7072 = vunpack.c.h.b16 %v6773
    %v7073 = vunpack.c.l.b16 %v6774
    %v7074 = vunpack.c.h.b16 %v6774
    %v7075 = vunpack.c.l.b16 %v6775
    %v7076 = vunpack.c.h.b16 %v6775
    %v7077 = vunpack.c.l.b16 %v6776
    %v7078 = vunpack.c.h.b16 %v6776
    %v7079 = vunpack.c.l.b16 %v6777
    %v7080 = vunpack.c.h.b16 %v6777
    %v7081 = vunpack.c.l.b16 %v6778
    %v7082 = vunpack.c.h.b16 %v6778
    %v7083 = vunpack.c.l.b16 %v6779
    %v7084 = vunpack.c.h.b16 %v6779
    %v7085 = vunpack.c.l.b16 %v6780
    %v7086 = vunpack.c.h.b16 %v6780
    %v7087 = vunpack.c.l.b16 %v6781
    %v7088 = vunpack.c.h.b16 %v6781
    %v7089 = vunpack.c.l.b16 %v6782
    %v7090 = vunpack.c.h.b16 %v6782
    %v7091 = vunpack.c.l.b16 %v6783
    %v7092 = vunpack.c.h.b16 %v6783
    %v7093 = vunpack.c.l.b16 %v6784
    %v7094 = vunpack.c.h.b16 %v6784
    %v7095 = vunpack.c.l.b16 %v6785
    %v7096 = vunpack.c.h.b16 %v6785
    %v7097 = vunpack.c.l.b16 %v6786
    %v7098 = vunpack.c.h.b16 %v6786
    %v7099 = vunpack.c.l.b16 %v6787
    %v7100 = vunpack.c.h.b16 %v6787
    %v7101 = vunpack.c.l.b16 %v6788
    %v7102 = vunpack.c.h.b16 %v6788
    %v7103 = vunpack.c.l.b16 %v6789
    %v7104 = vunpack.c.h.b16 %v6789
    %v7105 = vunpack.c.l.b16 %v6790
    %v7106 = vunpack.c.h.b16 %v6790
    %v7107 = vunpack.c.l.b16 %v6791
    %v7108 = vunpack.c.h.b16 %v6791
    %v7109 = vunpack.c.l.b16 %v6792
    %v7110 = vunpack.c.h.b16 %v6792
    %v7111 = vunpack.c.l.b16 %v6793
    %v7112 = vunpack.c.h.b16 %v6793
    %v7113 = vunpack.c.l.b16 %v6794
    %v7114 = vunpack.c.h.b16 %v6794
    %v7115 = vunpack.c.l.b16 %v6795
    %v7116 = vunpack.c.h.b16 %v6795
    %v7117 = vunpack.c.l.b16 %v6796
    %v7118 = vunpack.c.h.b16 %v6796
    %v7119 = vunpack.c.l.b16 %v6797
    %v7120 = vunpack.c.h.b16 %v6797
    %v7121 = vunpack.c.l.b16 %v6798
    %v7122 = vunpack.c.h.b16 %v6798
    %v7123 = vunpack.c.l.b16 %v6799
    %v7124 = vunpack.c.h.b16 %v6799
    %v7125 = vunpack.c.l.b16 %v6800
    %v7126 = vunpack.c.h.b16 %v6800
    %v7127 = vunpack.c.l.b16 %v6801
    %v7128 = vunpack.c.h.b16 %v6801
    %v7129 = vunpack.c.l.b16 %v6802
    %v7130 = vunpack.c.h.b16 %v6802
    %v7131 = vunpack.c.l.b16 %v6803
    %v7132 = vunpack.c.h.b16 %v6803
    %v7133 = vunpack.c.l.b16 %v6804
    %v7134 = vunpack.c.h.b16 %v6804
    %v7135 = vunpack.c.l.b16 %v6805
    %v7136 = vunpack.c.h.b16 %v6805
    %v7137 = vunpack.c.l.b16 %v6806
    %v7138 = vunpack.c.h.b16 %v6806
    %v7139 = vunpack.c.l.b16 %v6807
    %v7140 = vunpack.c.h.b16 %v6807
    %v7141 = vunpack.c.l.b16 %v6808
    %v7142 = vunpack.c.h.b16 %v6808
    %v7143 = vunpack.c.l.b16 %v6809
    %v7144 = vunpack.c.h.b16 %v6809
    %v7145 = vunpack.c.l.b16 %v6810
    %v7146 = vunpack.c.h.b16 %v6810
    %v7147 = vunpack.c.l.b16 %v6811
    %v7148 = vunpack.c.h.b16 %v6811
    %v7149 = vunpack.c.l.b16 %v6812
    %v7150 = vunpack.c.h.b16 %v6812
    %v7151 = vunpack.c.l.b16 %v6813
    %v7152 = vunpack.c.h.b16 %v6813
    %v7153 = vunpack.c.l.b16 %v6814
    %v7154 = vunpack.c.h.b16 %v6814
    %v7155 = vunpack.c.l.b16 %v6815
    %v7156 = vunpack.c.h.b16 %v6815
    %v7157 = vunpack.c.l.b16 %v6816
    %v7158 = vunpack.c.h.b16 %v6816
    %v7159 = vunpack.c.l.b16 %v6817
    %v7160 = vunpack.c.h.b16 %v6817
    %v7161 = vunpack.c.l.b16 %v6818
    %v7162 = vunpack.c.h.b16 %v6818
    %v7163 = vunpack.c.l.b16 %v6819
    %v7164 = vunpack.c.h.b16 %v6819
    %v7165 = vunpack.c.l.b16 %v6820
    %v7166 = vunpack.c.h.b16 %v6820
    %v7167 = vunpack.c.l.b16 %v6821
    %v7168 = vunpack.c.h.b16 %v6821
    %v7169 = vunpack.c.l.b16 %v6822
    %v7170 = vunpack.c.h.b16 %v6822
    %v7171 = vunpack.c.l.b16 %v6823
    %v7172 = vunpack.c.h.b16 %v6823
    %v7173 = vunpack.c.l.b16 %v6824
    %v7174 = vunpack.c.h.b16 %v6824
    %v7175 = vunpack.c.l.b16 %v6825
    %v7176 = vunpack.c.h.b16 %v6825
    %v7177 = vunpack.c.l.b16 %v6826
    %v7178 = vunpack.c.h.b16 %v6826
    %v7179 = vunpack.c.l.b16 %v6827
    %v7180 = vunpack.c.h.b16 %v6827
    %v7181 = vunpack.c.l.b16 %v6828
    %v7182 = vunpack.c.h.b16 %v6828
    %v7183 = vunpack.c.l.b16 %v6829
    %v7184 = vunpack.c.h.b16 %v6829
    %v7185 = vunpack.c.l.b16 %v6830
    %v7186 = vunpack.c.h.b16 %v6830
    %v7187 = vunpack.c.l.b16 %v6831
    %v7188 = vunpack.c.h.b16 %v6831
    %v7189 = vunpack.c.l.b16 %v6832
    %v7190 = vunpack.c.h.b16 %v6832
    %v7191 = vunpack.c.l.b16 %v6833
    %v7192 = vunpack.c.h.b16 %v6833
    %v7193 = vunpack.c.l.b16 %v6834
    %v7194 = vunpack.c.h.b16 %v6834
    %v7195 = vunpack.c.l.b16 %v6835
    %v7196 = vunpack.c.h.b16 %v6835
    %v7197 = vunpack.c.l.b16 %v6836
    %v7198 = vunpack.c.h.b16 %v6836
    %v7199 = vunpack.c.l.b16 %v6837
    %v7200 = vunpack.c.h.b16 %v6837
    %v7201 = vunpack.c.l.b16 %v6838
    %v7202 = vunpack.c.h.b16 %v6838
    %v7203 = vunpack.c.l.b16 %v6839
    %v7204 = vunpack.c.h.b16 %v6839
    %v7205 = vunpack.c.l.b16 %v6840
    %v7206 = vunpack.c.h.b16 %v6840
    %v7207 = vunpack.c.l.b16 %v6841
    %v7208 = vunpack.c.h.b16 %v6841
    %v7209 = vunpack.c.l.b16 %v6842
    %v7210 = vunpack.c.h.b16 %v6842
    %v7211 = vunpack.c.l.b16 %v6843
    %v7212 = vunpack.c.h.b16 %v6843
    %v7213 = vunpack.c.l.b16 %v6844
    %v7214 = vunpack.c.h.b16 %v6844
    %v7215 = vunpack.c.l.b16 %v6845
    %v7216 = vunpack.c.h.b16 %v6845
    %v7217 = vunpack.c.l.b16 %v6846
    %v7218 = vunpack.c.h.b16 %v6846
    %v7219 = vunpack.c.l.b16 %v6847
    %v7220 = vunpack.c.h.b16 %v6847
    %v7221 = vunpack.c.l.b16 %v6848
    %v7222 = vunpack.c.h.b16 %v6848
    %v7223 = vunpack.c.l.b16 %v6849
    %v7224 = vunpack.c.h.b16 %v6849
    %v7225 = vunpack.c.l.b16 %v6850
    %v7226 = vunpack.c.h.b16 %v6850
    %v7227 = vunpack.c.l.b16 %v6851
    %v7228 = vunpack.c.h.b16 %v6851
    %v7229 = vunpack.c.l.b16 %v6852
    %v7230 = vunpack.c.h.b16 %v6852
    %v7231 = vunpack.c.l.b16 %v6853
    %v7232 = vunpack.c.h.b16 %v6853
    %v7233 = vunpack.c.l.b16 %v6854
    %v7234 = vunpack.c.h.b16 %v6854
    %v7235 = vunpack.c.l.b16 %v6855
    %v7236 = vunpack.c.h.b16 %v6855
    %v7237 = vunpack.c.l.b16 %v6856
    %v7238 = vunpack.c.h.b16 %v6856
    %v7239 = vunpack.c.l.b16 %v6857
    %v7240 = vunpack.c.h.b16 %v6857
    %v7241 = vunpack.c.l.b16 %v6858
    %v7242 = vunpack.c.h.b16 %v6858
    %v7243 = vpack.c.b16 %v6991, %v6987
    %v7244 = vpack.c.b16 %v6992, %v6988
    %v7245 = vpack.c.b16 %v6993, %v6989
    %v7246 = vpack.c.b16 %v6994, %v6990
    %v7247 = vpack.c.b16 %v6999, %v6995
    %v7248 = vpack.c.b16 %v7000, %v6996
    %v7249 = vpack.c.b16 %v7001, %v6997
    %v7250 = vpack.c.b16 %v7002, %v6998
    %v7251 = vpack.c.b16 %v7007, %v7003
    %v7252 = vpack.c.b16 %v7008, %v7004
    %v7253 = vpack.c.b16 %v7009, %v7005
    %v7254 = vpack.c.b16 %v7010, %v7006
    %v7255 = vpack.c.b16 %v7015, %v7011
    %v7256 = vpack.c.b16 %v7016, %v7012
    %v7257 = vpack.c.b16 %v7017, %v7013
    %v7258 = vpack.c.b16 %v7018, %v7014
    %v7259 = vpack.c.b16 %v7023, %v7019
    %v7260 = vpack.c.b16 %v7024, %v7020
    %v7261 = vpack.c.b16 %v7025, %v7021
    %v7262 = vpack.c.b16 %v7026, %v7022
    %v7263 = vpack.c.b16 %v7031, %v7027
    %v7264 = vpack.c.b16 %v7032, %v7028
    %v7265 = vpack.c.b16 %v7033, %v7029
    %v7266 = vpack.c.b16 %v7034, %v7030
    %v7267 = vpack.c.b16 %v7039, %v7035
    %v7268 = vpack.c.b16 %v7040, %v7036
    %v7269 = vpack.c.b16 %v7041, %v7037
    %v7270 = vpack.c.b16 %v7042, %v7038
    %v7271 = vpack.c.b16 %v7047, %v7043
    %v7272 = vpack.c.b16 %v7048, %v7044
    %v7273 = vpack.c.b16 %v7049, %v7045
    %v7274 = vpack.c.b16 %v7050, %v7046
    %v7275 = vpack.c.b16 %v7055, %v7051
    %v7276 = vpack.c.b16 %v7056, %v7052
    %v7277 = vpack.c.b16 %v7057, %v7053
    %v7278 = vpack.c.b16 %v7058, %v7054
    %v7279 = vpack.c.b16 %v7063, %v7059
    %v7280 = vpack.c.b16 %v7064, %v7060
    %v7281 = vpack.c.b16 %v7065, %v7061
    %v7282 = vpack.c.b16 %v7066, %v7062
    %v7283 = vpack.c.b16 %v7071, %v7067
    %v7284 = vpack.c.b16 %v7072, %v7068
    %v7285 = vpack.c.b16 %v7073, %v7069
    %v7286 = vpack.c.b16 %v7074, %v7070
    %v7287 = vpack.c.b16 %v7079, %v7075
    %v7288 = vpack.c.b16 %v7080, %v7076
    %v7289 = vpack.c.b16 %v7081, %v7077
    %v7290 = vpack.c.b16 %v7082, %v7078
    %v7291 = vpack.c.b16 %v7087, %v7083
    %v7292 = vpack.c.b16 %v7088, %v7084
    %v7293 = vpack.c.b16 %v7089, %v7085
    %v7294 = vpack.c.b16 %v7090, %v7086
    %v7295 = vpack.c.b16 %v7095, %v7091
    %v7296 = vpack.c.b16 %v7096, %v7092
    %v7297 = vpack.c.b16 %v7097, %v7093
    %v7298 = vpack.c.b16 %v7098, %v7094
    %v7299 = vpack.c.b16 %v7103, %v7099
    %v7300 = vpack.c.b16 %v7104, %v7100
    %v7301 = vpack.c.b16 %v7105, %v7101
    %v7302 = vpack.c.b16 %v7106, %v7102
    %v7303 = vpack.c.b16 %v7111, %v7107
    %v7304 = vpack.c.b16 %v7112, %v7108
    %v7305 = vpack.c.b16 %v7113, %v7109
    %v7306 = vpack.c.b16 %v7114, %v7110
    %v7307 = vpack.c.b16 %v7119, %v7115
    %v7308 = vpack.c.b16 %v7120, %v7116
    %v7309 = vpack.c.b16 %v7121, %v7117
    %v7310 = vpack.c.b16 %v7122, %v7118
    %v7311 = vpack.c.b16 %v7127, %v7123
    %v7312 = vpack.c.b16 %v7128, %v7124
    %v7313 = vpack.c.b16 %v7129, %v7125
    %v7314 = vpack.c.b16 %v7130, %v7126
    %v7315 = vpack.c.b16 %v7135, %v7131
    %v7316 = vpack.c.b16 %v7136, %v7132
    %v7317 = vpack.c.b16 %v7137, %v7133
    %v7318 = vpack.c.b16 %v7138, %v7134
    %v7319 = vpack.c.b16 %v7143, %v7139
    %v7320 = vpack.c.b16 %v7144, %v7140
    %v7321 = vpack.c.b16 %v7145, %v7141
    %v7322 = vpack.c.b16 %v7146, %v7142
    %v7323 = vpack.c.b16 %v7151, %v7147
    %v7324 = vpack.c.b16 %v7152, %v7148
    %v7325 = vpack.c.b16 %v7153, %v7149
    %v7326 = vpack.c.b16 %v7154, %v7150
    %v7327 = vpack.c.b16 %v7159, %v7155
    %v7328 = vpack.c.b16 %v7160, %v7156
    %v7329 = vpack.c.b16 %v7161, %v7157
    %v7330 = vpack.c.b16 %v7162, %v7158
    %v7331 = vpack.c.b16 %v7167, %v7163
    %v7332 = vpack.c.b16 %v7168, %v7164
    %v7333 = vpack.c.b16 %v7169, %v7165
    %v7334 = vpack.c.b16 %v7170, %v7166
    %v7335 = vpack.c.b16 %v7175, %v7171
    %v7336 = vpack.c.b16 %v7176, %v7172
    %v7337 = vpack.c.b16 %v7177, %v7173
    %v7338 = vpack.c.b16 %v7178, %v7174
    %v7339 = vpack.c.b16 %v7183, %v7179
    %v7340 = vpack.c.b16 %v7184, %v7180
    %v7341 = vpack.c.b16 %v7185, %v7181
    %v7342 = vpack.c.b16 %v7186, %v7182
    %v7343 = vpack.c.b16 %v7191, %v7187
    %v7344 = vpack.c.b16 %v7192, %v7188
    %v7345 = vpack.c.b16 %v7193, %v7189
    %v7346 = vpack.c.b16 %v7194, %v7190
    %v7347 = vpack.c.b16 %v7199, %v7195
    %v7348 = vpack.c.b16 %v7200, %v7196
    %v7349 = vpack.c.b16 %v7201, %v7197
    %v7350 = vpack.c.b16 %v7202, %v7198
    %v7351 = vpack.c.b16 %v7207, %v7203
    %v7352 = vpack.c.b16 %v7208, %v7204
    %v7353 = vpack.c.b16 %v7209, %v7205
    %v7354 = vpack.c.b16 %v7210, %v7206
    %v7355 = vpack.c.b16 %v7215, %v7211
    %v7356 = vpack.c.b16 %v7216, %v7212
    %v7357 = vpack.c.b16 %v7217, %v7213
    %v7358 = vpack.c.b16 %v7218, %v7214
    %v7359 = vpack.c.b16 %v7223, %v7219
    %v7360 = vpack.c.b16 %v7224, %v7220
    %v7361 = vpack.c.b16 %v7225, %v7221
    %v7362 = vpack.c.b16 %v7226, %v7222
    %v7363 = vpack.c.b16 %v7231, %v7227
    %v7364 = vpack.c.b16 %v7232, %v7228
    %v7365 = vpack.c.b16 %v7233, %v7229
    %v7366 = vpack.c.b16 %v7234, %v7230
    %v7367 = vpack.c.b16 %v7239, %v7235
    %v7368 = vpack.c.b16 %v7240, %v7236
    %v7369 = vpack.c.b16 %v7241, %v7237
    %v7370 = vpack.c.b16 %v7242, %v7238
    %7499 = vmatprep.subr.bf16.mxu0 %v7244
    %7500 = vmatpush1.bf16.msra.mxu0 %v7243
    %7501 = vmatprep.subr.bf16.mxu0 %v7248
    %7502 = vmatpush1.bf16.msra.mxu0 %v7247
    %7503 = vmatprep.subr.bf16.mxu0 %v7252
    %7504 = vmatpush1.bf16.msra.mxu0 %v7251
    %7505 = vmatprep.subr.bf16.mxu0 %v7256
    %7506 = vmatpush1.bf16.msra.mxu0 %v7255
    %7507 = vmatprep.subr.bf16.mxu0 %v7260
    %7508 = vmatpush1.bf16.msra.mxu0 %v7259
    %7509 = vmatprep.subr.bf16.mxu0 %v7264
    %7510 = vmatpush1.bf16.msra.mxu0 %v7263
    %7511 = vmatprep.subr.bf16.mxu0 %v7268
    %7512 = vmatpush1.bf16.msra.mxu0 %v7267
    %7513 = vmatprep.subr.bf16.mxu0 %v7272
    %7514 = vmatpush1.bf16.msra.mxu0 %v7271
    %7515 = vmatprep.subr.bf16.mxu0 %v7276
    %7516 = vmatpush1.bf16.msra.mxu0 %v7275
    %7517 = vmatprep.subr.bf16.mxu0 %v7280
    %7518 = vmatpush1.bf16.msra.mxu0 %v7279
    %7519 = vmatprep.subr.bf16.mxu0 %v7284
    %7520 = vmatpush1.bf16.msra.mxu0 %v7283
    %7521 = vmatprep.subr.bf16.mxu0 %v7288
    %7522 = vmatpush1.bf16.msra.mxu0 %v7287
    %7523 = vmatprep.subr.bf16.mxu0 %v7292
    %7524 = vmatpush1.bf16.msra.mxu0 %v7291
    %7525 = vmatprep.subr.bf16.mxu0 %v7296
    %7526 = vmatpush1.bf16.msra.mxu0 %v7295
    %7527 = vmatprep.subr.bf16.mxu0 %v7300
    %7528 = vmatpush1.bf16.msra.mxu0 %v7299
    %7529 = vmatprep.subr.bf16.mxu0 %v7304
    %7530 = vmatpush1.bf16.msra.mxu0 %v7303
    %7531 = vmatprep.mubr.bf16.mxu0 %v6700
    %7532 = vmatmul.mubr.bf16.gmra.mrb[0].mxu0 %v6699
    %v7533 = vpop.f32.mrb[0].mxu0
    %v7534 = vadd.f32 0.0, %v7533
    %v7535 = vpop.f32.mrb[0].mxu0
    %v7536 = vadd.f32 0.0, %v7535
    %v7537 = vpop.f32.mrb[0].mxu0
    %v7538 = vadd.f32 0.0, %v7537
    %v7539 = vpop.f32.mrb[0].mxu0
    %v7540 = vadd.f32 0.0, %v7539
    %7541 = vmatprep.mubr.bf16.mxu0 %v6704
    %7542 = vmatmul.mubr.bf16.gmra.mrb[0].mxu0 %v6703
    %v7543 = vpop.f32.mrb[0].mxu0
    %v7544 = vadd.f32 0.0, %v7543
    %v7545 = vpop.f32.mrb[0].mxu0
    %v7546 = vadd.f32 0.0, %v7545
    %v7547 = vpop.f32.mrb[0].mxu0
    %v7548 = vadd.f32 0.0, %v7547
    %v7549 = vpop.f32.mrb[0].mxu0
    %v7550 = vadd.f32 0.0, %v7549
    %7551 = vmatprep.mubr.bf16.mxu0 %v6708
    %7552 = vmatmul.mubr.bf16.gmra.mrb[0].mxu0 %v6707
    %v7553 = vpop.f32.mrb[0].mxu0
    %v7554 = vadd.f32 0.0, %v7553
    %v7555 = vpop.f32.mrb[0].mxu0
    %v7556 = vadd.f32 0.0, %v7555
    %v7557 = vpop.f32.mrb[0].mxu0
    %v7558 = vadd.f32 0.0, %v7557
    %v7559 = vpop.f32.mrb[0].mxu0
    %v7560 = vadd.f32 0.0, %v7559
    %7561 = vmatprep.mubr.bf16.mxu0 %v6712
    %7562 = vmatmul.mubr.bf16.gmra.mrb[0].mxu0 %v6711
    %v7563 = vpop.f32.mrb[0].mxu0
    %v7564 = vadd.f32 0.0, %v7563
    %v7565 = vpop.f32.mrb[0].mxu0
    %v7566 = vadd.f32 0.0, %v7565
    %v7567 = vpop.f32.mrb[0].mxu0
    %v7568 = vadd.f32 0.0, %v7567
    %v7569 = vpop.f32.mrb[0].mxu0
    %v7570 = vadd.f32 0.0, %v7569
    %7571 = vmatprep.mubr.bf16.mxu0 %v6716
    %7572 = vmatmul.mubr.bf16.gmra.mrb[0].mxu0 %v6715
    %v7573 = vpop.f32.mrb[0].mxu0
    %v7574 = vadd.f32 0.0, %v7573
    %v7575 = vpop.f32.mrb[0].mxu0
    %v7576 = vadd.f32 0.0, %v7575
    %v7577 = vpop.f32.mrb[0].mxu0
    %v7578 = vadd.f32 0.0, %v7577
    %v7579 = vpop.f32.mrb[0].mxu0
    %v7580 = vadd.f32 0.0, %v7579
    %7581 = vmatprep.mubr.bf16.mxu0 %v6720
    %7582 = vmatmul.mubr.bf16.gmra.mrb[0].mxu0 %v6719
    %v7583 = vpop.f32.mrb[0].mxu0
    %v7584 = vadd.f32 0.0, %v7583
    %v7585 = vpop.f32.mrb[0].mxu0
    %v7586 = vadd.f32 0.0, %v7585
    %v7587 = vpop.f32.mrb[0].mxu0
    %v7588 = vadd.f32 0.0, %v7587
    %v7589 = vpop.f32.mrb[0].mxu0
    %v7590 = vadd.f32 0.0, %v7589
    %7591 = vmatprep.mubr.bf16.mxu0 %v6724
    %7592 = vmatmul.mubr.bf16.gmra.mrb[0].mxu0 %v6723
    %v7593 = vpop.f32.mrb[0].mxu0
    %v7594 = vadd.f32 0.0, %v7593
    %v7595 = vpop.f32.mrb[0].mxu0
    %v7596 = vadd.f32 0.0, %v7595
    %v7597 = vpop.f32.mrb[0].mxu0
    %v7598 = vadd.f32 0.0, %v7597
    %v7599 = vpop.f32.mrb[0].mxu0
    %v7600 = vadd.f32 0.0, %v7599
    %7601 = vmatprep.mubr.bf16.mxu0 %v6728
    %7602 = vmatmul.mubr.bf16.gmra.mrb[0].mxu0 %v6727
    %v7603 = vpop.f32.mrb[0].mxu0
    %v7604 = vadd.f32 0.0, %v7603
    %v7605 = vpop.f32.mrb[0].mxu0
    %v7606 = vadd.f32 0.0, %v7605
    %v7607 = vpop.f32.mrb[0].mxu0
    %v7608 = vadd.f32 0.0, %v7607
    %v7609 = vpop.f32.mrb[0].mxu0
    %v7610 = vadd.f32 0.0, %v7609
    %7611 = vdwg.mxu0
    %7612 = vmatprep.subr.bf16.mxu0 %v7308
    %7613 = vmatpush1.bf16.msra.mxu0 %v7307
    %7614 = vmatprep.subr.bf16.mxu0 %v7312
    %7615 = vmatpush1.bf16.msra.mxu0 %v7311
    %7616 = vmatprep.subr.bf16.mxu0 %v7316
    %7617 = vmatpush1.bf16.msra.mxu0 %v7315
    %7618 = vmatprep.subr.bf16.mxu0 %v7320
    %7619 = vmatpush1.bf16.msra.mxu0 %v7319
    %7620 = vmatprep.subr.bf16.mxu0 %v7324
    %7621 = vmatpush1.bf16.msra.mxu0 %v7323
    %7622 = vmatprep.subr.bf16.mxu0 %v7328
    %7623 = vmatpush1.bf16.msra.mxu0 %v7327
    %7624 = vmatprep.subr.bf16.mxu0 %v7332
    %7625 = vmatpush1.bf16.msra.mxu0 %v7331
    %7626 = vmatprep.subr.bf16.mxu0 %v7336
    %7627 = vmatpush1.bf16.msra.mxu0 %v7335
    %7628 = vmatprep.subr.bf16.mxu0 %v7340
    %7629 = vmatpush1.bf16.msra.mxu0 %v7339
    %7630 = vmatprep.subr.bf16.mxu0 %v7344
    %7631 = vmatpush1.bf16.msra.mxu0 %v7343
    %7632 = vmatprep.subr.bf16.mxu0 %v7348
    %7633 = vmatpush1.bf16.msra.mxu0 %v7347
    %7634 = vmatprep.subr.bf16.mxu0 %v7352
    %7635 = vmatpush1.bf16.msra.mxu0 %v7351
    %7636 = vmatprep.subr.bf16.mxu0 %v7356
    %7637 = vmatpush1.bf16.msra.mxu0 %v7355
    %7638 = vmatprep.subr.bf16.mxu0 %v7360
    %7639 = vmatpush1.bf16.msra.mxu0 %v7359
    %7640 = vmatprep.subr.bf16.mxu0 %v7364
    %7641 = vmatpush1.bf16.msra.mxu0 %v7363
    %7642 = vmatprep.subr.bf16.mxu0 %v7368
    %7643 = vmatpush1.bf16.msra.mxu0 %v7367
    %7644 = vmatprep.mubr.bf16.mxu0 %v6702
    %7645 = vmatmul.mubr.bf16.gmra.mrb[0].mxu0 %v6701
    %v7646 = vpop.f32.mrb[0].mxu0
    %v7647 = vadd.f32 %v7534, %v7646
    %v7648 = vpop.f32.mrb[0].mxu0
    %v7649 = vadd.f32 %v7536, %v7648
    %v7650 = vpop.f32.mrb[0].mxu0
    %v7651 = vadd.f32 %v7538, %v7650
    %v7652 = vpop.f32.mrb[0].mxu0
    %v7653 = vadd.f32 %v7540, %v7652
    %7654 = vmatprep.mubr.bf16.mxu0 %v6706
    %7655 = vmatmul.mubr.bf16.gmra.mrb[0].mxu0 %v6705
    %v7656 = vpop.f32.mrb[0].mxu0
    %v7657 = vadd.f32 %v7544, %v7656
    %v7658 = vpop.f32.mrb[0].mxu0
    %v7659 = vadd.f32 %v7546, %v7658
    %v7660 = vpop.f32.mrb[0].mxu0
    %v7661 = vadd.f32 %v7548, %v7660
    %v7662 = vpop.f32.mrb[0].mxu0
    %v7663 = vadd.f32 %v7550, %v7662
    %7664 = vmatprep.mubr.bf16.mxu0 %v6710
    %7665 = vmatmul.mubr.bf16.gmra.mrb[0].mxu0 %v6709
    %v7666 = vpop.f32.mrb[0].mxu0
    %v7667 = vadd.f32 %v7554, %v7666
    %v7668 = vpop.f32.mrb[0].mxu0
    %v7669 = vadd.f32 %v7556, %v7668
    %v7670 = vpop.f32.mrb[0].mxu0
    %v7671 = vadd.f32 %v7558, %v7670
    %v7672 = vpop.f32.mrb[0].mxu0
    %v7673 = vadd.f32 %v7560, %v7672
    %7674 = vmatprep.mubr.bf16.mxu0 %v6714
    %7675 = vmatmul.mubr.bf16.gmra.mrb[0].mxu0 %v6713
    %v7676 = vpop.f32.mrb[0].mxu0
    %v7677 = vadd.f32 %v7564, %v7676
    %v7678 = vpop.f32.mrb[0].mxu0
    %v7679 = vadd.f32 %v7566, %v7678
    %v7680 = vpop.f32.mrb[0].mxu0
    %v7681 = vadd.f32 %v7568, %v7680
    %v7682 = vpop.f32.mrb[0].mxu0
    %v7683 = vadd.f32 %v7570, %v7682
    %7684 = vmatprep.mubr.bf16.mxu0 %v6718
    %7685 = vmatmul.mubr.bf16.gmra.mrb[0].mxu0 %v6717
    %v7686 = vpop.f32.mrb[0].mxu0
    %v7687 = vadd.f32 %v7574, %v7686
    %v7688 = vpop.f32.mrb[0].mxu0
    %v7689 = vadd.f32 %v7576, %v7688
    %v7690 = vpop.f32.mrb[0].mxu0
    %v7691 = vadd.f32 %v7578, %v7690
    %v7692 = vpop.f32.mrb[0].mxu0
    %v7693 = vadd.f32 %v7580, %v7692
    %7694 = vmatprep.mubr.bf16.mxu0 %v6722
    %7695 = vmatmul.mubr.bf16.gmra.mrb[0].mxu0 %v6721
    %v7696 = vpop.f32.mrb[0].mxu0
    %v7697 = vadd.f32 %v7584, %v7696
    %v7698 = vpop.f32.mrb[0].mxu0
    %v7699 = vadd.f32 %v7586, %v7698
    %v7700 = vpop.f32.mrb[0].mxu0
    %v7701 = vadd.f32 %v7588, %v7700
    %v7702 = vpop.f32.mrb[0].mxu0
    %v7703 = vadd.f32 %v7590, %v7702
    %7704 = vmatprep.mubr.bf16.mxu0 %v6726
    %7705 = vmatmul.mubr.bf16.gmra.mrb[0].mxu0 %v6725
    %v7706 = vpop.f32.mrb[0].mxu0
    %v7707 = vadd.f32 %v7594, %v7706
    %v7708 = vpop.f32.mrb[0].mxu0
    %v7709 = vadd.f32 %v7596, %v7708
    %v7710 = vpop.f32.mrb[0].mxu0
    %v7711 = vadd.f32 %v7598, %v7710
    %v7712 = vpop.f32.mrb[0].mxu0
    %v7713 = vadd.f32 %v7600, %v7712
    %7714 = vmatprep.mubr.bf16.mxu0 %v6730
    %7715 = vmatmul.mubr.bf16.gmra.mrb[0].mxu0 %v6729
    %v7716 = vpop.f32.mrb[0].mxu0
    %v7717 = vadd.f32 %v7604, %v7716
    %v7718 = vpop.f32.mrb[0].mxu0
    %v7719 = vadd.f32 %v7606, %v7718
    %v7720 = vpop.f32.mrb[0].mxu0
    %v7721 = vadd.f32 %v7608, %v7720
    %v7722 = vpop.f32.mrb[0].mxu0
    %v7723 = vadd.f32 %v7610, %v7722
    %7724 = vdwg.mxu0
    %7725 = vmatprep.subr.bf16.mxu0 %v7246
    %7726 = vmatpush1.bf16.msra.mxu0 %v7245
    %7727 = vmatprep.subr.bf16.mxu0 %v7250
    %7728 = vmatpush1.bf16.msra.mxu0 %v7249
    %7729 = vmatprep.subr.bf16.mxu0 %v7254
    %7730 = vmatpush1.bf16.msra.mxu0 %v7253
    %7731 = vmatprep.subr.bf16.mxu0 %v7258
    %7732 = vmatpush1.bf16.msra.mxu0 %v7257
    %7733 = vmatprep.subr.bf16.mxu0 %v7262
    %7734 = vmatpush1.bf16.msra.mxu0 %v7261
    %7735 = vmatprep.subr.bf16.mxu0 %v7266
    %7736 = vmatpush1.bf16.msra.mxu0 %v7265
    %7737 = vmatprep.subr.bf16.mxu0 %v7270
    %7738 = vmatpush1.bf16.msra.mxu0 %v7269
    %7739 = vmatprep.subr.bf16.mxu0 %v7274
    %7740 = vmatpush1.bf16.msra.mxu0 %v7273
    %7741 = vmatprep.subr.bf16.mxu0 %v7278
    %7742 = vmatpush1.bf16.msra.mxu0 %v7277
    %7743 = vmatprep.subr.bf16.mxu0 %v7282
    %7744 = vmatpush1.bf16.msra.mxu0 %v7281
    %7745 = vmatprep.subr.bf16.mxu0 %v7286
    %7746 = vmatpush1.bf16.msra.mxu0 %v7285
    %7747 = vmatprep.subr.bf16.mxu0 %v7290
    %7748 = vmatpush1.bf16.msra.mxu0 %v7289
    %7749 = vmatprep.subr.bf16.mxu0 %v7294
    %7750 = vmatpush1.bf16.msra.mxu0 %v7293
    %7751 = vmatprep.subr.bf16.mxu0 %v7298
    %7752 = vmatpush1.bf16.msra.mxu0 %v7297
    %7753 = vmatprep.subr.bf16.mxu0 %v7302
    %7754 = vmatpush1.bf16.msra.mxu0 %v7301
    %7755 = vmatprep.subr.bf16.mxu0 %v7306
    %7756 = vmatpush1.bf16.msra.mxu0 %v7305
    %7757 = vmatprep.mubr.bf16.mxu0 %v6700
    %7758 = vmatmul.mubr.bf16.gmra.mrb[0].mxu0 %v6699
    %v7759 = vpop.f32.mrb[0].mxu0
    %v7760 = vadd.f32 0.0, %v7759
    %v7761 = vpop.f32.mrb[0].mxu0
    %v7762 = vadd.f32 0.0, %v7761
    %v7763 = vpop.f32.mrb[0].mxu0
    %v7764 = vadd.f32 0.0, %v7763
    %v7765 = vpop.f32.mrb[0].mxu0
    %v7766 = vadd.f32 0.0, %v7765
    %7767 = vmatprep.mubr.bf16.mxu0 %v6704
    %7768 = vmatmul.mubr.bf16.gmra.mrb[0].mxu0 %v6703
    %v7769 = vpop.f32.mrb[0].mxu0
    %v7770 = vadd.f32 0.0, %v7769
    %v7771 = vpop.f32.mrb[0].mxu0
    %v7772 = vadd.f32 0.0, %v7771
    %v7773 = vpop.f32.mrb[0].mxu0
    %v7774 = vadd.f32 0.0, %v7773
    %v7775 = vpop.f32.mrb[0].mxu0
    %v7776 = vadd.f32 0.0, %v7775
    %7777 = vmatprep.mubr.bf16.mxu0 %v6708
    %7778 = vmatmul.mubr.bf16.gmra.mrb[0].mxu0 %v6707
    %v7779 = vpop.f32.mrb[0].mxu0
    %v7780 = vadd.f32 0.0, %v7779
    %v7781 = vpop.f32.mrb[0].mxu0
    %v7782 = vadd.f32 0.0, %v7781
    %v7783 = vpop.f32.mrb[0].mxu0
    %v7784 = vadd.f32 0.0, %v7783
    %v7785 = vpop.f32.mrb[0].mxu0
    %v7786 = vadd.f32 0.0, %v7785
    %7787 = vmatprep.mubr.bf16.mxu0 %v6712
    %7788 = vmatmul.mubr.bf16.gmra.mrb[0].mxu0 %v6711
    %v7789 = vpop.f32.mrb[0].mxu0
    %v7790 = vadd.f32 0.0, %v7789
    %v7791 = vpop.f32.mrb[0].mxu0
    %v7792 = vadd.f32 0.0, %v7791
    %v7793 = vpop.f32.mrb[0].mxu0
    %v7794 = vadd.f32 0.0, %v7793
    %v7795 = vpop.f32.mrb[0].mxu0
    %v7796 = vadd.f32 0.0, %v7795
    %7797 = vmatprep.mubr.bf16.mxu0 %v6716
    %7798 = vmatmul.mubr.bf16.gmra.mrb[0].mxu0 %v6715
    %v7799 = vpop.f32.mrb[0].mxu0
    %v7800 = vadd.f32 0.0, %v7799
    %v7801 = vpop.f32.mrb[0].mxu0
    %v7802 = vadd.f32 0.0, %v7801
    %v7803 = vpop.f32.mrb[0].mxu0
    %v7804 = vadd.f32 0.0, %v7803
    %v7805 = vpop.f32.mrb[0].mxu0
    %v7806 = vadd.f32 0.0, %v7805
    %7807 = vmatprep.mubr.bf16.mxu0 %v6720
    %7808 = vmatmul.mubr.bf16.gmra.mrb[0].mxu0 %v6719
    %v7809 = vpop.f32.mrb[0].mxu0
    %v7810 = vadd.f32 0.0, %v7809
    %v7811 = vpop.f32.mrb[0].mxu0
    %v7812 = vadd.f32 0.0, %v7811
    %v7813 = vpop.f32.mrb[0].mxu0
    %v7814 = vadd.f32 0.0, %v7813
    %v7815 = vpop.f32.mrb[0].mxu0
    %v7816 = vadd.f32 0.0, %v7815
    %7817 = vmatprep.mubr.bf16.mxu0 %v6724
    %7818 = vmatmul.mubr.bf16.gmra.mrb[0].mxu0 %v6723
    %v7819 = vpop.f32.mrb[0].mxu0
    %v7820 = vadd.f32 0.0, %v7819
    %v7821 = vpop.f32.mrb[0].mxu0
    %v7822 = vadd.f32 0.0, %v7821
    %v7823 = vpop.f32.mrb[0].mxu0
    %v7824 = vadd.f32 0.0, %v7823
    %v7825 = vpop.f32.mrb[0].mxu0
    %v7826 = vadd.f32 0.0, %v7825
    %7827 = vmatprep.mubr.bf16.mxu0 %v6728
    %7828 = vmatmul.mubr.bf16.gmra.mrb[0].mxu0 %v6727
    %v7829 = vpop.f32.mrb[0].mxu0
    %v7830 = vadd.f32 0.0, %v7829
    %v7831 = vpop.f32.mrb[0].mxu0
    %v7832 = vadd.f32 0.0, %v7831
    %v7833 = vpop.f32.mrb[0].mxu0
    %v7834 = vadd.f32 0.0, %v7833
    %v7835 = vpop.f32.mrb[0].mxu0
    %v7836 = vadd.f32 0.0, %v7835
    %7837 = vdwg.mxu0
    %7838 = vmatprep.subr.bf16.mxu0 %v7310
    %7839 = vmatpush1.bf16.msra.mxu0 %v7309
    %7840 = vmatprep.subr.bf16.mxu0 %v7314
    %7841 = vmatpush1.bf16.msra.mxu0 %v7313
    %7842 = vmatprep.subr.bf16.mxu0 %v7318
    %7843 = vmatpush1.bf16.msra.mxu0 %v7317
    %7844 = vmatprep.subr.bf16.mxu0 %v7322
    %7845 = vmatpush1.bf16.msra.mxu0 %v7321
    %7846 = vmatprep.subr.bf16.mxu0 %v7326
    %7847 = vmatpush1.bf16.msra.mxu0 %v7325
    %7848 = vmatprep.subr.bf16.mxu0 %v7330
    %7849 = vmatpush1.bf16.msra.mxu0 %v7329
    %7850 = vmatprep.subr.bf16.mxu0 %v7334
    %7851 = vmatpush1.bf16.msra.mxu0 %v7333
    %7852 = vmatprep.subr.bf16.mxu0 %v7338
    %7853 = vmatpush1.bf16.msra.mxu0 %v7337
    %7854 = vmatprep.subr.bf16.mxu0 %v7342
    %7855 = vmatpush1.bf16.msra.mxu0 %v7341
    %7856 = vmatprep.subr.bf16.mxu0 %v7346
    %7857 = vmatpush1.bf16.msra.mxu0 %v7345
    %7858 = vmatprep.subr.bf16.mxu0 %v7350
    %7859 = vmatpush1.bf16.msra.mxu0 %v7349
    %7860 = vmatprep.subr.bf16.mxu0 %v7354
    %7861 = vmatpush1.bf16.msra.mxu0 %v7353
    %7862 = vmatprep.subr.bf16.mxu0 %v7358
    %7863 = vmatpush1.bf16.msra.mxu0 %v7357
    %7864 = vmatprep.subr.bf16.mxu0 %v7362
    %7865 = vmatpush1.bf16.msra.mxu0 %v7361
    %7866 = vmatprep.subr.bf16.mxu0 %v7366
    %7867 = vmatpush1.bf16.msra.mxu0 %v7365
    %7868 = vmatprep.subr.bf16.mxu0 %v7370
    %7869 = vmatpush1.bf16.msra.mxu0 %v7369
    %7870 = vmatprep.mubr.bf16.mxu0 %v6702
    %7871 = vmatmul.mubr.bf16.gmra.mrb[0].mxu0 %v6701
    %v7872 = vpop.f32.mrb[0].mxu0
    %v7873 = vadd.f32 %v7760, %v7872
    %v7874 = vpop.f32.mrb[0].mxu0
    %v7875 = vadd.f32 %v7762, %v7874
    %v7876 = vpop.f32.mrb[0].mxu0
    %v7877 = vadd.f32 %v7764, %v7876
    %v7878 = vpop.f32.mrb[0].mxu0
    %v7879 = vadd.f32 %v7766, %v7878
    %7880 = vmatprep.mubr.bf16.mxu0 %v6706
    %7881 = vmatmul.mubr.bf16.gmra.mrb[0].mxu0 %v6705
    %v7882 = vpop.f32.mrb[0].mxu0
    %v7883 = vadd.f32 %v7770, %v7882
    %v7884 = vpop.f32.mrb[0].mxu0
    %v7885 = vadd.f32 %v7772, %v7884
    %v7886 = vpop.f32.mrb[0].mxu0
    %v7887 = vadd.f32 %v7774, %v7886
    %v7888 = vpop.f32.mrb[0].mxu0
    %v7889 = vadd.f32 %v7776, %v7888
    %7890 = vmatprep.mubr.bf16.mxu0 %v6710
    %7891 = vmatmul.mubr.bf16.gmra.mrb[0].mxu0 %v6709
    %v7892 = vpop.f32.mrb[0].mxu0
    %v7893 = vadd.f32 %v7780, %v7892
    %v7894 = vpop.f32.mrb[0].mxu0
    %v7895 = vadd.f32 %v7782, %v7894
    %v7896 = vpop.f32.mrb[0].mxu0
    %v7897 = vadd.f32 %v7784, %v7896
    %v7898 = vpop.f32.mrb[0].mxu0
    %v7899 = vadd.f32 %v7786, %v7898
    %7900 = vmatprep.mubr.bf16.mxu0 %v6714
    %7901 = vmatmul.mubr.bf16.gmra.mrb[0].mxu0 %v6713
    %v7902 = vpop.f32.mrb[0].mxu0
    %v7903 = vadd.f32 %v7790, %v7902
    %v7904 = vpop.f32.mrb[0].mxu0
    %v7905 = vadd.f32 %v7792, %v7904
    %v7906 = vpop.f32.mrb[0].mxu0
    %v7907 = vadd.f32 %v7794, %v7906
    %v7908 = vpop.f32.mrb[0].mxu0
    %v7909 = vadd.f32 %v7796, %v7908
    %7910 = vmatprep.mubr.bf16.mxu0 %v6718
    %7911 = vmatmul.mubr.bf16.gmra.mrb[0].mxu0 %v6717
    %v7912 = vpop.f32.mrb[0].mxu0
    %v7913 = vadd.f32 %v7800, %v7912
    %v7914 = vpop.f32.mrb[0].mxu0
    %v7915 = vadd.f32 %v7802, %v7914
    %v7916 = vpop.f32.mrb[0].mxu0
    %v7917 = vadd.f32 %v7804, %v7916
    %v7918 = vpop.f32.mrb[0].mxu0
    %v7919 = vadd.f32 %v7806, %v7918
    %7920 = vmatprep.mubr.bf16.mxu0 %v6722
    %7921 = vmatmul.mubr.bf16.gmra.mrb[0].mxu0 %v6721
    %v7922 = vpop.f32.mrb[0].mxu0
    %v7923 = vadd.f32 %v7810, %v7922
    %v7924 = vpop.f32.mrb[0].mxu0
    %v7925 = vadd.f32 %v7812, %v7924
    %v7926 = vpop.f32.mrb[0].mxu0
    %v7927 = vadd.f32 %v7814, %v7926
    %v7928 = vpop.f32.mrb[0].mxu0
    %v7929 = vadd.f32 %v7816, %v7928
    %7930 = vmatprep.mubr.bf16.mxu0 %v6726
    %7931 = vmatmul.mubr.bf16.gmra.mrb[0].mxu0 %v6725
    %v7932 = vpop.f32.mrb[0].mxu0
    %v7933 = vadd.f32 %v7820, %v7932
    %v7934 = vpop.f32.mrb[0].mxu0
    %v7935 = vadd.f32 %v7822, %v7934
    %v7936 = vpop.f32.mrb[0].mxu0
    %v7937 = vadd.f32 %v7824, %v7936
    %v7938 = vpop.f32.mrb[0].mxu0
    %v7939 = vadd.f32 %v7826, %v7938
    %7940 = vmatprep.mubr.bf16.mxu0 %v6730
    %7941 = vmatmul.mubr.bf16.gmra.mrb[0].mxu0 %v6729
    %v7942 = vpop.f32.mrb[0].mxu0
    %v7943 = vadd.f32 %v7830, %v7942
    %v7944 = vpop.f32.mrb[0].mxu0
    %v7945 = vadd.f32 %v7832, %v7944
    %v7946 = vpop.f32.mrb[0].mxu0
    %v7947 = vadd.f32 %v7834, %v7946
    %v7948 = vpop.f32.mrb[0].mxu0
    %v7949 = vadd.f32 %v7836, %v7948
    %7950 = vdwg.mxu0
    %v7951 = vadd.f32 %v5089, %v7647
    %v7952 = vadd.f32 %v5091, %v7649
    %v7953 = vadd.f32 %v5315, %v7873
    %v7954 = vadd.f32 %v5317, %v7875
    %v7955 = vadd.f32 %v5093, %v7651
    %v7956 = vadd.f32 %v5095, %v7653
    %v7957 = vadd.f32 %v5319, %v7877
    %v7958 = vadd.f32 %v5321, %v7879
    %v7959 = vadd.f32 %v5099, %v7657
    %v7960 = vadd.f32 %v5101, %v7659
    %v7961 = vadd.f32 %v5325, %v7883
    %v7962 = vadd.f32 %v5327, %v7885
    %v7963 = vadd.f32 %v5103, %v7661
    %v7964 = vadd.f32 %v5105, %v7663
    %v7965 = vadd.f32 %v5329, %v7887
    %v7966 = vadd.f32 %v5331, %v7889
    %v7967 = vadd.f32 %v5109, %v7667
    %v7968 = vadd.f32 %v5111, %v7669
    %v7969 = vadd.f32 %v5335, %v7893
    %v7970 = vadd.f32 %v5337, %v7895
    %v7971 = vadd.f32 %v5113, %v7671
    %v7972 = vadd.f32 %v5115, %v7673
    %v7973 = vadd.f32 %v5339, %v7897
    %v7974 = vadd.f32 %v5341, %v7899
    %v7975 = vadd.f32 %v5119, %v7677
    %v7976 = vadd.f32 %v5121, %v7679
    %v7977 = vadd.f32 %v5345, %v7903
    %v7978 = vadd.f32 %v5347, %v7905
    %v7979 = vadd.f32 %v5123, %v7681
    %v7980 = vadd.f32 %v5125, %v7683
    %v7981 = vadd.f32 %v5349, %v7907
    %v7982 = vadd.f32 %v5351, %v7909
    %v7983 = vadd.f32 %v5129, %v7687
    %v7984 = vadd.f32 %v5131, %v7689
    %v7985 = vadd.f32 %v5355, %v7913
    %v7986 = vadd.f32 %v5357, %v7915
    %v7987 = vadd.f32 %v5133, %v7691
    %v7988 = vadd.f32 %v5135, %v7693
    %v7989 = vadd.f32 %v5359, %v7917
    %v7990 = vadd.f32 %v5361, %v7919
    %v7991 = vadd.f32 %v5139, %v7697
    %v7992 = vadd.f32 %v5141, %v7699
    %v7993 = vadd.f32 %v5365, %v7923
    %v7994 = vadd.f32 %v5367, %v7925
    %v7995 = vadd.f32 %v5143, %v7701
    %v7996 = vadd.f32 %v5145, %v7703
    %v7997 = vadd.f32 %v5369, %v7927
    %v7998 = vadd.f32 %v5371, %v7929
    %v7999 = vadd.f32 %v5149, %v7707
    %v8000 = vadd.f32 %v5151, %v7709
    %v8001 = vadd.f32 %v5375, %v7933
    %v8002 = vadd.f32 %v5377, %v7935
    %v8003 = vadd.f32 %v5153, %v7711
    %v8004 = vadd.f32 %v5155, %v7713
    %v8005 = vadd.f32 %v5379, %v7937
    %v8006 = vadd.f32 %v5381, %v7939
    %v8007 = vadd.f32 %v5159, %v7717
    %v8008 = vadd.f32 %v5161, %v7719
    %v8009 = vadd.f32 %v5385, %v7943
    %v8010 = vadd.f32 %v5387, %v7945
    %v8011 = vadd.f32 %v5163, %v7721
    %v8012 = vadd.f32 %v5165, %v7723
    %v8013 = vadd.f32 %v5389, %v7947
    %v8014 = vadd.f32 %v5391, %v7949
    %v8015 = vld [vmem:[#allocation5 + $0x30] sm:$0xff]
    %v8016 = vld [vmem:[#allocation5 + $0x38] sm:$0xff]
    %v8017 = vld [vmem:[#allocation5 + $0x70] sm:$0xff]
    %v8018 = vld [vmem:[#allocation5 + $0x78] sm:$0xff]
    %v8019 = vld [vmem:[#allocation5 + $0xb0] sm:$0xff]
    %v8020 = vld [vmem:[#allocation5 + $0xb8] sm:$0xff]
    %v8021 = vld [vmem:[#allocation5 + $0xf0] sm:$0xff]
    %v8022 = vld [vmem:[#allocation5 + $0xf8] sm:$0xff]
    %v8023 = vld [vmem:[#allocation5 + $0x130] sm:$0xff]
    %v8024 = vld [vmem:[#allocation5 + $0x138] sm:$0xff]
    %v8025 = vld [vmem:[#allocation5 + $0x170] sm:$0xff]
    %v8026 = vld [vmem:[#allocation5 + $0x178] sm:$0xff]
    %v8027 = vld [vmem:[#allocation5 + $0x1b0] sm:$0xff]
    %v8028 = vld [vmem:[#allocation5 + $0x1b8] sm:$0xff]
    %v8029 = vld [vmem:[#allocation5 + $0x1f0] sm:$0xff]
    %v8030 = vld [vmem:[#allocation5 + $0x1f8] sm:$0xff]
    %v8031 = vld [vmem:[#allocation5 + $0x230] sm:$0xff]
    %v8032 = vld [vmem:[#allocation5 + $0x238] sm:$0xff]
    %v8033 = vld [vmem:[#allocation5 + $0x270] sm:$0xff]
    %v8034 = vld [vmem:[#allocation5 + $0x278] sm:$0xff]
    %v8035 = vld [vmem:[#allocation5 + $0x2b0] sm:$0xff]
    %v8036 = vld [vmem:[#allocation5 + $0x2b8] sm:$0xff]
    %v8037 = vld [vmem:[#allocation5 + $0x2f0] sm:$0xff]
    %v8038 = vld [vmem:[#allocation5 + $0x2f8] sm:$0xff]
    %v8039 = vld [vmem:[#allocation5 + $0x330] sm:$0xff]
    %v8040 = vld [vmem:[#allocation5 + $0x338] sm:$0xff]
    %v8041 = vld [vmem:[#allocation5 + $0x370] sm:$0xff]
    %v8042 = vld [vmem:[#allocation5 + $0x378] sm:$0xff]
    %v8043 = vld [vmem:[#allocation5 + $0x3b0] sm:$0xff]
    %v8044 = vld [vmem:[#allocation5 + $0x3b8] sm:$0xff]
    %v8045 = vld [vmem:[#allocation5 + $0x3f0] sm:$0xff]
    %v8046 = vld [vmem:[#allocation5 + $0x3f8] sm:$0xff]
    %v8047 = vld [vmem:[#allocation5 + $0x430] sm:$0xff]
    %v8048 = vld [vmem:[#allocation5 + $0x438] sm:$0xff]
    %v8049 = vld [vmem:[#allocation5 + $0x470] sm:$0xff]
    %v8050 = vld [vmem:[#allocation5 + $0x478] sm:$0xff]
    %v8051 = vld [vmem:[#allocation5 + $0x4b0] sm:$0xff]
    %v8052 = vld [vmem:[#allocation5 + $0x4b8] sm:$0xff]
    %v8053 = vld [vmem:[#allocation5 + $0x4f0] sm:$0xff]
    %v8054 = vld [vmem:[#allocation5 + $0x4f8] sm:$0xff]
    %v8055 = vld [vmem:[#allocation5 + $0x530] sm:$0xff]
    %v8056 = vld [vmem:[#allocation5 + $0x538] sm:$0xff]
    %v8057 = vld [vmem:[#allocation5 + $0x570] sm:$0xff]
    %v8058 = vld [vmem:[#allocation5 + $0x578] sm:$0xff]
    %v8059 = vld [vmem:[#allocation5 + $0x5b0] sm:$0xff]
    %v8060 = vld [vmem:[#allocation5 + $0x5b8] sm:$0xff]
    %v8061 = vld [vmem:[#allocation5 + $0x5f0] sm:$0xff]
    %v8062 = vld [vmem:[#allocation5 + $0x5f8] sm:$0xff]
    %v8063 = vld [vmem:[#allocation5 + $0x630] sm:$0xff]
    %v8064 = vld [vmem:[#allocation5 + $0x638] sm:$0xff]
    %v8065 = vld [vmem:[#allocation5 + $0x670] sm:$0xff]
    %v8066 = vld [vmem:[#allocation5 + $0x678] sm:$0xff]
    %v8067 = vld [vmem:[#allocation5 + $0x6b0] sm:$0xff]
    %v8068 = vld [vmem:[#allocation5 + $0x6b8] sm:$0xff]
    %v8069 = vld [vmem:[#allocation5 + $0x6f0] sm:$0xff]
    %v8070 = vld [vmem:[#allocation5 + $0x6f8] sm:$0xff]
    %v8071 = vld [vmem:[#allocation5 + $0x730] sm:$0xff]
    %v8072 = vld [vmem:[#allocation5 + $0x738] sm:$0xff]
    %v8073 = vld [vmem:[#allocation5 + $0x770] sm:$0xff]
    %v8074 = vld [vmem:[#allocation5 + $0x778] sm:$0xff]
    %v8075 = vld [vmem:[#allocation5 + $0x7b0] sm:$0xff]
    %v8076 = vld [vmem:[#allocation5 + $0x7b8] sm:$0xff]
    %v8077 = vld [vmem:[#allocation5 + $0x7f0] sm:$0xff]
    %v8078 = vld [vmem:[#allocation5 + $0x7f8] sm:$0xff]
    %v8079 = vld [vmem:[#allocation5 + $0x830] sm:$0xff]
    %v8080 = vld [vmem:[#allocation5 + $0x838] sm:$0xff]
    %v8081 = vld [vmem:[#allocation5 + $0x870] sm:$0xff]
    %v8082 = vld [vmem:[#allocation5 + $0x878] sm:$0xff]
    %v8083 = vld [vmem:[#allocation5 + $0x8b0] sm:$0xff]
    %v8084 = vld [vmem:[#allocation5 + $0x8b8] sm:$0xff]
    %v8085 = vld [vmem:[#allocation5 + $0x8f0] sm:$0xff]
    %v8086 = vld [vmem:[#allocation5 + $0x8f8] sm:$0xff]
    %v8087 = vld [vmem:[#allocation5 + $0x930] sm:$0xff]
    %v8088 = vld [vmem:[#allocation5 + $0x938] sm:$0xff]
    %v8089 = vld [vmem:[#allocation5 + $0x970] sm:$0xff]
    %v8090 = vld [vmem:[#allocation5 + $0x978] sm:$0xff]
    %v8091 = vld [vmem:[#allocation5 + $0x9b0] sm:$0xff]
    %v8092 = vld [vmem:[#allocation5 + $0x9b8] sm:$0xff]
    %v8093 = vld [vmem:[#allocation5 + $0x9f0] sm:$0xff]
    %v8094 = vld [vmem:[#allocation5 + $0x9f8] sm:$0xff]
    %v8095 = vld [vmem:[#allocation5 + $0xa30] sm:$0xff]
    %v8096 = vld [vmem:[#allocation5 + $0xa38] sm:$0xff]
    %v8097 = vld [vmem:[#allocation5 + $0xa70] sm:$0xff]
    %v8098 = vld [vmem:[#allocation5 + $0xa78] sm:$0xff]
    %v8099 = vld [vmem:[#allocation5 + $0xab0] sm:$0xff]
    %v8100 = vld [vmem:[#allocation5 + $0xab8] sm:$0xff]
    %v8101 = vld [vmem:[#allocation5 + $0xaf0] sm:$0xff]
    %v8102 = vld [vmem:[#allocation5 + $0xaf8] sm:$0xff]
    %v8103 = vld [vmem:[#allocation5 + $0xb30] sm:$0xff]
    %v8104 = vld [vmem:[#allocation5 + $0xb38] sm:$0xff]
    %v8105 = vld [vmem:[#allocation5 + $0xb70] sm:$0xff]
    %v8106 = vld [vmem:[#allocation5 + $0xb78] sm:$0xff]
    %v8107 = vld [vmem:[#allocation5 + $0xbb0] sm:$0xff]
    %v8108 = vld [vmem:[#allocation5 + $0xbb8] sm:$0xff]
    %v8109 = vld [vmem:[#allocation5 + $0xbf0] sm:$0xff]
    %v8110 = vld [vmem:[#allocation5 + $0xbf8] sm:$0xff]
    %v8111 = vld [vmem:[#allocation5 + $0xc30] sm:$0xff]
    %v8112 = vld [vmem:[#allocation5 + $0xc38] sm:$0xff]
    %v8113 = vld [vmem:[#allocation5 + $0xc70] sm:$0xff]
    %v8114 = vld [vmem:[#allocation5 + $0xc78] sm:$0xff]
    %v8115 = vld [vmem:[#allocation5 + $0xcb0] sm:$0xff]
    %v8116 = vld [vmem:[#allocation5 + $0xcb8] sm:$0xff]
    %v8117 = vld [vmem:[#allocation5 + $0xcf0] sm:$0xff]
    %v8118 = vld [vmem:[#allocation5 + $0xcf8] sm:$0xff]
    %v8119 = vld [vmem:[#allocation5 + $0xd30] sm:$0xff]
    %v8120 = vld [vmem:[#allocation5 + $0xd38] sm:$0xff]
    %v8121 = vld [vmem:[#allocation5 + $0xd70] sm:$0xff]
    %v8122 = vld [vmem:[#allocation5 + $0xd78] sm:$0xff]
    %v8123 = vld [vmem:[#allocation5 + $0xdb0] sm:$0xff]
    %v8124 = vld [vmem:[#allocation5 + $0xdb8] sm:$0xff]
    %v8125 = vld [vmem:[#allocation5 + $0xdf0] sm:$0xff]
    %v8126 = vld [vmem:[#allocation5 + $0xdf8] sm:$0xff]
    %v8127 = vld [vmem:[#allocation5 + $0xe30] sm:$0xff]
    %v8128 = vld [vmem:[#allocation5 + $0xe38] sm:$0xff]
    %v8129 = vld [vmem:[#allocation5 + $0xe70] sm:$0xff]
    %v8130 = vld [vmem:[#allocation5 + $0xe78] sm:$0xff]
    %v8131 = vld [vmem:[#allocation5 + $0xeb0] sm:$0xff]
    %v8132 = vld [vmem:[#allocation5 + $0xeb8] sm:$0xff]
    %v8133 = vld [vmem:[#allocation5 + $0xef0] sm:$0xff]
    %v8134 = vld [vmem:[#allocation5 + $0xef8] sm:$0xff]
    %v8135 = vld [vmem:[#allocation5 + $0xf30] sm:$0xff]
    %v8136 = vld [vmem:[#allocation5 + $0xf38] sm:$0xff]
    %v8137 = vld [vmem:[#allocation5 + $0xf70] sm:$0xff]
    %v8138 = vld [vmem:[#allocation5 + $0xf78] sm:$0xff]
    %v8139 = vld [vmem:[#allocation5 + $0xfb0] sm:$0xff]
    %v8140 = vld [vmem:[#allocation5 + $0xfb8] sm:$0xff]
    %v8141 = vld [vmem:[#allocation5 + $0xff0] sm:$0xff]
    %v8142 = vld [vmem:[#allocation5 + $0xff8] sm:$0xff]
    %v8143 = vld [vmem:[#allocation7 + $0xc] sm:$0xf]
    %v8145 = vlaneseq
    %v8146 = vshrl.u32 %v8145, 7
    %v8147 = vsub.s32 0, %v8146
    %v8148 = vrot.slane %v8143, %v8147
    %v8149 = vlaneseq
    %v8150 = vshrl.u32 %v8149, 7
    %v8151 = vsub.s32 1, %v8150
    %v8152 = vrot.slane %v8143, %v8151
    %v8153 = vlaneseq
    %v8154 = vshrl.u32 %v8153, 7
    %v8155 = vsub.s32 2, %v8154
    %v8156 = vrot.slane %v8143, %v8155
    %v8157 = vlaneseq
    %v8158 = vshrl.u32 %v8157, 7
    %v8159 = vsub.s32 3, %v8158
    %v8160 = vrot.slane %v8143, %v8159
    %v8293 = vunpack.c.l.b16 %v8015
    %v8294 = vunpack.c.h.b16 %v8015
    %v8295 = vunpack.c.l.b16 %v8016
    %v8296 = vunpack.c.h.b16 %v8016
    %v8297 = vunpack.c.l.b16 %v8017
    %v8298 = vunpack.c.h.b16 %v8017
    %v8299 = vunpack.c.l.b16 %v8018
    %v8300 = vunpack.c.h.b16 %v8018
    %v8301 = vunpack.c.l.b16 %v8019
    %v8302 = vunpack.c.h.b16 %v8019
    %v8303 = vunpack.c.l.b16 %v8020
    %v8304 = vunpack.c.h.b16 %v8020
    %v8305 = vunpack.c.l.b16 %v8021
    %v8306 = vunpack.c.h.b16 %v8021
    %v8307 = vunpack.c.l.b16 %v8022
    %v8308 = vunpack.c.h.b16 %v8022
    %v8309 = vunpack.c.l.b16 %v8023
    %v8310 = vunpack.c.h.b16 %v8023
    %v8311 = vunpack.c.l.b16 %v8024
    %v8312 = vunpack.c.h.b16 %v8024
    %v8313 = vunpack.c.l.b16 %v8025
    %v8314 = vunpack.c.h.b16 %v8025
    %v8315 = vunpack.c.l.b16 %v8026
    %v8316 = vunpack.c.h.b16 %v8026
    %v8317 = vunpack.c.l.b16 %v8027
    %v8318 = vunpack.c.h.b16 %v8027
    %v8319 = vunpack.c.l.b16 %v8028
    %v8320 = vunpack.c.h.b16 %v8028
    %v8321 = vunpack.c.l.b16 %v8029
    %v8322 = vunpack.c.h.b16 %v8029
    %v8323 = vunpack.c.l.b16 %v8030
    %v8324 = vunpack.c.h.b16 %v8030
    %v8325 = vunpack.c.l.b16 %v8031
    %v8326 = vunpack.c.h.b16 %v8031
    %v8327 = vunpack.c.l.b16 %v8032
    %v8328 = vunpack.c.h.b16 %v8032
    %v8329 = vunpack.c.l.b16 %v8033
    %v8330 = vunpack.c.h.b16 %v8033
    %v8331 = vunpack.c.l.b16 %v8034
    %v8332 = vunpack.c.h.b16 %v8034
    %v8333 = vunpack.c.l.b16 %v8035
    %v8334 = vunpack.c.h.b16 %v8035
    %v8335 = vunpack.c.l.b16 %v8036
    %v8336 = vunpack.c.h.b16 %v8036
    %v8337 = vunpack.c.l.b16 %v8037
    %v8338 = vunpack.c.h.b16 %v8037
    %v8339 = vunpack.c.l.b16 %v8038
    %v8340 = vunpack.c.h.b16 %v8038
    %v8341 = vunpack.c.l.b16 %v8039
    %v8342 = vunpack.c.h.b16 %v8039
    %v8343 = vunpack.c.l.b16 %v8040
    %v8344 = vunpack.c.h.b16 %v8040
    %v8345 = vunpack.c.l.b16 %v8041
    %v8346 = vunpack.c.h.b16 %v8041
    %v8347 = vunpack.c.l.b16 %v8042
    %v8348 = vunpack.c.h.b16 %v8042
    %v8349 = vunpack.c.l.b16 %v8043
    %v8350 = vunpack.c.h.b16 %v8043
    %v8351 = vunpack.c.l.b16 %v8044
    %v8352 = vunpack.c.h.b16 %v8044
    %v8353 = vunpack.c.l.b16 %v8045
    %v8354 = vunpack.c.h.b16 %v8045
    %v8355 = vunpack.c.l.b16 %v8046
    %v8356 = vunpack.c.h.b16 %v8046
    %v8357 = vunpack.c.l.b16 %v8047
    %v8358 = vunpack.c.h.b16 %v8047
    %v8359 = vunpack.c.l.b16 %v8048
    %v8360 = vunpack.c.h.b16 %v8048
    %v8361 = vunpack.c.l.b16 %v8049
    %v8362 = vunpack.c.h.b16 %v8049
    %v8363 = vunpack.c.l.b16 %v8050
    %v8364 = vunpack.c.h.b16 %v8050
    %v8365 = vunpack.c.l.b16 %v8051
    %v8366 = vunpack.c.h.b16 %v8051
    %v8367 = vunpack.c.l.b16 %v8052
    %v8368 = vunpack.c.h.b16 %v8052
    %v8369 = vunpack.c.l.b16 %v8053
    %v8370 = vunpack.c.h.b16 %v8053
    %v8371 = vunpack.c.l.b16 %v8054
    %v8372 = vunpack.c.h.b16 %v8054
    %v8373 = vunpack.c.l.b16 %v8055
    %v8374 = vunpack.c.h.b16 %v8055
    %v8375 = vunpack.c.l.b16 %v8056
    %v8376 = vunpack.c.h.b16 %v8056
    %v8377 = vunpack.c.l.b16 %v8057
    %v8378 = vunpack.c.h.b16 %v8057
    %v8379 = vunpack.c.l.b16 %v8058
    %v8380 = vunpack.c.h.b16 %v8058
    %v8381 = vunpack.c.l.b16 %v8059
    %v8382 = vunpack.c.h.b16 %v8059
    %v8383 = vunpack.c.l.b16 %v8060
    %v8384 = vunpack.c.h.b16 %v8060
    %v8385 = vunpack.c.l.b16 %v8061
    %v8386 = vunpack.c.h.b16 %v8061
    %v8387 = vunpack.c.l.b16 %v8062
    %v8388 = vunpack.c.h.b16 %v8062
    %v8389 = vunpack.c.l.b16 %v8063
    %v8390 = vunpack.c.h.b16 %v8063
    %v8391 = vunpack.c.l.b16 %v8064
    %v8392 = vunpack.c.h.b16 %v8064
    %v8393 = vunpack.c.l.b16 %v8065
    %v8394 = vunpack.c.h.b16 %v8065
    %v8395 = vunpack.c.l.b16 %v8066
    %v8396 = vunpack.c.h.b16 %v8066
    %v8397 = vunpack.c.l.b16 %v8067
    %v8398 = vunpack.c.h.b16 %v8067
    %v8399 = vunpack.c.l.b16 %v8068
    %v8400 = vunpack.c.h.b16 %v8068
    %v8401 = vunpack.c.l.b16 %v8069
    %v8402 = vunpack.c.h.b16 %v8069
    %v8403 = vunpack.c.l.b16 %v8070
    %v8404 = vunpack.c.h.b16 %v8070
    %v8405 = vunpack.c.l.b16 %v8071
    %v8406 = vunpack.c.h.b16 %v8071
    %v8407 = vunpack.c.l.b16 %v8072
    %v8408 = vunpack.c.h.b16 %v8072
    %v8409 = vunpack.c.l.b16 %v8073
    %v8410 = vunpack.c.h.b16 %v8073
    %v8411 = vunpack.c.l.b16 %v8074
    %v8412 = vunpack.c.h.b16 %v8074
    %v8413 = vunpack.c.l.b16 %v8075
    %v8414 = vunpack.c.h.b16 %v8075
    %v8415 = vunpack.c.l.b16 %v8076
    %v8416 = vunpack.c.h.b16 %v8076
    %v8417 = vunpack.c.l.b16 %v8077
    %v8418 = vunpack.c.h.b16 %v8077
    %v8419 = vunpack.c.l.b16 %v8078
    %v8420 = vunpack.c.h.b16 %v8078
    %v8421 = vunpack.c.l.b16 %v8079
    %v8422 = vunpack.c.h.b16 %v8079
    %v8423 = vunpack.c.l.b16 %v8080
    %v8424 = vunpack.c.h.b16 %v8080
    %v8425 = vunpack.c.l.b16 %v8081
    %v8426 = vunpack.c.h.b16 %v8081
    %v8427 = vunpack.c.l.b16 %v8082
    %v8428 = vunpack.c.h.b16 %v8082
    %v8429 = vunpack.c.l.b16 %v8083
    %v8430 = vunpack.c.h.b16 %v8083
    %v8431 = vunpack.c.l.b16 %v8084
    %v8432 = vunpack.c.h.b16 %v8084
    %v8433 = vunpack.c.l.b16 %v8085
    %v8434 = vunpack.c.h.b16 %v8085
    %v8435 = vunpack.c.l.b16 %v8086
    %v8436 = vunpack.c.h.b16 %v8086
    %v8437 = vunpack.c.l.b16 %v8087
    %v8438 = vunpack.c.h.b16 %v8087
    %v8439 = vunpack.c.l.b16 %v8088
    %v8440 = vunpack.c.h.b16 %v8088
    %v8441 = vunpack.c.l.b16 %v8089
    %v8442 = vunpack.c.h.b16 %v8089
    %v8443 = vunpack.c.l.b16 %v8090
    %v8444 = vunpack.c.h.b16 %v8090
    %v8445 = vunpack.c.l.b16 %v8091
    %v8446 = vunpack.c.h.b16 %v8091
    %v8447 = vunpack.c.l.b16 %v8092
    %v8448 = vunpack.c.h.b16 %v8092
    %v8449 = vunpack.c.l.b16 %v8093
    %v8450 = vunpack.c.h.b16 %v8093
    %v8451 = vunpack.c.l.b16 %v8094
    %v8452 = vunpack.c.h.b16 %v8094
    %v8453 = vunpack.c.l.b16 %v8095
    %v8454 = vunpack.c.h.b16 %v8095
    %v8455 = vunpack.c.l.b16 %v8096
    %v8456 = vunpack.c.h.b16 %v8096
    %v8457 = vunpack.c.l.b16 %v8097
    %v8458 = vunpack.c.h.b16 %v8097
    %v8459 = vunpack.c.l.b16 %v8098
    %v8460 = vunpack.c.h.b16 %v8098
    %v8461 = vunpack.c.l.b16 %v8099
    %v8462 = vunpack.c.h.b16 %v8099
    %v8463 = vunpack.c.l.b16 %v8100
    %v8464 = vunpack.c.h.b16 %v8100
    %v8465 = vunpack.c.l.b16 %v8101
    %v8466 = vunpack.c.h.b16 %v8101
    %v8467 = vunpack.c.l.b16 %v8102
    %v8468 = vunpack.c.h.b16 %v8102
    %v8469 = vunpack.c.l.b16 %v8103
    %v8470 = vunpack.c.h.b16 %v8103
    %v8471 = vunpack.c.l.b16 %v8104
    %v8472 = vunpack.c.h.b16 %v8104
    %v8473 = vunpack.c.l.b16 %v8105
    %v8474 = vunpack.c.h.b16 %v8105
    %v8475 = vunpack.c.l.b16 %v8106
    %v8476 = vunpack.c.h.b16 %v8106
    %v8477 = vunpack.c.l.b16 %v8107
    %v8478 = vunpack.c.h.b16 %v8107
    %v8479 = vunpack.c.l.b16 %v8108
    %v8480 = vunpack.c.h.b16 %v8108
    %v8481 = vunpack.c.l.b16 %v8109
    %v8482 = vunpack.c.h.b16 %v8109
    %v8483 = vunpack.c.l.b16 %v8110
    %v8484 = vunpack.c.h.b16 %v8110
    %v8485 = vunpack.c.l.b16 %v8111
    %v8486 = vunpack.c.h.b16 %v8111
    %v8487 = vunpack.c.l.b16 %v8112
    %v8488 = vunpack.c.h.b16 %v8112
    %v8489 = vunpack.c.l.b16 %v8113
    %v8490 = vunpack.c.h.b16 %v8113
    %v8491 = vunpack.c.l.b16 %v8114
    %v8492 = vunpack.c.h.b16 %v8114
    %v8493 = vunpack.c.l.b16 %v8115
    %v8494 = vunpack.c.h.b16 %v8115
    %v8495 = vunpack.c.l.b16 %v8116
    %v8496 = vunpack.c.h.b16 %v8116
    %v8497 = vunpack.c.l.b16 %v8117
    %v8498 = vunpack.c.h.b16 %v8117
    %v8499 = vunpack.c.l.b16 %v8118
    %v8500 = vunpack.c.h.b16 %v8118
    %v8501 = vunpack.c.l.b16 %v8119
    %v8502 = vunpack.c.h.b16 %v8119
    %v8503 = vunpack.c.l.b16 %v8120
    %v8504 = vunpack.c.h.b16 %v8120
    %v8505 = vunpack.c.l.b16 %v8121
    %v8506 = vunpack.c.h.b16 %v8121
    %v8507 = vunpack.c.l.b16 %v8122
    %v8508 = vunpack.c.h.b16 %v8122
    %v8509 = vunpack.c.l.b16 %v8123
    %v8510 = vunpack.c.h.b16 %v8123
    %v8511 = vunpack.c.l.b16 %v8124
    %v8512 = vunpack.c.h.b16 %v8124
    %v8513 = vunpack.c.l.b16 %v8125
    %v8514 = vunpack.c.h.b16 %v8125
    %v8515 = vunpack.c.l.b16 %v8126
    %v8516 = vunpack.c.h.b16 %v8126
    %v8517 = vunpack.c.l.b16 %v8127
    %v8518 = vunpack.c.h.b16 %v8127
    %v8519 = vunpack.c.l.b16 %v8128
    %v8520 = vunpack.c.h.b16 %v8128
    %v8521 = vunpack.c.l.b16 %v8129
    %v8522 = vunpack.c.h.b16 %v8129
    %v8523 = vunpack.c.l.b16 %v8130
    %v8524 = vunpack.c.h.b16 %v8130
    %v8525 = vunpack.c.l.b16 %v8131
    %v8526 = vunpack.c.h.b16 %v8131
    %v8527 = vunpack.c.l.b16 %v8132
    %v8528 = vunpack.c.h.b16 %v8132
    %v8529 = vunpack.c.l.b16 %v8133
    %v8530 = vunpack.c.h.b16 %v8133
    %v8531 = vunpack.c.l.b16 %v8134
    %v8532 = vunpack.c.h.b16 %v8134
    %v8533 = vunpack.c.l.b16 %v8135
    %v8534 = vunpack.c.h.b16 %v8135
    %v8535 = vunpack.c.l.b16 %v8136
    %v8536 = vunpack.c.h.b16 %v8136
    %v8537 = vunpack.c.l.b16 %v8137
    %v8538 = vunpack.c.h.b16 %v8137
    %v8539 = vunpack.c.l.b16 %v8138
    %v8540 = vunpack.c.h.b16 %v8138
    %v8541 = vunpack.c.l.b16 %v8139
    %v8542 = vunpack.c.h.b16 %v8139
    %v8543 = vunpack.c.l.b16 %v8140
    %v8544 = vunpack.c.h.b16 %v8140
    %v8545 = vunpack.c.l.b16 %v8141
    %v8546 = vunpack.c.h.b16 %v8141
    %v8547 = vunpack.c.l.b16 %v8142
    %v8548 = vunpack.c.h.b16 %v8142
    %v8549 = vpack.c.b16 %v8297, %v8293
    %v8550 = vpack.c.b16 %v8298, %v8294
    %v8551 = vpack.c.b16 %v8299, %v8295
    %v8552 = vpack.c.b16 %v8300, %v8296
    %v8553 = vpack.c.b16 %v8305, %v8301
    %v8554 = vpack.c.b16 %v8306, %v8302
    %v8555 = vpack.c.b16 %v8307, %v8303
    %v8556 = vpack.c.b16 %v8308, %v8304
    %v8557 = vpack.c.b16 %v8313, %v8309
    %v8558 = vpack.c.b16 %v8314, %v8310
    %v8559 = vpack.c.b16 %v8315, %v8311
    %v8560 = vpack.c.b16 %v8316, %v8312
    %v8561 = vpack.c.b16 %v8321, %v8317
    %v8562 = vpack.c.b16 %v8322, %v8318
    %v8563 = vpack.c.b16 %v8323, %v8319
    %v8564 = vpack.c.b16 %v8324, %v8320
    %v8565 = vpack.c.b16 %v8329, %v8325
    %v8566 = vpack.c.b16 %v8330, %v8326
    %v8567 = vpack.c.b16 %v8331, %v8327
    %v8568 = vpack.c.b16 %v8332, %v8328
    %v8569 = vpack.c.b16 %v8337, %v8333
    %v8570 = vpack.c.b16 %v8338, %v8334
    %v8571 = vpack.c.b16 %v8339, %v8335
    %v8572 = vpack.c.b16 %v8340, %v8336
    %v8573 = vpack.c.b16 %v8345, %v8341
    %v8574 = vpack.c.b16 %v8346, %v8342
    %v8575 = vpack.c.b16 %v8347, %v8343
    %v8576 = vpack.c.b16 %v8348, %v8344
    %v8577 = vpack.c.b16 %v8353, %v8349
    %v8578 = vpack.c.b16 %v8354, %v8350
    %v8579 = vpack.c.b16 %v8355, %v8351
    %v8580 = vpack.c.b16 %v8356, %v8352
    %v8581 = vpack.c.b16 %v8361, %v8357
    %v8582 = vpack.c.b16 %v8362, %v8358
    %v8583 = vpack.c.b16 %v8363, %v8359
    %v8584 = vpack.c.b16 %v8364, %v8360
    %v8585 = vpack.c.b16 %v8369, %v8365
    %v8586 = vpack.c.b16 %v8370, %v8366
    %v8587 = vpack.c.b16 %v8371, %v8367
    %v8588 = vpack.c.b16 %v8372, %v8368
    %v8589 = vpack.c.b16 %v8377, %v8373
    %v8590 = vpack.c.b16 %v8378, %v8374
    %v8591 = vpack.c.b16 %v8379, %v8375
    %v8592 = vpack.c.b16 %v8380, %v8376
    %v8593 = vpack.c.b16 %v8385, %v8381
    %v8594 = vpack.c.b16 %v8386, %v8382
    %v8595 = vpack.c.b16 %v8387, %v8383
    %v8596 = vpack.c.b16 %v8388, %v8384
    %v8597 = vpack.c.b16 %v8393, %v8389
    %v8598 = vpack.c.b16 %v8394, %v8390
    %v8599 = vpack.c.b16 %v8395, %v8391
    %v8600 = vpack.c.b16 %v8396, %v8392
    %v8601 = vpack.c.b16 %v8401, %v8397
    %v8602 = vpack.c.b16 %v8402, %v8398
    %v8603 = vpack.c.b16 %v8403, %v8399
    %v8604 = vpack.c.b16 %v8404, %v8400
    %v8605 = vpack.c.b16 %v8409, %v8405
    %v8606 = vpack.c.b16 %v8410, %v8406
    %v8607 = vpack.c.b16 %v8411, %v8407
    %v8608 = vpack.c.b16 %v8412, %v8408
    %v8609 = vpack.c.b16 %v8417, %v8413
    %v8610 = vpack.c.b16 %v8418, %v8414
    %v8611 = vpack.c.b16 %v8419, %v8415
    %v8612 = vpack.c.b16 %v8420, %v8416
    %v8613 = vpack.c.b16 %v8425, %v8421
    %v8614 = vpack.c.b16 %v8426, %v8422
    %v8615 = vpack.c.b16 %v8427, %v8423
    %v8616 = vpack.c.b16 %v8428, %v8424
    %v8617 = vpack.c.b16 %v8433, %v8429
    %v8618 = vpack.c.b16 %v8434, %v8430
    %v8619 = vpack.c.b16 %v8435, %v8431
    %v8620 = vpack.c.b16 %v8436, %v8432
    %v8621 = vpack.c.b16 %v8441, %v8437
    %v8622 = vpack.c.b16 %v8442, %v8438
    %v8623 = vpack.c.b16 %v8443, %v8439
    %v8624 = vpack.c.b16 %v8444, %v8440
    %v8625 = vpack.c.b16 %v8449, %v8445
    %v8626 = vpack.c.b16 %v8450, %v8446
    %v8627 = vpack.c.b16 %v8451, %v8447
    %v8628 = vpack.c.b16 %v8452, %v8448
    %v8629 = vpack.c.b16 %v8457, %v8453
    %v8630 = vpack.c.b16 %v8458, %v8454
    %v8631 = vpack.c.b16 %v8459, %v8455
    %v8632 = vpack.c.b16 %v8460, %v8456
    %v8633 = vpack.c.b16 %v8465, %v8461
    %v8634 = vpack.c.b16 %v8466, %v8462
    %v8635 = vpack.c.b16 %v8467, %v8463
    %v8636 = vpack.c.b16 %v8468, %v8464
    %v8637 = vpack.c.b16 %v8473, %v8469
    %v8638 = vpack.c.b16 %v8474, %v8470
    %v8639 = vpack.c.b16 %v8475, %v8471
    %v8640 = vpack.c.b16 %v8476, %v8472
    %v8641 = vpack.c.b16 %v8481, %v8477
    %v8642 = vpack.c.b16 %v8482, %v8478
    %v8643 = vpack.c.b16 %v8483, %v8479
    %v8644 = vpack.c.b16 %v8484, %v8480
    %v8645 = vpack.c.b16 %v8489, %v8485
    %v8646 = vpack.c.b16 %v8490, %v8486
    %v8647 = vpack.c.b16 %v8491, %v8487
    %v8648 = vpack.c.b16 %v8492, %v8488
    %v8649 = vpack.c.b16 %v8497, %v8493
    %v8650 = vpack.c.b16 %v8498, %v8494
    %v8651 = vpack.c.b16 %v8499, %v8495
    %v8652 = vpack.c.b16 %v8500, %v8496
    %v8653 = vpack.c.b16 %v8505, %v8501
    %v8654 = vpack.c.b16 %v8506, %v8502
    %v8655 = vpack.c.b16 %v8507, %v8503
    %v8656 = vpack.c.b16 %v8508, %v8504
    %v8657 = vpack.c.b16 %v8513, %v8509
    %v8658 = vpack.c.b16 %v8514, %v8510
    %v8659 = vpack.c.b16 %v8515, %v8511
    %v8660 = vpack.c.b16 %v8516, %v8512
    %v8661 = vpack.c.b16 %v8521, %v8517
    %v8662 = vpack.c.b16 %v8522, %v8518
    %v8663 = vpack.c.b16 %v8523, %v8519
    %v8664 = vpack.c.b16 %v8524, %v8520
    %v8665 = vpack.c.b16 %v8529, %v8525
    %v8666 = vpack.c.b16 %v8530, %v8526
    %v8667 = vpack.c.b16 %v8531, %v8527
    %v8668 = vpack.c.b16 %v8532, %v8528
    %v8669 = vpack.c.b16 %v8537, %v8533
    %v8670 = vpack.c.b16 %v8538, %v8534
    %v8671 = vpack.c.b16 %v8539, %v8535
    %v8672 = vpack.c.b16 %v8540, %v8536
    %v8673 = vpack.c.b16 %v8545, %v8541
    %v8674 = vpack.c.b16 %v8546, %v8542
    %v8675 = vpack.c.b16 %v8547, %v8543
    %v8676 = vpack.c.b16 %v8548, %v8544
    %8805 = vmatprep.subr.bf16.mxu0 %v8550
    %8806 = vmatpush1.bf16.msra.mxu0 %v8549
    %8807 = vmatprep.subr.bf16.mxu0 %v8554
    %8808 = vmatpush1.bf16.msra.mxu0 %v8553
    %8809 = vmatprep.subr.bf16.mxu0 %v8558
    %8810 = vmatpush1.bf16.msra.mxu0 %v8557
    %8811 = vmatprep.subr.bf16.mxu0 %v8562
    %8812 = vmatpush1.bf16.msra.mxu0 %v8561
    %8813 = vmatprep.subr.bf16.mxu0 %v8566
    %8814 = vmatpush1.bf16.msra.mxu0 %v8565
    %8815 = vmatprep.subr.bf16.mxu0 %v8570
    %8816 = vmatpush1.bf16.msra.mxu0 %v8569
    %8817 = vmatprep.subr.bf16.mxu0 %v8574
    %8818 = vmatpush1.bf16.msra.mxu0 %v8573
    %8819 = vmatprep.subr.bf16.mxu0 %v8578
    %8820 = vmatpush1.bf16.msra.mxu0 %v8577
    %8821 = vmatprep.subr.bf16.mxu0 %v8582
    %8822 = vmatpush1.bf16.msra.mxu0 %v8581
    %8823 = vmatprep.subr.bf16.mxu0 %v8586
    %8824 = vmatpush1.bf16.msra.mxu0 %v8585
    %8825 = vmatprep.subr.bf16.mxu0 %v8590
    %8826 = vmatpush1.bf16.msra.mxu0 %v8589
    %8827 = vmatprep.subr.bf16.mxu0 %v8594
    %8828 = vmatpush1.bf16.msra.mxu0 %v8593
    %8829 = vmatprep.subr.bf16.mxu0 %v8598
    %8830 = vmatpush1.bf16.msra.mxu0 %v8597
    %8831 = vmatprep.subr.bf16.mxu0 %v8602
    %8832 = vmatpush1.bf16.msra.mxu0 %v8601
    %8833 = vmatprep.subr.bf16.mxu0 %v8606
    %8834 = vmatpush1.bf16.msra.mxu0 %v8605
    %8835 = vmatprep.subr.bf16.mxu0 %v8610
    %8836 = vmatpush1.bf16.msra.mxu0 %v8609
    %8837 = vmatprep.mubr.bf16.mxu0 %v364
    %8838 = vmatmul.mubr.bf16.gmra.mrb[0].mxu0 %v363
    %v8839 = vpop.f32.mrb[0].mxu0
    %v8840 = vadd.f32 %v8148, %v8839
    %v8841 = vpop.f32.mrb[0].mxu0
    %v8842 = vadd.f32 %v8152, %v8841
    %v8843 = vpop.f32.mrb[0].mxu0
    %v8844 = vadd.f32 %v8148, %v8843
    %v8845 = vpop.f32.mrb[0].mxu0
    %v8846 = vadd.f32 %v8152, %v8845
    %8847 = vmatprep.mubr.bf16.mxu0 %v368
    %8848 = vmatmul.mubr.bf16.gmra.mrb[0].mxu0 %v367
    %v8849 = vpop.f32.mrb[0].mxu0
    %v8850 = vadd.f32 %v8148, %v8849
    %v8851 = vpop.f32.mrb[0].mxu0
    %v8852 = vadd.f32 %v8152, %v8851
    %v8853 = vpop.f32.mrb[0].mxu0
    %v8854 = vadd.f32 %v8148, %v8853
    %v8855 = vpop.f32.mrb[0].mxu0
    %v8856 = vadd.f32 %v8152, %v8855
    %8857 = vmatprep.mubr.bf16.mxu0 %v372
    %8858 = vmatmul.mubr.bf16.gmra.mrb[0].mxu0 %v371
    %v8859 = vpop.f32.mrb[0].mxu0
    %v8860 = vadd.f32 %v8148, %v8859
    %v8861 = vpop.f32.mrb[0].mxu0
    %v8862 = vadd.f32 %v8152, %v8861
    %v8863 = vpop.f32.mrb[0].mxu0
    %v8864 = vadd.f32 %v8148, %v8863
    %v8865 = vpop.f32.mrb[0].mxu0
    %v8866 = vadd.f32 %v8152, %v8865
    %8867 = vmatprep.mubr.bf16.mxu0 %v376
    %8868 = vmatmul.mubr.bf16.gmra.mrb[0].mxu0 %v375
    %v8869 = vpop.f32.mrb[0].mxu0
    %v8870 = vadd.f32 %v8148, %v8869
    %v8871 = vpop.f32.mrb[0].mxu0
    %v8872 = vadd.f32 %v8152, %v8871
    %v8873 = vpop.f32.mrb[0].mxu0
    %v8874 = vadd.f32 %v8148, %v8873
    %v8875 = vpop.f32.mrb[0].mxu0
    %v8876 = vadd.f32 %v8152, %v8875
    %8877 = vmatprep.mubr.bf16.mxu0 %v380
    %8878 = vmatmul.mubr.bf16.gmra.mrb[0].mxu0 %v379
    %v8879 = vpop.f32.mrb[0].mxu0
    %v8880 = vadd.f32 %v8148, %v8879
    %v8881 = vpop.f32.mrb[0].mxu0
    %v8882 = vadd.f32 %v8152, %v8881
    %v8883 = vpop.f32.mrb[0].mxu0
    %v8884 = vadd.f32 %v8148, %v8883
    %v8885 = vpop.f32.mrb[0].mxu0
    %v8886 = vadd.f32 %v8152, %v8885
    %8887 = vmatprep.mubr.bf16.mxu0 %v384
    %8888 = vmatmul.mubr.bf16.gmra.mrb[0].mxu0 %v383
    %v8889 = vpop.f32.mrb[0].mxu0
    %v8890 = vadd.f32 %v8148, %v8889
    %v8891 = vpop.f32.mrb[0].mxu0
    %v8892 = vadd.f32 %v8152, %v8891
    %v8893 = vpop.f32.mrb[0].mxu0
    %v8894 = vadd.f32 %v8148, %v8893
    %v8895 = vpop.f32.mrb[0].mxu0
    %v8896 = vadd.f32 %v8152, %v8895
    %8897 = vmatprep.mubr.bf16.mxu0 %v388
    %8898 = vmatmul.mubr.bf16.gmra.mrb[0].mxu0 %v387
    %v8899 = vpop.f32.mrb[0].mxu0
    %v8900 = vadd.f32 %v8148, %v8899
    %v8901 = vpop.f32.mrb[0].mxu0
    %v8902 = vadd.f32 %v8152, %v8901
    %v8903 = vpop.f32.mrb[0].mxu0
    %v8904 = vadd.f32 %v8148, %v8903
    %v8905 = vpop.f32.mrb[0].mxu0
    %v8906 = vadd.f32 %v8152, %v8905
    %8907 = vmatprep.mubr.bf16.mxu0 %v392
    %8908 = vmatmul.mubr.bf16.gmra.mrb[0].mxu0 %v391
    %v8909 = vpop.f32.mrb[0].mxu0
    %v8910 = vadd.f32 %v8148, %v8909
    %v8911 = vpop.f32.mrb[0].mxu0
    %v8912 = vadd.f32 %v8152, %v8911
    %v8913 = vpop.f32.mrb[0].mxu0
    %v8914 = vadd.f32 %v8148, %v8913
    %v8915 = vpop.f32.mrb[0].mxu0
    %v8916 = vadd.f32 %v8152, %v8915
    %8917 = vdwg.mxu0
    %8918 = vmatprep.subr.bf16.mxu0 %v8614
    %8919 = vmatpush1.bf16.msra.mxu0 %v8613
    %8920 = vmatprep.subr.bf16.mxu0 %v8618
    %8921 = vmatpush1.bf16.msra.mxu0 %v8617
    %8922 = vmatprep.subr.bf16.mxu0 %v8622
    %8923 = vmatpush1.bf16.msra.mxu0 %v8621
    %8924 = vmatprep.subr.bf16.mxu0 %v8626
    %8925 = vmatpush1.bf16.msra.mxu0 %v8625
    %8926 = vmatprep.subr.bf16.mxu0 %v8630
    %8927 = vmatpush1.bf16.msra.mxu0 %v8629
    %8928 = vmatprep.subr.bf16.mxu0 %v8634
    %8929 = vmatpush1.bf16.msra.mxu0 %v8633
    %8930 = vmatprep.subr.bf16.mxu0 %v8638
    %8931 = vmatpush1.bf16.msra.mxu0 %v8637
    %8932 = vmatprep.subr.bf16.mxu0 %v8642
    %8933 = vmatpush1.bf16.msra.mxu0 %v8641
    %8934 = vmatprep.subr.bf16.mxu0 %v8646
    %8935 = vmatpush1.bf16.msra.mxu0 %v8645
    %8936 = vmatprep.subr.bf16.mxu0 %v8650
    %8937 = vmatpush1.bf16.msra.mxu0 %v8649
    %8938 = vmatprep.subr.bf16.mxu0 %v8654
    %8939 = vmatpush1.bf16.msra.mxu0 %v8653
    %8940 = vmatprep.subr.bf16.mxu0 %v8658
    %8941 = vmatpush1.bf16.msra.mxu0 %v8657
    %8942 = vmatprep.subr.bf16.mxu0 %v8662
    %8943 = vmatpush1.bf16.msra.mxu0 %v8661
    %8944 = vmatprep.subr.bf16.mxu0 %v8666
    %8945 = vmatpush1.bf16.msra.mxu0 %v8665
    %8946 = vmatprep.subr.bf16.mxu0 %v8670
    %8947 = vmatpush1.bf16.msra.mxu0 %v8669
    %8948 = vmatprep.subr.bf16.mxu0 %v8674
    %8949 = vmatpush1.bf16.msra.mxu0 %v8673
    %8950 = vmatprep.mubr.bf16.mxu0 %v366
    %8951 = vmatmul.mubr.bf16.gmra.mrb[0].mxu0 %v365
    %v8952 = vpop.f32.mrb[0].mxu0
    %v8953 = vadd.f32 %v8840, %v8952
    %v8954 = vpop.f32.mrb[0].mxu0
    %v8955 = vadd.f32 %v8842, %v8954
    %v8956 = vpop.f32.mrb[0].mxu0
    %v8957 = vadd.f32 %v8844, %v8956
    %v8958 = vpop.f32.mrb[0].mxu0
    %v8959 = vadd.f32 %v8846, %v8958
    %8960 = vmatprep.mubr.bf16.mxu0 %v370
    %8961 = vmatmul.mubr.bf16.gmra.mrb[0].mxu0 %v369
    %v8962 = vpop.f32.mrb[0].mxu0
    %v8963 = vadd.f32 %v8850, %v8962
    %v8964 = vpop.f32.mrb[0].mxu0
    %v8965 = vadd.f32 %v8852, %v8964
    %v8966 = vpop.f32.mrb[0].mxu0
    %v8967 = vadd.f32 %v8854, %v8966
    %v8968 = vpop.f32.mrb[0].mxu0
    %v8969 = vadd.f32 %v8856, %v8968
    %8970 = vmatprep.mubr.bf16.mxu0 %v374
    %8971 = vmatmul.mubr.bf16.gmra.mrb[0].mxu0 %v373
    %v8972 = vpop.f32.mrb[0].mxu0
    %v8973 = vadd.f32 %v8860, %v8972
    %v8974 = vpop.f32.mrb[0].mxu0
    %v8975 = vadd.f32 %v8862, %v8974
    %v8976 = vpop.f32.mrb[0].mxu0
    %v8977 = vadd.f32 %v8864, %v8976
    %v8978 = vpop.f32.mrb[0].mxu0
    %v8979 = vadd.f32 %v8866, %v8978
    %8980 = vmatprep.mubr.bf16.mxu0 %v378
    %8981 = vmatmul.mubr.bf16.gmra.mrb[0].mxu0 %v377
    %v8982 = vpop.f32.mrb[0].mxu0
    %v8983 = vadd.f32 %v8870, %v8982
    %v8984 = vpop.f32.mrb[0].mxu0
    %v8985 = vadd.f32 %v8872, %v8984
    %v8986 = vpop.f32.mrb[0].mxu0
    %v8987 = vadd.f32 %v8874, %v8986
    %v8988 = vpop.f32.mrb[0].mxu0
    %v8989 = vadd.f32 %v8876, %v8988
    %8990 = vmatprep.mubr.bf16.mxu0 %v382
    %8991 = vmatmul.mubr.bf16.gmra.mrb[0].mxu0 %v381
    %v8992 = vpop.f32.mrb[0].mxu0
    %v8993 = vadd.f32 %v8880, %v8992
    %v8994 = vpop.f32.mrb[0].mxu0
    %v8995 = vadd.f32 %v8882, %v8994
    %v8996 = vpop.f32.mrb[0].mxu0
    %v8997 = vadd.f32 %v8884, %v8996
    %v8998 = vpop.f32.mrb[0].mxu0
    %v8999 = vadd.f32 %v8886, %v8998
    %9000 = vmatprep.mubr.bf16.mxu0 %v386
    %9001 = vmatmul.mubr.bf16.gmra.mrb[0].mxu0 %v385
    %v9002 = vpop.f32.mrb[0].mxu0
    %v9003 = vadd.f32 %v8890, %v9002
    %v9004 = vpop.f32.mrb[0].mxu0
    %v9005 = vadd.f32 %v8892, %v9004
    %v9006 = vpop.f32.mrb[0].mxu0
    %v9007 = vadd.f32 %v8894, %v9006
    %v9008 = vpop.f32.mrb[0].mxu0
    %v9009 = vadd.f32 %v8896, %v9008
    %9010 = vmatprep.mubr.bf16.mxu0 %v390
    %9011 = vmatmul.mubr.bf16.gmra.mrb[0].mxu0 %v389
    %v9012 = vpop.f32.mrb[0].mxu0
    %v9013 = vadd.f32 %v8900, %v9012
    %v9014 = vpop.f32.mrb[0].mxu0
    %v9015 = vadd.f32 %v8902, %v9014
    %v9016 = vpop.f32.mrb[0].mxu0
    %v9017 = vadd.f32 %v8904, %v9016
    %v9018 = vpop.f32.mrb[0].mxu0
    %v9019 = vadd.f32 %v8906, %v9018
    %9020 = vmatprep.mubr.bf16.mxu0 %v394
    %9021 = vmatmul.mubr.bf16.gmra.mrb[0].mxu0 %v393
    %v9022 = vpop.f32.mrb[0].mxu0
    %v9023 = vadd.f32 %v8910, %v9022
    %v9024 = vpop.f32.mrb[0].mxu0
    %v9025 = vadd.f32 %v8912, %v9024
    %v9026 = vpop.f32.mrb[0].mxu0
    %v9027 = vadd.f32 %v8914, %v9026
    %v9028 = vpop.f32.mrb[0].mxu0
    %v9029 = vadd.f32 %v8916, %v9028
    %9030 = vdwg.mxu0
    %9031 = vmatprep.subr.bf16.mxu0 %v8552
    %9032 = vmatpush1.bf16.msra.mxu0 %v8551
    %9033 = vmatprep.subr.bf16.mxu0 %v8556
    %9034 = vmatpush1.bf16.msra.mxu0 %v8555
    %9035 = vmatprep.subr.bf16.mxu0 %v8560
    %9036 = vmatpush1.bf16.msra.mxu0 %v8559
    %9037 = vmatprep.subr.bf16.mxu0 %v8564
    %9038 = vmatpush1.bf16.msra.mxu0 %v8563
    %9039 = vmatprep.subr.bf16.mxu0 %v8568
    %9040 = vmatpush1.bf16.msra.mxu0 %v8567
    %9041 = vmatprep.subr.bf16.mxu0 %v8572
    %9042 = vmatpush1.bf16.msra.mxu0 %v8571
    %9043 = vmatprep.subr.bf16.mxu0 %v8576
    %9044 = vmatpush1.bf16.msra.mxu0 %v8575
    %9045 = vmatprep.subr.bf16.mxu0 %v8580
    %9046 = vmatpush1.bf16.msra.mxu0 %v8579
    %9047 = vmatprep.subr.bf16.mxu0 %v8584
    %9048 = vmatpush1.bf16.msra.mxu0 %v8583
    %9049 = vmatprep.subr.bf16.mxu0 %v8588
    %9050 = vmatpush1.bf16.msra.mxu0 %v8587
    %9051 = vmatprep.subr.bf16.mxu0 %v8592
    %9052 = vmatpush1.bf16.msra.mxu0 %v8591
    %9053 = vmatprep.subr.bf16.mxu0 %v8596
    %9054 = vmatpush1.bf16.msra.mxu0 %v8595
    %9055 = vmatprep.subr.bf16.mxu0 %v8600
    %9056 = vmatpush1.bf16.msra.mxu0 %v8599
    %9057 = vmatprep.subr.bf16.mxu0 %v8604
    %9058 = vmatpush1.bf16.msra.mxu0 %v8603
    %9059 = vmatprep.subr.bf16.mxu0 %v8608
    %9060 = vmatpush1.bf16.msra.mxu0 %v8607
    %9061 = vmatprep.subr.bf16.mxu0 %v8612
    %9062 = vmatpush1.bf16.msra.mxu0 %v8611
    %9063 = vmatprep.mubr.bf16.mxu0 %v364
    %9064 = vmatmul.mubr.bf16.gmra.mrb[0].mxu0 %v363
    %v9065 = vpop.f32.mrb[0].mxu0
    %v9066 = vadd.f32 %v8156, %v9065
    %v9067 = vpop.f32.mrb[0].mxu0
    %v9068 = vadd.f32 %v8160, %v9067
    %v9069 = vpop.f32.mrb[0].mxu0
    %v9070 = vadd.f32 %v8156, %v9069
    %v9071 = vpop.f32.mrb[0].mxu0
    %v9072 = vadd.f32 %v8160, %v9071
    %9073 = vmatprep.mubr.bf16.mxu0 %v368
    %9074 = vmatmul.mubr.bf16.gmra.mrb[0].mxu0 %v367
    %v9075 = vpop.f32.mrb[0].mxu0
    %v9076 = vadd.f32 %v8156, %v9075
    %v9077 = vpop.f32.mrb[0].mxu0
    %v9078 = vadd.f32 %v8160, %v9077
    %v9079 = vpop.f32.mrb[0].mxu0
    %v9080 = vadd.f32 %v8156, %v9079
    %v9081 = vpop.f32.mrb[0].mxu0
    %v9082 = vadd.f32 %v8160, %v9081
    %9083 = vmatprep.mubr.bf16.mxu0 %v372
    %9084 = vmatmul.mubr.bf16.gmra.mrb[0].mxu0 %v371
    %v9085 = vpop.f32.mrb[0].mxu0
    %v9086 = vadd.f32 %v8156, %v9085
    %v9087 = vpop.f32.mrb[0].mxu0
    %v9088 = vadd.f32 %v8160, %v9087
    %v9089 = vpop.f32.mrb[0].mxu0
    %v9090 = vadd.f32 %v8156, %v9089
    %v9091 = vpop.f32.mrb[0].mxu0
    %v9092 = vadd.f32 %v8160, %v9091
    %9093 = vmatprep.mubr.bf16.mxu0 %v376
    %9094 = vmatmul.mubr.bf16.gmra.mrb[0].mxu0 %v375
    %v9095 = vpop.f32.mrb[0].mxu0
    %v9096 = vadd.f32 %v8156, %v9095
    %v9097 = vpop.f32.mrb[0].mxu0
    %v9098 = vadd.f32 %v8160, %v9097
    %v9099 = vpop.f32.mrb[0].mxu0
    %v9100 = vadd.f32 %v8156, %v9099
    %v9101 = vpop.f32.mrb[0].mxu0
    %v9102 = vadd.f32 %v8160, %v9101
    %9103 = vmatprep.mubr.bf16.mxu0 %v380
    %9104 = vmatmul.mubr.bf16.gmra.mrb[0].mxu0 %v379
    %v9105 = vpop.f32.mrb[0].mxu0
    %v9106 = vadd.f32 %v8156, %v9105
    %v9107 = vpop.f32.mrb[0].mxu0
    %v9108 = vadd.f32 %v8160, %v9107
    %v9109 = vpop.f32.mrb[0].mxu0
    %v9110 = vadd.f32 %v8156, %v9109
    %v9111 = vpop.f32.mrb[0].mxu0
    %v9112 = vadd.f32 %v8160, %v9111
    %9113 = vmatprep.mubr.bf16.mxu0 %v384
    %9114 = vmatmul.mubr.bf16.gmra.mrb[0].mxu0 %v383
    %v9115 = vpop.f32.mrb[0].mxu0
    %v9116 = vadd.f32 %v8156, %v9115
    %v9117 = vpop.f32.mrb[0].mxu0
    %v9118 = vadd.f32 %v8160, %v9117
    %v9119 = vpop.f32.mrb[0].mxu0
    %v9120 = vadd.f32 %v8156, %v9119
    %v9121 = vpop.f32.mrb[0].mxu0
    %v9122 = vadd.f32 %v8160, %v9121
    %9123 = vmatprep.mubr.bf16.mxu0 %v388
    %9124 = vmatmul.mubr.bf16.gmra.mrb[0].mxu0 %v387
    %v9125 = vpop.f32.mrb[0].mxu0
    %v9126 = vadd.f32 %v8156, %v9125
    %v9127 = vpop.f32.mrb[0].mxu0
    %v9128 = vadd.f32 %v8160, %v9127
    %v9129 = vpop.f32.mrb[0].mxu0
    %v9130 = vadd.f32 %v8156, %v9129
    %v9131 = vpop.f32.mrb[0].mxu0
    %v9132 = vadd.f32 %v8160, %v9131
    %9133 = vmatprep.mubr.bf16.mxu0 %v392
    %9134 = vmatmul.mubr.bf16.gmra.mrb[0].mxu0 %v391
    %v9135 = vpop.f32.mrb[0].mxu0
    %v9136 = vadd.f32 %v8156, %v9135
    %v9137 = vpop.f32.mrb[0].mxu0
    %v9138 = vadd.f32 %v8160, %v9137
    %v9139 = vpop.f32.mrb[0].mxu0
    %v9140 = vadd.f32 %v8156, %v9139
    %v9141 = vpop.f32.mrb[0].mxu0
    %v9142 = vadd.f32 %v8160, %v9141
    %9143 = vdwg.mxu0
    %9144 = vmatprep.subr.bf16.mxu0 %v8616
    %9145 = vmatpush1.bf16.msra.mxu0 %v8615
    %9146 = vmatprep.subr.bf16.mxu0 %v8620
    %9147 = vmatpush1.bf16.msra.mxu0 %v8619
    %9148 = vmatprep.subr.bf16.mxu0 %v8624
    %9149 = vmatpush1.bf16.msra.mxu0 %v8623
    %9150 = vmatprep.subr.bf16.mxu0 %v8628
    %9151 = vmatpush1.bf16.msra.mxu0 %v8627
    %9152 = vmatprep.subr.bf16.mxu0 %v8632
    %9153 = vmatpush1.bf16.msra.mxu0 %v8631
    %9154 = vmatprep.subr.bf16.mxu0 %v8636
    %9155 = vmatpush1.bf16.msra.mxu0 %v8635
    %9156 = vmatprep.subr.bf16.mxu0 %v8640
    %9157 = vmatpush1.bf16.msra.mxu0 %v8639
    %9158 = vmatprep.subr.bf16.mxu0 %v8644
    %9159 = vmatpush1.bf16.msra.mxu0 %v8643
    %9160 = vmatprep.subr.bf16.mxu0 %v8648
    %9161 = vmatpush1.bf16.msra.mxu0 %v8647
    %9162 = vmatprep.subr.bf16.mxu0 %v8652
    %9163 = vmatpush1.bf16.msra.mxu0 %v8651
    %9164 = vmatprep.subr.bf16.mxu0 %v8656
    %9165 = vmatpush1.bf16.msra.mxu0 %v8655
    %9166 = vmatprep.subr.bf16.mxu0 %v8660
    %9167 = vmatpush1.bf16.msra.mxu0 %v8659
    %9168 = vmatprep.subr.bf16.mxu0 %v8664
    %9169 = vmatpush1.bf16.msra.mxu0 %v8663
    %9170 = vmatprep.subr.bf16.mxu0 %v8668
    %9171 = vmatpush1.bf16.msra.mxu0 %v8667
    %9172 = vmatprep.subr.bf16.mxu0 %v8672
    %9173 = vmatpush1.bf16.msra.mxu0 %v8671
    %9174 = vmatprep.subr.bf16.mxu0 %v8676
    %9175 = vmatpush1.bf16.msra.mxu0 %v8675
    %9176 = vmatprep.mubr.bf16.mxu0 %v366
    %9177 = vmatmul.mubr.bf16.gmra.mrb[0].mxu0 %v365
    %v9178 = vpop.f32.mrb[0].mxu0
    %v9179 = vadd.f32 %v9066, %v9178
    %v9180 = vpop.f32.mrb[0].mxu0
    %v9181 = vadd.f32 %v9068, %v9180
    %v9182 = vpop.f32.mrb[0].mxu0
    %v9183 = vadd.f32 %v9070, %v9182
    %v9184 = vpop.f32.mrb[0].mxu0
    %v9185 = vadd.f32 %v9072, %v9184
    %9186 = vmatprep.mubr.bf16.mxu0 %v370
    %9187 = vmatmul.mubr.bf16.gmra.mrb[0].mxu0 %v369
    %v9188 = vpop.f32.mrb[0].mxu0
    %v9189 = vadd.f32 %v9076, %v9188
    %v9190 = vpop.f32.mrb[0].mxu0
    %v9191 = vadd.f32 %v9078, %v9190
    %v9192 = vpop.f32.mrb[0].mxu0
    %v9193 = vadd.f32 %v9080, %v9192
    %v9194 = vpop.f32.mrb[0].mxu0
    %v9195 = vadd.f32 %v9082, %v9194
    %9196 = vmatprep.mubr.bf16.mxu0 %v374
    %9197 = vmatmul.mubr.bf16.gmra.mrb[0].mxu0 %v373
    %v9198 = vpop.f32.mrb[0].mxu0
    %v9199 = vadd.f32 %v9086, %v9198
    %v9200 = vpop.f32.mrb[0].mxu0
    %v9201 = vadd.f32 %v9088, %v9200
    %v9202 = vpop.f32.mrb[0].mxu0
    %v9203 = vadd.f32 %v9090, %v9202
    %v9204 = vpop.f32.mrb[0].mxu0
    %v9205 = vadd.f32 %v9092, %v9204
    %9206 = vmatprep.mubr.bf16.mxu0 %v378
    %9207 = vmatmul.mubr.bf16.gmra.mrb[0].mxu0 %v377
    %v9208 = vpop.f32.mrb[0].mxu0
    %v9209 = vadd.f32 %v9096, %v9208
    %v9210 = vpop.f32.mrb[0].mxu0
    %v9211 = vadd.f32 %v9098, %v9210
    %v9212 = vpop.f32.mrb[0].mxu0
    %v9213 = vadd.f32 %v9100, %v9212
    %v9214 = vpop.f32.mrb[0].mxu0
    %v9215 = vadd.f32 %v9102, %v9214
    %9216 = vmatprep.mubr.bf16.mxu0 %v382
    %9217 = vmatmul.mubr.bf16.gmra.mrb[0].mxu0 %v381
    %v9218 = vpop.f32.mrb[0].mxu0
    %v9219 = vadd.f32 %v9106, %v9218
    %v9220 = vpop.f32.mrb[0].mxu0
    %v9221 = vadd.f32 %v9108, %v9220
    %v9222 = vpop.f32.mrb[0].mxu0
    %v9223 = vadd.f32 %v9110, %v9222
    %v9224 = vpop.f32.mrb[0].mxu0
    %v9225 = vadd.f32 %v9112, %v9224
    %9226 = vmatprep.mubr.bf16.mxu0 %v386
    %9227 = vmatmul.mubr.bf16.gmra.mrb[0].mxu0 %v385
    %v9228 = vpop.f32.mrb[0].mxu0
    %v9229 = vadd.f32 %v9116, %v9228
    %v9230 = vpop.f32.mrb[0].mxu0
    %v9231 = vadd.f32 %v9118, %v9230
    %v9232 = vpop.f32.mrb[0].mxu0
    %v9233 = vadd.f32 %v9120, %v9232
    %v9234 = vpop.f32.mrb[0].mxu0
    %v9235 = vadd.f32 %v9122, %v9234
    %9236 = vmatprep.mubr.bf16.mxu0 %v390
    %9237 = vmatmul.mubr.bf16.gmra.mrb[0].mxu0 %v389
    %v9238 = vpop.f32.mrb[0].mxu0
    %v9239 = vadd.f32 %v9126, %v9238
    %v9240 = vpop.f32.mrb[0].mxu0
    %v9241 = vadd.f32 %v9128, %v9240
    %v9242 = vpop.f32.mrb[0].mxu0
    %v9243 = vadd.f32 %v9130, %v9242
    %v9244 = vpop.f32.mrb[0].mxu0
    %v9245 = vadd.f32 %v9132, %v9244
    %9246 = vmatprep.mubr.bf16.mxu0 %v394
    %9247 = vmatmul.mubr.bf16.gmra.mrb[0].mxu0 %v393
    %v9248 = vpop.f32.mrb[0].mxu0
    %v9249 = vadd.f32 %v9136, %v9248
    %v9250 = vpop.f32.mrb[0].mxu0
    %v9251 = vadd.f32 %v9138, %v9250
    %v9252 = vpop.f32.mrb[0].mxu0
    %v9253 = vadd.f32 %v9140, %v9252
    %v9254 = vpop.f32.mrb[0].mxu0
    %v9255 = vadd.f32 %v9142, %v9254
    %9256 = vdwg.mxu0
    %v9257 = vmax.f32 %v8953, 0.0
    %v9258 = vmax.f32 %v8955, 0.0
    %v9259 = vmax.f32 %v9179, 0.0
    %v9260 = vmax.f32 %v9181, 0.0
    %v9261 = vmax.f32 %v8957, 0.0
    %v9262 = vmax.f32 %v8959, 0.0
    %v9263 = vmax.f32 %v9183, 0.0
    %v9264 = vmax.f32 %v9185, 0.0
    %v9265 = vmax.f32 %v8963, 0.0
    %v9266 = vmax.f32 %v8965, 0.0
    %v9267 = vmax.f32 %v9189, 0.0
    %v9268 = vmax.f32 %v9191, 0.0
    %v9269 = vmax.f32 %v8967, 0.0
    %v9270 = vmax.f32 %v8969, 0.0
    %v9271 = vmax.f32 %v9193, 0.0
    %v9272 = vmax.f32 %v9195, 0.0
    %v9273 = vmax.f32 %v8973, 0.0
    %v9274 = vmax.f32 %v8975, 0.0
    %v9275 = vmax.f32 %v9199, 0.0
    %v9276 = vmax.f32 %v9201, 0.0
    %v9277 = vmax.f32 %v8977, 0.0
    %v9278 = vmax.f32 %v8979, 0.0
    %v9279 = vmax.f32 %v9203, 0.0
    %v9280 = vmax.f32 %v9205, 0.0
    %v9281 = vmax.f32 %v8983, 0.0
    %v9282 = vmax.f32 %v8985, 0.0
    %v9283 = vmax.f32 %v9209, 0.0
    %v9284 = vmax.f32 %v9211, 0.0
    %v9285 = vmax.f32 %v8987, 0.0
    %v9286 = vmax.f32 %v8989, 0.0
    %v9287 = vmax.f32 %v9213, 0.0
    %v9288 = vmax.f32 %v9215, 0.0
    %v9289 = vmax.f32 %v8993, 0.0
    %v9290 = vmax.f32 %v8995, 0.0
    %v9291 = vmax.f32 %v9219, 0.0
    %v9292 = vmax.f32 %v9221, 0.0
    %v9293 = vmax.f32 %v8997, 0.0
    %v9294 = vmax.f32 %v8999, 0.0
    %v9295 = vmax.f32 %v9223, 0.0
    %v9296 = vmax.f32 %v9225, 0.0
    %v9297 = vmax.f32 %v9003, 0.0
    %v9298 = vmax.f32 %v9005, 0.0
    %v9299 = vmax.f32 %v9229, 0.0
    %v9300 = vmax.f32 %v9231, 0.0
    %v9301 = vmax.f32 %v9007, 0.0
    %v9302 = vmax.f32 %v9009, 0.0
    %v9303 = vmax.f32 %v9233, 0.0
    %v9304 = vmax.f32 %v9235, 0.0
    %v9305 = vmax.f32 %v9013, 0.0
    %v9306 = vmax.f32 %v9015, 0.0
    %v9307 = vmax.f32 %v9239, 0.0
    %v9308 = vmax.f32 %v9241, 0.0
    %v9309 = vmax.f32 %v9017, 0.0
    %v9310 = vmax.f32 %v9019, 0.0
    %v9311 = vmax.f32 %v9243, 0.0
    %v9312 = vmax.f32 %v9245, 0.0
    %v9313 = vmax.f32 %v9023, 0.0
    %v9314 = vmax.f32 %v9025, 0.0
    %v9315 = vmax.f32 %v9249, 0.0
    %v9316 = vmax.f32 %v9251, 0.0
    %v9317 = vmax.f32 %v9027, 0.0
    %v9318 = vmax.f32 %v9029, 0.0
    %v9319 = vmax.f32 %v9253, 0.0
    %v9320 = vmax.f32 %v9255, 0.0
    %v9321 = vpack.c.bf16 %v9261, %v9257
    %v9322 = vpack.c.bf16 %v9262, %v9258
    %v9323 = vpack.c.bf16 %v9263, %v9259
    %v9324 = vpack.c.bf16 %v9264, %v9260
    %v9325 = vpack.c.bf16 %v9269, %v9265
    %v9326 = vpack.c.bf16 %v9270, %v9266
    %v9327 = vpack.c.bf16 %v9271, %v9267
    %v9328 = vpack.c.bf16 %v9272, %v9268
    %v9329 = vpack.c.bf16 %v9277, %v9273
    %v9330 = vpack.c.bf16 %v9278, %v9274
    %v9331 = vpack.c.bf16 %v9279, %v9275
    %v9332 = vpack.c.bf16 %v9280, %v9276
    %v9333 = vpack.c.bf16 %v9285, %v9281
    %v9334 = vpack.c.bf16 %v9286, %v9282
    %v9335 = vpack.c.bf16 %v9287, %v9283
    %v9336 = vpack.c.bf16 %v9288, %v9284
    %v9337 = vpack.c.bf16 %v9293, %v9289
    %v9338 = vpack.c.bf16 %v9294, %v9290
    %v9339 = vpack.c.bf16 %v9295, %v9291
    %v9340 = vpack.c.bf16 %v9296, %v9292
    %v9341 = vpack.c.bf16 %v9301, %v9297
    %v9342 = vpack.c.bf16 %v9302, %v9298
    %v9343 = vpack.c.bf16 %v9303, %v9299
    %v9344 = vpack.c.bf16 %v9304, %v9300
    %v9345 = vpack.c.bf16 %v9309, %v9305
    %v9346 = vpack.c.bf16 %v9310, %v9306
    %v9347 = vpack.c.bf16 %v9311, %v9307
    %v9348 = vpack.c.bf16 %v9312, %v9308
    %v9349 = vpack.c.bf16 %v9317, %v9313
    %v9350 = vpack.c.bf16 %v9318, %v9314
    %v9351 = vpack.c.bf16 %v9319, %v9315
    %v9352 = vpack.c.bf16 %v9320, %v9316
    %v9353 = vld [vmem:[#allocation8 + $0xc00] sm:$0xff]
    %v9354 = vld [vmem:[#allocation8 + $0xc08] sm:$0xff]
    %v9355 = vld [vmem:[#allocation8 + $0xc10] sm:$0xff]
    %v9356 = vld [vmem:[#allocation8 + $0xc18] sm:$0xff]
    %v9357 = vld [vmem:[#allocation8 + $0xc20] sm:$0xff]
    %v9358 = vld [vmem:[#allocation8 + $0xc28] sm:$0xff]
    %v9359 = vld [vmem:[#allocation8 + $0xc30] sm:$0xff]
    %v9360 = vld [vmem:[#allocation8 + $0xc38] sm:$0xff]
    %v9361 = vld [vmem:[#allocation8 + $0xc40] sm:$0xff]
    %v9362 = vld [vmem:[#allocation8 + $0xc48] sm:$0xff]
    %v9363 = vld [vmem:[#allocation8 + $0xc50] sm:$0xff]
    %v9364 = vld [vmem:[#allocation8 + $0xc58] sm:$0xff]
    %v9365 = vld [vmem:[#allocation8 + $0xc60] sm:$0xff]
    %v9366 = vld [vmem:[#allocation8 + $0xc68] sm:$0xff]
    %v9367 = vld [vmem:[#allocation8 + $0xc70] sm:$0xff]
    %v9368 = vld [vmem:[#allocation8 + $0xc78] sm:$0xff]
    %v9369 = vld [vmem:[#allocation8 + $0xc80] sm:$0xff]
    %v9370 = vld [vmem:[#allocation8 + $0xc88] sm:$0xff]
    %v9371 = vld [vmem:[#allocation8 + $0xc90] sm:$0xff]
    %v9372 = vld [vmem:[#allocation8 + $0xc98] sm:$0xff]
    %v9373 = vld [vmem:[#allocation8 + $0xca0] sm:$0xff]
    %v9374 = vld [vmem:[#allocation8 + $0xca8] sm:$0xff]
    %v9375 = vld [vmem:[#allocation8 + $0xcb0] sm:$0xff]
    %v9376 = vld [vmem:[#allocation8 + $0xcb8] sm:$0xff]
    %v9377 = vld [vmem:[#allocation8 + $0xcc0] sm:$0xff]
    %v9378 = vld [vmem:[#allocation8 + $0xcc8] sm:$0xff]
    %v9379 = vld [vmem:[#allocation8 + $0xcd0] sm:$0xff]
    %v9380 = vld [vmem:[#allocation8 + $0xcd8] sm:$0xff]
    %v9381 = vld [vmem:[#allocation8 + $0xce0] sm:$0xff]
    %v9382 = vld [vmem:[#allocation8 + $0xce8] sm:$0xff]
    %v9383 = vld [vmem:[#allocation8 + $0xcf0] sm:$0xff]
    %v9384 = vld [vmem:[#allocation8 + $0xcf8] sm:$0xff]
    %v9385 = vld [vmem:[#allocation8 + $0xd00] sm:$0xff]
    %v9386 = vld [vmem:[#allocation8 + $0xd08] sm:$0xff]
    %v9387 = vld [vmem:[#allocation8 + $0xd10] sm:$0xff]
    %v9388 = vld [vmem:[#allocation8 + $0xd18] sm:$0xff]
    %v9389 = vld [vmem:[#allocation8 + $0xd20] sm:$0xff]
    %v9390 = vld [vmem:[#allocation8 + $0xd28] sm:$0xff]
    %v9391 = vld [vmem:[#allocation8 + $0xd30] sm:$0xff]
    %v9392 = vld [vmem:[#allocation8 + $0xd38] sm:$0xff]
    %v9393 = vld [vmem:[#allocation8 + $0xd40] sm:$0xff]
    %v9394 = vld [vmem:[#allocation8 + $0xd48] sm:$0xff]
    %v9395 = vld [vmem:[#allocation8 + $0xd50] sm:$0xff]
    %v9396 = vld [vmem:[#allocation8 + $0xd58] sm:$0xff]
    %v9397 = vld [vmem:[#allocation8 + $0xd60] sm:$0xff]
    %v9398 = vld [vmem:[#allocation8 + $0xd68] sm:$0xff]
    %v9399 = vld [vmem:[#allocation8 + $0xd70] sm:$0xff]
    %v9400 = vld [vmem:[#allocation8 + $0xd78] sm:$0xff]
    %v9401 = vld [vmem:[#allocation8 + $0xd80] sm:$0xff]
    %v9402 = vld [vmem:[#allocation8 + $0xd88] sm:$0xff]
    %v9403 = vld [vmem:[#allocation8 + $0xd90] sm:$0xff]
    %v9404 = vld [vmem:[#allocation8 + $0xd98] sm:$0xff]
    %v9405 = vld [vmem:[#allocation8 + $0xda0] sm:$0xff]
    %v9406 = vld [vmem:[#allocation8 + $0xda8] sm:$0xff]
    %v9407 = vld [vmem:[#allocation8 + $0xdb0] sm:$0xff]
    %v9408 = vld [vmem:[#allocation8 + $0xdb8] sm:$0xff]
    %v9409 = vld [vmem:[#allocation8 + $0xdc0] sm:$0xff]
    %v9410 = vld [vmem:[#allocation8 + $0xdc8] sm:$0xff]
    %v9411 = vld [vmem:[#allocation8 + $0xdd0] sm:$0xff]
    %v9412 = vld [vmem:[#allocation8 + $0xdd8] sm:$0xff]
    %v9413 = vld [vmem:[#allocation8 + $0xde0] sm:$0xff]
    %v9414 = vld [vmem:[#allocation8 + $0xde8] sm:$0xff]
    %v9415 = vld [vmem:[#allocation8 + $0xdf0] sm:$0xff]
    %v9416 = vld [vmem:[#allocation8 + $0xdf8] sm:$0xff]
    %v9417 = vld [vmem:[#allocation8 + $0xe00] sm:$0xff]
    %v9418 = vld [vmem:[#allocation8 + $0xe08] sm:$0xff]
    %v9419 = vld [vmem:[#allocation8 + $0xe10] sm:$0xff]
    %v9420 = vld [vmem:[#allocation8 + $0xe18] sm:$0xff]
    %v9421 = vld [vmem:[#allocation8 + $0xe20] sm:$0xff]
    %v9422 = vld [vmem:[#allocation8 + $0xe28] sm:$0xff]
    %v9423 = vld [vmem:[#allocation8 + $0xe30] sm:$0xff]
    %v9424 = vld [vmem:[#allocation8 + $0xe38] sm:$0xff]
    %v9425 = vld [vmem:[#allocation8 + $0xe40] sm:$0xff]
    %v9426 = vld [vmem:[#allocation8 + $0xe48] sm:$0xff]
    %v9427 = vld [vmem:[#allocation8 + $0xe50] sm:$0xff]
    %v9428 = vld [vmem:[#allocation8 + $0xe58] sm:$0xff]
    %v9429 = vld [vmem:[#allocation8 + $0xe60] sm:$0xff]
    %v9430 = vld [vmem:[#allocation8 + $0xe68] sm:$0xff]
    %v9431 = vld [vmem:[#allocation8 + $0xe70] sm:$0xff]
    %v9432 = vld [vmem:[#allocation8 + $0xe78] sm:$0xff]
    %v9433 = vld [vmem:[#allocation8 + $0xe80] sm:$0xff]
    %v9434 = vld [vmem:[#allocation8 + $0xe88] sm:$0xff]
    %v9435 = vld [vmem:[#allocation8 + $0xe90] sm:$0xff]
    %v9436 = vld [vmem:[#allocation8 + $0xe98] sm:$0xff]
    %v9437 = vld [vmem:[#allocation8 + $0xea0] sm:$0xff]
    %v9438 = vld [vmem:[#allocation8 + $0xea8] sm:$0xff]
    %v9439 = vld [vmem:[#allocation8 + $0xeb0] sm:$0xff]
    %v9440 = vld [vmem:[#allocation8 + $0xeb8] sm:$0xff]
    %v9441 = vld [vmem:[#allocation8 + $0xec0] sm:$0xff]
    %v9442 = vld [vmem:[#allocation8 + $0xec8] sm:$0xff]
    %v9443 = vld [vmem:[#allocation8 + $0xed0] sm:$0xff]
    %v9444 = vld [vmem:[#allocation8 + $0xed8] sm:$0xff]
    %v9445 = vld [vmem:[#allocation8 + $0xee0] sm:$0xff]
    %v9446 = vld [vmem:[#allocation8 + $0xee8] sm:$0xff]
    %v9447 = vld [vmem:[#allocation8 + $0xef0] sm:$0xff]
    %v9448 = vld [vmem:[#allocation8 + $0xef8] sm:$0xff]
    %v9449 = vld [vmem:[#allocation8 + $0xf00] sm:$0xff]
    %v9450 = vld [vmem:[#allocation8 + $0xf08] sm:$0xff]
    %v9451 = vld [vmem:[#allocation8 + $0xf10] sm:$0xff]
    %v9452 = vld [vmem:[#allocation8 + $0xf18] sm:$0xff]
    %v9453 = vld [vmem:[#allocation8 + $0xf20] sm:$0xff]
    %v9454 = vld [vmem:[#allocation8 + $0xf28] sm:$0xff]
    %v9455 = vld [vmem:[#allocation8 + $0xf30] sm:$0xff]
    %v9456 = vld [vmem:[#allocation8 + $0xf38] sm:$0xff]
    %v9457 = vld [vmem:[#allocation8 + $0xf40] sm:$0xff]
    %v9458 = vld [vmem:[#allocation8 + $0xf48] sm:$0xff]
    %v9459 = vld [vmem:[#allocation8 + $0xf50] sm:$0xff]
    %v9460 = vld [vmem:[#allocation8 + $0xf58] sm:$0xff]
    %v9461 = vld [vmem:[#allocation8 + $0xf60] sm:$0xff]
    %v9462 = vld [vmem:[#allocation8 + $0xf68] sm:$0xff]
    %v9463 = vld [vmem:[#allocation8 + $0xf70] sm:$0xff]
    %v9464 = vld [vmem:[#allocation8 + $0xf78] sm:$0xff]
    %v9465 = vld [vmem:[#allocation8 + $0xf80] sm:$0xff]
    %v9466 = vld [vmem:[#allocation8 + $0xf88] sm:$0xff]
    %v9467 = vld [vmem:[#allocation8 + $0xf90] sm:$0xff]
    %v9468 = vld [vmem:[#allocation8 + $0xf98] sm:$0xff]
    %v9469 = vld [vmem:[#allocation8 + $0xfa0] sm:$0xff]
    %v9470 = vld [vmem:[#allocation8 + $0xfa8] sm:$0xff]
    %v9471 = vld [vmem:[#allocation8 + $0xfb0] sm:$0xff]
    %v9472 = vld [vmem:[#allocation8 + $0xfb8] sm:$0xff]
    %v9473 = vld [vmem:[#allocation8 + $0xfc0] sm:$0xff]
    %v9474 = vld [vmem:[#allocation8 + $0xfc8] sm:$0xff]
    %v9475 = vld [vmem:[#allocation8 + $0xfd0] sm:$0xff]
    %v9476 = vld [vmem:[#allocation8 + $0xfd8] sm:$0xff]
    %v9477 = vld [vmem:[#allocation8 + $0xfe0] sm:$0xff]
    %v9478 = vld [vmem:[#allocation8 + $0xfe8] sm:$0xff]
    %v9479 = vld [vmem:[#allocation8 + $0xff0] sm:$0xff]
    %v9480 = vld [vmem:[#allocation8 + $0xff8] sm:$0xff]
    %v9609 = vunpack.c.l.b16 %v9353
    %v9610 = vunpack.c.h.b16 %v9353
    %v9611 = vunpack.c.l.b16 %v9354
    %v9612 = vunpack.c.h.b16 %v9354
    %v9613 = vunpack.c.l.b16 %v9355
    %v9614 = vunpack.c.h.b16 %v9355
    %v9615 = vunpack.c.l.b16 %v9356
    %v9616 = vunpack.c.h.b16 %v9356
    %v9617 = vunpack.c.l.b16 %v9357
    %v9618 = vunpack.c.h.b16 %v9357
    %v9619 = vunpack.c.l.b16 %v9358
    %v9620 = vunpack.c.h.b16 %v9358
    %v9621 = vunpack.c.l.b16 %v9359
    %v9622 = vunpack.c.h.b16 %v9359
    %v9623 = vunpack.c.l.b16 %v9360
    %v9624 = vunpack.c.h.b16 %v9360
    %v9625 = vunpack.c.l.b16 %v9361
    %v9626 = vunpack.c.h.b16 %v9361
    %v9627 = vunpack.c.l.b16 %v9362
    %v9628 = vunpack.c.h.b16 %v9362
    %v9629 = vunpack.c.l.b16 %v9363
    %v9630 = vunpack.c.h.b16 %v9363
    %v9631 = vunpack.c.l.b16 %v9364
    %v9632 = vunpack.c.h.b16 %v9364
    %v9633 = vunpack.c.l.b16 %v9365
    %v9634 = vunpack.c.h.b16 %v9365
    %v9635 = vunpack.c.l.b16 %v9366
    %v9636 = vunpack.c.h.b16 %v9366
    %v9637 = vunpack.c.l.b16 %v9367
    %v9638 = vunpack.c.h.b16 %v9367
    %v9639 = vunpack.c.l.b16 %v9368
    %v9640 = vunpack.c.h.b16 %v9368
    %v9641 = vunpack.c.l.b16 %v9369
    %v9642 = vunpack.c.h.b16 %v9369
    %v9643 = vunpack.c.l.b16 %v9370
    %v9644 = vunpack.c.h.b16 %v9370
    %v9645 = vunpack.c.l.b16 %v9371
    %v9646 = vunpack.c.h.b16 %v9371
    %v9647 = vunpack.c.l.b16 %v9372
    %v9648 = vunpack.c.h.b16 %v9372
    %v9649 = vunpack.c.l.b16 %v9373
    %v9650 = vunpack.c.h.b16 %v9373
    %v9651 = vunpack.c.l.b16 %v9374
    %v9652 = vunpack.c.h.b16 %v9374
    %v9653 = vunpack.c.l.b16 %v9375
    %v9654 = vunpack.c.h.b16 %v9375
    %v9655 = vunpack.c.l.b16 %v9376
    %v9656 = vunpack.c.h.b16 %v9376
    %v9657 = vunpack.c.l.b16 %v9377
    %v9658 = vunpack.c.h.b16 %v9377
    %v9659 = vunpack.c.l.b16 %v9378
    %v9660 = vunpack.c.h.b16 %v9378
    %v9661 = vunpack.c.l.b16 %v9379
    %v9662 = vunpack.c.h.b16 %v9379
    %v9663 = vunpack.c.l.b16 %v9380
    %v9664 = vunpack.c.h.b16 %v9380
    %v9665 = vunpack.c.l.b16 %v9381
    %v9666 = vunpack.c.h.b16 %v9381
    %v9667 = vunpack.c.l.b16 %v9382
    %v9668 = vunpack.c.h.b16 %v9382
    %v9669 = vunpack.c.l.b16 %v9383
    %v9670 = vunpack.c.h.b16 %v9383
    %v9671 = vunpack.c.l.b16 %v9384
    %v9672 = vunpack.c.h.b16 %v9384
    %v9673 = vunpack.c.l.b16 %v9385
    %v9674 = vunpack.c.h.b16 %v9385
    %v9675 = vunpack.c.l.b16 %v9386
    %v9676 = vunpack.c.h.b16 %v9386
    %v9677 = vunpack.c.l.b16 %v9387
    %v9678 = vunpack.c.h.b16 %v9387
    %v9679 = vunpack.c.l.b16 %v9388
    %v9680 = vunpack.c.h.b16 %v9388
    %v9681 = vunpack.c.l.b16 %v9389
    %v9682 = vunpack.c.h.b16 %v9389
    %v9683 = vunpack.c.l.b16 %v9390
    %v9684 = vunpack.c.h.b16 %v9390
    %v9685 = vunpack.c.l.b16 %v9391
    %v9686 = vunpack.c.h.b16 %v9391
    %v9687 = vunpack.c.l.b16 %v9392
    %v9688 = vunpack.c.h.b16 %v9392
    %v9689 = vunpack.c.l.b16 %v9393
    %v9690 = vunpack.c.h.b16 %v9393
    %v9691 = vunpack.c.l.b16 %v9394
    %v9692 = vunpack.c.h.b16 %v9394
    %v9693 = vunpack.c.l.b16 %v9395
    %v9694 = vunpack.c.h.b16 %v9395
    %v9695 = vunpack.c.l.b16 %v9396
    %v9696 = vunpack.c.h.b16 %v9396
    %v9697 = vunpack.c.l.b16 %v9397
    %v9698 = vunpack.c.h.b16 %v9397
    %v9699 = vunpack.c.l.b16 %v9398
    %v9700 = vunpack.c.h.b16 %v9398
    %v9701 = vunpack.c.l.b16 %v9399
    %v9702 = vunpack.c.h.b16 %v9399
    %v9703 = vunpack.c.l.b16 %v9400
    %v9704 = vunpack.c.h.b16 %v9400
    %v9705 = vunpack.c.l.b16 %v9401
    %v9706 = vunpack.c.h.b16 %v9401
    %v9707 = vunpack.c.l.b16 %v9402
    %v9708 = vunpack.c.h.b16 %v9402
    %v9709 = vunpack.c.l.b16 %v9403
    %v9710 = vunpack.c.h.b16 %v9403
    %v9711 = vunpack.c.l.b16 %v9404
    %v9712 = vunpack.c.h.b16 %v9404
    %v9713 = vunpack.c.l.b16 %v9405
    %v9714 = vunpack.c.h.b16 %v9405
    %v9715 = vunpack.c.l.b16 %v9406
    %v9716 = vunpack.c.h.b16 %v9406
    %v9717 = vunpack.c.l.b16 %v9407
    %v9718 = vunpack.c.h.b16 %v9407
    %v9719 = vunpack.c.l.b16 %v9408
    %v9720 = vunpack.c.h.b16 %v9408
    %v9721 = vunpack.c.l.b16 %v9409
    %v9722 = vunpack.c.h.b16 %v9409
    %v9723 = vunpack.c.l.b16 %v9410
    %v9724 = vunpack.c.h.b16 %v9410
    %v9725 = vunpack.c.l.b16 %v9411
    %v9726 = vunpack.c.h.b16 %v9411
    %v9727 = vunpack.c.l.b16 %v9412
    %v9728 = vunpack.c.h.b16 %v9412
    %v9729 = vunpack.c.l.b16 %v9413
    %v9730 = vunpack.c.h.b16 %v9413
    %v9731 = vunpack.c.l.b16 %v9414
    %v9732 = vunpack.c.h.b16 %v9414
    %v9733 = vunpack.c.l.b16 %v9415
    %v9734 = vunpack.c.h.b16 %v9415
    %v9735 = vunpack.c.l.b16 %v9416
    %v9736 = vunpack.c.h.b16 %v9416
    %v9737 = vunpack.c.l.b16 %v9417
    %v9738 = vunpack.c.h.b16 %v9417
    %v9739 = vunpack.c.l.b16 %v9418
    %v9740 = vunpack.c.h.b16 %v9418
    %v9741 = vunpack.c.l.b16 %v9419
    %v9742 = vunpack.c.h.b16 %v9419
    %v9743 = vunpack.c.l.b16 %v9420
    %v9744 = vunpack.c.h.b16 %v9420
    %v9745 = vunpack.c.l.b16 %v9421
    %v9746 = vunpack.c.h.b16 %v9421
    %v9747 = vunpack.c.l.b16 %v9422
    %v9748 = vunpack.c.h.b16 %v9422
    %v9749 = vunpack.c.l.b16 %v9423
    %v9750 = vunpack.c.h.b16 %v9423
    %v9751 = vunpack.c.l.b16 %v9424
    %v9752 = vunpack.c.h.b16 %v9424
    %v9753 = vunpack.c.l.b16 %v9425
    %v9754 = vunpack.c.h.b16 %v9425
    %v9755 = vunpack.c.l.b16 %v9426
    %v9756 = vunpack.c.h.b16 %v9426
    %v9757 = vunpack.c.l.b16 %v9427
    %v9758 = vunpack.c.h.b16 %v9427
    %v9759 = vunpack.c.l.b16 %v9428
    %v9760 = vunpack.c.h.b16 %v9428
    %v9761 = vunpack.c.l.b16 %v9429
    %v9762 = vunpack.c.h.b16 %v9429
    %v9763 = vunpack.c.l.b16 %v9430
    %v9764 = vunpack.c.h.b16 %v9430
    %v9765 = vunpack.c.l.b16 %v9431
    %v9766 = vunpack.c.h.b16 %v9431
    %v9767 = vunpack.c.l.b16 %v9432
    %v9768 = vunpack.c.h.b16 %v9432
    %v9769 = vunpack.c.l.b16 %v9433
    %v9770 = vunpack.c.h.b16 %v9433
    %v9771 = vunpack.c.l.b16 %v9434
    %v9772 = vunpack.c.h.b16 %v9434
    %v9773 = vunpack.c.l.b16 %v9435
    %v9774 = vunpack.c.h.b16 %v9435
    %v9775 = vunpack.c.l.b16 %v9436
    %v9776 = vunpack.c.h.b16 %v9436
    %v9777 = vunpack.c.l.b16 %v9437
    %v9778 = vunpack.c.h.b16 %v9437
    %v9779 = vunpack.c.l.b16 %v9438
    %v9780 = vunpack.c.h.b16 %v9438
    %v9781 = vunpack.c.l.b16 %v9439
    %v9782 = vunpack.c.h.b16 %v9439
    %v9783 = vunpack.c.l.b16 %v9440
    %v9784 = vunpack.c.h.b16 %v9440
    %v9785 = vunpack.c.l.b16 %v9441
    %v9786 = vunpack.c.h.b16 %v9441
    %v9787 = vunpack.c.l.b16 %v9442
    %v9788 = vunpack.c.h.b16 %v9442
    %v9789 = vunpack.c.l.b16 %v9443
    %v9790 = vunpack.c.h.b16 %v9443
    %v9791 = vunpack.c.l.b16 %v9444
    %v9792 = vunpack.c.h.b16 %v9444
    %v9793 = vunpack.c.l.b16 %v9445
    %v9794 = vunpack.c.h.b16 %v9445
    %v9795 = vunpack.c.l.b16 %v9446
    %v9796 = vunpack.c.h.b16 %v9446
    %v9797 = vunpack.c.l.b16 %v9447
    %v9798 = vunpack.c.h.b16 %v9447
    %v9799 = vunpack.c.l.b16 %v9448
    %v9800 = vunpack.c.h.b16 %v9448
    %v9801 = vunpack.c.l.b16 %v9449
    %v9802 = vunpack.c.h.b16 %v9449
    %v9803 = vunpack.c.l.b16 %v9450
    %v9804 = vunpack.c.h.b16 %v9450
    %v9805 = vunpack.c.l.b16 %v9451
    %v9806 = vunpack.c.h.b16 %v9451
    %v9807 = vunpack.c.l.b16 %v9452
    %v9808 = vunpack.c.h.b16 %v9452
    %v9809 = vunpack.c.l.b16 %v9453
    %v9810 = vunpack.c.h.b16 %v9453
    %v9811 = vunpack.c.l.b16 %v9454
    %v9812 = vunpack.c.h.b16 %v9454
    %v9813 = vunpack.c.l.b16 %v9455
    %v9814 = vunpack.c.h.b16 %v9455
    %v9815 = vunpack.c.l.b16 %v9456
    %v9816 = vunpack.c.h.b16 %v9456
    %v9817 = vunpack.c.l.b16 %v9457
    %v9818 = vunpack.c.h.b16 %v9457
    %v9819 = vunpack.c.l.b16 %v9458
    %v9820 = vunpack.c.h.b16 %v9458
    %v9821 = vunpack.c.l.b16 %v9459
    %v9822 = vunpack.c.h.b16 %v9459
    %v9823 = vunpack.c.l.b16 %v9460
    %v9824 = vunpack.c.h.b16 %v9460
    %v9825 = vunpack.c.l.b16 %v9461
    %v9826 = vunpack.c.h.b16 %v9461
    %v9827 = vunpack.c.l.b16 %v9462
    %v9828 = vunpack.c.h.b16 %v9462
    %v9829 = vunpack.c.l.b16 %v9463
    %v9830 = vunpack.c.h.b16 %v9463
    %v9831 = vunpack.c.l.b16 %v9464
    %v9832 = vunpack.c.h.b16 %v9464
    %v9833 = vunpack.c.l.b16 %v9465
    %v9834 = vunpack.c.h.b16 %v9465
    %v9835 = vunpack.c.l.b16 %v9466
    %v9836 = vunpack.c.h.b16 %v9466
    %v9837 = vunpack.c.l.b16 %v9467
    %v9838 = vunpack.c.h.b16 %v9467
    %v9839 = vunpack.c.l.b16 %v9468
    %v9840 = vunpack.c.h.b16 %v9468
    %v9841 = vunpack.c.l.b16 %v9469
    %v9842 = vunpack.c.h.b16 %v9469
    %v9843 = vunpack.c.l.b16 %v9470
    %v9844 = vunpack.c.h.b16 %v9470
    %v9845 = vunpack.c.l.b16 %v9471
    %v9846 = vunpack.c.h.b16 %v9471
    %v9847 = vunpack.c.l.b16 %v9472
    %v9848 = vunpack.c.h.b16 %v9472
    %v9849 = vunpack.c.l.b16 %v9473
    %v9850 = vunpack.c.h.b16 %v9473
    %v9851 = vunpack.c.l.b16 %v9474
    %v9852 = vunpack.c.h.b16 %v9474
    %v9853 = vunpack.c.l.b16 %v9475
    %v9854 = vunpack.c.h.b16 %v9475
    %v9855 = vunpack.c.l.b16 %v9476
    %v9856 = vunpack.c.h.b16 %v9476
    %v9857 = vunpack.c.l.b16 %v9477
    %v9858 = vunpack.c.h.b16 %v9477
    %v9859 = vunpack.c.l.b16 %v9478
    %v9860 = vunpack.c.h.b16 %v9478
    %v9861 = vunpack.c.l.b16 %v9479
    %v9862 = vunpack.c.h.b16 %v9479
    %v9863 = vunpack.c.l.b16 %v9480
    %v9864 = vunpack.c.h.b16 %v9480
    %v9865 = vpack.c.b16 %v9613, %v9609
    %v9866 = vpack.c.b16 %v9614, %v9610
    %v9867 = vpack.c.b16 %v9615, %v9611
    %v9868 = vpack.c.b16 %v9616, %v9612
    %v9869 = vpack.c.b16 %v9621, %v9617
    %v9870 = vpack.c.b16 %v9622, %v9618
    %v9871 = vpack.c.b16 %v9623, %v9619
    %v9872 = vpack.c.b16 %v9624, %v9620
    %v9873 = vpack.c.b16 %v9629, %v9625
    %v9874 = vpack.c.b16 %v9630, %v9626
    %v9875 = vpack.c.b16 %v9631, %v9627
    %v9876 = vpack.c.b16 %v9632, %v9628
    %v9877 = vpack.c.b16 %v9637, %v9633
    %v9878 = vpack.c.b16 %v9638, %v9634
    %v9879 = vpack.c.b16 %v9639, %v9635
    %v9880 = vpack.c.b16 %v9640, %v9636
    %v9881 = vpack.c.b16 %v9645, %v9641
    %v9882 = vpack.c.b16 %v9646, %v9642
    %v9883 = vpack.c.b16 %v9647, %v9643
    %v9884 = vpack.c.b16 %v9648, %v9644
    %v9885 = vpack.c.b16 %v9653, %v9649
    %v9886 = vpack.c.b16 %v9654, %v9650
    %v9887 = vpack.c.b16 %v9655, %v9651
    %v9888 = vpack.c.b16 %v9656, %v9652
    %v9889 = vpack.c.b16 %v9661, %v9657
    %v9890 = vpack.c.b16 %v9662, %v9658
    %v9891 = vpack.c.b16 %v9663, %v9659
    %v9892 = vpack.c.b16 %v9664, %v9660
    %v9893 = vpack.c.b16 %v9669, %v9665
    %v9894 = vpack.c.b16 %v9670, %v9666
    %v9895 = vpack.c.b16 %v9671, %v9667
    %v9896 = vpack.c.b16 %v9672, %v9668
    %v9897 = vpack.c.b16 %v9677, %v9673
    %v9898 = vpack.c.b16 %v9678, %v9674
    %v9899 = vpack.c.b16 %v9679, %v9675
    %v9900 = vpack.c.b16 %v9680, %v9676
    %v9901 = vpack.c.b16 %v9685, %v9681
    %v9902 = vpack.c.b16 %v9686, %v9682
    %v9903 = vpack.c.b16 %v9687, %v9683
    %v9904 = vpack.c.b16 %v9688, %v9684
    %v9905 = vpack.c.b16 %v9693, %v9689
    %v9906 = vpack.c.b16 %v9694, %v9690
    %v9907 = vpack.c.b16 %v9695, %v9691
    %v9908 = vpack.c.b16 %v9696, %v9692
    %v9909 = vpack.c.b16 %v9701, %v9697
    %v9910 = vpack.c.b16 %v9702, %v9698
    %v9911 = vpack.c.b16 %v9703, %v9699
    %v9912 = vpack.c.b16 %v9704, %v9700
    %v9913 = vpack.c.b16 %v9709, %v9705
    %v9914 = vpack.c.b16 %v9710, %v9706
    %v9915 = vpack.c.b16 %v9711, %v9707
    %v9916 = vpack.c.b16 %v9712, %v9708
    %v9917 = vpack.c.b16 %v9717, %v9713
    %v9918 = vpack.c.b16 %v9718, %v9714
    %v9919 = vpack.c.b16 %v9719, %v9715
    %v9920 = vpack.c.b16 %v9720, %v9716
    %v9921 = vpack.c.b16 %v9725, %v9721
    %v9922 = vpack.c.b16 %v9726, %v9722
    %v9923 = vpack.c.b16 %v9727, %v9723
    %v9924 = vpack.c.b16 %v9728, %v9724
    %v9925 = vpack.c.b16 %v9733, %v9729
    %v9926 = vpack.c.b16 %v9734, %v9730
    %v9927 = vpack.c.b16 %v9735, %v9731
    %v9928 = vpack.c.b16 %v9736, %v9732
    %v9929 = vpack.c.b16 %v9741, %v9737
    %v9930 = vpack.c.b16 %v9742, %v9738
    %v9931 = vpack.c.b16 %v9743, %v9739
    %v9932 = vpack.c.b16 %v9744, %v9740
    %v9933 = vpack.c.b16 %v9749, %v9745
    %v9934 = vpack.c.b16 %v9750, %v9746
    %v9935 = vpack.c.b16 %v9751, %v9747
    %v9936 = vpack.c.b16 %v9752, %v9748
    %v9937 = vpack.c.b16 %v9757, %v9753
    %v9938 = vpack.c.b16 %v9758, %v9754
    %v9939 = vpack.c.b16 %v9759, %v9755
    %v9940 = vpack.c.b16 %v9760, %v9756
    %v9941 = vpack.c.b16 %v9765, %v9761
    %v9942 = vpack.c.b16 %v9766, %v9762
    %v9943 = vpack.c.b16 %v9767, %v9763
    %v9944 = vpack.c.b16 %v9768, %v9764
    %v9945 = vpack.c.b16 %v9773, %v9769
    %v9946 = vpack.c.b16 %v9774, %v9770
    %v9947 = vpack.c.b16 %v9775, %v9771
    %v9948 = vpack.c.b16 %v9776, %v9772
    %v9949 = vpack.c.b16 %v9781, %v9777
    %v9950 = vpack.c.b16 %v9782, %v9778
    %v9951 = vpack.c.b16 %v9783, %v9779
    %v9952 = vpack.c.b16 %v9784, %v9780
    %v9953 = vpack.c.b16 %v9789, %v9785
    %v9954 = vpack.c.b16 %v9790, %v9786
    %v9955 = vpack.c.b16 %v9791, %v9787
    %v9956 = vpack.c.b16 %v9792, %v9788
    %v9957 = vpack.c.b16 %v9797, %v9793
    %v9958 = vpack.c.b16 %v9798, %v9794
    %v9959 = vpack.c.b16 %v9799, %v9795
    %v9960 = vpack.c.b16 %v9800, %v9796
    %v9961 = vpack.c.b16 %v9805, %v9801
    %v9962 = vpack.c.b16 %v9806, %v9802
    %v9963 = vpack.c.b16 %v9807, %v9803
    %v9964 = vpack.c.b16 %v9808, %v9804
    %v9965 = vpack.c.b16 %v9813, %v9809
    %v9966 = vpack.c.b16 %v9814, %v9810
    %v9967 = vpack.c.b16 %v9815, %v9811
    %v9968 = vpack.c.b16 %v9816, %v9812
    %v9969 = vpack.c.b16 %v9821, %v9817
    %v9970 = vpack.c.b16 %v9822, %v9818
    %v9971 = vpack.c.b16 %v9823, %v9819
    %v9972 = vpack.c.b16 %v9824, %v9820
    %v9973 = vpack.c.b16 %v9829, %v9825
    %v9974 = vpack.c.b16 %v9830, %v9826
    %v9975 = vpack.c.b16 %v9831, %v9827
    %v9976 = vpack.c.b16 %v9832, %v9828
    %v9977 = vpack.c.b16 %v9837, %v9833
    %v9978 = vpack.c.b16 %v9838, %v9834
    %v9979 = vpack.c.b16 %v9839, %v9835
    %v9980 = vpack.c.b16 %v9840, %v9836
    %v9981 = vpack.c.b16 %v9845, %v9841
    %v9982 = vpack.c.b16 %v9846, %v9842
    %v9983 = vpack.c.b16 %v9847, %v9843
    %v9984 = vpack.c.b16 %v9848, %v9844
    %v9985 = vpack.c.b16 %v9853, %v9849
    %v9986 = vpack.c.b16 %v9854, %v9850
    %v9987 = vpack.c.b16 %v9855, %v9851
    %v9988 = vpack.c.b16 %v9856, %v9852
    %v9989 = vpack.c.b16 %v9861, %v9857
    %v9990 = vpack.c.b16 %v9862, %v9858
    %v9991 = vpack.c.b16 %v9863, %v9859
    %v9992 = vpack.c.b16 %v9864, %v9860
    %10121 = vmatprep.subr.bf16.mxu0 %v9866
    %10122 = vmatpush1.bf16.msra.mxu0 %v9865
    %10123 = vmatprep.subr.bf16.mxu0 %v9870
    %10124 = vmatpush1.bf16.msra.mxu0 %v9869
    %10125 = vmatprep.subr.bf16.mxu0 %v9874
    %10126 = vmatpush1.bf16.msra.mxu0 %v9873
    %10127 = vmatprep.subr.bf16.mxu0 %v9878
    %10128 = vmatpush1.bf16.msra.mxu0 %v9877
    %10129 = vmatprep.subr.bf16.mxu0 %v9882
    %10130 = vmatpush1.bf16.msra.mxu0 %v9881
    %10131 = vmatprep.subr.bf16.mxu0 %v9886
    %10132 = vmatpush1.bf16.msra.mxu0 %v9885
    %10133 = vmatprep.subr.bf16.mxu0 %v9890
    %10134 = vmatpush1.bf16.msra.mxu0 %v9889
    %10135 = vmatprep.subr.bf16.mxu0 %v9894
    %10136 = vmatpush1.bf16.msra.mxu0 %v9893
    %10137 = vmatprep.subr.bf16.mxu0 %v9898
    %10138 = vmatpush1.bf16.msra.mxu0 %v9897
    %10139 = vmatprep.subr.bf16.mxu0 %v9902
    %10140 = vmatpush1.bf16.msra.mxu0 %v9901
    %10141 = vmatprep.subr.bf16.mxu0 %v9906
    %10142 = vmatpush1.bf16.msra.mxu0 %v9905
    %10143 = vmatprep.subr.bf16.mxu0 %v9910
    %10144 = vmatpush1.bf16.msra.mxu0 %v9909
    %10145 = vmatprep.subr.bf16.mxu0 %v9914
    %10146 = vmatpush1.bf16.msra.mxu0 %v9913
    %10147 = vmatprep.subr.bf16.mxu0 %v9918
    %10148 = vmatpush1.bf16.msra.mxu0 %v9917
    %10149 = vmatprep.subr.bf16.mxu0 %v9922
    %10150 = vmatpush1.bf16.msra.mxu0 %v9921
    %10151 = vmatprep.subr.bf16.mxu0 %v9926
    %10152 = vmatpush1.bf16.msra.mxu0 %v9925
    %10153 = vmatprep.mubr.bf16.mxu0 %v9322
    %10154 = vmatmul.mubr.bf16.gmra.mrb[0].mxu0 %v9321
    %v10155 = vpop.f32.mrb[0].mxu0
    %v10156 = vadd.f32 0.0, %v10155
    %v10157 = vpop.f32.mrb[0].mxu0
    %v10158 = vadd.f32 0.0, %v10157
    %v10159 = vpop.f32.mrb[0].mxu0
    %v10160 = vadd.f32 0.0, %v10159
    %v10161 = vpop.f32.mrb[0].mxu0
    %v10162 = vadd.f32 0.0, %v10161
    %10163 = vmatprep.mubr.bf16.mxu0 %v9326
    %10164 = vmatmul.mubr.bf16.gmra.mrb[0].mxu0 %v9325
    %v10165 = vpop.f32.mrb[0].mxu0
    %v10166 = vadd.f32 0.0, %v10165
    %v10167 = vpop.f32.mrb[0].mxu0
    %v10168 = vadd.f32 0.0, %v10167
    %v10169 = vpop.f32.mrb[0].mxu0
    %v10170 = vadd.f32 0.0, %v10169
    %v10171 = vpop.f32.mrb[0].mxu0
    %v10172 = vadd.f32 0.0, %v10171
    %10173 = vmatprep.mubr.bf16.mxu0 %v9330
    %10174 = vmatmul.mubr.bf16.gmra.mrb[0].mxu0 %v9329
    %v10175 = vpop.f32.mrb[0].mxu0
    %v10176 = vadd.f32 0.0, %v10175
    %v10177 = vpop.f32.mrb[0].mxu0
    %v10178 = vadd.f32 0.0, %v10177
    %v10179 = vpop.f32.mrb[0].mxu0
    %v10180 = vadd.f32 0.0, %v10179
    %v10181 = vpop.f32.mrb[0].mxu0
    %v10182 = vadd.f32 0.0, %v10181
    %10183 = vmatprep.mubr.bf16.mxu0 %v9334
    %10184 = vmatmul.mubr.bf16.gmra.mrb[0].mxu0 %v9333
    %v10185 = vpop.f32.mrb[0].mxu0
    %v10186 = vadd.f32 0.0, %v10185
    %v10187 = vpop.f32.mrb[0].mxu0
    %v10188 = vadd.f32 0.0, %v10187
    %v10189 = vpop.f32.mrb[0].mxu0
    %v10190 = vadd.f32 0.0, %v10189
    %v10191 = vpop.f32.mrb[0].mxu0
    %v10192 = vadd.f32 0.0, %v10191
    %10193 = vmatprep.mubr.bf16.mxu0 %v9338
    %10194 = vmatmul.mubr.bf16.gmra.mrb[0].mxu0 %v9337
    %v10195 = vpop.f32.mrb[0].mxu0
    %v10196 = vadd.f32 0.0, %v10195
    %v10197 = vpop.f32.mrb[0].mxu0
    %v10198 = vadd.f32 0.0, %v10197
    %v10199 = vpop.f32.mrb[0].mxu0
    %v10200 = vadd.f32 0.0, %v10199
    %v10201 = vpop.f32.mrb[0].mxu0
    %v10202 = vadd.f32 0.0, %v10201
    %10203 = vmatprep.mubr.bf16.mxu0 %v9342
    %10204 = vmatmul.mubr.bf16.gmra.mrb[0].mxu0 %v9341
    %v10205 = vpop.f32.mrb[0].mxu0
    %v10206 = vadd.f32 0.0, %v10205
    %v10207 = vpop.f32.mrb[0].mxu0
    %v10208 = vadd.f32 0.0, %v10207
    %v10209 = vpop.f32.mrb[0].mxu0
    %v10210 = vadd.f32 0.0, %v10209
    %v10211 = vpop.f32.mrb[0].mxu0
    %v10212 = vadd.f32 0.0, %v10211
    %10213 = vmatprep.mubr.bf16.mxu0 %v9346
    %10214 = vmatmul.mubr.bf16.gmra.mrb[0].mxu0 %v9345
    %v10215 = vpop.f32.mrb[0].mxu0
    %v10216 = vadd.f32 0.0, %v10215
    %v10217 = vpop.f32.mrb[0].mxu0
    %v10218 = vadd.f32 0.0, %v10217
    %v10219 = vpop.f32.mrb[0].mxu0
    %v10220 = vadd.f32 0.0, %v10219
    %v10221 = vpop.f32.mrb[0].mxu0
    %v10222 = vadd.f32 0.0, %v10221
    %10223 = vmatprep.mubr.bf16.mxu0 %v9350
    %10224 = vmatmul.mubr.bf16.gmra.mrb[0].mxu0 %v9349
    %v10225 = vpop.f32.mrb[0].mxu0
    %v10226 = vadd.f32 0.0, %v10225
    %v10227 = vpop.f32.mrb[0].mxu0
    %v10228 = vadd.f32 0.0, %v10227
    %v10229 = vpop.f32.mrb[0].mxu0
    %v10230 = vadd.f32 0.0, %v10229
    %v10231 = vpop.f32.mrb[0].mxu0
    %v10232 = vadd.f32 0.0, %v10231
    %10233 = vdwg.mxu0
    %10234 = vmatprep.subr.bf16.mxu0 %v9930
    %10235 = vmatpush1.bf16.msra.mxu0 %v9929
    %10236 = vmatprep.subr.bf16.mxu0 %v9934
    %10237 = vmatpush1.bf16.msra.mxu0 %v9933
    %10238 = vmatprep.subr.bf16.mxu0 %v9938
    %10239 = vmatpush1.bf16.msra.mxu0 %v9937
    %10240 = vmatprep.subr.bf16.mxu0 %v9942
    %10241 = vmatpush1.bf16.msra.mxu0 %v9941
    %10242 = vmatprep.subr.bf16.mxu0 %v9946
    %10243 = vmatpush1.bf16.msra.mxu0 %v9945
    %10244 = vmatprep.subr.bf16.mxu0 %v9950
    %10245 = vmatpush1.bf16.msra.mxu0 %v9949
    %10246 = vmatprep.subr.bf16.mxu0 %v9954
    %10247 = vmatpush1.bf16.msra.mxu0 %v9953
    %10248 = vmatprep.subr.bf16.mxu0 %v9958
    %10249 = vmatpush1.bf16.msra.mxu0 %v9957
    %10250 = vmatprep.subr.bf16.mxu0 %v9962
    %10251 = vmatpush1.bf16.msra.mxu0 %v9961
    %10252 = vmatprep.subr.bf16.mxu0 %v9966
    %10253 = vmatpush1.bf16.msra.mxu0 %v9965
    %10254 = vmatprep.subr.bf16.mxu0 %v9970
    %10255 = vmatpush1.bf16.msra.mxu0 %v9969
    %10256 = vmatprep.subr.bf16.mxu0 %v9974
    %10257 = vmatpush1.bf16.msra.mxu0 %v9973
    %10258 = vmatprep.subr.bf16.mxu0 %v9978
    %10259 = vmatpush1.bf16.msra.mxu0 %v9977
    %10260 = vmatprep.subr.bf16.mxu0 %v9982
    %10261 = vmatpush1.bf16.msra.mxu0 %v9981
    %10262 = vmatprep.subr.bf16.mxu0 %v9986
    %10263 = vmatpush1.bf16.msra.mxu0 %v9985
    %10264 = vmatprep.subr.bf16.mxu0 %v9990
    %10265 = vmatpush1.bf16.msra.mxu0 %v9989
    %10266 = vmatprep.mubr.bf16.mxu0 %v9324
    %10267 = vmatmul.mubr.bf16.gmra.mrb[0].mxu0 %v9323
    %v10268 = vpop.f32.mrb[0].mxu0
    %v10269 = vadd.f32 %v10156, %v10268
    %v10270 = vpop.f32.mrb[0].mxu0
    %v10271 = vadd.f32 %v10158, %v10270
    %v10272 = vpop.f32.mrb[0].mxu0
    %v10273 = vadd.f32 %v10160, %v10272
    %v10274 = vpop.f32.mrb[0].mxu0
    %v10275 = vadd.f32 %v10162, %v10274
    %10276 = vmatprep.mubr.bf16.mxu0 %v9328
    %10277 = vmatmul.mubr.bf16.gmra.mrb[0].mxu0 %v9327
    %v10278 = vpop.f32.mrb[0].mxu0
    %v10279 = vadd.f32 %v10166, %v10278
    %v10280 = vpop.f32.mrb[0].mxu0
    %v10281 = vadd.f32 %v10168, %v10280
    %v10282 = vpop.f32.mrb[0].mxu0
    %v10283 = vadd.f32 %v10170, %v10282
    %v10284 = vpop.f32.mrb[0].mxu0
    %v10285 = vadd.f32 %v10172, %v10284
    %10286 = vmatprep.mubr.bf16.mxu0 %v9332
    %10287 = vmatmul.mubr.bf16.gmra.mrb[0].mxu0 %v9331
    %v10288 = vpop.f32.mrb[0].mxu0
    %v10289 = vadd.f32 %v10176, %v10288
    %v10290 = vpop.f32.mrb[0].mxu0
    %v10291 = vadd.f32 %v10178, %v10290
    %v10292 = vpop.f32.mrb[0].mxu0
    %v10293 = vadd.f32 %v10180, %v10292
    %v10294 = vpop.f32.mrb[0].mxu0
    %v10295 = vadd.f32 %v10182, %v10294
    %10296 = vmatprep.mubr.bf16.mxu0 %v9336
    %10297 = vmatmul.mubr.bf16.gmra.mrb[0].mxu0 %v9335
    %v10298 = vpop.f32.mrb[0].mxu0
    %v10299 = vadd.f32 %v10186, %v10298
    %v10300 = vpop.f32.mrb[0].mxu0
    %v10301 = vadd.f32 %v10188, %v10300
    %v10302 = vpop.f32.mrb[0].mxu0
    %v10303 = vadd.f32 %v10190, %v10302
    %v10304 = vpop.f32.mrb[0].mxu0
    %v10305 = vadd.f32 %v10192, %v10304
    %10306 = vmatprep.mubr.bf16.mxu0 %v9340
    %10307 = vmatmul.mubr.bf16.gmra.mrb[0].mxu0 %v9339
    %v10308 = vpop.f32.mrb[0].mxu0
    %v10309 = vadd.f32 %v10196, %v10308
    %v10310 = vpop.f32.mrb[0].mxu0
    %v10311 = vadd.f32 %v10198, %v10310
    %v10312 = vpop.f32.mrb[0].mxu0
    %v10313 = vadd.f32 %v10200, %v10312
    %v10314 = vpop.f32.mrb[0].mxu0
    %v10315 = vadd.f32 %v10202, %v10314
    %10316 = vmatprep.mubr.bf16.mxu0 %v9344
    %10317 = vmatmul.mubr.bf16.gmra.mrb[0].mxu0 %v9343
    %v10318 = vpop.f32.mrb[0].mxu0
    %v10319 = vadd.f32 %v10206, %v10318
    %v10320 = vpop.f32.mrb[0].mxu0
    %v10321 = vadd.f32 %v10208, %v10320
    %v10322 = vpop.f32.mrb[0].mxu0
    %v10323 = vadd.f32 %v10210, %v10322
    %v10324 = vpop.f32.mrb[0].mxu0
    %v10325 = vadd.f32 %v10212, %v10324
    %10326 = vmatprep.mubr.bf16.mxu0 %v9348
    %10327 = vmatmul.mubr.bf16.gmra.mrb[0].mxu0 %v9347
    %v10328 = vpop.f32.mrb[0].mxu0
    %v10329 = vadd.f32 %v10216, %v10328
    %v10330 = vpop.f32.mrb[0].mxu0
    %v10331 = vadd.f32 %v10218, %v10330
    %v10332 = vpop.f32.mrb[0].mxu0
    %v10333 = vadd.f32 %v10220, %v10332
    %v10334 = vpop.f32.mrb[0].mxu0
    %v10335 = vadd.f32 %v10222, %v10334
    %10336 = vmatprep.mubr.bf16.mxu0 %v9352
    %10337 = vmatmul.mubr.bf16.gmra.mrb[0].mxu0 %v9351
    %v10338 = vpop.f32.mrb[0].mxu0
    %v10339 = vadd.f32 %v10226, %v10338
    %v10340 = vpop.f32.mrb[0].mxu0
    %v10341 = vadd.f32 %v10228, %v10340
    %v10342 = vpop.f32.mrb[0].mxu0
    %v10343 = vadd.f32 %v10230, %v10342
    %v10344 = vpop.f32.mrb[0].mxu0
    %v10345 = vadd.f32 %v10232, %v10344
    %10346 = vdwg.mxu0
    %10347 = vmatprep.subr.bf16.mxu0 %v9868
    %10348 = vmatpush1.bf16.msra.mxu0 %v9867
    %10349 = vmatprep.subr.bf16.mxu0 %v9872
    %10350 = vmatpush1.bf16.msra.mxu0 %v9871
    %10351 = vmatprep.subr.bf16.mxu0 %v9876
    %10352 = vmatpush1.bf16.msra.mxu0 %v9875
    %10353 = vmatprep.subr.bf16.mxu0 %v9880
    %10354 = vmatpush1.bf16.msra.mxu0 %v9879
    %10355 = vmatprep.subr.bf16.mxu0 %v9884
    %10356 = vmatpush1.bf16.msra.mxu0 %v9883
    %10357 = vmatprep.subr.bf16.mxu0 %v9888
    %10358 = vmatpush1.bf16.msra.mxu0 %v9887
    %10359 = vmatprep.subr.bf16.mxu0 %v9892
    %10360 = vmatpush1.bf16.msra.mxu0 %v9891
    %10361 = vmatprep.subr.bf16.mxu0 %v9896
    %10362 = vmatpush1.bf16.msra.mxu0 %v9895
    %10363 = vmatprep.subr.bf16.mxu0 %v9900
    %10364 = vmatpush1.bf16.msra.mxu0 %v9899
    %10365 = vmatprep.subr.bf16.mxu0 %v9904
    %10366 = vmatpush1.bf16.msra.mxu0 %v9903
    %10367 = vmatprep.subr.bf16.mxu0 %v9908
    %10368 = vmatpush1.bf16.msra.mxu0 %v9907
    %10369 = vmatprep.subr.bf16.mxu0 %v9912
    %10370 = vmatpush1.bf16.msra.mxu0 %v9911
    %10371 = vmatprep.subr.bf16.mxu0 %v9916
    %10372 = vmatpush1.bf16.msra.mxu0 %v9915
    %10373 = vmatprep.subr.bf16.mxu0 %v9920
    %10374 = vmatpush1.bf16.msra.mxu0 %v9919
    %10375 = vmatprep.subr.bf16.mxu0 %v9924
    %10376 = vmatpush1.bf16.msra.mxu0 %v9923
    %10377 = vmatprep.subr.bf16.mxu0 %v9928
    %10378 = vmatpush1.bf16.msra.mxu0 %v9927
    %10379 = vmatprep.mubr.bf16.mxu0 %v9322
    %10380 = vmatmul.mubr.bf16.gmra.mrb[0].mxu0 %v9321
    %v10381 = vpop.f32.mrb[0].mxu0
    %v10382 = vadd.f32 0.0, %v10381
    %v10383 = vpop.f32.mrb[0].mxu0
    %v10384 = vadd.f32 0.0, %v10383
    %v10385 = vpop.f32.mrb[0].mxu0
    %v10386 = vadd.f32 0.0, %v10385
    %v10387 = vpop.f32.mrb[0].mxu0
    %v10388 = vadd.f32 0.0, %v10387
    %10389 = vmatprep.mubr.bf16.mxu0 %v9326
    %10390 = vmatmul.mubr.bf16.gmra.mrb[0].mxu0 %v9325
    %v10391 = vpop.f32.mrb[0].mxu0
    %v10392 = vadd.f32 0.0, %v10391
    %v10393 = vpop.f32.mrb[0].mxu0
    %v10394 = vadd.f32 0.0, %v10393
    %v10395 = vpop.f32.mrb[0].mxu0
    %v10396 = vadd.f32 0.0, %v10395
    %v10397 = vpop.f32.mrb[0].mxu0
    %v10398 = vadd.f32 0.0, %v10397
    %10399 = vmatprep.mubr.bf16.mxu0 %v9330
    %10400 = vmatmul.mubr.bf16.gmra.mrb[0].mxu0 %v9329
    %v10401 = vpop.f32.mrb[0].mxu0
    %v10402 = vadd.f32 0.0, %v10401
    %v10403 = vpop.f32.mrb[0].mxu0
    %v10404 = vadd.f32 0.0, %v10403
    %v10405 = vpop.f32.mrb[0].mxu0
    %v10406 = vadd.f32 0.0, %v10405
    %v10407 = vpop.f32.mrb[0].mxu0
    %v10408 = vadd.f32 0.0, %v10407
    %10409 = vmatprep.mubr.bf16.mxu0 %v9334
    %10410 = vmatmul.mubr.bf16.gmra.mrb[0].mxu0 %v9333
    %v10411 = vpop.f32.mrb[0].mxu0
    %v10412 = vadd.f32 0.0, %v10411
    %v10413 = vpop.f32.mrb[0].mxu0
    %v10414 = vadd.f32 0.0, %v10413
    %v10415 = vpop.f32.mrb[0].mxu0
    %v10416 = vadd.f32 0.0, %v10415
    %v10417 = vpop.f32.mrb[0].mxu0
    %v10418 = vadd.f32 0.0, %v10417
    %10419 = vmatprep.mubr.bf16.mxu0 %v9338
    %10420 = vmatmul.mubr.bf16.gmra.mrb[0].mxu0 %v9337
    %v10421 = vpop.f32.mrb[0].mxu0
    %v10422 = vadd.f32 0.0, %v10421
    %v10423 = vpop.f32.mrb[0].mxu0
    %v10424 = vadd.f32 0.0, %v10423
    %v10425 = vpop.f32.mrb[0].mxu0
    %v10426 = vadd.f32 0.0, %v10425
    %v10427 = vpop.f32.mrb[0].mxu0
    %v10428 = vadd.f32 0.0, %v10427
    %10429 = vmatprep.mubr.bf16.mxu0 %v9342
    %10430 = vmatmul.mubr.bf16.gmra.mrb[0].mxu0 %v9341
    %v10431 = vpop.f32.mrb[0].mxu0
    %v10432 = vadd.f32 0.0, %v10431
    %v10433 = vpop.f32.mrb[0].mxu0
    %v10434 = vadd.f32 0.0, %v10433
    %v10435 = vpop.f32.mrb[0].mxu0
    %v10436 = vadd.f32 0.0, %v10435
    %v10437 = vpop.f32.mrb[0].mxu0
    %v10438 = vadd.f32 0.0, %v10437
    %10439 = vmatprep.mubr.bf16.mxu0 %v9346
    %10440 = vmatmul.mubr.bf16.gmra.mrb[0].mxu0 %v9345
    %v10441 = vpop.f32.mrb[0].mxu0
    %v10442 = vadd.f32 0.0, %v10441
    %v10443 = vpop.f32.mrb[0].mxu0
    %v10444 = vadd.f32 0.0, %v10443
    %v10445 = vpop.f32.mrb[0].mxu0
    %v10446 = vadd.f32 0.0, %v10445
    %v10447 = vpop.f32.mrb[0].mxu0
    %v10448 = vadd.f32 0.0, %v10447
    %10449 = vmatprep.mubr.bf16.mxu0 %v9350
    %10450 = vmatmul.mubr.bf16.gmra.mrb[0].mxu0 %v9349
    %v10451 = vpop.f32.mrb[0].mxu0
    %v10452 = vadd.f32 0.0, %v10451
    %v10453 = vpop.f32.mrb[0].mxu0
    %v10454 = vadd.f32 0.0, %v10453
    %v10455 = vpop.f32.mrb[0].mxu0
    %v10456 = vadd.f32 0.0, %v10455
    %v10457 = vpop.f32.mrb[0].mxu0
    %v10458 = vadd.f32 0.0, %v10457
    %10459 = vdwg.mxu0
    %10460 = vmatprep.subr.bf16.mxu0 %v9932
    %10461 = vmatpush1.bf16.msra.mxu0 %v9931
    %10462 = vmatprep.subr.bf16.mxu0 %v9936
    %10463 = vmatpush1.bf16.msra.mxu0 %v9935
    %10464 = vmatprep.subr.bf16.mxu0 %v9940
    %10465 = vmatpush1.bf16.msra.mxu0 %v9939
    %10466 = vmatprep.subr.bf16.mxu0 %v9944
    %10467 = vmatpush1.bf16.msra.mxu0 %v9943
    %10468 = vmatprep.subr.bf16.mxu0 %v9948
    %10469 = vmatpush1.bf16.msra.mxu0 %v9947
    %10470 = vmatprep.subr.bf16.mxu0 %v9952
    %10471 = vmatpush1.bf16.msra.mxu0 %v9951
    %10472 = vmatprep.subr.bf16.mxu0 %v9956
    %10473 = vmatpush1.bf16.msra.mxu0 %v9955
    %10474 = vmatprep.subr.bf16.mxu0 %v9960
    %10475 = vmatpush1.bf16.msra.mxu0 %v9959
    %10476 = vmatprep.subr.bf16.mxu0 %v9964
    %10477 = vmatpush1.bf16.msra.mxu0 %v9963
    %10478 = vmatprep.subr.bf16.mxu0 %v9968
    %10479 = vmatpush1.bf16.msra.mxu0 %v9967
    %10480 = vmatprep.subr.bf16.mxu0 %v9972
    %10481 = vmatpush1.bf16.msra.mxu0 %v9971
    %10482 = vmatprep.subr.bf16.mxu0 %v9976
    %10483 = vmatpush1.bf16.msra.mxu0 %v9975
    %10484 = vmatprep.subr.bf16.mxu0 %v9980
    %10485 = vmatpush1.bf16.msra.mxu0 %v9979
    %10486 = vmatprep.subr.bf16.mxu0 %v9984
    %10487 = vmatpush1.bf16.msra.mxu0 %v9983
    %10488 = vmatprep.subr.bf16.mxu0 %v9988
    %10489 = vmatpush1.bf16.msra.mxu0 %v9987
    %10490 = vmatprep.subr.bf16.mxu0 %v9992
    %10491 = vmatpush1.bf16.msra.mxu0 %v9991
    %10492 = vmatprep.mubr.bf16.mxu0 %v9324
    %10493 = vmatmul.mubr.bf16.gmra.mrb[0].mxu0 %v9323
    %v10494 = vpop.f32.mrb[0].mxu0
    %v10495 = vadd.f32 %v10382, %v10494
    %v10496 = vpop.f32.mrb[0].mxu0
    %v10497 = vadd.f32 %v10384, %v10496
    %v10498 = vpop.f32.mrb[0].mxu0
    %v10499 = vadd.f32 %v10386, %v10498
    %v10500 = vpop.f32.mrb[0].mxu0
    %v10501 = vadd.f32 %v10388, %v10500
    %10502 = vmatprep.mubr.bf16.mxu0 %v9328
    %10503 = vmatmul.mubr.bf16.gmra.mrb[0].mxu0 %v9327
    %v10504 = vpop.f32.mrb[0].mxu0
    %v10505 = vadd.f32 %v10392, %v10504
    %v10506 = vpop.f32.mrb[0].mxu0
    %v10507 = vadd.f32 %v10394, %v10506
    %v10508 = vpop.f32.mrb[0].mxu0
    %v10509 = vadd.f32 %v10396, %v10508
    %v10510 = vpop.f32.mrb[0].mxu0
    %v10511 = vadd.f32 %v10398, %v10510
    %10512 = vmatprep.mubr.bf16.mxu0 %v9332
    %10513 = vmatmul.mubr.bf16.gmra.mrb[0].mxu0 %v9331
    %v10514 = vpop.f32.mrb[0].mxu0
    %v10515 = vadd.f32 %v10402, %v10514
    %v10516 = vpop.f32.mrb[0].mxu0
    %v10517 = vadd.f32 %v10404, %v10516
    %v10518 = vpop.f32.mrb[0].mxu0
    %v10519 = vadd.f32 %v10406, %v10518
    %v10520 = vpop.f32.mrb[0].mxu0
    %v10521 = vadd.f32 %v10408, %v10520
    %10522 = vmatprep.mubr.bf16.mxu0 %v9336
    %10523 = vmatmul.mubr.bf16.gmra.mrb[0].mxu0 %v9335
    %v10524 = vpop.f32.mrb[0].mxu0
    %v10525 = vadd.f32 %v10412, %v10524
    %v10526 = vpop.f32.mrb[0].mxu0
    %v10527 = vadd.f32 %v10414, %v10526
    %v10528 = vpop.f32.mrb[0].mxu0
    %v10529 = vadd.f32 %v10416, %v10528
    %v10530 = vpop.f32.mrb[0].mxu0
    %v10531 = vadd.f32 %v10418, %v10530
    %10532 = vmatprep.mubr.bf16.mxu0 %v9340
    %10533 = vmatmul.mubr.bf16.gmra.mrb[0].mxu0 %v9339
    %v10534 = vpop.f32.mrb[0].mxu0
    %v10535 = vadd.f32 %v10422, %v10534
    %v10536 = vpop.f32.mrb[0].mxu0
    %v10537 = vadd.f32 %v10424, %v10536
    %v10538 = vpop.f32.mrb[0].mxu0
    %v10539 = vadd.f32 %v10426, %v10538
    %v10540 = vpop.f32.mrb[0].mxu0
    %v10541 = vadd.f32 %v10428, %v10540
    %10542 = vmatprep.mubr.bf16.mxu0 %v9344
    %10543 = vmatmul.mubr.bf16.gmra.mrb[0].mxu0 %v9343
    %v10544 = vpop.f32.mrb[0].mxu0
    %v10545 = vadd.f32 %v10432, %v10544
    %v10546 = vpop.f32.mrb[0].mxu0
    %v10547 = vadd.f32 %v10434, %v10546
    %v10548 = vpop.f32.mrb[0].mxu0
    %v10549 = vadd.f32 %v10436, %v10548
    %v10550 = vpop.f32.mrb[0].mxu0
    %v10551 = vadd.f32 %v10438, %v10550
    %10552 = vmatprep.mubr.bf16.mxu0 %v9348
    %10553 = vmatmul.mubr.bf16.gmra.mrb[0].mxu0 %v9347
    %v10554 = vpop.f32.mrb[0].mxu0
    %v10555 = vadd.f32 %v10442, %v10554
    %v10556 = vpop.f32.mrb[0].mxu0
    %v10557 = vadd.f32 %v10444, %v10556
    %v10558 = vpop.f32.mrb[0].mxu0
    %v10559 = vadd.f32 %v10446, %v10558
    %v10560 = vpop.f32.mrb[0].mxu0
    %v10561 = vadd.f32 %v10448, %v10560
    %10562 = vmatprep.mubr.bf16.mxu0 %v9352
    %10563 = vmatmul.mubr.bf16.gmra.mrb[0].mxu0 %v9351
    %v10564 = vpop.f32.mrb[0].mxu0
    %v10565 = vadd.f32 %v10452, %v10564
    %v10566 = vpop.f32.mrb[0].mxu0
    %v10567 = vadd.f32 %v10454, %v10566
    %v10568 = vpop.f32.mrb[0].mxu0
    %v10569 = vadd.f32 %v10456, %v10568
    %v10570 = vpop.f32.mrb[0].mxu0
    %v10571 = vadd.f32 %v10458, %v10570
    %10572 = vdwg.mxu0
    %v10573 = vadd.f32 %v7951, %v10269
    %v10574 = vadd.f32 %v7952, %v10271
    %v10575 = vadd.f32 %v7953, %v10495
    %v10576 = vadd.f32 %v7954, %v10497
    %v10577 = vadd.f32 %v7955, %v10273
    %v10578 = vadd.f32 %v7956, %v10275
    %v10579 = vadd.f32 %v7957, %v10499
    %v10580 = vadd.f32 %v7958, %v10501
    %v10581 = vadd.f32 %v7959, %v10279
    %v10582 = vadd.f32 %v7960, %v10281
    %v10583 = vadd.f32 %v7961, %v10505
    %v10584 = vadd.f32 %v7962, %v10507
    %v10585 = vadd.f32 %v7963, %v10283
    %v10586 = vadd.f32 %v7964, %v10285
    %v10587 = vadd.f32 %v7965, %v10509
    %v10588 = vadd.f32 %v7966, %v10511
    %v10589 = vadd.f32 %v7967, %v10289
    %v10590 = vadd.f32 %v7968, %v10291
    %v10591 = vadd.f32 %v7969, %v10515
    %v10592 = vadd.f32 %v7970, %v10517
    %v10593 = vadd.f32 %v7971, %v10293
    %v10594 = vadd.f32 %v7972, %v10295
    %v10595 = vadd.f32 %v7973, %v10519
    %v10596 = vadd.f32 %v7974, %v10521
    %v10597 = vadd.f32 %v7975, %v10299
    %v10598 = vadd.f32 %v7976, %v10301
    %v10599 = vadd.f32 %v7977, %v10525
    %v10600 = vadd.f32 %v7978, %v10527
    %v10601 = vadd.f32 %v7979, %v10303
    %v10602 = vadd.f32 %v7980, %v10305
    %v10603 = vadd.f32 %v7981, %v10529
    %v10604 = vadd.f32 %v7982, %v10531
    %v10605 = vadd.f32 %v7983, %v10309
    %v10606 = vadd.f32 %v7984, %v10311
    %v10607 = vadd.f32 %v7985, %v10535
    %v10608 = vadd.f32 %v7986, %v10537
    %v10609 = vadd.f32 %v7987, %v10313
    %v10610 = vadd.f32 %v7988, %v10315
    %v10611 = vadd.f32 %v7989, %v10539
    %v10612 = vadd.f32 %v7990, %v10541
    %v10613 = vadd.f32 %v7991, %v10319
    %v10614 = vadd.f32 %v7992, %v10321
    %v10615 = vadd.f32 %v7993, %v10545
    %v10616 = vadd.f32 %v7994, %v10547
    %v10617 = vadd.f32 %v7995, %v10323
    %v10618 = vadd.f32 %v7996, %v10325
    %v10619 = vadd.f32 %v7997, %v10549
    %v10620 = vadd.f32 %v7998, %v10551
    %v10621 = vadd.f32 %v7999, %v10329
    %v10622 = vadd.f32 %v8000, %v10331
    %v10623 = vadd.f32 %v8001, %v10555
    %v10624 = vadd.f32 %v8002, %v10557
    %v10625 = vadd.f32 %v8003, %v10333
    %v10626 = vadd.f32 %v8004, %v10335
    %v10627 = vadd.f32 %v8005, %v10559
    %v10628 = vadd.f32 %v8006, %v10561
    %v10629 = vadd.f32 %v8007, %v10339
    %v10630 = vadd.f32 %v8008, %v10341
    %v10631 = vadd.f32 %v8009, %v10565
    %v10632 = vadd.f32 %v8010, %v10567
    %v10633 = vadd.f32 %v8011, %v10343
    %v10634 = vadd.f32 %v8012, %v10345
    %v10635 = vadd.f32 %v8013, %v10569
    %v10636 = vadd.f32 %v8014, %v10571
    %v10637 = vld [vmem:[#allocation10] sm:$0xf]
    %v10639 = vlaneseq
    %v10640 = vshrl.u32 %v10639, 7
    %v10641 = vsub.s32 0, %v10640
    %v10642 = vrot.slane %v10637, %v10641
    %v10643 = vlaneseq
    %v10644 = vshrl.u32 %v10643, 7
    %v10645 = vsub.s32 1, %v10644
    %v10646 = vrot.slane %v10637, %v10645
    %v10647 = vlaneseq
    %v10648 = vshrl.u32 %v10647, 7
    %v10649 = vsub.s32 2, %v10648
    %v10650 = vrot.slane %v10637, %v10649
    %v10651 = vlaneseq
    %v10652 = vshrl.u32 %v10651, 7
    %v10653 = vsub.s32 3, %v10652
    %v10654 = vrot.slane %v10637, %v10653
    %v10659 = vadd.f32 %v10573, %v10642
    %v10660 = vadd.f32 %v10574, %v10646
    %v10661 = vadd.f32 %v10575, %v10650
    %v10662 = vadd.f32 %v10576, %v10654
    %v10663 = vadd.f32 %v10577, %v10642
    %v10664 = vadd.f32 %v10578, %v10646
    %v10665 = vadd.f32 %v10579, %v10650
    %v10666 = vadd.f32 %v10580, %v10654
    %v10667 = vadd.f32 %v10581, %v10642
    %v10668 = vadd.f32 %v10582, %v10646
    %v10669 = vadd.f32 %v10583, %v10650
    %v10670 = vadd.f32 %v10584, %v10654
    %v10671 = vadd.f32 %v10585, %v10642
    %v10672 = vadd.f32 %v10586, %v10646
    %v10673 = vadd.f32 %v10587, %v10650
    %v10674 = vadd.f32 %v10588, %v10654
    %v10675 = vadd.f32 %v10589, %v10642
    %v10676 = vadd.f32 %v10590, %v10646
    %v10677 = vadd.f32 %v10591, %v10650
    %v10678 = vadd.f32 %v10592, %v10654
    %v10679 = vadd.f32 %v10593, %v10642
    %v10680 = vadd.f32 %v10594, %v10646
    %v10681 = vadd.f32 %v10595, %v10650
    %v10682 = vadd.f32 %v10596, %v10654
    %v10683 = vadd.f32 %v10597, %v10642
    %v10684 = vadd.f32 %v10598, %v10646
    %v10685 = vadd.f32 %v10599, %v10650
    %v10686 = vadd.f32 %v10600, %v10654
    %v10687 = vadd.f32 %v10601, %v10642
    %v10688 = vadd.f32 %v10602, %v10646
    %v10689 = vadd.f32 %v10603, %v10650
    %v10690 = vadd.f32 %v10604, %v10654
    %v10691 = vadd.f32 %v10605, %v10642
    %v10692 = vadd.f32 %v10606, %v10646
    %v10693 = vadd.f32 %v10607, %v10650
    %v10694 = vadd.f32 %v10608, %v10654
    %v10695 = vadd.f32 %v10609, %v10642
    %v10696 = vadd.f32 %v10610, %v10646
    %v10697 = vadd.f32 %v10611, %v10650
    %v10698 = vadd.f32 %v10612, %v10654
    %v10699 = vadd.f32 %v10613, %v10642
    %v10700 = vadd.f32 %v10614, %v10646
    %v10701 = vadd.f32 %v10615, %v10650
    %v10702 = vadd.f32 %v10616, %v10654
    %v10703 = vadd.f32 %v10617, %v10642
    %v10704 = vadd.f32 %v10618, %v10646
    %v10705 = vadd.f32 %v10619, %v10650
    %v10706 = vadd.f32 %v10620, %v10654
    %v10707 = vadd.f32 %v10621, %v10642
    %v10708 = vadd.f32 %v10622, %v10646
    %v10709 = vadd.f32 %v10623, %v10650
    %v10710 = vadd.f32 %v10624, %v10654
    %v10711 = vadd.f32 %v10625, %v10642
    %v10712 = vadd.f32 %v10626, %v10646
    %v10713 = vadd.f32 %v10627, %v10650
    %v10714 = vadd.f32 %v10628, %v10654
    %v10715 = vadd.f32 %v10629, %v10642
    %v10716 = vadd.f32 %v10630, %v10646
    %v10717 = vadd.f32 %v10631, %v10650
    %v10718 = vadd.f32 %v10632, %v10654
    %v10719 = vadd.f32 %v10633, %v10642
    %v10720 = vadd.f32 %v10634, %v10646
    %v10721 = vadd.f32 %v10635, %v10650
    %v10722 = vadd.f32 %v10636, %v10654
    %10723 = vst [vmem:[#allocation11] sm:$0xff] %v10659
    %10724 = vst [vmem:[#allocation11 + $0x8] sm:$0xff] %v10660
    %10725 = vst [vmem:[#allocation11 + $0x10] sm:$0xff] %v10661
    %10726 = vst [vmem:[#allocation11 + $0x18] sm:$0xff] %v10662
    %10727 = vst [vmem:[#allocation11 + $0x20] sm:$0xff] %v10663
    %10728 = vst [vmem:[#allocation11 + $0x28] sm:$0xff] %v10664
    %10729 = vst [vmem:[#allocation11 + $0x30] sm:$0xff] %v10665
    %10730 = vst [vmem:[#allocation11 + $0x38] sm:$0xff] %v10666
    %10731 = vst [vmem:[#allocation11 + $0x40] sm:$0xff] %v10667
    %10732 = vst [vmem:[#allocation11 + $0x48] sm:$0xff] %v10668
    %10733 = vst [vmem:[#allocation11 + $0x50] sm:$0xff] %v10669
    %10734 = vst [vmem:[#allocation11 + $0x58] sm:$0xff] %v10670
    %10735 = vst [vmem:[#allocation11 + $0x60] sm:$0xff] %v10671
    %10736 = vst [vmem:[#allocation11 + $0x68] sm:$0xff] %v10672
    %10737 = vst [vmem:[#allocation11 + $0x70] sm:$0xff] %v10673
    %10738 = vst [vmem:[#allocation11 + $0x78] sm:$0xff] %v10674
    %10739 = vst [vmem:[#allocation11 + $0x80] sm:$0xff] %v10675
    %10740 = vst [vmem:[#allocation11 + $0x88] sm:$0xff] %v10676
    %10741 = vst [vmem:[#allocation11 + $0x90] sm:$0xff] %v10677
    %10742 = vst [vmem:[#allocation11 + $0x98] sm:$0xff] %v10678
    %10743 = vst [vmem:[#allocation11 + $0xa0] sm:$0xff] %v10679
    %10744 = vst [vmem:[#allocation11 + $0xa8] sm:$0xff] %v10680
    %10745 = vst [vmem:[#allocation11 + $0xb0] sm:$0xff] %v10681
    %10746 = vst [vmem:[#allocation11 + $0xb8] sm:$0xff] %v10682
    %10747 = vst [vmem:[#allocation11 + $0xc0] sm:$0xff] %v10683
    %10748 = vst [vmem:[#allocation11 + $0xc8] sm:$0xff] %v10684
    %10749 = vst [vmem:[#allocation11 + $0xd0] sm:$0xff] %v10685
    %10750 = vst [vmem:[#allocation11 + $0xd8] sm:$0xff] %v10686
    %10751 = vst [vmem:[#allocation11 + $0xe0] sm:$0xff] %v10687
    %10752 = vst [vmem:[#allocation11 + $0xe8] sm:$0xff] %v10688
    %10753 = vst [vmem:[#allocation11 + $0xf0] sm:$0xff] %v10689
    %10754 = vst [vmem:[#allocation11 + $0xf8] sm:$0xff] %v10690
    %10755 = vst [vmem:[#allocation11 + $0x100] sm:$0xff] %v10691
    %10756 = vst [vmem:[#allocation11 + $0x108] sm:$0xff] %v10692
    %10757 = vst [vmem:[#allocation11 + $0x110] sm:$0xff] %v10693
    %10758 = vst [vmem:[#allocation11 + $0x118] sm:$0xff] %v10694
    %10759 = vst [vmem:[#allocation11 + $0x120] sm:$0xff] %v10695
    %10760 = vst [vmem:[#allocation11 + $0x128] sm:$0xff] %v10696
    %10761 = vst [vmem:[#allocation11 + $0x130] sm:$0xff] %v10697
    %10762 = vst [vmem:[#allocation11 + $0x138] sm:$0xff] %v10698
    %10763 = vst [vmem:[#allocation11 + $0x140] sm:$0xff] %v10699
    %10764 = vst [vmem:[#allocation11 + $0x148] sm:$0xff] %v10700
    %10765 = vst [vmem:[#allocation11 + $0x150] sm:$0xff] %v10701
    %10766 = vst [vmem:[#allocation11 + $0x158] sm:$0xff] %v10702
    %10767 = vst [vmem:[#allocation11 + $0x160] sm:$0xff] %v10703
    %10768 = vst [vmem:[#allocation11 + $0x168] sm:$0xff] %v10704
    %10769 = vst [vmem:[#allocation11 + $0x170] sm:$0xff] %v10705
    %10770 = vst [vmem:[#allocation11 + $0x178] sm:$0xff] %v10706
    %10771 = vst [vmem:[#allocation11 + $0x180] sm:$0xff] %v10707
    %10772 = vst [vmem:[#allocation11 + $0x188] sm:$0xff] %v10708
    %10773 = vst [vmem:[#allocation11 + $0x190] sm:$0xff] %v10709
    %10774 = vst [vmem:[#allocation11 + $0x198] sm:$0xff] %v10710
    %10775 = vst [vmem:[#allocation11 + $0x1a0] sm:$0xff] %v10711
    %10776 = vst [vmem:[#allocation11 + $0x1a8] sm:$0xff] %v10712
    %10777 = vst [vmem:[#allocation11 + $0x1b0] sm:$0xff] %v10713
    %10778 = vst [vmem:[#allocation11 + $0x1b8] sm:$0xff] %v10714
    %10779 = vst [vmem:[#allocation11 + $0x1c0] sm:$0xff] %v10715
    %10780 = vst [vmem:[#allocation11 + $0x1c8] sm:$0xff] %v10716
    %10781 = vst [vmem:[#allocation11 + $0x1d0] sm:$0xff] %v10717
    %10782 = vst [vmem:[#allocation11 + $0x1d8] sm:$0xff] %v10718
    %10783 = vst [vmem:[#allocation11 + $0x1e0] sm:$0xff] %v10719
    %10784 = vst [vmem:[#allocation11 + $0x1e8] sm:$0xff] %v10720
    %10785 = vst [vmem:[#allocation11 + $0x1f0] sm:$0xff] %v10721
    %10786 = vst [vmem:[#allocation11 + $0x1f8] sm:$0xff] %v10722
    // Predicated region
    $region42: #{tpu_custom_call.1} parent=1 // pred_check
      _
    $region43: #{tpu_custom_call.1} parent=1 // pred_check_branch
      %10788 = sbr.rel (0) target = $region45
    $region44: #{tpu_custom_call.1} parent=1 // pred_region
      %s10790 = ssub.s32 8192, 8192
      %10791 = vsyncadd [#allocation4], %s10790
      %s10792 = sshll.u32 [#allocation11], 4
      %s10793 = int_to_ptr.vmem [resolvable:$true] %s10792
      %10798 = dma.vmem_to_hbm [thread:$0]  %s10793, 8192, %s5, [#allocation4], 512, 512, 32
    $region45: #{tpu_custom_call.1} parent=1 // pred_fallthru
      _
    // Predicated region
    $region46: #{tpu_custom_call.1} parent=1 // pred_check
      _
    $region47: #{tpu_custom_call.1} parent=1 // pred_check_branch
      %10800 = sbr.rel (0) target = $region49
    $region48: #{tpu_custom_call.1} parent=1 // pred_region
      %10801 = dma.done [#allocation4], 8192
    $region49: #{tpu_custom_call.1} parent=1 // pred_fallthru
      _
    %10802 = vsyncpa [#allocation3], 1
    %10803 = vsyncpa [#allocation6], 1
    %10804 = vsyncpa [#allocation9], 1
    %10805 = vsyncpa [#allocation4], 1

</llo_original>
